<compile_context>
chip_gen: v6e
topology: v6e:2x2x1
jax: 0.10.0
libtpu: 0.0.40
codegen_flags: <defaults>
</compile_context>

<pallas_src>
import functools

import jax
import jax.numpy as jnp
from jax.experimental import pallas as pl
from jax.experimental.pallas import tpu as pltpu


# ------------------------------- geometry ----------------------------------

def _geometry(H, W):
    """Padded-pixel geometry shared by wrapper and parameter prep."""
    Hp = H + 2
    Wp = W + 2
    while (Hp * Wp) % 8 != 0:       # P multiple of 8 -> aligned interior writes
        Wp += 1
    P = Hp * Wp
    apron = -(-(Wp + 1) // 8) * 8   # max |row shift| of a 3x3 tap, rounded to 8
    rows = P + 2 * apron
    shifts = tuple(dy * Wp + dx for dy in (-1, 0, 1) for dx in (-1, 0, 1))
    return Hp, Wp, P, apron, rows, shifts


def _pick_k_chunk(F, target=4096):
    """Largest multiple of 128 <= target that divides F (fc1 K-chunk size)."""
    assert F % 128 == 0
    best = 128
    k = 128
    while k <= min(F, target):
        if F % k == 0:
            best = k
        k += 128
    return best


# ----------------------------- Pallas kernels ------------------------------

def conv_stack_kernel(x_ref, w1_ref, b1_ref, w2_ref, b2_ref, w3_ref, b3_ref,
                      mask_ref, o_ref, abuf2, abuf3, *, shifts, apron):
    """Fused conv1->conv2->conv3 (3x3 'same', bias, ReLU) for ONE image.

    x_ref    : (rows, C0) bf16; apron rows and image-border rows are zero.
    wK_ref   : (9*Cin, Cout) bf16 tap-slab weights; bK_ref: (1, Cout) f32.
    mask_ref : (P, 1) f32; 1.0 on interior pixels, 0.0 on the padded border.
    o_ref    : (P, 64) bf16 conv3 output (border rows are relu(b3), not used
               downstream: fc1's prepped weight has zero rows there).
    abufK    : (rows, Cin) bf16 apron buffers for the conv2/conv3 inputs.
    """
    P = o_ref.shape[0]
    mask = mask_ref[...]                                     # (P, 1) f32

    def conv(src_ref, w_ref, b_ref):
        # 9 statically-shifted row slices, concatenated in registers into one
        # lane-dense (P, 9*Cin) slab -> a single K=9*Cin MXU matmul.
        taps = [src_ref[apron + s: apron + s + P, :] for s in shifts]
        slab = jnp.concatenate(taps, axis=-1)
        acc = jnp.dot(slab, w_ref[...], preferred_element_type=jnp.float32)
        return jnp.maximum(acc + b_ref[...], 0.0)            # (P, Cout) f32

    def fill(abuf, y):
        # zero apron rows (cheap) + masked interior rows, cast to bf16 once.
        z = jnp.zeros((apron, abuf.shape[1]), abuf.dtype)
        abuf[0:apron, :] = z
        abuf[apron + P: apron + P + apron, :] = z
        abuf[apron: apron + P, :] = (y * mask).astype(abuf.dtype)

    y1 = conv(x_ref, w1_ref, b1_ref)                         # (P, 16)
    fill(abuf2, y1)
    y2 = conv(abuf2, w2_ref, b2_ref)                         # (P, 32)
    fill(abuf3, y2)
    # conv3: no mask multiply (fc1 weight rows for border pixels are zero).
    o_ref[...] = conv(abuf3, w3_ref, b3_ref).astype(o_ref.dtype)


def mlp_kernel(x_ref, w1_ref, b1_ref, *refs):
    """fc1 (K-chunked over the grid, f32 accumulator) -> hidden... -> out."""
    acc_ref = refs[-1]
    o_ref = refs[-2]
    wbs = refs[:-2]
    n_tail = len(wbs) // 2
    k = pl.program_id(0)

    @pl.when(k == 0)
    def _():
        acc_ref[...] = jnp.zeros_like(acc_ref)

    acc_ref[...] += jnp.dot(x_ref[...], w1_ref[...],
                            preferred_element_type=jnp.float32)

    @pl.when(k == pl.num_programs(0) - 1)
    def _():
        h = jnp.maximum(acc_ref[...] + b1_ref[...], 0.0).astype(jnp.bfloat16)
        for i in range(n_tail):
            w = wbs[2 * i][...]
            b = wbs[2 * i + 1][...]
            y = jnp.dot(h, w, preferred_element_type=jnp.float32) + b
            if i < n_tail - 1:
                h = jnp.maximum(y, 0.0).astype(jnp.bfloat16)
            else:
                o_ref[...] = y.astype(o_ref.dtype)


# -------------------------- parameter construction --------------------------

def init_params(key, state_shape, out_dim, hidden_dims=(32, 32)):
    """Torch-like init (uniform +-1/sqrt(fan_in)); weights rounded to
    bf16-representable values so kernel and reference share parameters."""
    C, H, W = state_shape

    def _q(a):
        return a.astype(jnp.bfloat16).astype(jnp.float32)

    def dense(k, fan_in, fan_out):
        kw, kb = jax.random.split(k)
        s = 1.0 / jnp.sqrt(jnp.float32(fan_in))
        return (_q(jax.random.uniform(kw, (fan_in, fan_out), jnp.float32, -s, s)),
                jax.random.uniform(kb, (fan_out,), jnp.float32, -s, s))

    def conv(k, cin, cout):
        kw, kb = jax.random.split(k)
        s = 1.0 / jnp.sqrt(jnp.float32(cin * 9))
        return (_q(jax.random.uniform(kw, (3, 3, cin, cout), jnp.float32, -s, s)),
                jax.random.uniform(kb, (cout,), jnp.float32, -s, s))

    n_hidden = len(hidden_dims) - 1
    keys = jax.random.split(key, 5 + n_hidden)
    return {
        'conv1': conv(keys[0], C, 16),
        'conv2': conv(keys[1], 16, 32),
        'conv3': conv(keys[2], 32, 64),
        'fc1':   dense(keys[3], 64 * H * W, hidden_dims[0]),
        'hidden': [dense(keys[4 + i], hidden_dims[i], hidden_dims[i + 1])
                   for i in range(n_hidden)],
        'out':   dense(keys[4 + n_hidden], hidden_dims[-1], out_dim),
    }


def prepare_pallas_params(params, state_shape):
    """One-time rearrangement into the layouts the fused kernels consume."""
    C, H, W = state_shape
    Hp, Wp, P, apron, rows, shifts = _geometry(H, W)

    def conv_w(w, b):            # HWIO (3,3,Cin,Cout) -> (9*Cin, Cout) slab order
        cin, cout = w.shape[2], w.shape[3]
        return (w.reshape(9 * cin, cout).astype(jnp.bfloat16),
                b.reshape(1, cout).astype(jnp.float32))

    def dense_w(w, b):
        return (w.astype(jnp.bfloat16), b.reshape(1, -1).astype(jnp.float32))

    # fc1: permute rows from torch's NCHW flatten (c*H*W + y*W + x) into the
    # kernel's flatten order (padded_pixel*64 + c); border-pixel rows are 0.
    w_fc1, b_fc1 = params['fc1']
    cout3 = params['conv3'][0].shape[3]                        # 64
    d1 = w_fc1.shape[1]
    w = w_fc1.reshape(cout3, H, W, d1).transpose(1, 2, 0, 3)   # (H, W, 64, d1)
    w = jnp.pad(w, ((1, Hp - H - 1), (1, Wp - W - 1), (0, 0), (0, 0)))
    fc1 = (w.reshape(P * cout3, d1).astype(jnp.bfloat16),
           b_fc1.reshape(1, -1).astype(jnp.float32))

    # interior-pixel mask (1 inside the original HxW image, 0 on the border)
    mask = jnp.zeros((Hp, Wp), jnp.float32).at[1:H + 1, 1:W + 1].set(1.0)
    mask = mask.reshape(P, 1)

    return {
        'conv1': conv_w(*params['conv1']),
        'conv2': conv_w(*params['conv2']),
        'conv3': conv_w(*params['conv3']),
        'fc1':   fc1,
        'hidden': [dense_w(w, b) for (w, b) in params['hidden']],
        'out':   dense_w(*params['out']),
        'mask':  mask,
    }


# ------------------------------ forward pass --------------------------------

def policy_vpg_forward(prep, x_nchw):
    N, C, H, W = x_nchw.shape
    Hp, Wp, P, apron, rows, shifts = _geometry(H, W)

    (w1, b1), (w2, b2), (w3, b3) = prep['conv1'], prep['conv2'], prep['conv3']
    mask = prep['mask']
    cout3 = w3.shape[1]                                        # 64

    # layout glue: NCHW -> apron-padded flat bf16 NHWC per image
    x = jnp.transpose(x_nchw, (0, 2, 3, 1))                    # (N,H,W,C)
    x = jnp.pad(x, ((0, 0), (1, Hp - H - 1), (1, Wp - W - 1), (0, 0)))
    x = x.reshape(N, P, C)
    x = jnp.pad(x, ((0, 0), (apron, apron), (0, 0)))           # (N,rows,C)
    x = x.astype(jnp.bfloat16)

    def bcast(arr):
        nd = arr.ndim
        return pl.BlockSpec(arr.shape, lambda n, _nd=nd: (0,) * _nd)

    conv_flops = 2 * N * P * sum(w.shape[0] * w.shape[1] for w in (w1, w2, w3))
    conv_bytes = int(
        x.size * 2
        + sum(w.size * 2 + b.size * 4 for w, b in
              (prep['conv1'], prep['conv2'], prep['conv3']))
        + mask.size * 4 + N * P * cout3 * 2)

    a3 = pl.pallas_call(
        functools.partial(conv_stack_kernel, shifts=shifts, apron=apron),
        out_shape=jax.ShapeDtypeStruct((N, P, cout3), jnp.bfloat16),
        grid=(N,),
        in_specs=[
            pl.BlockSpec((None, rows, C), lambda n: (n, 0, 0)),
            bcast(w1), bcast(b1),
            bcast(w2), bcast(b2),
            bcast(w3), bcast(b3),
            bcast(mask),
        ],
        out_specs=pl.BlockSpec((None, P, cout3), lambda n: (n, 0, 0)),
        scratch_shapes=[
            pltpu.VMEM((rows, w1.shape[1]), jnp.bfloat16),   # conv2 input (+apron)
            pltpu.VMEM((rows, w2.shape[1]), jnp.bfloat16),   # conv3 input (+apron)
        ],
        compiler_params=pltpu.CompilerParams(
            dimension_semantics=("parallel",)),
        cost_estimate=pl.CostEstimate(flops=int(conv_flops), transcendentals=0,
                                      bytes_accessed=conv_bytes),
    )(x, w1, b1, w2, b2, w3, b3, mask)

    # Free reshape: (N, P, 64) -> (N, P*64).  fc1's weight rows were permuted
    # at prep time to this (padded_pixel, channel) order -> no transpose.
    F = P * cout3
    feats = a3.reshape(N, F)

    w_fc1, b_fc1 = prep['fc1']
    d1 = w_fc1.shape[1]
    tail = list(prep['hidden']) + [prep['out']]
    tail_args = []
    for w, b in tail:
        tail_args += [w, b]
    out_dim = tail[-1][0].shape[1]

    TK = _pick_k_chunk(F)
    nk = F // TK

    mlp_flops = 2 * N * (F * d1 + sum(w.shape[0] * w.shape[1] for w, _ in tail))
    mlp_bytes = int(feats.size * 2 + w_fc1.size * 2 + b_fc1.size * 4
                    + sum(w.size * 2 + b.size * 4 for w, b in tail)
                    + N * out_dim * 4)

    def bcast_k(arr):
        return pl.BlockSpec(arr.shape, lambda k: (0, 0))

    logits = pl.pallas_call(
        mlp_kernel,
        out_shape=jax.ShapeDtypeStruct((N, out_dim), jnp.float32),
        grid=(nk,),
        in_specs=[
            pl.BlockSpec((N, TK), lambda k: (0, k)),              # feats K-chunk
            pl.BlockSpec((TK, d1), lambda k: (k, 0)),             # fc1 W K-chunk
            bcast_k(b_fc1),
        ] + [bcast_k(a) for a in tail_args],
        out_specs=pl.BlockSpec((N, out_dim), lambda k: (0, 0)),
        scratch_shapes=[pltpu.VMEM((N, d1), jnp.float32)],        # fc1 accumulator
        compiler_params=pltpu.CompilerParams(
            dimension_semantics=("arbitrary",)),
        cost_estimate=pl.CostEstimate(flops=int(mlp_flops), transcendentals=0,
                                      bytes_accessed=mlp_bytes),
    )(feats, w_fc1, b_fc1, *tail_args)
    return logits


# ------------------------------- reference ----------------------------------

def reference_forward(params, x_nchw):
    hi = jax.lax.Precision.HIGHEST
    x = jnp.transpose(x_nchw, (0, 2, 3, 1))
    for name in ('conv1', 'conv2', 'conv3'):
        w, b = params[name]
        x = jax.lax.conv_general_dilated(
            x, w, (1, 1), 'SAME',
            dimension_numbers=('NHWC', 'HWIO', 'NHWC'), precision=hi)
        x = jax.nn.relu(x + b)
    N = x.shape[0]
    x = jnp.transpose(x, (0, 3, 1, 2)).reshape(N, -1)   # torch's NCHW .view(N,-1)
    w, b = params['fc1']
    x = jax.nn.relu(jnp.dot(x, w, precision=hi) + b)
    for w, b in params['hidden']:
        x = jax.nn.relu(jnp.dot(x, w, precision=hi) + b)
    w, b = params['out']
    return jnp.dot(x, w, precision=hi) + b


# TODO(synk): full_pass/select_action (Categorical sampling + .item()) are
# host-side RNG conveniences, not part of the forward kernel.

if __name__ == "__main__":
    key = jax.random.PRNGKey(0)
    k_par, k_x = jax.random.split(key)

    state_shape = (4, 16, 16)   # (C, H, W)
    out_dim = 6
    batch = 2

    params = init_params(k_par, state_shape, out_dim, hidden_dims=(32, 32))
    prep = prepare_pallas_params(params, state_shape)
    x = jax.random.normal(k_x, (batch,) + state_shape, jnp.float32)  # NCHW

    fwd = jax.jit(policy_vpg_forward)
    logits = fwd(prep, x)
    jax.block_until_ready(logits)

    assert logits.shape == (batch, out_dim)
    ref = reference_forward(params, x)
    max_err = float(jnp.max(jnp.abs(logits - ref)))
    assert jnp.allclose(logits, ref, rtol=5e-3, atol=5e-3), max_err

    print("KERNEL_OK")
</pallas_src>

<mosaic_0001>
module attributes {stable_mosaic.version = 11 : i64} {
  func.func @conv_stack_kernel(%arg0: i32, %arg1: memref<1x408x4xbf16, #tpu.memory_space<vmem>>, %arg2: memref<36x16xbf16, #tpu.memory_space<vmem>>, %arg3: memref<1x16xf32, #tpu.memory_space<vmem>>, %arg4: memref<144x32xbf16, #tpu.memory_space<vmem>>, %arg5: memref<1x32xf32, #tpu.memory_space<vmem>>, %arg6: memref<288x64xbf16, #tpu.memory_space<vmem>>, %arg7: memref<1x64xf32, #tpu.memory_space<vmem>>, %arg8: memref<360x1xf32, #tpu.memory_space<vmem>>, %arg9: memref<1x360x64xbf16, #tpu.memory_space<vmem>>, %arg10: memref<408x16xbf16, #tpu.memory_space<vmem>>, %arg11: memref<408x32xbf16, #tpu.memory_space<vmem>>) attributes {dimension_semantics = [#tpu.dimension_semantics<parallel>], iteration_bounds = array<i64: 2>, scalar_prefetch = 0 : i64, scratch_operands = 2 : i64, tpu.core_type = #tpu.core_type<tc>, window_params = [{transform_indices = @transform_0, window_bounds = array<i64: 1, 408, 4>}, {pipeline_mode = #tpu.pipeline_mode<synchronous>, transform_indices = @transform_1, window_bounds = array<i64: 36, 16>}, {pipeline_mode = #tpu.pipeline_mode<synchronous>, transform_indices = @transform_2, window_bounds = array<i64: 1, 16>}, {pipeline_mode = #tpu.pipeline_mode<synchronous>, transform_indices = @transform_3, window_bounds = array<i64: 144, 32>}, {pipeline_mode = #tpu.pipeline_mode<synchronous>, transform_indices = @transform_4, window_bounds = array<i64: 1, 32>}, {pipeline_mode = #tpu.pipeline_mode<synchronous>, transform_indices = @transform_5, window_bounds = array<i64: 288, 64>}, {pipeline_mode = #tpu.pipeline_mode<synchronous>, transform_indices = @transform_6, window_bounds = array<i64: 1, 64>}, {pipeline_mode = #tpu.pipeline_mode<synchronous>, transform_indices = @transform_7, window_bounds = array<i64: 360, 1>}, {transform_indices = @transform_8, window_bounds = array<i64: 1, 360, 64>}]} {
    %c0 = arith.constant 0 : index
    %c0_0 = arith.constant 0 : index
    %0 = vector.load %arg8[%c0, %c0_0] : memref<360x1xf32, #tpu.memory_space<vmem>>, vector<360x1xf32>
    %c0_1 = arith.constant 0 : index
    %c3 = arith.constant 3 : index
    %c0_2 = arith.constant 0 : index
    %1 = vector.load %arg1[%c0_1, %c3, %c0_2] : memref<1x408x4xbf16, #tpu.memory_space<vmem>>, vector<1x360x4xbf16>
    %2 = vector.shape_cast %1 : vector<1x360x4xbf16> to vector<360x4xbf16>
    %c0_3 = arith.constant 0 : index
    %c4 = arith.constant 4 : index
    %c0_4 = arith.constant 0 : index
    %3 = vector.load %arg1[%c0_3, %c4, %c0_4] : memref<1x408x4xbf16, #tpu.memory_space<vmem>>, vector<1x360x4xbf16>
    %4 = vector.shape_cast %3 : vector<1x360x4xbf16> to vector<360x4xbf16>
    %c0_5 = arith.constant 0 : index
    %c5 = arith.constant 5 : index
    %c0_6 = arith.constant 0 : index
    %5 = vector.load %arg1[%c0_5, %c5, %c0_6] : memref<1x408x4xbf16, #tpu.memory_space<vmem>>, vector<1x360x4xbf16>
    %6 = vector.shape_cast %5 : vector<1x360x4xbf16> to vector<360x4xbf16>
    %c0_7 = arith.constant 0 : index
    %c23 = arith.constant 23 : index
    %c0_8 = arith.constant 0 : index
    %7 = vector.load %arg1[%c0_7, %c23, %c0_8] : memref<1x408x4xbf16, #tpu.memory_space<vmem>>, vector<1x360x4xbf16>
    %8 = vector.shape_cast %7 : vector<1x360x4xbf16> to vector<360x4xbf16>
    %c0_9 = arith.constant 0 : index
    %c24 = arith.constant 24 : index
    %c0_10 = arith.constant 0 : index
    %9 = vector.load %arg1[%c0_9, %c24, %c0_10] : memref<1x408x4xbf16, #tpu.memory_space<vmem>>, vector<1x360x4xbf16>
    %10 = vector.shape_cast %9 : vector<1x360x4xbf16> to vector<360x4xbf16>
    %c0_11 = arith.constant 0 : index
    %c25 = arith.constant 25 : index
    %c0_12 = arith.constant 0 : index
    %11 = vector.load %arg1[%c0_11, %c25, %c0_12] : memref<1x408x4xbf16, #tpu.memory_space<vmem>>, vector<1x360x4xbf16>
    %12 = vector.shape_cast %11 : vector<1x360x4xbf16> to vector<360x4xbf16>
    %c0_13 = arith.constant 0 : index
    %c43 = arith.constant 43 : index
    %c0_14 = arith.constant 0 : index
    %13 = vector.load %arg1[%c0_13, %c43, %c0_14] : memref<1x408x4xbf16, #tpu.memory_space<vmem>>, vector<1x360x4xbf16>
    %14 = vector.shape_cast %13 : vector<1x360x4xbf16> to vector<360x4xbf16>
    %c0_15 = arith.constant 0 : index
    %c44 = arith.constant 44 : index
    %c0_16 = arith.constant 0 : index
    %15 = vector.load %arg1[%c0_15, %c44, %c0_16] : memref<1x408x4xbf16, #tpu.memory_space<vmem>>, vector<1x360x4xbf16>
    %16 = vector.shape_cast %15 : vector<1x360x4xbf16> to vector<360x4xbf16>
    %c0_17 = arith.constant 0 : index
    %c45 = arith.constant 45 : index
    %c0_18 = arith.constant 0 : index
    %17 = vector.load %arg1[%c0_17, %c45, %c0_18] : memref<1x408x4xbf16, #tpu.memory_space<vmem>>, vector<1x360x4xbf16>
    %18 = vector.shape_cast %17 : vector<1x360x4xbf16> to vector<360x4xbf16>
    %19 = tpu.concatenate %2, %4, %6, %8, %10, %12, %14, %16, %18 in 1 : vector<360x4xbf16>, vector<360x4xbf16>, vector<360x4xbf16>, vector<360x4xbf16>, vector<360x4xbf16>, vector<360x4xbf16>, vector<360x4xbf16>, vector<360x4xbf16>, vector<360x4xbf16> -> vector<360x36xbf16>
    %c0_19 = arith.constant 0 : index
    %c0_20 = arith.constant 0 : index
    %20 = vector.load %arg2[%c0_19, %c0_20] : memref<36x16xbf16, #tpu.memory_space<vmem>>, vector<36x16xbf16>
    %cst = arith.constant dense<0.000000e+00> : vector<360x16xf32>
    %21 = tpu.matmul %19, %20, %cst {dimension_numbers = #tpu.dot_dimension_numbers<[1], [0], [0], [1], [0, 0, 1, 1], [], []>} : vector<360x36xbf16>, vector<36x16xbf16>, vector<360x16xf32> -> vector<360x16xf32>
    %c0_21 = arith.constant 0 : index
    %c0_22 = arith.constant 0 : index
    %22 = vector.load %arg3[%c0_21, %c0_22] : memref<1x16xf32, #tpu.memory_space<vmem>>, vector<1x16xf32>
    %23 = vector.broadcast %22 : vector<1x16xf32> to vector<360x16xf32>
    %24 = arith.addf %21, %23 : vector<360x16xf32>
    %cst_23 = arith.constant 0.000000e+00 : f32
    %25 = vector.broadcast %cst_23 : f32 to vector<360x16xf32>
    %26 = arith.maximumf %24, %25 : vector<360x16xf32>
    %cst_24 = arith.constant 0.000000e+00 : bf16
    %27 = vector.broadcast %cst_24 : bf16 to vector<24x16xbf16>
    %c0_25 = arith.constant 0 : index
    %c0_26 = arith.constant 0 : index
    %28 = vector.load %arg10[%c0_25, %c0_26] : memref<408x16xbf16, #tpu.memory_space<vmem>>, vector<24x16xbf16>
    tpu.vector_store %arg10[%c0_25, %c0_26], %27 {strides = array<i32>} : memref<408x16xbf16, #tpu.memory_space<vmem>>, vector<24x16xbf16>,
    %c384 = arith.constant 384 : index
    %c0_27 = arith.constant 0 : index
    %29 = vector.load %arg10[%c384, %c0_27] : memref<408x16xbf16, #tpu.memory_space<vmem>>, vector<24x16xbf16>
    tpu.vector_store %arg10[%c384, %c0_27], %27 {strides = array<i32>} : memref<408x16xbf16, #tpu.memory_space<vmem>>, vector<24x16xbf16>,
    %30 = vector.broadcast %0 : vector<360x1xf32> to vector<360x16xf32>
    %31 = arith.mulf %26, %30 : vector<360x16xf32>
    %32 = arith.truncf %31 : vector<360x16xf32> to vector<360x16xbf16>
    %c24_28 = arith.constant 24 : index
    %c0_29 = arith.constant 0 : index
    %33 = vector.load %arg10[%c24_28, %c0_29] : memref<408x16xbf16, #tpu.memory_space<vmem>>, vector<360x16xbf16>
    tpu.vector_store %arg10[%c24_28, %c0_29], %32 {strides = array<i32>} : memref<408x16xbf16, #tpu.memory_space<vmem>>, vector<360x16xbf16>,
    %c3_30 = arith.constant 3 : index
    %c0_31 = arith.constant 0 : index
    %34 = vector.load %arg10[%c3_30, %c0_31] : memref<408x16xbf16, #tpu.memory_space<vmem>>, vector<360x16xbf16>
    %c4_32 = arith.constant 4 : index
    %c0_33 = arith.constant 0 : index
    %35 = vector.load %arg10[%c4_32, %c0_33] : memref<408x16xbf16, #tpu.memory_space<vmem>>, vector<360x16xbf16>
    %c5_34 = arith.constant 5 : index
    %c0_35 = arith.constant 0 : index
    %36 = vector.load %arg10[%c5_34, %c0_35] : memref<408x16xbf16, #tpu.memory_space<vmem>>, vector<360x16xbf16>
    %c23_36 = arith.constant 23 : index
    %c0_37 = arith.constant 0 : index
    %37 = vector.load %arg10[%c23_36, %c0_37] : memref<408x16xbf16, #tpu.memory_space<vmem>>, vector<360x16xbf16>
    %c24_38 = arith.constant 24 : index
    %c0_39 = arith.constant 0 : index
    %38 = vector.load %arg10[%c24_38, %c0_39] : memref<408x16xbf16, #tpu.memory_space<vmem>>, vector<360x16xbf16>
    %c25_40 = arith.constant 25 : index
    %c0_41 = arith.constant 0 : index
    %39 = vector.load %arg10[%c25_40, %c0_41] : memref<408x16xbf16, #tpu.memory_space<vmem>>, vector<360x16xbf16>
    %c43_42 = arith.constant 43 : index
    %c0_43 = arith.constant 0 : index
    %40 = vector.load %arg10[%c43_42, %c0_43] : memref<408x16xbf16, #tpu.memory_space<vmem>>, vector<360x16xbf16>
    %c44_44 = arith.constant 44 : index
    %c0_45 = arith.constant 0 : index
    %41 = vector.load %arg10[%c44_44, %c0_45] : memref<408x16xbf16, #tpu.memory_space<vmem>>, vector<360x16xbf16>
    %c45_46 = arith.constant 45 : index
    %c0_47 = arith.constant 0 : index
    %42 = vector.load %arg10[%c45_46, %c0_47] : memref<408x16xbf16, #tpu.memory_space<vmem>>, vector<360x16xbf16>
    %43 = tpu.concatenate %34, %35, %36, %37, %38, %39, %40, %41, %42 in 1 : vector<360x16xbf16>, vector<360x16xbf16>, vector<360x16xbf16>, vector<360x16xbf16>, vector<360x16xbf16>, vector<360x16xbf16>, vector<360x16xbf16>, vector<360x16xbf16>, vector<360x16xbf16> -> vector<360x144xbf16>
    %c0_48 = arith.constant 0 : index
    %c0_49 = arith.constant 0 : index
    %44 = vector.load %arg4[%c0_48, %c0_49] : memref<144x32xbf16, #tpu.memory_space<vmem>>, vector<144x32xbf16>
    %cst_50 = arith.constant dense<0.000000e+00> : vector<360x32xf32>
    %45 = tpu.matmul %43, %44, %cst_50 {dimension_numbers = #tpu.dot_dimension_numbers<[1], [0], [0], [1], [0, 0, 1, 1], [], []>} : vector<360x144xbf16>, vector<144x32xbf16>, vector<360x32xf32> -> vector<360x32xf32>
    %c0_51 = arith.constant 0 : index
    %c0_52 = arith.constant 0 : index
    %46 = vector.load %arg5[%c0_51, %c0_52] : memref<1x32xf32, #tpu.memory_space<vmem>>, vector<1x32xf32>
    %47 = vector.broadcast %46 : vector<1x32xf32> to vector<360x32xf32>
    %48 = arith.addf %45, %47 : vector<360x32xf32>
    %cst_53 = arith.constant 0.000000e+00 : f32
    %49 = vector.broadcast %cst_53 : f32 to vector<360x32xf32>
    %50 = arith.maximumf %48, %49 : vector<360x32xf32>
    %cst_54 = arith.constant 0.000000e+00 : bf16
    %51 = vector.broadcast %cst_54 : bf16 to vector<24x32xbf16>
    %c0_55 = arith.constant 0 : index
    %c0_56 = arith.constant 0 : index
    %52 = vector.load %arg11[%c0_55, %c0_56] : memref<408x32xbf16, #tpu.memory_space<vmem>>, vector<24x32xbf16>
    tpu.vector_store %arg11[%c0_55, %c0_56], %51 {strides = array<i32>} : memref<408x32xbf16, #tpu.memory_space<vmem>>, vector<24x32xbf16>,
    %c384_57 = arith.constant 384 : index
    %c0_58 = arith.constant 0 : index
    %53 = vector.load %arg11[%c384_57, %c0_58] : memref<408x32xbf16, #tpu.memory_space<vmem>>, vector<24x32xbf16>
    tpu.vector_store %arg11[%c384_57, %c0_58], %51 {strides = array<i32>} : memref<408x32xbf16, #tpu.memory_space<vmem>>, vector<24x32xbf16>,
    %54 = vector.broadcast %0 : vector<360x1xf32> to vector<360x32xf32>
    %55 = arith.mulf %50, %54 : vector<360x32xf32>
    %56 = arith.truncf %55 : vector<360x32xf32> to vector<360x32xbf16>
    %c24_59 = arith.constant 24 : index
    %c0_60 = arith.constant 0 : index
    %57 = vector.load %arg11[%c24_59, %c0_60] : memref<408x32xbf16, #tpu.memory_space<vmem>>, vector<360x32xbf16>
    tpu.vector_store %arg11[%c24_59, %c0_60], %56 {strides = array<i32>} : memref<408x32xbf16, #tpu.memory_space<vmem>>, vector<360x32xbf16>,
    %c3_61 = arith.constant 3 : index
    %c0_62 = arith.constant 0 : index
    %58 = vector.load %arg11[%c3_61, %c0_62] : memref<408x32xbf16, #tpu.memory_space<vmem>>, vector<360x32xbf16>
    %c4_63 = arith.constant 4 : index
    %c0_64 = arith.constant 0 : index
    %59 = vector.load %arg11[%c4_63, %c0_64] : memref<408x32xbf16, #tpu.memory_space<vmem>>, vector<360x32xbf16>
    %c5_65 = arith.constant 5 : index
    %c0_66 = arith.constant 0 : index
    %60 = vector.load %arg11[%c5_65, %c0_66] : memref<408x32xbf16, #tpu.memory_space<vmem>>, vector<360x32xbf16>
    %c23_67 = arith.constant 23 : index
    %c0_68 = arith.constant 0 : index
    %61 = vector.load %arg11[%c23_67, %c0_68] : memref<408x32xbf16, #tpu.memory_space<vmem>>, vector<360x32xbf16>
    %c24_69 = arith.constant 24 : index
    %c0_70 = arith.constant 0 : index
    %62 = vector.load %arg11[%c24_69, %c0_70] : memref<408x32xbf16, #tpu.memory_space<vmem>>, vector<360x32xbf16>
    %c25_71 = arith.constant 25 : index
    %c0_72 = arith.constant 0 : index
    %63 = vector.load %arg11[%c25_71, %c0_72] : memref<408x32xbf16, #tpu.memory_space<vmem>>, vector<360x32xbf16>
    %c43_73 = arith.constant 43 : index
    %c0_74 = arith.constant 0 : index
    %64 = vector.load %arg11[%c43_73, %c0_74] : memref<408x32xbf16, #tpu.memory_space<vmem>>, vector<360x32xbf16>
    %c44_75 = arith.constant 44 : index
    %c0_76 = arith.constant 0 : index
    %65 = vector.load %arg11[%c44_75, %c0_76] : memref<408x32xbf16, #tpu.memory_space<vmem>>, vector<360x32xbf16>
    %c45_77 = arith.constant 45 : index
    %c0_78 = arith.constant 0 : index
    %66 = vector.load %arg11[%c45_77, %c0_78] : memref<408x32xbf16, #tpu.memory_space<vmem>>, vector<360x32xbf16>
    %67 = tpu.concatenate %58, %59, %60, %61, %62, %63, %64, %65, %66 in 1 : vector<360x32xbf16>, vector<360x32xbf16>, vector<360x32xbf16>, vector<360x32xbf16>, vector<360x32xbf16>, vector<360x32xbf16>, vector<360x32xbf16>, vector<360x32xbf16>, vector<360x32xbf16> -> vector<360x288xbf16>
    %c0_79 = arith.constant 0 : index
    %c0_80 = arith.constant 0 : index
    %68 = vector.load %arg6[%c0_79, %c0_80] : memref<288x64xbf16, #tpu.memory_space<vmem>>, vector<288x64xbf16>
    %cst_81 = arith.constant dense<0.000000e+00> : vector<360x64xf32>
    %69 = tpu.matmul %67, %68, %cst_81 {dimension_numbers = #tpu.dot_dimension_numbers<[1], [0], [0], [1], [0, 0, 1, 1], [], []>} : vector<360x288xbf16>, vector<288x64xbf16>, vector<360x64xf32> -> vector<360x64xf32>
    %c0_82 = arith.constant 0 : index
    %c0_83 = arith.constant 0 : index
    %70 = vector.load %arg7[%c0_82, %c0_83] : memref<1x64xf32, #tpu.memory_space<vmem>>, vector<1x64xf32>
    %71 = vector.broadcast %70 : vector<1x64xf32> to vector<360x64xf32>
    %72 = arith.addf %69, %71 : vector<360x64xf32>
    %cst_84 = arith.constant 0.000000e+00 : f32
    %73 = vector.broadcast %cst_84 : f32 to vector<360x64xf32>
    %74 = arith.maximumf %72, %73 : vector<360x64xf32>
    %75 = arith.truncf %74 : vector<360x64xf32> to vector<360x64xbf16>
    %c0_85 = arith.constant 0 : index
    %c0_86 = arith.constant 0 : index
    %c0_87 = arith.constant 0 : index
    %76 = vector.load %arg9[%c0_85, %c0_86, %c0_87] : memref<1x360x64xbf16, #tpu.memory_space<vmem>>, vector<1x360x64xbf16>
    %77 = vector.shape_cast %76 : vector<1x360x64xbf16> to vector<360x64xbf16>
    %78 = vector.shape_cast %75 : vector<360x64xbf16> to vector<1x360x64xbf16>
    tpu.vector_store %arg9[%c0_85, %c0_86, %c0_87], %78 {strides = array<i32>} : memref<1x360x64xbf16, #tpu.memory_space<vmem>>, vector<1x360x64xbf16>,
    return
  }
  func.func @transform_0(%arg0: i32) -> (i32, i32, i32) {
    %c0_i32 = arith.constant 0 : i32
    %c0_i32_0 = arith.constant 0 : i32
    %c0_i32_1 = arith.constant 0 : i32
    return %arg0, %c0_i32, %c0_i32_0 : i32, i32, i32
  }
  func.func @transform_1(%arg0: i32) -> (i32, i32) {
    %c0_i32 = arith.constant 0 : i32
    %c0_i32_0 = arith.constant 0 : i32
    %c0_i32_1 = arith.constant 0 : i32
    return %c0_i32, %c0_i32_0 : i32, i32
  }
  func.func @transform_2(%arg0: i32) -> (i32, i32) {
    %c0_i32 = arith.constant 0 : i32
    %c0_i32_0 = arith.constant 0 : i32
    %c0_i32_1 = arith.constant 0 : i32
    return %c0_i32, %c0_i32_0 : i32, i32
  }
  func.func @transform_3(%arg0: i32) -> (i32, i32) {
    %c0_i32 = arith.constant 0 : i32
    %c0_i32_0 = arith.constant 0 : i32
    %c0_i32_1 = arith.constant 0 : i32
    return %c0_i32, %c0_i32_0 : i32, i32
  }
  func.func @transform_4(%arg0: i32) -> (i32, i32) {
    %c0_i32 = arith.constant 0 : i32
    %c0_i32_0 = arith.constant 0 : i32
    %c0_i32_1 = arith.constant 0 : i32
    return %c0_i32, %c0_i32_0 : i32, i32
  }
  func.func @transform_5(%arg0: i32) -> (i32, i32) {
    %c0_i32 = arith.constant 0 : i32
    %c0_i32_0 = arith.constant 0 : i32
    %c0_i32_1 = arith.constant 0 : i32
    return %c0_i32, %c0_i32_0 : i32, i32
  }
  func.func @transform_6(%arg0: i32) -> (i32, i32) {
    %c0_i32 = arith.constant 0 : i32
    %c0_i32_0 = arith.constant 0 : i32
    %c0_i32_1 = arith.constant 0 : i32
    return %c0_i32, %c0_i32_0 : i32, i32
  }
  func.func @transform_7(%arg0: i32) -> (i32, i32) {
    %c0_i32 = arith.constant 0 : i32
    %c0_i32_0 = arith.constant 0 : i32
    %c0_i32_1 = arith.constant 0 : i32
    return %c0_i32, %c0_i32_0 : i32, i32
  }
  func.func @transform_8(%arg0: i32) -> (i32, i32, i32) {
    %c0_i32 = arith.constant 0 : i32
    %c0_i32_0 = arith.constant 0 : i32
    %c0_i32_1 = arith.constant 0 : i32
    return %arg0, %c0_i32, %c0_i32_0 : i32, i32, i32
  }
}

module attributes {stable_mosaic.version = 11 : i64} {
  func.func @mlp_kernel(%arg0: i32, %arg1: memref<2x3840xbf16, #tpu.memory_space<vmem>>, %arg2: memref<3840x32xbf16, #tpu.memory_space<vmem>>, %arg3: memref<1x32xf32, #tpu.memory_space<vmem>>, %arg4: memref<32x32xbf16, #tpu.memory_space<vmem>>, %arg5: memref<1x32xf32, #tpu.memory_space<vmem>>, %arg6: memref<32x6xbf16, #tpu.memory_space<vmem>>, %arg7: memref<1x6xf32, #tpu.memory_space<vmem>>, %arg8: memref<2x6xf32, #tpu.memory_space<vmem>>, %arg9: memref<2x32xf32, #tpu.memory_space<vmem>>) attributes {dimension_semantics = [#tpu.dimension_semantics<arbitrary>], iteration_bounds = array<i64: 6>, scalar_prefetch = 0 : i64, scratch_operands = 1 : i64, tpu.core_type = #tpu.core_type<tc>, window_params = [{transform_indices = @transform_0, window_bounds = array<i64: 2, 3840>}, {transform_indices = @transform_1, window_bounds = array<i64: 3840, 32>}, {pipeline_mode = #tpu.pipeline_mode<synchronous>, transform_indices = @transform_2, window_bounds = array<i64: 1, 32>}, {pipeline_mode = #tpu.pipeline_mode<synchronous>, transform_indices = @transform_3, window_bounds = array<i64: 32, 32>}, {pipeline_mode = #tpu.pipeline_mode<synchronous>, transform_indices = @transform_4, window_bounds = array<i64: 1, 32>}, {pipeline_mode = #tpu.pipeline_mode<synchronous>, transform_indices = @transform_5, window_bounds = array<i64: 32, 6>}, {pipeline_mode = #tpu.pipeline_mode<synchronous>, transform_indices = @transform_6, window_bounds = array<i64: 1, 6>}, {pipeline_mode = #tpu.pipeline_mode<synchronous>, transform_indices = @transform_7, window_bounds = array<i64: 2, 6>}]} {
    %c0_i32 = arith.constant 0 : i32
    %0 = arith.cmpi eq, %arg0, %c0_i32 : i32
    %1 = arith.extui %0 : i1 to i32
    %c0_i32_0 = arith.constant 0 : i32
    %2 = arith.cmpi ne, %1, %c0_i32_0 : i32
    scf.if %2 {
      %cst_9 = arith.constant 0.000000e+00 : f32
      %12 = vector.broadcast %cst_9 : f32 to vector<2x32xf32>
      %c0_10 = arith.constant 0 : index
      %c0_11 = arith.constant 0 : index
      %13 = vector.load %arg9[%c0_10, %c0_11] : memref<2x32xf32, #tpu.memory_space<vmem>>, vector<2x32xf32>
      tpu.vector_store %arg9[%c0_10, %c0_11], %12 {strides = array<i32>} : memref<2x32xf32, #tpu.memory_space<vmem>>, vector<2x32xf32>,
    } else {
    }
    %c0 = arith.constant 0 : index
    %c0_1 = arith.constant 0 : index
    %3 = vector.load %arg9[%c0, %c0_1] : memref<2x32xf32, #tpu.memory_space<vmem>>, vector<2x32xf32>
    %c0_2 = arith.constant 0 : index
    %c0_3 = arith.constant 0 : index
    %4 = vector.load %arg1[%c0_2, %c0_3] : memref<2x3840xbf16, #tpu.memory_space<vmem>>, vector<2x3840xbf16>
    %c0_4 = arith.constant 0 : index
    %c0_5 = arith.constant 0 : index
    %5 = vector.load %arg2[%c0_4, %c0_5] : memref<3840x32xbf16, #tpu.memory_space<vmem>>, vector<3840x32xbf16>
    %cst = arith.constant dense<0.000000e+00> : vector<2x32xf32>
    %6 = tpu.matmul %4, %5, %cst {dimension_numbers = #tpu.dot_dimension_numbers<[1], [0], [0], [1], [0, 0, 1, 1], [], []>} : vector<2x3840xbf16>, vector<3840x32xbf16>, vector<2x32xf32> -> vector<2x32xf32>
    %7 = arith.addf %3, %6 : vector<2x32xf32>
    %c0_6 = arith.constant 0 : index
    %c0_7 = arith.constant 0 : index
    %8 = vector.load %arg9[%c0_6, %c0_7] : memref<2x32xf32, #tpu.memory_space<vmem>>, vector<2x32xf32>
    tpu.vector_store %arg9[%c0_6, %c0_7], %7 {strides = array<i32>} : memref<2x32xf32, #tpu.memory_space<vmem>>, vector<2x32xf32>,
    %c5_i32 = arith.constant 5 : i32
    %9 = arith.cmpi eq, %arg0, %c5_i32 : i32
    %10 = arith.extui %9 : i1 to i32
    %c0_i32_8 = arith.constant 0 : i32
    %11 = arith.cmpi ne, %10, %c0_i32_8 : i32
    scf.if %11 {
      %c0_9 = arith.constant 0 : index
      %c0_10 = arith.constant 0 : index
      %12 = vector.load %arg9[%c0_9, %c0_10] : memref<2x32xf32, #tpu.memory_space<vmem>>, vector<2x32xf32>
      %c0_11 = arith.constant 0 : index
      %c0_12 = arith.constant 0 : index
      %13 = vector.load %arg3[%c0_11, %c0_12] : memref<1x32xf32, #tpu.memory_space<vmem>>, vector<1x32xf32>
      %14 = vector.broadcast %13 : vector<1x32xf32> to vector<2x32xf32>
      %15 = arith.addf %12, %14 : vector<2x32xf32>
      %cst_13 = arith.constant 0.000000e+00 : f32
      %16 = vector.broadcast %cst_13 : f32 to vector<2x32xf32>
      %17 = arith.maximumf %15, %16 : vector<2x32xf32>
      %18 = arith.truncf %17 : vector<2x32xf32> to vector<2x32xbf16>
      %c0_14 = arith.constant 0 : index
      %c0_15 = arith.constant 0 : index
      %19 = vector.load %arg4[%c0_14, %c0_15] : memref<32x32xbf16, #tpu.memory_space<vmem>>, vector<32x32xbf16>
      %c0_16 = arith.constant 0 : index
      %c0_17 = arith.constant 0 : index
      %20 = vector.load %arg5[%c0_16, %c0_17] : memref<1x32xf32, #tpu.memory_space<vmem>>, vector<1x32xf32>
      %cst_18 = arith.constant dense<0.000000e+00> : vector<2x32xf32>
      %21 = tpu.matmul %18, %19, %cst_18 {dimension_numbers = #tpu.dot_dimension_numbers<[1], [0], [0], [1], [0, 0, 1, 1], [], []>} : vector<2x32xbf16>, vector<32x32xbf16>, vector<2x32xf32> -> vector<2x32xf32>
      %22 = vector.broadcast %20 : vector<1x32xf32> to vector<2x32xf32>
      %23 = arith.addf %21, %22 : vector<2x32xf32>
      %cst_19 = arith.constant 0.000000e+00 : f32
      %24 = vector.broadcast %cst_19 : f32 to vector<2x32xf32>
      %25 = arith.maximumf %23, %24 : vector<2x32xf32>
      %26 = arith.truncf %25 : vector<2x32xf32> to vector<2x32xbf16>
      %c0_20 = arith.constant 0 : index
      %c0_21 = arith.constant 0 : index
      %27 = vector.load %arg6[%c0_20, %c0_21] : memref<32x6xbf16, #tpu.memory_space<vmem>>, vector<32x6xbf16>
      %c0_22 = arith.constant 0 : index
      %c0_23 = arith.constant 0 : index
      %28 = vector.load %arg7[%c0_22, %c0_23] : memref<1x6xf32, #tpu.memory_space<vmem>>, vector<1x6xf32>
      %cst_24 = arith.constant dense<0.000000e+00> : vector<2x6xf32>
      %29 = tpu.matmul %26, %27, %cst_24 {dimension_numbers = #tpu.dot_dimension_numbers<[1], [0], [0], [1], [0, 0, 1, 1], [], []>} : vector<2x32xbf16>, vector<32x6xbf16>, vector<2x6xf32> -> vector<2x6xf32>
      %30 = vector.broadcast %28 : vector<1x6xf32> to vector<2x6xf32>
      %31 = arith.addf %29, %30 : vector<2x6xf32>
      %c0_25 = arith.constant 0 : index
      %c0_26 = arith.constant 0 : index
      %32 = vector.load %arg8[%c0_25, %c0_26] : memref<2x6xf32, #tpu.memory_space<vmem>>, vector<2x6xf32>
      tpu.vector_store %arg8[%c0_25, %c0_26], %31 {strides = array<i32>} : memref<2x6xf32, #tpu.memory_space<vmem>>, vector<2x6xf32>,
    } else {
    }
    return
  }
  func.func @transform_0(%arg0: i32) -> (i32, i32) {
    %c0_i32 = arith.constant 0 : i32
    %c0_i32_0 = arith.constant 0 : i32
    return %c0_i32, %arg0 : i32, i32
  }
  func.func @transform_1(%arg0: i32) -> (i32, i32) {
    %c0_i32 = arith.constant 0 : i32
    %c0_i32_0 = arith.constant 0 : i32
    return %arg0, %c0_i32 : i32, i32
  }
  func.func @transform_2(%arg0: i32) -> (i32, i32) {
    %c0_i32 = arith.constant 0 : i32
    %c0_i32_0 = arith.constant 0 : i32
    %c0_i32_1 = arith.constant 0 : i32
    return %c0_i32, %c0_i32_0 : i32, i32
  }
  func.func @transform_3(%arg0: i32) -> (i32, i32) {
    %c0_i32 = arith.constant 0 : i32
    %c0_i32_0 = arith.constant 0 : i32
    %c0_i32_1 = arith.constant 0 : i32
    return %c0_i32, %c0_i32_0 : i32, i32
  }
  func.func @transform_4(%arg0: i32) -> (i32, i32) {
    %c0_i32 = arith.constant 0 : i32
    %c0_i32_0 = arith.constant 0 : i32
    %c0_i32_1 = arith.constant 0 : i32
    return %c0_i32, %c0_i32_0 : i32, i32
  }
  func.func @transform_5(%arg0: i32) -> (i32, i32) {
    %c0_i32 = arith.constant 0 : i32
    %c0_i32_0 = arith.constant 0 : i32
    %c0_i32_1 = arith.constant 0 : i32
    return %c0_i32, %c0_i32_0 : i32, i32
  }
  func.func @transform_6(%arg0: i32) -> (i32, i32) {
    %c0_i32 = arith.constant 0 : i32
    %c0_i32_0 = arith.constant 0 : i32
    %c0_i32_1 = arith.constant 0 : i32
    return %c0_i32, %c0_i32_0 : i32, i32
  }
  func.func @transform_7(%arg0: i32) -> (i32, i32) {
    %c0_i32 = arith.constant 0 : i32
    %c0_i32_0 = arith.constant 0 : i32
    %c0_i32_1 = arith.constant 0 : i32
    return %c0_i32, %c0_i32_0 : i32, i32
  }
}

</mosaic_0001>

<llo_original>
// kernel: policy_vpg_forward.3
$region0: #{policy_vpg_forward.3}
  #allocation0 [shape = 'u32[]', space=smem, size = 0x4, offset = 0x4, fixed_abs, tag = 'smem constant byte address 0x4 - core index']
  #allocation1 [shape = 'u32[144,128]{1,0:T(1,128)}', space=vmem, size = 0x12000, scoped, tag = 'internal scratch']
  #allocation2 [shape = 'f32[2,32]{1,0:T(2,128)}', space=vmem, size = 0x400, scoped, tag = 'scratch operand']
  %s0 = inlined_call_operand.vmem [shape: bf16[2,23040], index: 0, kind: input, shape index: {}]
  %s1 = inlined_call_operand.vmem [shape: bf16[23040,32], index: 1, kind: input, shape index: {}]
  %s2 = inlined_call_operand.vmem [shape: f32[1,32], index: 2, kind: input, shape index: {}]
  %s3 = inlined_call_operand.vmem [shape: bf16[32,32], index: 3, kind: input, shape index: {}]
  %s4 = inlined_call_operand.vmem [shape: f32[1,32], index: 4, kind: input, shape index: {}]
  %s5 = inlined_call_operand.vmem [shape: bf16[32,6], index: 5, kind: input, shape index: {}]
  %s6 = inlined_call_operand.vmem [shape: f32[1,6], index: 6, kind: input, shape index: {}]
  %s7 = inlined_call_operand.hbm [shape: f32[2,6], index: 7, kind: output, shape index: {}]
  %s8 = sld [smem:[#allocation0]]
  $region69: #{policy_vpg_forward.3} parent=0
    _
  %s10 = ssub.s32 1, %s8
  %s11 = scalar_select 0, %s10, %s8
  $region1: #{policy_vpg_forward.3} parent=0
    #allocation3 [shape = 'u8[1024]{0}', space=vmem, size = 0x400, scoped, tag = 'output window, operand 0, single buffered']
    #allocation4 [shape = 's32[2]{0}', space=sflag, size = 0x8, scoped, tag = 'scoped memory for policy_vpg_forward.3']
    %12 = vsyncpa [#allocation4], 0
    loop: start=0, step=1, limit=8
    $region2: #{policy_vpg_forward.3} parent=1 // loop_pre_header
      _
    $region3: #{policy_vpg_forward.3} parent=1 // loop_header
      %s14 = sphi 0, %s18
      %p15 = scmp.ge.s32.totalorder %s14, 8
      %s24 = sphi 0, %s26
      %s27 = sphi 0, %s24
      %s28 = sphi 0, %s27
      %s44 = sphi 0, %s28
      %s50 = sphi 0, %s52
      %s53 = sphi 0, %s50
      %s54 = sphi 0, %s53
      %s70 = sphi 0, %s54
      %s74 = sphi 0, %s74
      %s76 = sphi 0, %s74
      %s77 = sphi 0, %s76
      %s91 = sphi 0, %s77
      %s95 = sphi 0, %s95
      %s97 = sphi 0, %s95
      %s98 = sphi 0, %s97
      %s112 = sphi 0, %s98
      %s116 = sphi 0, %s116
      %s118 = sphi 0, %s116
      %s119 = sphi 0, %s118
      %s133 = sphi 0, %s119
      %s137 = sphi 0, %s137
      %s139 = sphi 0, %s137
      %s140 = sphi 0, %s139
      %s154 = sphi 0, %s140
      %s158 = sphi 0, %s158
      %s160 = sphi 0, %s158
      %s161 = sphi 0, %s160
      %s175 = sphi 0, %s161
      %s179 = sphi 0, %s179
      %s181 = sphi 0, %s179
      %s182 = sphi 0, %s181
      %s196 = sphi 0, %s182
    $region4: #{policy_vpg_forward.3} parent=1 // loop_header_branch
      %17 = sbr.rel (%p15) target = $region8
    $region5: #{policy_vpg_forward.3} parent=1 // loop_body
      %s19 = ssub.s32 %s14, 1
      %s20 = ssub.s32 %s14, 2
      %s21 = sadd.s32 %s14, 1
      %s22 = ssub.s32 %s14, %s21
      %p23 = scmp.eq.s32.totalorder %s22, 0
      %s25 = sadd.s32 %s24, 1
      %s26 = scalar_select %p23, %s24, %s25
      %p29 = pneg %p23
      %p30 = scmp.eq.s32.totalorder %s14, 5
      %p31 = por %p29, %p30
      %p32 = scmp.ne.s32.totalorder %s24, %s27
      %p33 = scmp.eq.s32.totalorder %s14, 0
      %p34 = por %p32, %p33
      %p35 = scmp.ne.s32.totalorder %s24, %s27
      %p36 = scmp.eq.s32.totalorder %s19, 5
      %p37 = por %p35, %p36
      %p38 = scmp.ne.s32.totalorder %s27, %s28
      %p39 = scmp.eq.s32.totalorder %s19, 0
      %p40 = por %p38, %p39
      %p41 = scmp.ne.s32.totalorder %s27, %s28
      %p42 = scmp.eq.s32.totalorder %s20, 5
      %p43 = por %p41, %p42
      %p45 = scmp.ne.s32.totalorder %s28, %s44
      %p46 = scmp.eq.s32.totalorder %s20, 0
      %p47 = por %p45, %p46
      %s48 = ssub.s32 %s14, %s21
      %p49 = scmp.eq.s32.totalorder %s48, 0
      %s51 = sadd.s32 %s50, 1
      %s52 = scalar_select %p49, %s50, %s51
      %p55 = pneg %p49
      %p56 = scmp.eq.s32.totalorder %s14, 5
      %p57 = por %p55, %p56
      %p58 = scmp.ne.s32.totalorder %s50, %s53
      %p59 = scmp.eq.s32.totalorder %s14, 0
      %p60 = por %p58, %p59
      %p61 = scmp.ne.s32.totalorder %s50, %s53
      %p62 = scmp.eq.s32.totalorder %s19, 5
      %p63 = por %p61, %p62
      %p64 = scmp.ne.s32.totalorder %s53, %s54
      %p65 = scmp.eq.s32.totalorder %s19, 0
      %p66 = por %p64, %p65
      %p67 = scmp.ne.s32.totalorder %s53, %s54
      %p68 = scmp.eq.s32.totalorder %s20, 5
      %p69 = por %p67, %p68
      %p71 = scmp.ne.s32.totalorder %s54, %s70
      %p72 = scmp.eq.s32.totalorder %s20, 0
      %p73 = por %p71, %p72
      %s75 = sadd.s32 %s74, 1
      %p78 = scmp.eq.s32.totalorder %s14, 5
      %p79 = scmp.ne.s32.totalorder %s74, %s76
      %p80 = scmp.eq.s32.totalorder %s14, 0
      %p81 = por %p79, %p80
      %p82 = scmp.ne.s32.totalorder %s74, %s76
      %p83 = scmp.eq.s32.totalorder %s19, 5
      %p84 = por %p82, %p83
      %p85 = scmp.ne.s32.totalorder %s76, %s77
      %p86 = scmp.eq.s32.totalorder %s19, 0
      %p87 = por %p85, %p86
      %p88 = scmp.ne.s32.totalorder %s76, %s77
      %p89 = scmp.eq.s32.totalorder %s20, 5
      %p90 = por %p88, %p89
      %p92 = scmp.ne.s32.totalorder %s77, %s91
      %p93 = scmp.eq.s32.totalorder %s20, 0
      %p94 = por %p92, %p93
      %s96 = sadd.s32 %s95, 1
      %p99 = scmp.eq.s32.totalorder %s14, 5
      %p100 = scmp.ne.s32.totalorder %s95, %s97
      %p101 = scmp.eq.s32.totalorder %s14, 0
      %p102 = por %p100, %p101
      %p103 = scmp.ne.s32.totalorder %s95, %s97
      %p104 = scmp.eq.s32.totalorder %s19, 5
      %p105 = por %p103, %p104
      %p106 = scmp.ne.s32.totalorder %s97, %s98
      %p107 = scmp.eq.s32.totalorder %s19, 0
      %p108 = por %p106, %p107
      %p109 = scmp.ne.s32.totalorder %s97, %s98
      %p110 = scmp.eq.s32.totalorder %s20, 5
      %p111 = por %p109, %p110
      %p113 = scmp.ne.s32.totalorder %s98, %s112
      %p114 = scmp.eq.s32.totalorder %s20, 0
      %p115 = por %p113, %p114
      %s117 = sadd.s32 %s116, 1
      %p120 = scmp.eq.s32.totalorder %s14, 5
      %p121 = scmp.ne.s32.totalorder %s116, %s118
      %p122 = scmp.eq.s32.totalorder %s14, 0
      %p123 = por %p121, %p122
      %p124 = scmp.ne.s32.totalorder %s116, %s118
      %p125 = scmp.eq.s32.totalorder %s19, 5
      %p126 = por %p124, %p125
      %p127 = scmp.ne.s32.totalorder %s118, %s119
      %p128 = scmp.eq.s32.totalorder %s19, 0
      %p129 = por %p127, %p128
      %p130 = scmp.ne.s32.totalorder %s118, %s119
      %p131 = scmp.eq.s32.totalorder %s20, 5
      %p132 = por %p130, %p131
      %p134 = scmp.ne.s32.totalorder %s119, %s133
      %p135 = scmp.eq.s32.totalorder %s20, 0
      %p136 = por %p134, %p135
      %s138 = sadd.s32 %s137, 1
      %p141 = scmp.eq.s32.totalorder %s14, 5
      %p142 = scmp.ne.s32.totalorder %s137, %s139
      %p143 = scmp.eq.s32.totalorder %s14, 0
      %p144 = por %p142, %p143
      %p145 = scmp.ne.s32.totalorder %s137, %s139
      %p146 = scmp.eq.s32.totalorder %s19, 5
      %p147 = por %p145, %p146
      %p148 = scmp.ne.s32.totalorder %s139, %s140
      %p149 = scmp.eq.s32.totalorder %s19, 0
      %p150 = por %p148, %p149
      %p151 = scmp.ne.s32.totalorder %s139, %s140
      %p152 = scmp.eq.s32.totalorder %s20, 5
      %p153 = por %p151, %p152
      %p155 = scmp.ne.s32.totalorder %s140, %s154
      %p156 = scmp.eq.s32.totalorder %s20, 0
      %p157 = por %p155, %p156
      %s159 = sadd.s32 %s158, 1
      %p162 = scmp.eq.s32.totalorder %s14, 5
      %p163 = scmp.ne.s32.totalorder %s158, %s160
      %p164 = scmp.eq.s32.totalorder %s14, 0
      %p165 = por %p163, %p164
      %p166 = scmp.ne.s32.totalorder %s158, %s160
      %p167 = scmp.eq.s32.totalorder %s19, 5
      %p168 = por %p166, %p167
      %p169 = scmp.ne.s32.totalorder %s160, %s161
      %p170 = scmp.eq.s32.totalorder %s19, 0
      %p171 = por %p169, %p170
      %p172 = scmp.ne.s32.totalorder %s160, %s161
      %p173 = scmp.eq.s32.totalorder %s20, 5
      %p174 = por %p172, %p173
      %p176 = scmp.ne.s32.totalorder %s161, %s175
      %p177 = scmp.eq.s32.totalorder %s20, 0
      %p178 = por %p176, %p177
      %s180 = sadd.s32 %s179, 1
      %p183 = scmp.eq.s32.totalorder %s14, 5
      %p184 = scmp.ne.s32.totalorder %s179, %s181
      %p185 = scmp.eq.s32.totalorder %s14, 0
      %p186 = por %p184, %p185
      %p187 = scmp.ne.s32.totalorder %s179, %s181
      %p188 = scmp.eq.s32.totalorder %s19, 5
      %p189 = por %p187, %p188
      %p190 = scmp.ne.s32.totalorder %s181, %s182
      %p191 = scmp.eq.s32.totalorder %s19, 0
      %p192 = por %p190, %p191
      %p193 = scmp.ne.s32.totalorder %s181, %s182
      %p194 = scmp.eq.s32.totalorder %s20, 5
      %p195 = por %p193, %p194
      %p197 = scmp.ne.s32.totalorder %s182, %s196
      %p198 = scmp.eq.s32.totalorder %s20, 0
      %p199 = por %p197, %p198
      %p200 = scmp.le.s32.totalorder 1, %s14
      %p201 = scmp.lt.s32.totalorder %s14, 7
      %p202 = pnand %p200, %p201
      %p203 = pneg %p202
      // Predicated region
      $region9: #{policy_vpg_forward.3} parent=5 // pred_check
        _
      $region10: #{policy_vpg_forward.3} parent=5 // pred_check_branch
        %205 = sbr.rel (%p202) target = $region12
      $region11: #{policy_vpg_forward.3} parent=5 // pred_region
        %s206 = ssub.s32 %s14, 1
        // Predicated region
        $region13: #{policy_vpg_forward.3} parent=11 // pred_check
          %p207 = pneg %p87
        $region14: #{policy_vpg_forward.3} parent=11 // pred_check_branch
          %209 = sbr.rel (%p207) target = $region16
        $region15: #{policy_vpg_forward.3} parent=11 // pred_region
          _
        $region16: #{policy_vpg_forward.3} parent=11 // pred_fallthru
          _
        // Predicated region
        $region17: #{policy_vpg_forward.3} parent=11 // pred_check
          %p210 = pneg %p108
        $region18: #{policy_vpg_forward.3} parent=11 // pred_check_branch
          %212 = sbr.rel (%p210) target = $region20
        $region19: #{policy_vpg_forward.3} parent=11 // pred_region
          _
        $region20: #{policy_vpg_forward.3} parent=11 // pred_fallthru
          _
        // Predicated region
        $region21: #{policy_vpg_forward.3} parent=11 // pred_check
          %p213 = pneg %p129
        $region22: #{policy_vpg_forward.3} parent=11 // pred_check_branch
          %215 = sbr.rel (%p213) target = $region24
        $region23: #{policy_vpg_forward.3} parent=11 // pred_region
          _
        $region24: #{policy_vpg_forward.3} parent=11 // pred_fallthru
          _
        // Predicated region
        $region25: #{policy_vpg_forward.3} parent=11 // pred_check
          %p216 = pneg %p150
        $region26: #{policy_vpg_forward.3} parent=11 // pred_check_branch
          %218 = sbr.rel (%p216) target = $region28
        $region27: #{policy_vpg_forward.3} parent=11 // pred_region
          _
        $region28: #{policy_vpg_forward.3} parent=11 // pred_fallthru
          _
        // Predicated region
        $region29: #{policy_vpg_forward.3} parent=11 // pred_check
          %p219 = pneg %p171
        $region30: #{policy_vpg_forward.3} parent=11 // pred_check_branch
          %221 = sbr.rel (%p219) target = $region32
        $region31: #{policy_vpg_forward.3} parent=11 // pred_region
          _
        $region32: #{policy_vpg_forward.3} parent=11 // pred_fallthru
          _
      $region12: #{policy_vpg_forward.3} parent=5 // pred_fallthru
        _
      %p222 = scmp.lt.s32.totalorder %s14, 6
      // Predicated region
      $region33: #{policy_vpg_forward.3} parent=5 // pred_check
        %p223 = pneg %p222
      $region34: #{policy_vpg_forward.3} parent=5 // pred_check_branch
        %225 = sbr.rel (%p223) target = $region36
      $region35: #{policy_vpg_forward.3} parent=5 // pred_region
        // Predicated region
        $region37: #{policy_vpg_forward.3} parent=35 // pred_check
          %p226 = pneg %p34
        $region38: #{policy_vpg_forward.3} parent=35 // pred_check_branch
          %228 = sbr.rel (%p226) target = $region40
        $region39: #{policy_vpg_forward.3} parent=35 // pred_region
          %s229 = smul.u32 30, %s14
          %p230 = scmp.lt.s32.totalorder %s229, 179
          %s231 = scalar_select %p230, %s229, 179
          %s232 = scalar_lea.vmem %s0, %s231
          %s233 = smul.u32 30, %s14
        $region40: #{policy_vpg_forward.3} parent=35 // pred_fallthru
          _
        // Predicated region
        $region41: #{policy_vpg_forward.3} parent=35 // pred_check
          %p234 = pneg %p60
        $region42: #{policy_vpg_forward.3} parent=35 // pred_check_branch
          %236 = sbr.rel (%p234) target = $region44
        $region43: #{policy_vpg_forward.3} parent=35 // pred_region
          %s237 = smul.u32 480, %s14
          %p238 = scmp.lt.s32.totalorder %s237, 2879
          %s239 = scalar_select %p238, %s237, 2879
          %s240 = smul.addr %s239, 4
          %s241 = scalar_lea.vmem %s1, %s240
          %s242 = smul.u32 480, %s14
        $region44: #{policy_vpg_forward.3} parent=35 // pred_fallthru
          _
      $region36: #{policy_vpg_forward.3} parent=5 // pred_fallthru
        _
      %p243 = scmp.le.s32.totalorder 1, %s14
      %p244 = scmp.lt.s32.totalorder %s14, 7
      %p245 = pnand %p243, %p244
      %p246 = pneg %p245
      // Predicated region
      $region45: #{policy_vpg_forward.3} parent=5 // pred_check
        _
      $region46: #{policy_vpg_forward.3} parent=5 // pred_check_branch
        %248 = sbr.rel (%p245) target = $region48
      $region47: #{policy_vpg_forward.3} parent=5 // pred_region
        %s249 = ssub.s32 %s14, 1
        %s250 = smul.u32 30, %s19
        %p251 = scmp.lt.s32.totalorder %s250, 179
        %s252 = scalar_select %p251, %s250, 179
        %s253 = scalar_lea.vmem %s0, %s252
        %p254 = pneg %p40
        %p255 = pneg %p37
        %s256 = smul.u32 480, %s19
        %p257 = scmp.lt.s32.totalorder %s256, 2879
        %s258 = scalar_select %p257, %s256, 2879
        %s259 = smul.addr %s258, 4
        %s260 = scalar_lea.vmem %s1, %s259
        %p261 = pneg %p66
        %p262 = pneg %p63
        %p263 = pneg %p87
        %p264 = pneg %p84
        %p265 = pneg %p108
        %p266 = pneg %p105
        %p267 = pneg %p129
        %p268 = pneg %p126
        %p269 = pneg %p150
        %p270 = pneg %p147
        %p271 = pneg %p171
        %p272 = pneg %p168
        %p273 = pneg %p192
        %p274 = pneg %p189
        %s275 = smul.u32 30, %s19
        %p276 = scmp.lt.s32.totalorder %s275, 179
        %s277 = scalar_select %p276, %s275, 179
        %s278 = scalar_lea.vmem %s0, %s277
        %s279 = smul.u32 30, %s19
        %s280 = smul.u32 480, %s19
        %p281 = scmp.lt.s32.totalorder %s280, 2879
        %s282 = scalar_select %p281, %s280, 2879
        %s283 = smul.addr %s282, 4
        %s284 = scalar_lea.vmem %s1, %s283
        %s285 = smul.u32 480, %s19
        %p287 = scmp.eq.s32.totalorder %s19, 0
        // Predicated region
        $region49: #{policy_vpg_forward.3} parent=47 // pred_check
          %p288 = pneg %p287
        $region50: #{policy_vpg_forward.3} parent=47 // pred_check_branch
          %290 = sbr.rel (%p288) target = $region52
        $region51: #{policy_vpg_forward.3} parent=47 // pred_region
          %vm291 = vcmask 254976
          %292 = vst.msk [vmem:[#allocation2] sm:$0x3] %vm291, 0.0
        $region52: #{policy_vpg_forward.3} parent=47 // pred_fallthru
          _
        %v293 = vld [vmem:[#allocation2] sm:$0x3]
        %v294 = vld [vmem:[%s278] sm:$0xff]
        %v295 = vld [vmem:[%s278 + $0x8] sm:$0xff]
        %v296 = vld [vmem:[%s278 + $0x10] sm:$0xff]
        %v297 = vld [vmem:[%s278 + $0x18] sm:$0x3f]
        %v298 = vld [vmem:[%s284] sm:$0xf]
        %v299 = vld [vmem:[%s284 + $0x4] sm:$0xf]
        %v300 = vld [vmem:[%s284 + $0x8] sm:$0xf]
        %v301 = vld [vmem:[%s284 + $0xc] sm:$0xf]
        %v302 = vld [vmem:[%s284 + $0x10] sm:$0xf]
        %v303 = vld [vmem:[%s284 + $0x14] sm:$0xf]
        %v304 = vld [vmem:[%s284 + $0x18] sm:$0xf]
        %v305 = vld [vmem:[%s284 + $0x1c] sm:$0xf]
        %v306 = vld [vmem:[%s284 + $0x20] sm:$0xf]
        %v307 = vld [vmem:[%s284 + $0x24] sm:$0xf]
        %v308 = vld [vmem:[%s284 + $0x28] sm:$0xf]
        %v309 = vld [vmem:[%s284 + $0x2c] sm:$0xf]
        %v310 = vld [vmem:[%s284 + $0x30] sm:$0xf]
        %v311 = vld [vmem:[%s284 + $0x34] sm:$0xf]
        %v312 = vld [vmem:[%s284 + $0x38] sm:$0xf]
        %v313 = vld [vmem:[%s284 + $0x3c] sm:$0xf]
        %v314 = vld [vmem:[%s284 + $0x40] sm:$0xf]
        %v315 = vld [vmem:[%s284 + $0x44] sm:$0xf]
        %v316 = vld [vmem:[%s284 + $0x48] sm:$0xf]
        %v317 = vld [vmem:[%s284 + $0x4c] sm:$0xf]
        %v318 = vld [vmem:[%s284 + $0x50] sm:$0xf]
        %v319 = vld [vmem:[%s284 + $0x54] sm:$0xf]
        %v320 = vld [vmem:[%s284 + $0x58] sm:$0xf]
        %v321 = vld [vmem:[%s284 + $0x5c] sm:$0xf]
        %v322 = vld [vmem:[%s284 + $0x60] sm:$0xf]
        %v323 = vld [vmem:[%s284 + $0x64] sm:$0xf]
        %v324 = vld [vmem:[%s284 + $0x68] sm:$0xf]
        %v325 = vld [vmem:[%s284 + $0x6c] sm:$0xf]
        %v326 = vld [vmem:[%s284 + $0x70] sm:$0xf]
        %v327 = vld [vmem:[%s284 + $0x74] sm:$0xf]
        %v328 = vld [vmem:[%s284 + $0x78] sm:$0xf]
        %v329 = vld [vmem:[%s284 + $0x7c] sm:$0xf]
        %v330 = vld [vmem:[%s284 + $0x80] sm:$0xf]
        %v331 = vld [vmem:[%s284 + $0x84] sm:$0xf]
        %v332 = vld [vmem:[%s284 + $0x88] sm:$0xf]
        %v333 = vld [vmem:[%s284 + $0x8c] sm:$0xf]
        %v334 = vld [vmem:[%s284 + $0x90] sm:$0xf]
        %v335 = vld [vmem:[%s284 + $0x94] sm:$0xf]
        %v336 = vld [vmem:[%s284 + $0x98] sm:$0xf]
        %v337 = vld [vmem:[%s284 + $0x9c] sm:$0xf]
        %v338 = vld [vmem:[%s284 + $0xa0] sm:$0xf]
        %v339 = vld [vmem:[%s284 + $0xa4] sm:$0xf]
        %v340 = vld [vmem:[%s284 + $0xa8] sm:$0xf]
        %v341 = vld [vmem:[%s284 + $0xac] sm:$0xf]
        %v342 = vld [vmem:[%s284 + $0xb0] sm:$0xf]
        %v343 = vld [vmem:[%s284 + $0xb4] sm:$0xf]
        %v344 = vld [vmem:[%s284 + $0xb8] sm:$0xf]
        %v345 = vld [vmem:[%s284 + $0xbc] sm:$0xf]
        %v346 = vld [vmem:[%s284 + $0xc0] sm:$0xf]
        %v347 = vld [vmem:[%s284 + $0xc4] sm:$0xf]
        %v348 = vld [vmem:[%s284 + $0xc8] sm:$0xf]
        %v349 = vld [vmem:[%s284 + $0xcc] sm:$0xf]
        %v350 = vld [vmem:[%s284 + $0xd0] sm:$0xf]
        %v351 = vld [vmem:[%s284 + $0xd4] sm:$0xf]
        %v352 = vld [vmem:[%s284 + $0xd8] sm:$0xf]
        %v353 = vld [vmem:[%s284 + $0xdc] sm:$0xf]
        %v354 = vld [vmem:[%s284 + $0xe0] sm:$0xf]
        %v355 = vld [vmem:[%s284 + $0xe4] sm:$0xf]
        %v356 = vld [vmem:[%s284 + $0xe8] sm:$0xf]
        %v357 = vld [vmem:[%s284 + $0xec] sm:$0xf]
        %v358 = vld [vmem:[%s284 + $0xf0] sm:$0xf]
        %v359 = vld [vmem:[%s284 + $0xf4] sm:$0xf]
        %v360 = vld [vmem:[%s284 + $0xf8] sm:$0xf]
        %v361 = vld [vmem:[%s284 + $0xfc] sm:$0xf]
        %v362 = vld [vmem:[%s284 + $0x100] sm:$0xf]
        %v363 = vld [vmem:[%s284 + $0x104] sm:$0xf]
        %v364 = vld [vmem:[%s284 + $0x108] sm:$0xf]
        %v365 = vld [vmem:[%s284 + $0x10c] sm:$0xf]
        %v366 = vld [vmem:[%s284 + $0x110] sm:$0xf]
        %v367 = vld [vmem:[%s284 + $0x114] sm:$0xf]
        %v368 = vld [vmem:[%s284 + $0x118] sm:$0xf]
        %v369 = vld [vmem:[%s284 + $0x11c] sm:$0xf]
        %v370 = vld [vmem:[%s284 + $0x120] sm:$0xf]
        %v371 = vld [vmem:[%s284 + $0x124] sm:$0xf]
        %v372 = vld [vmem:[%s284 + $0x128] sm:$0xf]
        %v373 = vld [vmem:[%s284 + $0x12c] sm:$0xf]
        %v374 = vld [vmem:[%s284 + $0x130] sm:$0xf]
        %v375 = vld [vmem:[%s284 + $0x134] sm:$0xf]
        %v376 = vld [vmem:[%s284 + $0x138] sm:$0xf]
        %v377 = vld [vmem:[%s284 + $0x13c] sm:$0xf]
        %v378 = vld [vmem:[%s284 + $0x140] sm:$0xf]
        %v379 = vld [vmem:[%s284 + $0x144] sm:$0xf]
        %v380 = vld [vmem:[%s284 + $0x148] sm:$0xf]
        %v381 = vld [vmem:[%s284 + $0x14c] sm:$0xf]
        %v382 = vld [vmem:[%s284 + $0x150] sm:$0xf]
        %v383 = vld [vmem:[%s284 + $0x154] sm:$0xf]
        %v384 = vld [vmem:[%s284 + $0x158] sm:$0xf]
        %v385 = vld [vmem:[%s284 + $0x15c] sm:$0xf]
        %v386 = vld [vmem:[%s284 + $0x160] sm:$0xf]
        %v387 = vld [vmem:[%s284 + $0x164] sm:$0xf]
        %v388 = vld [vmem:[%s284 + $0x168] sm:$0xf]
        %v389 = vld [vmem:[%s284 + $0x16c] sm:$0xf]
        %v390 = vld [vmem:[%s284 + $0x170] sm:$0xf]
        %v391 = vld [vmem:[%s284 + $0x174] sm:$0xf]
        %v392 = vld [vmem:[%s284 + $0x178] sm:$0xf]
        %v393 = vld [vmem:[%s284 + $0x17c] sm:$0xf]
        %v394 = vld [vmem:[%s284 + $0x180] sm:$0xf]
        %v395 = vld [vmem:[%s284 + $0x184] sm:$0xf]
        %v396 = vld [vmem:[%s284 + $0x188] sm:$0xf]
        %v397 = vld [vmem:[%s284 + $0x18c] sm:$0xf]
        %v398 = vld [vmem:[%s284 + $0x190] sm:$0xf]
        %v399 = vld [vmem:[%s284 + $0x194] sm:$0xf]
        %v400 = vld [vmem:[%s284 + $0x198] sm:$0xf]
        %v401 = vld [vmem:[%s284 + $0x19c] sm:$0xf]
        %v402 = vld [vmem:[%s284 + $0x1a0] sm:$0xf]
        %v403 = vld [vmem:[%s284 + $0x1a4] sm:$0xf]
        %v404 = vld [vmem:[%s284 + $0x1a8] sm:$0xf]
        %v405 = vld [vmem:[%s284 + $0x1ac] sm:$0xf]
        %v406 = vld [vmem:[%s284 + $0x1b0] sm:$0xf]
        %v407 = vld [vmem:[%s284 + $0x1b4] sm:$0xf]
        %v408 = vld [vmem:[%s284 + $0x1b8] sm:$0xf]
        %v409 = vld [vmem:[%s284 + $0x1bc] sm:$0xf]
        %v410 = vld [vmem:[%s284 + $0x1c0] sm:$0xf]
        %v411 = vld [vmem:[%s284 + $0x1c4] sm:$0xf]
        %v412 = vld [vmem:[%s284 + $0x1c8] sm:$0xf]
        %v413 = vld [vmem:[%s284 + $0x1cc] sm:$0xf]
        %v414 = vld [vmem:[%s284 + $0x1d0] sm:$0xf]
        %v415 = vld [vmem:[%s284 + $0x1d4] sm:$0xf]
        %v416 = vld [vmem:[%s284 + $0x1d8] sm:$0xf]
        %v417 = vld [vmem:[%s284 + $0x1dc] sm:$0xf]
        %v418 = vld [vmem:[%s284 + $0x1e0] sm:$0xf]
        %v419 = vld [vmem:[%s284 + $0x1e4] sm:$0xf]
        %v420 = vld [vmem:[%s284 + $0x1e8] sm:$0xf]
        %v421 = vld [vmem:[%s284 + $0x1ec] sm:$0xf]
        %v422 = vld [vmem:[%s284 + $0x1f0] sm:$0xf]
        %v423 = vld [vmem:[%s284 + $0x1f4] sm:$0xf]
        %v424 = vld [vmem:[%s284 + $0x1f8] sm:$0xf]
        %v425 = vld [vmem:[%s284 + $0x1fc] sm:$0xf]
        %v426 = vld [vmem:[%s284 + $0x200] sm:$0xf]
        %v427 = vld [vmem:[%s284 + $0x204] sm:$0xf]
        %v428 = vld [vmem:[%s284 + $0x208] sm:$0xf]
        %v429 = vld [vmem:[%s284 + $0x20c] sm:$0xf]
        %v430 = vld [vmem:[%s284 + $0x210] sm:$0xf]
        %v431 = vld [vmem:[%s284 + $0x214] sm:$0xf]
        %v432 = vld [vmem:[%s284 + $0x218] sm:$0xf]
        %v433 = vld [vmem:[%s284 + $0x21c] sm:$0xf]
        %v434 = vld [vmem:[%s284 + $0x220] sm:$0xf]
        %v435 = vld [vmem:[%s284 + $0x224] sm:$0xf]
        %v436 = vld [vmem:[%s284 + $0x228] sm:$0xf]
        %v437 = vld [vmem:[%s284 + $0x22c] sm:$0xf]
        %v438 = vld [vmem:[%s284 + $0x230] sm:$0xf]
        %v439 = vld [vmem:[%s284 + $0x234] sm:$0xf]
        %v440 = vld [vmem:[%s284 + $0x238] sm:$0xf]
        %v441 = vld [vmem:[%s284 + $0x23c] sm:$0xf]
        %v442 = vld [vmem:[%s284 + $0x240] sm:$0xf]
        %v443 = vld [vmem:[%s284 + $0x244] sm:$0xf]
        %v444 = vld [vmem:[%s284 + $0x248] sm:$0xf]
        %v445 = vld [vmem:[%s284 + $0x24c] sm:$0xf]
        %v446 = vld [vmem:[%s284 + $0x250] sm:$0xf]
        %v447 = vld [vmem:[%s284 + $0x254] sm:$0xf]
        %v448 = vld [vmem:[%s284 + $0x258] sm:$0xf]
        %v449 = vld [vmem:[%s284 + $0x25c] sm:$0xf]
        %v450 = vld [vmem:[%s284 + $0x260] sm:$0xf]
        %v451 = vld [vmem:[%s284 + $0x264] sm:$0xf]
        %v452 = vld [vmem:[%s284 + $0x268] sm:$0xf]
        %v453 = vld [vmem:[%s284 + $0x26c] sm:$0xf]
        %v454 = vld [vmem:[%s284 + $0x270] sm:$0xf]
        %v455 = vld [vmem:[%s284 + $0x274] sm:$0xf]
        %v456 = vld [vmem:[%s284 + $0x278] sm:$0xf]
        %v457 = vld [vmem:[%s284 + $0x27c] sm:$0xf]
        %v458 = vld [vmem:[%s284 + $0x280] sm:$0xf]
        %v459 = vld [vmem:[%s284 + $0x284] sm:$0xf]
        %v460 = vld [vmem:[%s284 + $0x288] sm:$0xf]
        %v461 = vld [vmem:[%s284 + $0x28c] sm:$0xf]
        %v462 = vld [vmem:[%s284 + $0x290] sm:$0xf]
        %v463 = vld [vmem:[%s284 + $0x294] sm:$0xf]
        %v464 = vld [vmem:[%s284 + $0x298] sm:$0xf]
        %v465 = vld [vmem:[%s284 + $0x29c] sm:$0xf]
        %v466 = vld [vmem:[%s284 + $0x2a0] sm:$0xf]
        %v467 = vld [vmem:[%s284 + $0x2a4] sm:$0xf]
        %v468 = vld [vmem:[%s284 + $0x2a8] sm:$0xf]
        %v469 = vld [vmem:[%s284 + $0x2ac] sm:$0xf]
        %v470 = vld [vmem:[%s284 + $0x2b0] sm:$0xf]
        %v471 = vld [vmem:[%s284 + $0x2b4] sm:$0xf]
        %v472 = vld [vmem:[%s284 + $0x2b8] sm:$0xf]
        %v473 = vld [vmem:[%s284 + $0x2bc] sm:$0xf]
        %v474 = vld [vmem:[%s284 + $0x2c0] sm:$0xf]
        %v475 = vld [vmem:[%s284 + $0x2c4] sm:$0xf]
        %v476 = vld [vmem:[%s284 + $0x2c8] sm:$0xf]
        %v477 = vld [vmem:[%s284 + $0x2cc] sm:$0xf]
        %v478 = vld [vmem:[%s284 + $0x2d0] sm:$0xf]
        %v479 = vld [vmem:[%s284 + $0x2d4] sm:$0xf]
        %v480 = vld [vmem:[%s284 + $0x2d8] sm:$0xf]
        %v481 = vld [vmem:[%s284 + $0x2dc] sm:$0xf]
        %v482 = vld [vmem:[%s284 + $0x2e0] sm:$0xf]
        %v483 = vld [vmem:[%s284 + $0x2e4] sm:$0xf]
        %v484 = vld [vmem:[%s284 + $0x2e8] sm:$0xf]
        %v485 = vld [vmem:[%s284 + $0x2ec] sm:$0xf]
        %v486 = vld [vmem:[%s284 + $0x2f0] sm:$0xf]
        %v487 = vld [vmem:[%s284 + $0x2f4] sm:$0xf]
        %v488 = vld [vmem:[%s284 + $0x2f8] sm:$0xf]
        %v489 = vld [vmem:[%s284 + $0x2fc] sm:$0xf]
        %v490 = vld [vmem:[%s284 + $0x300] sm:$0xf]
        %v491 = vld [vmem:[%s284 + $0x304] sm:$0xf]
        %v492 = vld [vmem:[%s284 + $0x308] sm:$0xf]
        %v493 = vld [vmem:[%s284 + $0x30c] sm:$0xf]
        %v494 = vld [vmem:[%s284 + $0x310] sm:$0xf]
        %v495 = vld [vmem:[%s284 + $0x314] sm:$0xf]
        %v496 = vld [vmem:[%s284 + $0x318] sm:$0xf]
        %v497 = vld [vmem:[%s284 + $0x31c] sm:$0xf]
        %v498 = vld [vmem:[%s284 + $0x320] sm:$0xf]
        %v499 = vld [vmem:[%s284 + $0x324] sm:$0xf]
        %v500 = vld [vmem:[%s284 + $0x328] sm:$0xf]
        %v501 = vld [vmem:[%s284 + $0x32c] sm:$0xf]
        %v502 = vld [vmem:[%s284 + $0x330] sm:$0xf]
        %v503 = vld [vmem:[%s284 + $0x334] sm:$0xf]
        %v504 = vld [vmem:[%s284 + $0x338] sm:$0xf]
        %v505 = vld [vmem:[%s284 + $0x33c] sm:$0xf]
        %v506 = vld [vmem:[%s284 + $0x340] sm:$0xf]
        %v507 = vld [vmem:[%s284 + $0x344] sm:$0xf]
        %v508 = vld [vmem:[%s284 + $0x348] sm:$0xf]
        %v509 = vld [vmem:[%s284 + $0x34c] sm:$0xf]
        %v510 = vld [vmem:[%s284 + $0x350] sm:$0xf]
        %v511 = vld [vmem:[%s284 + $0x354] sm:$0xf]
        %v512 = vld [vmem:[%s284 + $0x358] sm:$0xf]
        %v513 = vld [vmem:[%s284 + $0x35c] sm:$0xf]
        %v514 = vld [vmem:[%s284 + $0x360] sm:$0xf]
        %v515 = vld [vmem:[%s284 + $0x364] sm:$0xf]
        %v516 = vld [vmem:[%s284 + $0x368] sm:$0xf]
        %v517 = vld [vmem:[%s284 + $0x36c] sm:$0xf]
        %v518 = vld [vmem:[%s284 + $0x370] sm:$0xf]
        %v519 = vld [vmem:[%s284 + $0x374] sm:$0xf]
        %v520 = vld [vmem:[%s284 + $0x378] sm:$0xf]
        %v521 = vld [vmem:[%s284 + $0x37c] sm:$0xf]
        %v522 = vld [vmem:[%s284 + $0x380] sm:$0xf]
        %v523 = vld [vmem:[%s284 + $0x384] sm:$0xf]
        %v524 = vld [vmem:[%s284 + $0x388] sm:$0xf]
        %v525 = vld [vmem:[%s284 + $0x38c] sm:$0xf]
        %v526 = vld [vmem:[%s284 + $0x390] sm:$0xf]
        %v527 = vld [vmem:[%s284 + $0x394] sm:$0xf]
        %v528 = vld [vmem:[%s284 + $0x398] sm:$0xf]
        %v529 = vld [vmem:[%s284 + $0x39c] sm:$0xf]
        %v530 = vld [vmem:[%s284 + $0x3a0] sm:$0xf]
        %v531 = vld [vmem:[%s284 + $0x3a4] sm:$0xf]
        %v532 = vld [vmem:[%s284 + $0x3a8] sm:$0xf]
        %v533 = vld [vmem:[%s284 + $0x3ac] sm:$0xf]
        %v534 = vld [vmem:[%s284 + $0x3b0] sm:$0xf]
        %v535 = vld [vmem:[%s284 + $0x3b4] sm:$0xf]
        %v536 = vld [vmem:[%s284 + $0x3b8] sm:$0xf]
        %v537 = vld [vmem:[%s284 + $0x3bc] sm:$0xf]
        %v538 = vld [vmem:[%s284 + $0x3c0] sm:$0xf]
        %v539 = vld [vmem:[%s284 + $0x3c4] sm:$0xf]
        %v540 = vld [vmem:[%s284 + $0x3c8] sm:$0xf]
        %v541 = vld [vmem:[%s284 + $0x3cc] sm:$0xf]
        %v542 = vld [vmem:[%s284 + $0x3d0] sm:$0xf]
        %v543 = vld [vmem:[%s284 + $0x3d4] sm:$0xf]
        %v544 = vld [vmem:[%s284 + $0x3d8] sm:$0xf]
        %v545 = vld [vmem:[%s284 + $0x3dc] sm:$0xf]
        %v546 = vld [vmem:[%s284 + $0x3e0] sm:$0xf]
        %v547 = vld [vmem:[%s284 + $0x3e4] sm:$0xf]
        %v548 = vld [vmem:[%s284 + $0x3e8] sm:$0xf]
        %v549 = vld [vmem:[%s284 + $0x3ec] sm:$0xf]
        %v550 = vld [vmem:[%s284 + $0x3f0] sm:$0xf]
        %v551 = vld [vmem:[%s284 + $0x3f4] sm:$0xf]
        %v552 = vld [vmem:[%s284 + $0x3f8] sm:$0xf]
        %v553 = vld [vmem:[%s284 + $0x3fc] sm:$0xf]
        %v554 = vld [vmem:[%s284 + $0x400] sm:$0xf]
        %v555 = vld [vmem:[%s284 + $0x404] sm:$0xf]
        %v556 = vld [vmem:[%s284 + $0x408] sm:$0xf]
        %v557 = vld [vmem:[%s284 + $0x40c] sm:$0xf]
        %v558 = vld [vmem:[%s284 + $0x410] sm:$0xf]
        %v559 = vld [vmem:[%s284 + $0x414] sm:$0xf]
        %v560 = vld [vmem:[%s284 + $0x418] sm:$0xf]
        %v561 = vld [vmem:[%s284 + $0x41c] sm:$0xf]
        %v562 = vld [vmem:[%s284 + $0x420] sm:$0xf]
        %v563 = vld [vmem:[%s284 + $0x424] sm:$0xf]
        %v564 = vld [vmem:[%s284 + $0x428] sm:$0xf]
        %v565 = vld [vmem:[%s284 + $0x42c] sm:$0xf]
        %v566 = vld [vmem:[%s284 + $0x430] sm:$0xf]
        %v567 = vld [vmem:[%s284 + $0x434] sm:$0xf]
        %v568 = vld [vmem:[%s284 + $0x438] sm:$0xf]
        %v569 = vld [vmem:[%s284 + $0x43c] sm:$0xf]
        %v570 = vld [vmem:[%s284 + $0x440] sm:$0xf]
        %v571 = vld [vmem:[%s284 + $0x444] sm:$0xf]
        %v572 = vld [vmem:[%s284 + $0x448] sm:$0xf]
        %v573 = vld [vmem:[%s284 + $0x44c] sm:$0xf]
        %v574 = vld [vmem:[%s284 + $0x450] sm:$0xf]
        %v575 = vld [vmem:[%s284 + $0x454] sm:$0xf]
        %v576 = vld [vmem:[%s284 + $0x458] sm:$0xf]
        %v577 = vld [vmem:[%s284 + $0x45c] sm:$0xf]
        %v578 = vld [vmem:[%s284 + $0x460] sm:$0xf]
        %v579 = vld [vmem:[%s284 + $0x464] sm:$0xf]
        %v580 = vld [vmem:[%s284 + $0x468] sm:$0xf]
        %v581 = vld [vmem:[%s284 + $0x46c] sm:$0xf]
        %v582 = vld [vmem:[%s284 + $0x470] sm:$0xf]
        %v583 = vld [vmem:[%s284 + $0x474] sm:$0xf]
        %v584 = vld [vmem:[%s284 + $0x478] sm:$0xf]
        %v585 = vld [vmem:[%s284 + $0x47c] sm:$0xf]
        %v586 = vld [vmem:[%s284 + $0x480] sm:$0xf]
        %v587 = vld [vmem:[%s284 + $0x484] sm:$0xf]
        %v588 = vld [vmem:[%s284 + $0x488] sm:$0xf]
        %v589 = vld [vmem:[%s284 + $0x48c] sm:$0xf]
        %v590 = vld [vmem:[%s284 + $0x490] sm:$0xf]
        %v591 = vld [vmem:[%s284 + $0x494] sm:$0xf]
        %v592 = vld [vmem:[%s284 + $0x498] sm:$0xf]
        %v593 = vld [vmem:[%s284 + $0x49c] sm:$0xf]
        %v594 = vld [vmem:[%s284 + $0x4a0] sm:$0xf]
        %v595 = vld [vmem:[%s284 + $0x4a4] sm:$0xf]
        %v596 = vld [vmem:[%s284 + $0x4a8] sm:$0xf]
        %v597 = vld [vmem:[%s284 + $0x4ac] sm:$0xf]
        %v598 = vld [vmem:[%s284 + $0x4b0] sm:$0xf]
        %v599 = vld [vmem:[%s284 + $0x4b4] sm:$0xf]
        %v600 = vld [vmem:[%s284 + $0x4b8] sm:$0xf]
        %v601 = vld [vmem:[%s284 + $0x4bc] sm:$0xf]
        %v602 = vld [vmem:[%s284 + $0x4c0] sm:$0xf]
        %v603 = vld [vmem:[%s284 + $0x4c4] sm:$0xf]
        %v604 = vld [vmem:[%s284 + $0x4c8] sm:$0xf]
        %v605 = vld [vmem:[%s284 + $0x4cc] sm:$0xf]
        %v606 = vld [vmem:[%s284 + $0x4d0] sm:$0xf]
        %v607 = vld [vmem:[%s284 + $0x4d4] sm:$0xf]
        %v608 = vld [vmem:[%s284 + $0x4d8] sm:$0xf]
        %v609 = vld [vmem:[%s284 + $0x4dc] sm:$0xf]
        %v610 = vld [vmem:[%s284 + $0x4e0] sm:$0xf]
        %v611 = vld [vmem:[%s284 + $0x4e4] sm:$0xf]
        %v612 = vld [vmem:[%s284 + $0x4e8] sm:$0xf]
        %v613 = vld [vmem:[%s284 + $0x4ec] sm:$0xf]
        %v614 = vld [vmem:[%s284 + $0x4f0] sm:$0xf]
        %v615 = vld [vmem:[%s284 + $0x4f4] sm:$0xf]
        %v616 = vld [vmem:[%s284 + $0x4f8] sm:$0xf]
        %v617 = vld [vmem:[%s284 + $0x4fc] sm:$0xf]
        %v618 = vld [vmem:[%s284 + $0x500] sm:$0xf]
        %v619 = vld [vmem:[%s284 + $0x504] sm:$0xf]
        %v620 = vld [vmem:[%s284 + $0x508] sm:$0xf]
        %v621 = vld [vmem:[%s284 + $0x50c] sm:$0xf]
        %v622 = vld [vmem:[%s284 + $0x510] sm:$0xf]
        %v623 = vld [vmem:[%s284 + $0x514] sm:$0xf]
        %v624 = vld [vmem:[%s284 + $0x518] sm:$0xf]
        %v625 = vld [vmem:[%s284 + $0x51c] sm:$0xf]
        %v626 = vld [vmem:[%s284 + $0x520] sm:$0xf]
        %v627 = vld [vmem:[%s284 + $0x524] sm:$0xf]
        %v628 = vld [vmem:[%s284 + $0x528] sm:$0xf]
        %v629 = vld [vmem:[%s284 + $0x52c] sm:$0xf]
        %v630 = vld [vmem:[%s284 + $0x530] sm:$0xf]
        %v631 = vld [vmem:[%s284 + $0x534] sm:$0xf]
        %v632 = vld [vmem:[%s284 + $0x538] sm:$0xf]
        %v633 = vld [vmem:[%s284 + $0x53c] sm:$0xf]
        %v634 = vld [vmem:[%s284 + $0x540] sm:$0xf]
        %v635 = vld [vmem:[%s284 + $0x544] sm:$0xf]
        %v636 = vld [vmem:[%s284 + $0x548] sm:$0xf]
        %v637 = vld [vmem:[%s284 + $0x54c] sm:$0xf]
        %v638 = vld [vmem:[%s284 + $0x550] sm:$0xf]
        %v639 = vld [vmem:[%s284 + $0x554] sm:$0xf]
        %v640 = vld [vmem:[%s284 + $0x558] sm:$0xf]
        %v641 = vld [vmem:[%s284 + $0x55c] sm:$0xf]
        %v642 = vld [vmem:[%s284 + $0x560] sm:$0xf]
        %v643 = vld [vmem:[%s284 + $0x564] sm:$0xf]
        %v644 = vld [vmem:[%s284 + $0x568] sm:$0xf]
        %v645 = vld [vmem:[%s284 + $0x56c] sm:$0xf]
        %v646 = vld [vmem:[%s284 + $0x570] sm:$0xf]
        %v647 = vld [vmem:[%s284 + $0x574] sm:$0xf]
        %v648 = vld [vmem:[%s284 + $0x578] sm:$0xf]
        %v649 = vld [vmem:[%s284 + $0x57c] sm:$0xf]
        %v650 = vld [vmem:[%s284 + $0x580] sm:$0xf]
        %v651 = vld [vmem:[%s284 + $0x584] sm:$0xf]
        %v652 = vld [vmem:[%s284 + $0x588] sm:$0xf]
        %v653 = vld [vmem:[%s284 + $0x58c] sm:$0xf]
        %v654 = vld [vmem:[%s284 + $0x590] sm:$0xf]
        %v655 = vld [vmem:[%s284 + $0x594] sm:$0xf]
        %v656 = vld [vmem:[%s284 + $0x598] sm:$0xf]
        %v657 = vld [vmem:[%s284 + $0x59c] sm:$0xf]
        %v658 = vld [vmem:[%s284 + $0x5a0] sm:$0xf]
        %v659 = vld [vmem:[%s284 + $0x5a4] sm:$0xf]
        %v660 = vld [vmem:[%s284 + $0x5a8] sm:$0xf]
        %v661 = vld [vmem:[%s284 + $0x5ac] sm:$0xf]
        %v662 = vld [vmem:[%s284 + $0x5b0] sm:$0xf]
        %v663 = vld [vmem:[%s284 + $0x5b4] sm:$0xf]
        %v664 = vld [vmem:[%s284 + $0x5b8] sm:$0xf]
        %v665 = vld [vmem:[%s284 + $0x5bc] sm:$0xf]
        %v666 = vld [vmem:[%s284 + $0x5c0] sm:$0xf]
        %v667 = vld [vmem:[%s284 + $0x5c4] sm:$0xf]
        %v668 = vld [vmem:[%s284 + $0x5c8] sm:$0xf]
        %v669 = vld [vmem:[%s284 + $0x5cc] sm:$0xf]
        %v670 = vld [vmem:[%s284 + $0x5d0] sm:$0xf]
        %v671 = vld [vmem:[%s284 + $0x5d4] sm:$0xf]
        %v672 = vld [vmem:[%s284 + $0x5d8] sm:$0xf]
        %v673 = vld [vmem:[%s284 + $0x5dc] sm:$0xf]
        %v674 = vld [vmem:[%s284 + $0x5e0] sm:$0xf]
        %v675 = vld [vmem:[%s284 + $0x5e4] sm:$0xf]
        %v676 = vld [vmem:[%s284 + $0x5e8] sm:$0xf]
        %v677 = vld [vmem:[%s284 + $0x5ec] sm:$0xf]
        %v678 = vld [vmem:[%s284 + $0x5f0] sm:$0xf]
        %v679 = vld [vmem:[%s284 + $0x5f4] sm:$0xf]
        %v680 = vld [vmem:[%s284 + $0x5f8] sm:$0xf]
        %v681 = vld [vmem:[%s284 + $0x5fc] sm:$0xf]
        %v682 = vld [vmem:[%s284 + $0x600] sm:$0xf]
        %v683 = vld [vmem:[%s284 + $0x604] sm:$0xf]
        %v684 = vld [vmem:[%s284 + $0x608] sm:$0xf]
        %v685 = vld [vmem:[%s284 + $0x60c] sm:$0xf]
        %v686 = vld [vmem:[%s284 + $0x610] sm:$0xf]
        %v687 = vld [vmem:[%s284 + $0x614] sm:$0xf]
        %v688 = vld [vmem:[%s284 + $0x618] sm:$0xf]
        %v689 = vld [vmem:[%s284 + $0x61c] sm:$0xf]
        %v690 = vld [vmem:[%s284 + $0x620] sm:$0xf]
        %v691 = vld [vmem:[%s284 + $0x624] sm:$0xf]
        %v692 = vld [vmem:[%s284 + $0x628] sm:$0xf]
        %v693 = vld [vmem:[%s284 + $0x62c] sm:$0xf]
        %v694 = vld [vmem:[%s284 + $0x630] sm:$0xf]
        %v695 = vld [vmem:[%s284 + $0x634] sm:$0xf]
        %v696 = vld [vmem:[%s284 + $0x638] sm:$0xf]
        %v697 = vld [vmem:[%s284 + $0x63c] sm:$0xf]
        %v698 = vld [vmem:[%s284 + $0x640] sm:$0xf]
        %v699 = vld [vmem:[%s284 + $0x644] sm:$0xf]
        %v700 = vld [vmem:[%s284 + $0x648] sm:$0xf]
        %v701 = vld [vmem:[%s284 + $0x64c] sm:$0xf]
        %v702 = vld [vmem:[%s284 + $0x650] sm:$0xf]
        %v703 = vld [vmem:[%s284 + $0x654] sm:$0xf]
        %v704 = vld [vmem:[%s284 + $0x658] sm:$0xf]
        %v705 = vld [vmem:[%s284 + $0x65c] sm:$0xf]
        %v706 = vld [vmem:[%s284 + $0x660] sm:$0xf]
        %v707 = vld [vmem:[%s284 + $0x664] sm:$0xf]
        %v708 = vld [vmem:[%s284 + $0x668] sm:$0xf]
        %v709 = vld [vmem:[%s284 + $0x66c] sm:$0xf]
        %v710 = vld [vmem:[%s284 + $0x670] sm:$0xf]
        %v711 = vld [vmem:[%s284 + $0x674] sm:$0xf]
        %v712 = vld [vmem:[%s284 + $0x678] sm:$0xf]
        %v713 = vld [vmem:[%s284 + $0x67c] sm:$0xf]
        %v714 = vld [vmem:[%s284 + $0x680] sm:$0xf]
        %v715 = vld [vmem:[%s284 + $0x684] sm:$0xf]
        %v716 = vld [vmem:[%s284 + $0x688] sm:$0xf]
        %v717 = vld [vmem:[%s284 + $0x68c] sm:$0xf]
        %v718 = vld [vmem:[%s284 + $0x690] sm:$0xf]
        %v719 = vld [vmem:[%s284 + $0x694] sm:$0xf]
        %v720 = vld [vmem:[%s284 + $0x698] sm:$0xf]
        %v721 = vld [vmem:[%s284 + $0x69c] sm:$0xf]
        %v722 = vld [vmem:[%s284 + $0x6a0] sm:$0xf]
        %v723 = vld [vmem:[%s284 + $0x6a4] sm:$0xf]
        %v724 = vld [vmem:[%s284 + $0x6a8] sm:$0xf]
        %v725 = vld [vmem:[%s284 + $0x6ac] sm:$0xf]
        %v726 = vld [vmem:[%s284 + $0x6b0] sm:$0xf]
        %v727 = vld [vmem:[%s284 + $0x6b4] sm:$0xf]
        %v728 = vld [vmem:[%s284 + $0x6b8] sm:$0xf]
        %v729 = vld [vmem:[%s284 + $0x6bc] sm:$0xf]
        %v730 = vld [vmem:[%s284 + $0x6c0] sm:$0xf]
        %v731 = vld [vmem:[%s284 + $0x6c4] sm:$0xf]
        %v732 = vld [vmem:[%s284 + $0x6c8] sm:$0xf]
        %v733 = vld [vmem:[%s284 + $0x6cc] sm:$0xf]
        %v734 = vld [vmem:[%s284 + $0x6d0] sm:$0xf]
        %v735 = vld [vmem:[%s284 + $0x6d4] sm:$0xf]
        %v736 = vld [vmem:[%s284 + $0x6d8] sm:$0xf]
        %v737 = vld [vmem:[%s284 + $0x6dc] sm:$0xf]
        %v738 = vld [vmem:[%s284 + $0x6e0] sm:$0xf]
        %v739 = vld [vmem:[%s284 + $0x6e4] sm:$0xf]
        %v740 = vld [vmem:[%s284 + $0x6e8] sm:$0xf]
        %v741 = vld [vmem:[%s284 + $0x6ec] sm:$0xf]
        %v742 = vld [vmem:[%s284 + $0x6f0] sm:$0xf]
        %v743 = vld [vmem:[%s284 + $0x6f4] sm:$0xf]
        %v744 = vld [vmem:[%s284 + $0x6f8] sm:$0xf]
        %v745 = vld [vmem:[%s284 + $0x6fc] sm:$0xf]
        %v746 = vld [vmem:[%s284 + $0x700] sm:$0xf]
        %v747 = vld [vmem:[%s284 + $0x704] sm:$0xf]
        %v748 = vld [vmem:[%s284 + $0x708] sm:$0xf]
        %v749 = vld [vmem:[%s284 + $0x70c] sm:$0xf]
        %v750 = vld [vmem:[%s284 + $0x710] sm:$0xf]
        %v751 = vld [vmem:[%s284 + $0x714] sm:$0xf]
        %v752 = vld [vmem:[%s284 + $0x718] sm:$0xf]
        %v753 = vld [vmem:[%s284 + $0x71c] sm:$0xf]
        %v754 = vld [vmem:[%s284 + $0x720] sm:$0xf]
        %v755 = vld [vmem:[%s284 + $0x724] sm:$0xf]
        %v756 = vld [vmem:[%s284 + $0x728] sm:$0xf]
        %v757 = vld [vmem:[%s284 + $0x72c] sm:$0xf]
        %v758 = vld [vmem:[%s284 + $0x730] sm:$0xf]
        %v759 = vld [vmem:[%s284 + $0x734] sm:$0xf]
        %v760 = vld [vmem:[%s284 + $0x738] sm:$0xf]
        %v761 = vld [vmem:[%s284 + $0x73c] sm:$0xf]
        %v762 = vld [vmem:[%s284 + $0x740] sm:$0xf]
        %v763 = vld [vmem:[%s284 + $0x744] sm:$0xf]
        %v764 = vld [vmem:[%s284 + $0x748] sm:$0xf]
        %v765 = vld [vmem:[%s284 + $0x74c] sm:$0xf]
        %v766 = vld [vmem:[%s284 + $0x750] sm:$0xf]
        %v767 = vld [vmem:[%s284 + $0x754] sm:$0xf]
        %v768 = vld [vmem:[%s284 + $0x758] sm:$0xf]
        %v769 = vld [vmem:[%s284 + $0x75c] sm:$0xf]
        %v770 = vld [vmem:[%s284 + $0x760] sm:$0xf]
        %v771 = vld [vmem:[%s284 + $0x764] sm:$0xf]
        %v772 = vld [vmem:[%s284 + $0x768] sm:$0xf]
        %v773 = vld [vmem:[%s284 + $0x76c] sm:$0xf]
        %v774 = vld [vmem:[%s284 + $0x770] sm:$0xf]
        %v775 = vld [vmem:[%s284 + $0x774] sm:$0xf]
        %v776 = vld [vmem:[%s284 + $0x778] sm:$0xf]
        %v777 = vld [vmem:[%s284 + $0x77c] sm:$0xf]
        %v782 = vcombine.high %v294, %v294
        %v784 = vunpack.c.l.s4 1966171168
        %v785 = vunpack.c.0.s8 %v784
        %v786 = vlaneseq
        %v787 = vshrl.u32 %v786, 7
        %v788 = vsub.s32 %v785, %v787
        %v789 = vrot.slane %v294, %v788
        %v791 = vunpack.c.l.s4 1966171168
        %v792 = vunpack.c.0.s8 %v791
        %v793 = vlaneseq
        %v794 = vshrl.u32 %v793, 7
        %v795 = vsub.s32 %v792, %v794
        %v796 = vrot.slane %v782, %v795
        %v797 = vcombine.high %v789, %v789
        %v798 = vcombine.high %v796, %v796
        %v800 = vunpack.c.l.s4 1966171168
        %v801 = vunpack.c.0.s8 %v800
        %v802 = vlaneseq
        %v803 = vshrl.u32 %v802, 7
        %v804 = vsub.s32 %v801, %v803
        %v805 = vrot.slane %v789, %v804
        %v807 = vunpack.c.l.s4 1966171168
        %v808 = vunpack.c.0.s8 %v807
        %v809 = vlaneseq
        %v810 = vshrl.u32 %v809, 7
        %v811 = vsub.s32 %v808, %v810
        %v812 = vrot.slane %v796, %v811
        %v814 = vunpack.c.l.s4 1966171168
        %v815 = vunpack.c.0.s8 %v814
        %v816 = vlaneseq
        %v817 = vshrl.u32 %v816, 7
        %v818 = vsub.s32 %v815, %v817
        %v819 = vrot.slane %v797, %v818
        %v821 = vunpack.c.l.s4 1966171168
        %v822 = vunpack.c.0.s8 %v821
        %v823 = vlaneseq
        %v824 = vshrl.u32 %v823, 7
        %v825 = vsub.s32 %v822, %v824
        %v826 = vrot.slane %v798, %v825
        %v827 = vcombine.high %v805, %v805
        %v828 = vcombine.high %v812, %v812
        %v829 = vcombine.high %v819, %v819
        %v830 = vcombine.high %v826, %v826
        %v831 = vcombine.high %v295, %v295
        %v833 = vunpack.c.l.s4 1966171168
        %v834 = vunpack.c.0.s8 %v833
        %v835 = vlaneseq
        %v836 = vshrl.u32 %v835, 7
        %v837 = vsub.s32 %v834, %v836
        %v838 = vrot.slane %v295, %v837
        %v840 = vunpack.c.l.s4 1966171168
        %v841 = vunpack.c.0.s8 %v840
        %v842 = vlaneseq
        %v843 = vshrl.u32 %v842, 7
        %v844 = vsub.s32 %v841, %v843
        %v845 = vrot.slane %v831, %v844
        %v846 = vcombine.high %v838, %v838
        %v847 = vcombine.high %v845, %v845
        %v849 = vunpack.c.l.s4 1966171168
        %v850 = vunpack.c.0.s8 %v849
        %v851 = vlaneseq
        %v852 = vshrl.u32 %v851, 7
        %v853 = vsub.s32 %v850, %v852
        %v854 = vrot.slane %v838, %v853
        %v856 = vunpack.c.l.s4 1966171168
        %v857 = vunpack.c.0.s8 %v856
        %v858 = vlaneseq
        %v859 = vshrl.u32 %v858, 7
        %v860 = vsub.s32 %v857, %v859
        %v861 = vrot.slane %v845, %v860
        %v863 = vunpack.c.l.s4 1966171168
        %v864 = vunpack.c.0.s8 %v863
        %v865 = vlaneseq
        %v866 = vshrl.u32 %v865, 7
        %v867 = vsub.s32 %v864, %v866
        %v868 = vrot.slane %v846, %v867
        %v870 = vunpack.c.l.s4 1966171168
        %v871 = vunpack.c.0.s8 %v870
        %v872 = vlaneseq
        %v873 = vshrl.u32 %v872, 7
        %v874 = vsub.s32 %v871, %v873
        %v875 = vrot.slane %v847, %v874
        %v876 = vcombine.high %v854, %v854
        %v877 = vcombine.high %v861, %v861
        %v878 = vcombine.high %v868, %v868
        %v879 = vcombine.high %v875, %v875
        %v880 = vcombine.high %v296, %v296
        %v882 = vunpack.c.l.s4 1966171168
        %v883 = vunpack.c.0.s8 %v882
        %v884 = vlaneseq
        %v885 = vshrl.u32 %v884, 7
        %v886 = vsub.s32 %v883, %v885
        %v887 = vrot.slane %v296, %v886
        %v889 = vunpack.c.l.s4 1966171168
        %v890 = vunpack.c.0.s8 %v889
        %v891 = vlaneseq
        %v892 = vshrl.u32 %v891, 7
        %v893 = vsub.s32 %v890, %v892
        %v894 = vrot.slane %v880, %v893
        %v895 = vcombine.high %v887, %v887
        %v896 = vcombine.high %v894, %v894
        %v898 = vunpack.c.l.s4 1966171168
        %v899 = vunpack.c.0.s8 %v898
        %v900 = vlaneseq
        %v901 = vshrl.u32 %v900, 7
        %v902 = vsub.s32 %v899, %v901
        %v903 = vrot.slane %v887, %v902
        %v905 = vunpack.c.l.s4 1966171168
        %v906 = vunpack.c.0.s8 %v905
        %v907 = vlaneseq
        %v908 = vshrl.u32 %v907, 7
        %v909 = vsub.s32 %v906, %v908
        %v910 = vrot.slane %v894, %v909
        %v912 = vunpack.c.l.s4 1966171168
        %v913 = vunpack.c.0.s8 %v912
        %v914 = vlaneseq
        %v915 = vshrl.u32 %v914, 7
        %v916 = vsub.s32 %v913, %v915
        %v917 = vrot.slane %v895, %v916
        %v919 = vunpack.c.l.s4 1966171168
        %v920 = vunpack.c.0.s8 %v919
        %v921 = vlaneseq
        %v922 = vshrl.u32 %v921, 7
        %v923 = vsub.s32 %v920, %v922
        %v924 = vrot.slane %v896, %v923
        %v925 = vcombine.high %v903, %v903
        %v926 = vcombine.high %v910, %v910
        %v927 = vcombine.high %v917, %v917
        %v928 = vcombine.high %v924, %v924
        %v929 = vcombine.high %v297, %v297
        %v931 = vunpack.c.l.s4 1966171168
        %v932 = vunpack.c.0.s8 %v931
        %v933 = vlaneseq
        %v934 = vshrl.u32 %v933, 7
        %v935 = vsub.s32 %v932, %v934
        %v936 = vrot.slane %v297, %v935
        %v938 = vunpack.c.l.s4 1966171168
        %v939 = vunpack.c.0.s8 %v938
        %v940 = vlaneseq
        %v941 = vshrl.u32 %v940, 7
        %v942 = vsub.s32 %v939, %v941
        %v943 = vrot.slane %v929, %v942
        %v944 = vcombine.high %v936, %v936
        %v945 = vcombine.high %v943, %v943
        %v947 = vunpack.c.l.s4 1966171168
        %v948 = vunpack.c.0.s8 %v947
        %v949 = vlaneseq
        %v950 = vshrl.u32 %v949, 7
        %v951 = vsub.s32 %v948, %v950
        %v952 = vrot.slane %v936, %v951
        %v954 = vunpack.c.l.s4 1966171168
        %v955 = vunpack.c.0.s8 %v954
        %v956 = vlaneseq
        %v957 = vshrl.u32 %v956, 7
        %v958 = vsub.s32 %v955, %v957
        %v959 = vrot.slane %v943, %v958
        %v961 = vunpack.c.l.s4 1966171168
        %v962 = vunpack.c.0.s8 %v961
        %v963 = vlaneseq
        %v964 = vshrl.u32 %v963, 7
        %v965 = vsub.s32 %v962, %v964
        %v966 = vrot.slane %v944, %v965
        %v968 = vunpack.c.l.s4 1966171168
        %v969 = vunpack.c.0.s8 %v968
        %v970 = vlaneseq
        %v971 = vshrl.u32 %v970, 7
        %v972 = vsub.s32 %v969, %v971
        %v973 = vrot.slane %v945, %v972
        %v974 = vcombine.high %v952, %v952
        %v975 = vcombine.high %v966, %v966
        %v1486 = vunpack.c.l.b16 %v298
        %v1487 = vunpack.c.l.b16 %v299
        %v1488 = vunpack.c.l.b16 %v300
        %v1489 = vunpack.c.l.b16 %v301
        %v1490 = vunpack.c.l.b16 %v302
        %v1491 = vunpack.c.l.b16 %v303
        %v1492 = vunpack.c.l.b16 %v304
        %v1493 = vunpack.c.l.b16 %v305
        %v1494 = vunpack.c.l.b16 %v306
        %v1495 = vunpack.c.l.b16 %v307
        %v1496 = vunpack.c.l.b16 %v308
        %v1497 = vunpack.c.l.b16 %v309
        %v1498 = vunpack.c.l.b16 %v310
        %v1499 = vunpack.c.l.b16 %v311
        %v1500 = vunpack.c.l.b16 %v312
        %v1501 = vunpack.c.l.b16 %v313
        %v1502 = vunpack.c.l.b16 %v314
        %v1503 = vunpack.c.l.b16 %v315
        %v1504 = vunpack.c.l.b16 %v316
        %v1505 = vunpack.c.l.b16 %v317
        %v1506 = vunpack.c.l.b16 %v318
        %v1507 = vunpack.c.l.b16 %v319
        %v1508 = vunpack.c.l.b16 %v320
        %v1509 = vunpack.c.l.b16 %v321
        %v1510 = vunpack.c.l.b16 %v322
        %v1511 = vunpack.c.l.b16 %v323
        %v1512 = vunpack.c.l.b16 %v324
        %v1513 = vunpack.c.l.b16 %v325
        %v1514 = vunpack.c.l.b16 %v326
        %v1515 = vunpack.c.l.b16 %v327
        %v1516 = vunpack.c.l.b16 %v328
        %v1517 = vunpack.c.l.b16 %v329
        %v1518 = vunpack.c.l.b16 %v330
        %v1519 = vunpack.c.l.b16 %v331
        %v1520 = vunpack.c.l.b16 %v332
        %v1521 = vunpack.c.l.b16 %v333
        %v1522 = vunpack.c.l.b16 %v334
        %v1523 = vunpack.c.l.b16 %v335
        %v1524 = vunpack.c.l.b16 %v336
        %v1525 = vunpack.c.l.b16 %v337
        %v1526 = vunpack.c.l.b16 %v338
        %v1527 = vunpack.c.l.b16 %v339
        %v1528 = vunpack.c.l.b16 %v340
        %v1529 = vunpack.c.l.b16 %v341
        %v1530 = vunpack.c.l.b16 %v342
        %v1531 = vunpack.c.l.b16 %v343
        %v1532 = vunpack.c.l.b16 %v344
        %v1533 = vunpack.c.l.b16 %v345
        %v1534 = vunpack.c.l.b16 %v346
        %v1535 = vunpack.c.l.b16 %v347
        %v1536 = vunpack.c.l.b16 %v348
        %v1537 = vunpack.c.l.b16 %v349
        %v1538 = vunpack.c.l.b16 %v350
        %v1539 = vunpack.c.l.b16 %v351
        %v1540 = vunpack.c.l.b16 %v352
        %v1541 = vunpack.c.l.b16 %v353
        %v1542 = vunpack.c.l.b16 %v354
        %v1543 = vunpack.c.l.b16 %v355
        %v1544 = vunpack.c.l.b16 %v356
        %v1545 = vunpack.c.l.b16 %v357
        %v1546 = vunpack.c.l.b16 %v358
        %v1547 = vunpack.c.l.b16 %v359
        %v1548 = vunpack.c.l.b16 %v360
        %v1549 = vunpack.c.l.b16 %v361
        %v1550 = vunpack.c.l.b16 %v362
        %v1551 = vunpack.c.l.b16 %v363
        %v1552 = vunpack.c.l.b16 %v364
        %v1553 = vunpack.c.l.b16 %v365
        %v1554 = vunpack.c.l.b16 %v366
        %v1555 = vunpack.c.l.b16 %v367
        %v1556 = vunpack.c.l.b16 %v368
        %v1557 = vunpack.c.l.b16 %v369
        %v1558 = vunpack.c.l.b16 %v370
        %v1559 = vunpack.c.l.b16 %v371
        %v1560 = vunpack.c.l.b16 %v372
        %v1561 = vunpack.c.l.b16 %v373
        %v1562 = vunpack.c.l.b16 %v374
        %v1563 = vunpack.c.l.b16 %v375
        %v1564 = vunpack.c.l.b16 %v376
        %v1565 = vunpack.c.l.b16 %v377
        %v1566 = vunpack.c.l.b16 %v378
        %v1567 = vunpack.c.l.b16 %v379
        %v1568 = vunpack.c.l.b16 %v380
        %v1569 = vunpack.c.l.b16 %v381
        %v1570 = vunpack.c.l.b16 %v382
        %v1571 = vunpack.c.l.b16 %v383
        %v1572 = vunpack.c.l.b16 %v384
        %v1573 = vunpack.c.l.b16 %v385
        %v1574 = vunpack.c.l.b16 %v386
        %v1575 = vunpack.c.l.b16 %v387
        %v1576 = vunpack.c.l.b16 %v388
        %v1577 = vunpack.c.l.b16 %v389
        %v1578 = vunpack.c.l.b16 %v390
        %v1579 = vunpack.c.l.b16 %v391
        %v1580 = vunpack.c.l.b16 %v392
        %v1581 = vunpack.c.l.b16 %v393
        %v1582 = vunpack.c.l.b16 %v394
        %v1583 = vunpack.c.l.b16 %v395
        %v1584 = vunpack.c.l.b16 %v396
        %v1585 = vunpack.c.l.b16 %v397
        %v1586 = vunpack.c.l.b16 %v398
        %v1587 = vunpack.c.l.b16 %v399
        %v1588 = vunpack.c.l.b16 %v400
        %v1589 = vunpack.c.l.b16 %v401
        %v1590 = vunpack.c.l.b16 %v402
        %v1591 = vunpack.c.l.b16 %v403
        %v1592 = vunpack.c.l.b16 %v404
        %v1593 = vunpack.c.l.b16 %v405
        %v1594 = vunpack.c.l.b16 %v406
        %v1595 = vunpack.c.l.b16 %v407
        %v1596 = vunpack.c.l.b16 %v408
        %v1597 = vunpack.c.l.b16 %v409
        %v1598 = vunpack.c.l.b16 %v410
        %v1599 = vunpack.c.l.b16 %v411
        %v1600 = vunpack.c.l.b16 %v412
        %v1601 = vunpack.c.l.b16 %v413
        %v1602 = vunpack.c.l.b16 %v414
        %v1603 = vunpack.c.l.b16 %v415
        %v1604 = vunpack.c.l.b16 %v416
        %v1605 = vunpack.c.l.b16 %v417
        %v1606 = vunpack.c.l.b16 %v418
        %v1607 = vunpack.c.l.b16 %v419
        %v1608 = vunpack.c.l.b16 %v420
        %v1609 = vunpack.c.l.b16 %v421
        %v1610 = vunpack.c.l.b16 %v422
        %v1611 = vunpack.c.l.b16 %v423
        %v1612 = vunpack.c.l.b16 %v424
        %v1613 = vunpack.c.l.b16 %v425
        %v1614 = vunpack.c.l.b16 %v426
        %v1615 = vunpack.c.l.b16 %v427
        %v1616 = vunpack.c.l.b16 %v428
        %v1617 = vunpack.c.l.b16 %v429
        %v1618 = vunpack.c.l.b16 %v430
        %v1619 = vunpack.c.l.b16 %v431
        %v1620 = vunpack.c.l.b16 %v432
        %v1621 = vunpack.c.l.b16 %v433
        %v1622 = vunpack.c.l.b16 %v434
        %v1623 = vunpack.c.l.b16 %v435
        %v1624 = vunpack.c.l.b16 %v436
        %v1625 = vunpack.c.l.b16 %v437
        %v1626 = vunpack.c.l.b16 %v438
        %v1627 = vunpack.c.l.b16 %v439
        %v1628 = vunpack.c.l.b16 %v440
        %v1629 = vunpack.c.l.b16 %v441
        %v1630 = vunpack.c.l.b16 %v442
        %v1631 = vunpack.c.l.b16 %v443
        %v1632 = vunpack.c.l.b16 %v444
        %v1633 = vunpack.c.l.b16 %v445
        %v1634 = vunpack.c.l.b16 %v446
        %v1635 = vunpack.c.l.b16 %v447
        %v1636 = vunpack.c.l.b16 %v448
        %v1637 = vunpack.c.l.b16 %v449
        %v1638 = vunpack.c.l.b16 %v450
        %v1639 = vunpack.c.l.b16 %v451
        %v1640 = vunpack.c.l.b16 %v452
        %v1641 = vunpack.c.l.b16 %v453
        %v1642 = vunpack.c.l.b16 %v454
        %v1643 = vunpack.c.l.b16 %v455
        %v1644 = vunpack.c.l.b16 %v456
        %v1645 = vunpack.c.l.b16 %v457
        %v1646 = vunpack.c.l.b16 %v458
        %v1647 = vunpack.c.l.b16 %v459
        %v1648 = vunpack.c.l.b16 %v460
        %v1649 = vunpack.c.l.b16 %v461
        %v1650 = vunpack.c.l.b16 %v462
        %v1651 = vunpack.c.l.b16 %v463
        %v1652 = vunpack.c.l.b16 %v464
        %v1653 = vunpack.c.l.b16 %v465
        %v1654 = vunpack.c.l.b16 %v466
        %v1655 = vunpack.c.l.b16 %v467
        %v1656 = vunpack.c.l.b16 %v468
        %v1657 = vunpack.c.l.b16 %v469
        %v1658 = vunpack.c.l.b16 %v470
        %v1659 = vunpack.c.l.b16 %v471
        %v1660 = vunpack.c.l.b16 %v472
        %v1661 = vunpack.c.l.b16 %v473
        %v1662 = vunpack.c.l.b16 %v474
        %v1663 = vunpack.c.l.b16 %v475
        %v1664 = vunpack.c.l.b16 %v476
        %v1665 = vunpack.c.l.b16 %v477
        %v1666 = vunpack.c.l.b16 %v478
        %v1667 = vunpack.c.l.b16 %v479
        %v1668 = vunpack.c.l.b16 %v480
        %v1669 = vunpack.c.l.b16 %v481
        %v1670 = vunpack.c.l.b16 %v482
        %v1671 = vunpack.c.l.b16 %v483
        %v1672 = vunpack.c.l.b16 %v484
        %v1673 = vunpack.c.l.b16 %v485
        %v1674 = vunpack.c.l.b16 %v486
        %v1675 = vunpack.c.l.b16 %v487
        %v1676 = vunpack.c.l.b16 %v488
        %v1677 = vunpack.c.l.b16 %v489
        %v1678 = vunpack.c.l.b16 %v490
        %v1679 = vunpack.c.l.b16 %v491
        %v1680 = vunpack.c.l.b16 %v492
        %v1681 = vunpack.c.l.b16 %v493
        %v1682 = vunpack.c.l.b16 %v494
        %v1683 = vunpack.c.l.b16 %v495
        %v1684 = vunpack.c.l.b16 %v496
        %v1685 = vunpack.c.l.b16 %v497
        %v1686 = vunpack.c.l.b16 %v498
        %v1687 = vunpack.c.l.b16 %v499
        %v1688 = vunpack.c.l.b16 %v500
        %v1689 = vunpack.c.l.b16 %v501
        %v1690 = vunpack.c.l.b16 %v502
        %v1691 = vunpack.c.l.b16 %v503
        %v1692 = vunpack.c.l.b16 %v504
        %v1693 = vunpack.c.l.b16 %v505
        %v1694 = vunpack.c.l.b16 %v506
        %v1695 = vunpack.c.l.b16 %v507
        %v1696 = vunpack.c.l.b16 %v508
        %v1697 = vunpack.c.l.b16 %v509
        %v1698 = vunpack.c.l.b16 %v510
        %v1699 = vunpack.c.l.b16 %v511
        %v1700 = vunpack.c.l.b16 %v512
        %v1701 = vunpack.c.l.b16 %v513
        %v1702 = vunpack.c.l.b16 %v514
        %v1703 = vunpack.c.l.b16 %v515
        %v1704 = vunpack.c.l.b16 %v516
        %v1705 = vunpack.c.l.b16 %v517
        %v1706 = vunpack.c.l.b16 %v518
        %v1707 = vunpack.c.l.b16 %v519
        %v1708 = vunpack.c.l.b16 %v520
        %v1709 = vunpack.c.l.b16 %v521
        %v1710 = vunpack.c.l.b16 %v522
        %v1711 = vunpack.c.l.b16 %v523
        %v1712 = vunpack.c.l.b16 %v524
        %v1713 = vunpack.c.l.b16 %v525
        %v1714 = vunpack.c.l.b16 %v526
        %v1715 = vunpack.c.l.b16 %v527
        %v1716 = vunpack.c.l.b16 %v528
        %v1717 = vunpack.c.l.b16 %v529
        %v1718 = vunpack.c.l.b16 %v530
        %v1719 = vunpack.c.l.b16 %v531
        %v1720 = vunpack.c.l.b16 %v532
        %v1721 = vunpack.c.l.b16 %v533
        %v1722 = vunpack.c.l.b16 %v534
        %v1723 = vunpack.c.l.b16 %v535
        %v1724 = vunpack.c.l.b16 %v536
        %v1725 = vunpack.c.l.b16 %v537
        %v1726 = vunpack.c.l.b16 %v538
        %v1727 = vunpack.c.l.b16 %v539
        %v1728 = vunpack.c.l.b16 %v540
        %v1729 = vunpack.c.l.b16 %v541
        %v1730 = vunpack.c.l.b16 %v542
        %v1731 = vunpack.c.l.b16 %v543
        %v1732 = vunpack.c.l.b16 %v544
        %v1733 = vunpack.c.l.b16 %v545
        %v1734 = vunpack.c.l.b16 %v546
        %v1735 = vunpack.c.l.b16 %v547
        %v1736 = vunpack.c.l.b16 %v548
        %v1737 = vunpack.c.l.b16 %v549
        %v1738 = vunpack.c.l.b16 %v550
        %v1739 = vunpack.c.l.b16 %v551
        %v1740 = vunpack.c.l.b16 %v552
        %v1741 = vunpack.c.l.b16 %v553
        %v1742 = vunpack.c.l.b16 %v554
        %v1743 = vunpack.c.l.b16 %v555
        %v1744 = vunpack.c.l.b16 %v556
        %v1745 = vunpack.c.l.b16 %v557
        %v1746 = vunpack.c.l.b16 %v558
        %v1747 = vunpack.c.l.b16 %v559
        %v1748 = vunpack.c.l.b16 %v560
        %v1749 = vunpack.c.l.b16 %v561
        %v1750 = vunpack.c.l.b16 %v562
        %v1751 = vunpack.c.l.b16 %v563
        %v1752 = vunpack.c.l.b16 %v564
        %v1753 = vunpack.c.l.b16 %v565
        %v1754 = vunpack.c.l.b16 %v566
        %v1755 = vunpack.c.l.b16 %v567
        %v1756 = vunpack.c.l.b16 %v568
        %v1757 = vunpack.c.l.b16 %v569
        %v1758 = vunpack.c.l.b16 %v570
        %v1759 = vunpack.c.l.b16 %v571
        %v1760 = vunpack.c.l.b16 %v572
        %v1761 = vunpack.c.l.b16 %v573
        %v1762 = vunpack.c.l.b16 %v574
        %v1763 = vunpack.c.l.b16 %v575
        %v1764 = vunpack.c.l.b16 %v576
        %v1765 = vunpack.c.l.b16 %v577
        %v1766 = vunpack.c.l.b16 %v578
        %v1767 = vunpack.c.l.b16 %v579
        %v1768 = vunpack.c.l.b16 %v580
        %v1769 = vunpack.c.l.b16 %v581
        %v1770 = vunpack.c.l.b16 %v582
        %v1771 = vunpack.c.l.b16 %v583
        %v1772 = vunpack.c.l.b16 %v584
        %v1773 = vunpack.c.l.b16 %v585
        %v1774 = vunpack.c.l.b16 %v586
        %v1775 = vunpack.c.l.b16 %v587
        %v1776 = vunpack.c.l.b16 %v588
        %v1777 = vunpack.c.l.b16 %v589
        %v1778 = vunpack.c.l.b16 %v590
        %v1779 = vunpack.c.l.b16 %v591
        %v1780 = vunpack.c.l.b16 %v592
        %v1781 = vunpack.c.l.b16 %v593
        %v1782 = vunpack.c.l.b16 %v594
        %v1783 = vunpack.c.l.b16 %v595
        %v1784 = vunpack.c.l.b16 %v596
        %v1785 = vunpack.c.l.b16 %v597
        %v1786 = vunpack.c.l.b16 %v598
        %v1787 = vunpack.c.l.b16 %v599
        %v1788 = vunpack.c.l.b16 %v600
        %v1789 = vunpack.c.l.b16 %v601
        %v1790 = vunpack.c.l.b16 %v602
        %v1791 = vunpack.c.l.b16 %v603
        %v1792 = vunpack.c.l.b16 %v604
        %v1793 = vunpack.c.l.b16 %v605
        %v1794 = vunpack.c.l.b16 %v606
        %v1795 = vunpack.c.l.b16 %v607
        %v1796 = vunpack.c.l.b16 %v608
        %v1797 = vunpack.c.l.b16 %v609
        %v1798 = vunpack.c.l.b16 %v610
        %v1799 = vunpack.c.l.b16 %v611
        %v1800 = vunpack.c.l.b16 %v612
        %v1801 = vunpack.c.l.b16 %v613
        %v1802 = vunpack.c.l.b16 %v614
        %v1803 = vunpack.c.l.b16 %v615
        %v1804 = vunpack.c.l.b16 %v616
        %v1805 = vunpack.c.l.b16 %v617
        %v1806 = vunpack.c.l.b16 %v618
        %v1807 = vunpack.c.l.b16 %v619
        %v1808 = vunpack.c.l.b16 %v620
        %v1809 = vunpack.c.l.b16 %v621
        %v1810 = vunpack.c.l.b16 %v622
        %v1811 = vunpack.c.l.b16 %v623
        %v1812 = vunpack.c.l.b16 %v624
        %v1813 = vunpack.c.l.b16 %v625
        %v1814 = vunpack.c.l.b16 %v626
        %v1815 = vunpack.c.l.b16 %v627
        %v1816 = vunpack.c.l.b16 %v628
        %v1817 = vunpack.c.l.b16 %v629
        %v1818 = vunpack.c.l.b16 %v630
        %v1819 = vunpack.c.l.b16 %v631
        %v1820 = vunpack.c.l.b16 %v632
        %v1821 = vunpack.c.l.b16 %v633
        %v1822 = vunpack.c.l.b16 %v634
        %v1823 = vunpack.c.l.b16 %v635
        %v1824 = vunpack.c.l.b16 %v636
        %v1825 = vunpack.c.l.b16 %v637
        %v1826 = vunpack.c.l.b16 %v638
        %v1827 = vunpack.c.l.b16 %v639
        %v1828 = vunpack.c.l.b16 %v640
        %v1829 = vunpack.c.l.b16 %v641
        %v1830 = vunpack.c.l.b16 %v642
        %v1831 = vunpack.c.l.b16 %v643
        %v1832 = vunpack.c.l.b16 %v644
        %v1833 = vunpack.c.l.b16 %v645
        %v1834 = vunpack.c.l.b16 %v646
        %v1835 = vunpack.c.l.b16 %v647
        %v1836 = vunpack.c.l.b16 %v648
        %v1837 = vunpack.c.l.b16 %v649
        %v1838 = vunpack.c.l.b16 %v650
        %v1839 = vunpack.c.l.b16 %v651
        %v1840 = vunpack.c.l.b16 %v652
        %v1841 = vunpack.c.l.b16 %v653
        %v1842 = vunpack.c.l.b16 %v654
        %v1843 = vunpack.c.l.b16 %v655
        %v1844 = vunpack.c.l.b16 %v656
        %v1845 = vunpack.c.l.b16 %v657
        %v1846 = vunpack.c.l.b16 %v658
        %v1847 = vunpack.c.l.b16 %v659
        %v1848 = vunpack.c.l.b16 %v660
        %v1849 = vunpack.c.l.b16 %v661
        %v1850 = vunpack.c.l.b16 %v662
        %v1851 = vunpack.c.l.b16 %v663
        %v1852 = vunpack.c.l.b16 %v664
        %v1853 = vunpack.c.l.b16 %v665
        %v1854 = vunpack.c.l.b16 %v666
        %v1855 = vunpack.c.l.b16 %v667
        %v1856 = vunpack.c.l.b16 %v668
        %v1857 = vunpack.c.l.b16 %v669
        %v1858 = vunpack.c.l.b16 %v670
        %v1859 = vunpack.c.l.b16 %v671
        %v1860 = vunpack.c.l.b16 %v672
        %v1861 = vunpack.c.l.b16 %v673
        %v1862 = vunpack.c.l.b16 %v674
        %v1863 = vunpack.c.l.b16 %v675
        %v1864 = vunpack.c.l.b16 %v676
        %v1865 = vunpack.c.l.b16 %v677
        %v1866 = vunpack.c.l.b16 %v678
        %v1867 = vunpack.c.l.b16 %v679
        %v1868 = vunpack.c.l.b16 %v680
        %v1869 = vunpack.c.l.b16 %v681
        %v1870 = vunpack.c.l.b16 %v682
        %v1871 = vunpack.c.l.b16 %v683
        %v1872 = vunpack.c.l.b16 %v684
        %v1873 = vunpack.c.l.b16 %v685
        %v1874 = vunpack.c.l.b16 %v686
        %v1875 = vunpack.c.l.b16 %v687
        %v1876 = vunpack.c.l.b16 %v688
        %v1877 = vunpack.c.l.b16 %v689
        %v1878 = vunpack.c.l.b16 %v690
        %v1879 = vunpack.c.l.b16 %v691
        %v1880 = vunpack.c.l.b16 %v692
        %v1881 = vunpack.c.l.b16 %v693
        %v1882 = vunpack.c.l.b16 %v694
        %v1883 = vunpack.c.l.b16 %v695
        %v1884 = vunpack.c.l.b16 %v696
        %v1885 = vunpack.c.l.b16 %v697
        %v1886 = vunpack.c.l.b16 %v698
        %v1887 = vunpack.c.l.b16 %v699
        %v1888 = vunpack.c.l.b16 %v700
        %v1889 = vunpack.c.l.b16 %v701
        %v1890 = vunpack.c.l.b16 %v702
        %v1891 = vunpack.c.l.b16 %v703
        %v1892 = vunpack.c.l.b16 %v704
        %v1893 = vunpack.c.l.b16 %v705
        %v1894 = vunpack.c.l.b16 %v706
        %v1895 = vunpack.c.l.b16 %v707
        %v1896 = vunpack.c.l.b16 %v708
        %v1897 = vunpack.c.l.b16 %v709
        %v1898 = vunpack.c.l.b16 %v710
        %v1899 = vunpack.c.l.b16 %v711
        %v1900 = vunpack.c.l.b16 %v712
        %v1901 = vunpack.c.l.b16 %v713
        %v1902 = vunpack.c.l.b16 %v714
        %v1903 = vunpack.c.l.b16 %v715
        %v1904 = vunpack.c.l.b16 %v716
        %v1905 = vunpack.c.l.b16 %v717
        %v1906 = vunpack.c.l.b16 %v718
        %v1907 = vunpack.c.l.b16 %v719
        %v1908 = vunpack.c.l.b16 %v720
        %v1909 = vunpack.c.l.b16 %v721
        %v1910 = vunpack.c.l.b16 %v722
        %v1911 = vunpack.c.l.b16 %v723
        %v1912 = vunpack.c.l.b16 %v724
        %v1913 = vunpack.c.l.b16 %v725
        %v1914 = vunpack.c.l.b16 %v726
        %v1915 = vunpack.c.l.b16 %v727
        %v1916 = vunpack.c.l.b16 %v728
        %v1917 = vunpack.c.l.b16 %v729
        %v1918 = vunpack.c.l.b16 %v730
        %v1919 = vunpack.c.l.b16 %v731
        %v1920 = vunpack.c.l.b16 %v732
        %v1921 = vunpack.c.l.b16 %v733
        %v1922 = vunpack.c.l.b16 %v734
        %v1923 = vunpack.c.l.b16 %v735
        %v1924 = vunpack.c.l.b16 %v736
        %v1925 = vunpack.c.l.b16 %v737
        %v1926 = vunpack.c.l.b16 %v738
        %v1927 = vunpack.c.l.b16 %v739
        %v1928 = vunpack.c.l.b16 %v740
        %v1929 = vunpack.c.l.b16 %v741
        %v1930 = vunpack.c.l.b16 %v742
        %v1931 = vunpack.c.l.b16 %v743
        %v1932 = vunpack.c.l.b16 %v744
        %v1933 = vunpack.c.l.b16 %v745
        %v1934 = vunpack.c.l.b16 %v746
        %v1935 = vunpack.c.l.b16 %v747
        %v1936 = vunpack.c.l.b16 %v748
        %v1937 = vunpack.c.l.b16 %v749
        %v1938 = vunpack.c.l.b16 %v750
        %v1939 = vunpack.c.l.b16 %v751
        %v1940 = vunpack.c.l.b16 %v752
        %v1941 = vunpack.c.l.b16 %v753
        %v1942 = vunpack.c.l.b16 %v754
        %v1943 = vunpack.c.l.b16 %v755
        %v1944 = vunpack.c.l.b16 %v756
        %v1945 = vunpack.c.l.b16 %v757
        %v1946 = vunpack.c.l.b16 %v758
        %v1947 = vunpack.c.l.b16 %v759
        %v1948 = vunpack.c.l.b16 %v760
        %v1949 = vunpack.c.l.b16 %v761
        %v1950 = vunpack.c.l.b16 %v762
        %v1951 = vunpack.c.l.b16 %v763
        %v1952 = vunpack.c.l.b16 %v764
        %v1953 = vunpack.c.l.b16 %v765
        %v1954 = vunpack.c.l.b16 %v766
        %v1955 = vunpack.c.l.b16 %v767
        %v1956 = vunpack.c.l.b16 %v768
        %v1957 = vunpack.c.l.b16 %v769
        %v1958 = vunpack.c.l.b16 %v770
        %v1959 = vunpack.c.l.b16 %v771
        %v1960 = vunpack.c.l.b16 %v772
        %v1961 = vunpack.c.l.b16 %v773
        %v1962 = vunpack.c.l.b16 %v774
        %v1963 = vunpack.c.l.b16 %v775
        %v1964 = vunpack.c.l.b16 %v776
        %v1965 = vunpack.c.l.b16 %v777
        %v1966 = vpack.c.b16 %v1487, %v1486
        %v1967 = vpack.c.b16 %v1489, %v1488
        %v1968 = vpack.c.b16 %v1491, %v1490
        %v1969 = vpack.c.b16 %v1493, %v1492
        %v1970 = vpack.c.b16 %v1495, %v1494
        %v1971 = vpack.c.b16 %v1497, %v1496
        %v1972 = vpack.c.b16 %v1499, %v1498
        %v1973 = vpack.c.b16 %v1501, %v1500
        %v1974 = vpack.c.b16 %v1503, %v1502
        %v1975 = vpack.c.b16 %v1505, %v1504
        %v1976 = vpack.c.b16 %v1507, %v1506
        %v1977 = vpack.c.b16 %v1509, %v1508
        %v1978 = vpack.c.b16 %v1511, %v1510
        %v1979 = vpack.c.b16 %v1513, %v1512
        %v1980 = vpack.c.b16 %v1515, %v1514
        %v1981 = vpack.c.b16 %v1517, %v1516
        %v1982 = vpack.c.b16 %v1519, %v1518
        %v1983 = vpack.c.b16 %v1521, %v1520
        %v1984 = vpack.c.b16 %v1523, %v1522
        %v1985 = vpack.c.b16 %v1525, %v1524
        %v1986 = vpack.c.b16 %v1527, %v1526
        %v1987 = vpack.c.b16 %v1529, %v1528
        %v1988 = vpack.c.b16 %v1531, %v1530
        %v1989 = vpack.c.b16 %v1533, %v1532
        %v1990 = vpack.c.b16 %v1535, %v1534
        %v1991 = vpack.c.b16 %v1537, %v1536
        %v1992 = vpack.c.b16 %v1539, %v1538
        %v1993 = vpack.c.b16 %v1541, %v1540
        %v1994 = vpack.c.b16 %v1543, %v1542
        %v1995 = vpack.c.b16 %v1545, %v1544
        %v1996 = vpack.c.b16 %v1547, %v1546
        %v1997 = vpack.c.b16 %v1549, %v1548
        %v1998 = vpack.c.b16 %v1551, %v1550
        %v1999 = vpack.c.b16 %v1553, %v1552
        %v2000 = vpack.c.b16 %v1555, %v1554
        %v2001 = vpack.c.b16 %v1557, %v1556
        %v2002 = vpack.c.b16 %v1559, %v1558
        %v2003 = vpack.c.b16 %v1561, %v1560
        %v2004 = vpack.c.b16 %v1563, %v1562
        %v2005 = vpack.c.b16 %v1565, %v1564
        %v2006 = vpack.c.b16 %v1567, %v1566
        %v2007 = vpack.c.b16 %v1569, %v1568
        %v2008 = vpack.c.b16 %v1571, %v1570
        %v2009 = vpack.c.b16 %v1573, %v1572
        %v2010 = vpack.c.b16 %v1575, %v1574
        %v2011 = vpack.c.b16 %v1577, %v1576
        %v2012 = vpack.c.b16 %v1579, %v1578
        %v2013 = vpack.c.b16 %v1581, %v1580
        %v2014 = vpack.c.b16 %v1583, %v1582
        %v2015 = vpack.c.b16 %v1585, %v1584
        %v2016 = vpack.c.b16 %v1587, %v1586
        %v2017 = vpack.c.b16 %v1589, %v1588
        %v2018 = vpack.c.b16 %v1591, %v1590
        %v2019 = vpack.c.b16 %v1593, %v1592
        %v2020 = vpack.c.b16 %v1595, %v1594
        %v2021 = vpack.c.b16 %v1597, %v1596
        %v2022 = vpack.c.b16 %v1599, %v1598
        %v2023 = vpack.c.b16 %v1601, %v1600
        %v2024 = vpack.c.b16 %v1603, %v1602
        %v2025 = vpack.c.b16 %v1605, %v1604
        %v2026 = vpack.c.b16 %v1607, %v1606
        %v2027 = vpack.c.b16 %v1609, %v1608
        %v2028 = vpack.c.b16 %v1611, %v1610
        %v2029 = vpack.c.b16 %v1613, %v1612
        %v2030 = vpack.c.b16 %v1615, %v1614
        %v2031 = vpack.c.b16 %v1617, %v1616
        %v2032 = vpack.c.b16 %v1619, %v1618
        %v2033 = vpack.c.b16 %v1621, %v1620
        %v2034 = vpack.c.b16 %v1623, %v1622
        %v2035 = vpack.c.b16 %v1625, %v1624
        %v2036 = vpack.c.b16 %v1627, %v1626
        %v2037 = vpack.c.b16 %v1629, %v1628
        %v2038 = vpack.c.b16 %v1631, %v1630
        %v2039 = vpack.c.b16 %v1633, %v1632
        %v2040 = vpack.c.b16 %v1635, %v1634
        %v2041 = vpack.c.b16 %v1637, %v1636
        %v2042 = vpack.c.b16 %v1639, %v1638
        %v2043 = vpack.c.b16 %v1641, %v1640
        %v2044 = vpack.c.b16 %v1643, %v1642
        %v2045 = vpack.c.b16 %v1645, %v1644
        %v2046 = vpack.c.b16 %v1647, %v1646
        %v2047 = vpack.c.b16 %v1649, %v1648
        %v2048 = vpack.c.b16 %v1651, %v1650
        %v2049 = vpack.c.b16 %v1653, %v1652
        %v2050 = vpack.c.b16 %v1655, %v1654
        %v2051 = vpack.c.b16 %v1657, %v1656
        %v2052 = vpack.c.b16 %v1659, %v1658
        %v2053 = vpack.c.b16 %v1661, %v1660
        %v2054 = vpack.c.b16 %v1663, %v1662
        %v2055 = vpack.c.b16 %v1665, %v1664
        %v2056 = vpack.c.b16 %v1667, %v1666
        %v2057 = vpack.c.b16 %v1669, %v1668
        %v2058 = vpack.c.b16 %v1671, %v1670
        %v2059 = vpack.c.b16 %v1673, %v1672
        %v2060 = vpack.c.b16 %v1675, %v1674
        %v2061 = vpack.c.b16 %v1677, %v1676
        %v2062 = vpack.c.b16 %v1679, %v1678
        %v2063 = vpack.c.b16 %v1681, %v1680
        %v2064 = vpack.c.b16 %v1683, %v1682
        %v2065 = vpack.c.b16 %v1685, %v1684
        %v2066 = vpack.c.b16 %v1687, %v1686
        %v2067 = vpack.c.b16 %v1689, %v1688
        %v2068 = vpack.c.b16 %v1691, %v1690
        %v2069 = vpack.c.b16 %v1693, %v1692
        %v2070 = vpack.c.b16 %v1695, %v1694
        %v2071 = vpack.c.b16 %v1697, %v1696
        %v2072 = vpack.c.b16 %v1699, %v1698
        %v2073 = vpack.c.b16 %v1701, %v1700
        %v2074 = vpack.c.b16 %v1703, %v1702
        %v2075 = vpack.c.b16 %v1705, %v1704
        %v2076 = vpack.c.b16 %v1707, %v1706
        %v2077 = vpack.c.b16 %v1709, %v1708
        %v2078 = vpack.c.b16 %v1711, %v1710
        %v2079 = vpack.c.b16 %v1713, %v1712
        %v2080 = vpack.c.b16 %v1715, %v1714
        %v2081 = vpack.c.b16 %v1717, %v1716
        %v2082 = vpack.c.b16 %v1719, %v1718
        %v2083 = vpack.c.b16 %v1721, %v1720
        %v2084 = vpack.c.b16 %v1723, %v1722
        %v2085 = vpack.c.b16 %v1725, %v1724
        %v2086 = vpack.c.b16 %v1727, %v1726
        %v2087 = vpack.c.b16 %v1729, %v1728
        %v2088 = vpack.c.b16 %v1731, %v1730
        %v2089 = vpack.c.b16 %v1733, %v1732
        %v2090 = vpack.c.b16 %v1735, %v1734
        %v2091 = vpack.c.b16 %v1737, %v1736
        %v2092 = vpack.c.b16 %v1739, %v1738
        %v2093 = vpack.c.b16 %v1741, %v1740
        %v2094 = vpack.c.b16 %v1743, %v1742
        %v2095 = vpack.c.b16 %v1745, %v1744
        %v2096 = vpack.c.b16 %v1747, %v1746
        %v2097 = vpack.c.b16 %v1749, %v1748
        %v2098 = vpack.c.b16 %v1751, %v1750
        %v2099 = vpack.c.b16 %v1753, %v1752
        %v2100 = vpack.c.b16 %v1755, %v1754
        %v2101 = vpack.c.b16 %v1757, %v1756
        %v2102 = vpack.c.b16 %v1759, %v1758
        %v2103 = vpack.c.b16 %v1761, %v1760
        %v2104 = vpack.c.b16 %v1763, %v1762
        %v2105 = vpack.c.b16 %v1765, %v1764
        %v2106 = vpack.c.b16 %v1767, %v1766
        %v2107 = vpack.c.b16 %v1769, %v1768
        %v2108 = vpack.c.b16 %v1771, %v1770
        %v2109 = vpack.c.b16 %v1773, %v1772
        %v2110 = vpack.c.b16 %v1775, %v1774
        %v2111 = vpack.c.b16 %v1777, %v1776
        %v2112 = vpack.c.b16 %v1779, %v1778
        %v2113 = vpack.c.b16 %v1781, %v1780
        %v2114 = vpack.c.b16 %v1783, %v1782
        %v2115 = vpack.c.b16 %v1785, %v1784
        %v2116 = vpack.c.b16 %v1787, %v1786
        %v2117 = vpack.c.b16 %v1789, %v1788
        %v2118 = vpack.c.b16 %v1791, %v1790
        %v2119 = vpack.c.b16 %v1793, %v1792
        %v2120 = vpack.c.b16 %v1795, %v1794
        %v2121 = vpack.c.b16 %v1797, %v1796
        %v2122 = vpack.c.b16 %v1799, %v1798
        %v2123 = vpack.c.b16 %v1801, %v1800
        %v2124 = vpack.c.b16 %v1803, %v1802
        %v2125 = vpack.c.b16 %v1805, %v1804
        %v2126 = vpack.c.b16 %v1807, %v1806
        %v2127 = vpack.c.b16 %v1809, %v1808
        %v2128 = vpack.c.b16 %v1811, %v1810
        %v2129 = vpack.c.b16 %v1813, %v1812
        %v2130 = vpack.c.b16 %v1815, %v1814
        %v2131 = vpack.c.b16 %v1817, %v1816
        %v2132 = vpack.c.b16 %v1819, %v1818
        %v2133 = vpack.c.b16 %v1821, %v1820
        %v2134 = vpack.c.b16 %v1823, %v1822
        %v2135 = vpack.c.b16 %v1825, %v1824
        %v2136 = vpack.c.b16 %v1827, %v1826
        %v2137 = vpack.c.b16 %v1829, %v1828
        %v2138 = vpack.c.b16 %v1831, %v1830
        %v2139 = vpack.c.b16 %v1833, %v1832
        %v2140 = vpack.c.b16 %v1835, %v1834
        %v2141 = vpack.c.b16 %v1837, %v1836
        %v2142 = vpack.c.b16 %v1839, %v1838
        %v2143 = vpack.c.b16 %v1841, %v1840
        %v2144 = vpack.c.b16 %v1843, %v1842
        %v2145 = vpack.c.b16 %v1845, %v1844
        %v2146 = vpack.c.b16 %v1847, %v1846
        %v2147 = vpack.c.b16 %v1849, %v1848
        %v2148 = vpack.c.b16 %v1851, %v1850
        %v2149 = vpack.c.b16 %v1853, %v1852
        %v2150 = vpack.c.b16 %v1855, %v1854
        %v2151 = vpack.c.b16 %v1857, %v1856
        %v2152 = vpack.c.b16 %v1859, %v1858
        %v2153 = vpack.c.b16 %v1861, %v1860
        %v2154 = vpack.c.b16 %v1863, %v1862
        %v2155 = vpack.c.b16 %v1865, %v1864
        %v2156 = vpack.c.b16 %v1867, %v1866
        %v2157 = vpack.c.b16 %v1869, %v1868
        %v2158 = vpack.c.b16 %v1871, %v1870
        %v2159 = vpack.c.b16 %v1873, %v1872
        %v2160 = vpack.c.b16 %v1875, %v1874
        %v2161 = vpack.c.b16 %v1877, %v1876
        %v2162 = vpack.c.b16 %v1879, %v1878
        %v2163 = vpack.c.b16 %v1881, %v1880
        %v2164 = vpack.c.b16 %v1883, %v1882
        %v2165 = vpack.c.b16 %v1885, %v1884
        %v2166 = vpack.c.b16 %v1887, %v1886
        %v2167 = vpack.c.b16 %v1889, %v1888
        %v2168 = vpack.c.b16 %v1891, %v1890
        %v2169 = vpack.c.b16 %v1893, %v1892
        %v2170 = vpack.c.b16 %v1895, %v1894
        %v2171 = vpack.c.b16 %v1897, %v1896
        %v2172 = vpack.c.b16 %v1899, %v1898
        %v2173 = vpack.c.b16 %v1901, %v1900
        %v2174 = vpack.c.b16 %v1903, %v1902
        %v2175 = vpack.c.b16 %v1905, %v1904
        %v2176 = vpack.c.b16 %v1907, %v1906
        %v2177 = vpack.c.b16 %v1909, %v1908
        %v2178 = vpack.c.b16 %v1911, %v1910
        %v2179 = vpack.c.b16 %v1913, %v1912
        %v2180 = vpack.c.b16 %v1915, %v1914
        %v2181 = vpack.c.b16 %v1917, %v1916
        %v2182 = vpack.c.b16 %v1919, %v1918
        %v2183 = vpack.c.b16 %v1921, %v1920
        %v2184 = vpack.c.b16 %v1923, %v1922
        %v2185 = vpack.c.b16 %v1925, %v1924
        %v2186 = vpack.c.b16 %v1927, %v1926
        %v2187 = vpack.c.b16 %v1929, %v1928
        %v2188 = vpack.c.b16 %v1931, %v1930
        %v2189 = vpack.c.b16 %v1933, %v1932
        %v2190 = vpack.c.b16 %v1935, %v1934
        %v2191 = vpack.c.b16 %v1937, %v1936
        %v2192 = vpack.c.b16 %v1939, %v1938
        %v2193 = vpack.c.b16 %v1941, %v1940
        %v2194 = vpack.c.b16 %v1943, %v1942
        %v2195 = vpack.c.b16 %v1945, %v1944
        %v2196 = vpack.c.b16 %v1947, %v1946
        %v2197 = vpack.c.b16 %v1949, %v1948
        %v2198 = vpack.c.b16 %v1951, %v1950
        %v2199 = vpack.c.b16 %v1953, %v1952
        %v2200 = vpack.c.b16 %v1955, %v1954
        %v2201 = vpack.c.b16 %v1957, %v1956
        %v2202 = vpack.c.b16 %v1959, %v1958
        %v2203 = vpack.c.b16 %v1961, %v1960
        %v2204 = vpack.c.b16 %v1963, %v1962
        %v2205 = vpack.c.b16 %v1965, %v1964
        %2446 = vmatprep.subr.bf16.mxu0 0
        %2447 = vmatpush1.bf16.msra.mxu0 %v1973
        %2448 = vmatprep.subr.bf16.mxu0 0
        %2449 = vmatpush1.bf16.msra.mxu0 %v1972
        %2450 = vmatprep.subr.bf16.mxu0 0
        %2451 = vmatpush1.bf16.msra.mxu0 %v1971
        %2452 = vmatprep.subr.bf16.mxu0 0
        %2453 = vmatpush1.bf16.msra.mxu0 %v1970
        %2454 = vmatprep.subr.bf16.mxu0 0
        %2455 = vmatpush1.bf16.msra.mxu0 %v1969
        %2456 = vmatprep.subr.bf16.mxu0 0
        %2457 = vmatpush1.bf16.msra.mxu0 %v1968
        %2458 = vmatprep.subr.bf16.mxu0 0
        %2459 = vmatpush1.bf16.msra.mxu0 %v1967
        %2460 = vmatprep.subr.bf16.mxu0 0
        %2461 = vmatpush1.bf16.msra.mxu0 %v1966
        %2462 = vmatprep.subr.bf16.mxu0 0
        %2463 = vmatpush2.bf16.msra.mxu0 %v1981
        %2464 = vmatprep.subr.bf16.mxu0 0
        %2465 = vmatpush2.bf16.msra.mxu0 %v1980
        %2466 = vmatprep.subr.bf16.mxu0 0
        %2467 = vmatpush2.bf16.msra.mxu0 %v1979
        %2468 = vmatprep.subr.bf16.mxu0 0
        %2469 = vmatpush2.bf16.msra.mxu0 %v1978
        %2470 = vmatprep.subr.bf16.mxu0 0
        %2471 = vmatpush2.bf16.msra.mxu0 %v1977
        %2472 = vmatprep.subr.bf16.mxu0 0
        %2473 = vmatpush2.bf16.msra.mxu0 %v1976
        %2474 = vmatprep.subr.bf16.mxu0 0
        %2475 = vmatpush2.bf16.msra.mxu0 %v1975
        %2476 = vmatprep.subr.bf16.mxu0 0
        %2477 = vmatpush2.bf16.msra.mxu0 %v1974
        %2478 = vmatprep.mubr.bf16.mxu0 %v819
        %2479 = vmatmul.mubr.bf16.gmra.mxu0 %v805
        %v2480 = vpop.f32.mrf.mxu0
        %v2481 = vadd.f32 0.0, %v2480
        %v2482 = vpop.f32.mrf.mxu0
        %v2483 = vpop.f32.mrf.mxu0
        %v2484 = vpop.f32.mrf.mxu0
        %2485 = vdwg.mxu0
        %2486 = vmatprep.subr.bf16.mxu0 0
        %2487 = vmatpush1.bf16.msra.mxu0 %v1989
        %2488 = vmatprep.subr.bf16.mxu0 0
        %2489 = vmatpush1.bf16.msra.mxu0 %v1988
        %2490 = vmatprep.subr.bf16.mxu0 0
        %2491 = vmatpush1.bf16.msra.mxu0 %v1987
        %2492 = vmatprep.subr.bf16.mxu0 0
        %2493 = vmatpush1.bf16.msra.mxu0 %v1986
        %2494 = vmatprep.subr.bf16.mxu0 0
        %2495 = vmatpush1.bf16.msra.mxu0 %v1985
        %2496 = vmatprep.subr.bf16.mxu0 0
        %2497 = vmatpush1.bf16.msra.mxu0 %v1984
        %2498 = vmatprep.subr.bf16.mxu0 0
        %2499 = vmatpush1.bf16.msra.mxu0 %v1983
        %2500 = vmatprep.subr.bf16.mxu0 0
        %2501 = vmatpush1.bf16.msra.mxu0 %v1982
        %2502 = vmatprep.subr.bf16.mxu0 0
        %2503 = vmatpush2.bf16.msra.mxu0 %v1997
        %2504 = vmatprep.subr.bf16.mxu0 0
        %2505 = vmatpush2.bf16.msra.mxu0 %v1996
        %2506 = vmatprep.subr.bf16.mxu0 0
        %2507 = vmatpush2.bf16.msra.mxu0 %v1995
        %2508 = vmatprep.subr.bf16.mxu0 0
        %2509 = vmatpush2.bf16.msra.mxu0 %v1994
        %2510 = vmatprep.subr.bf16.mxu0 0
        %2511 = vmatpush2.bf16.msra.mxu0 %v1993
        %2512 = vmatprep.subr.bf16.mxu0 0
        %2513 = vmatpush2.bf16.msra.mxu0 %v1992
        %2514 = vmatprep.subr.bf16.mxu0 0
        %2515 = vmatpush2.bf16.msra.mxu0 %v1991
        %2516 = vmatprep.subr.bf16.mxu0 0
        %2517 = vmatpush2.bf16.msra.mxu0 %v1990
        %2518 = vmatprep.mubr.bf16.mxu0 %v829
        %2519 = vmatmul.mubr.bf16.gmra.mxu0 %v827
        %v2520 = vpop.f32.mrf.mxu0
        %v2521 = vadd.f32 %v2481, %v2520
        %v2522 = vpop.f32.mrf.mxu0
        %v2523 = vpop.f32.mrf.mxu0
        %v2524 = vpop.f32.mrf.mxu0
        %2525 = vdwg.mxu0
        %2526 = vmatprep.subr.bf16.mxu0 0
        %2527 = vmatpush1.bf16.msra.mxu0 %v2005
        %2528 = vmatprep.subr.bf16.mxu0 0
        %2529 = vmatpush1.bf16.msra.mxu0 %v2004
        %2530 = vmatprep.subr.bf16.mxu0 0
        %2531 = vmatpush1.bf16.msra.mxu0 %v2003
        %2532 = vmatprep.subr.bf16.mxu0 0
        %2533 = vmatpush1.bf16.msra.mxu0 %v2002
        %2534 = vmatprep.subr.bf16.mxu0 0
        %2535 = vmatpush1.bf16.msra.mxu0 %v2001
        %2536 = vmatprep.subr.bf16.mxu0 0
        %2537 = vmatpush1.bf16.msra.mxu0 %v2000
        %2538 = vmatprep.subr.bf16.mxu0 0
        %2539 = vmatpush1.bf16.msra.mxu0 %v1999
        %2540 = vmatprep.subr.bf16.mxu0 0
        %2541 = vmatpush1.bf16.msra.mxu0 %v1998
        %2542 = vmatprep.subr.bf16.mxu0 0
        %2543 = vmatpush2.bf16.msra.mxu0 %v2013
        %2544 = vmatprep.subr.bf16.mxu0 0
        %2545 = vmatpush2.bf16.msra.mxu0 %v2012
        %2546 = vmatprep.subr.bf16.mxu0 0
        %2547 = vmatpush2.bf16.msra.mxu0 %v2011
        %2548 = vmatprep.subr.bf16.mxu0 0
        %2549 = vmatpush2.bf16.msra.mxu0 %v2010
        %2550 = vmatprep.subr.bf16.mxu0 0
        %2551 = vmatpush2.bf16.msra.mxu0 %v2009
        %2552 = vmatprep.subr.bf16.mxu0 0
        %2553 = vmatpush2.bf16.msra.mxu0 %v2008
        %2554 = vmatprep.subr.bf16.mxu0 0
        %2555 = vmatpush2.bf16.msra.mxu0 %v2007
        %2556 = vmatprep.subr.bf16.mxu0 0
        %2557 = vmatpush2.bf16.msra.mxu0 %v2006
        %2558 = vmatprep.mubr.bf16.mxu0 %v826
        %2559 = vmatmul.mubr.bf16.gmra.mxu0 %v812
        %v2560 = vpop.f32.mrf.mxu0
        %v2561 = vadd.f32 %v2521, %v2560
        %v2562 = vpop.f32.mrf.mxu0
        %v2563 = vpop.f32.mrf.mxu0
        %v2564 = vpop.f32.mrf.mxu0
        %2565 = vdwg.mxu0
        %2566 = vmatprep.subr.bf16.mxu0 0
        %2567 = vmatpush1.bf16.msra.mxu0 %v2021
        %2568 = vmatprep.subr.bf16.mxu0 0
        %2569 = vmatpush1.bf16.msra.mxu0 %v2020
        %2570 = vmatprep.subr.bf16.mxu0 0
        %2571 = vmatpush1.bf16.msra.mxu0 %v2019
        %2572 = vmatprep.subr.bf16.mxu0 0
        %2573 = vmatpush1.bf16.msra.mxu0 %v2018
        %2574 = vmatprep.subr.bf16.mxu0 0
        %2575 = vmatpush1.bf16.msra.mxu0 %v2017
        %2576 = vmatprep.subr.bf16.mxu0 0
        %2577 = vmatpush1.bf16.msra.mxu0 %v2016
        %2578 = vmatprep.subr.bf16.mxu0 0
        %2579 = vmatpush1.bf16.msra.mxu0 %v2015
        %2580 = vmatprep.subr.bf16.mxu0 0
        %2581 = vmatpush1.bf16.msra.mxu0 %v2014
        %2582 = vmatprep.subr.bf16.mxu0 0
        %2583 = vmatpush2.bf16.msra.mxu0 %v2029
        %2584 = vmatprep.subr.bf16.mxu0 0
        %2585 = vmatpush2.bf16.msra.mxu0 %v2028
        %2586 = vmatprep.subr.bf16.mxu0 0
        %2587 = vmatpush2.bf16.msra.mxu0 %v2027
        %2588 = vmatprep.subr.bf16.mxu0 0
        %2589 = vmatpush2.bf16.msra.mxu0 %v2026
        %2590 = vmatprep.subr.bf16.mxu0 0
        %2591 = vmatpush2.bf16.msra.mxu0 %v2025
        %2592 = vmatprep.subr.bf16.mxu0 0
        %2593 = vmatpush2.bf16.msra.mxu0 %v2024
        %2594 = vmatprep.subr.bf16.mxu0 0
        %2595 = vmatpush2.bf16.msra.mxu0 %v2023
        %2596 = vmatprep.subr.bf16.mxu0 0
        %2597 = vmatpush2.bf16.msra.mxu0 %v2022
        %2598 = vmatprep.mubr.bf16.mxu0 %v830
        %2599 = vmatmul.mubr.bf16.gmra.mxu0 %v828
        %v2600 = vpop.f32.mrf.mxu0
        %v2601 = vadd.f32 %v2561, %v2600
        %v2602 = vpop.f32.mrf.mxu0
        %v2603 = vpop.f32.mrf.mxu0
        %v2604 = vpop.f32.mrf.mxu0
        %2605 = vdwg.mxu0
        %2606 = vmatprep.subr.bf16.mxu0 0
        %2607 = vmatpush1.bf16.msra.mxu0 %v2037
        %2608 = vmatprep.subr.bf16.mxu0 0
        %2609 = vmatpush1.bf16.msra.mxu0 %v2036
        %2610 = vmatprep.subr.bf16.mxu0 0
        %2611 = vmatpush1.bf16.msra.mxu0 %v2035
        %2612 = vmatprep.subr.bf16.mxu0 0
        %2613 = vmatpush1.bf16.msra.mxu0 %v2034
        %2614 = vmatprep.subr.bf16.mxu0 0
        %2615 = vmatpush1.bf16.msra.mxu0 %v2033
        %2616 = vmatprep.subr.bf16.mxu0 0
        %2617 = vmatpush1.bf16.msra.mxu0 %v2032
        %2618 = vmatprep.subr.bf16.mxu0 0
        %2619 = vmatpush1.bf16.msra.mxu0 %v2031
        %2620 = vmatprep.subr.bf16.mxu0 0
        %2621 = vmatpush1.bf16.msra.mxu0 %v2030
        %2622 = vmatprep.subr.bf16.mxu0 0
        %2623 = vmatpush2.bf16.msra.mxu0 %v2045
        %2624 = vmatprep.subr.bf16.mxu0 0
        %2625 = vmatpush2.bf16.msra.mxu0 %v2044
        %2626 = vmatprep.subr.bf16.mxu0 0
        %2627 = vmatpush2.bf16.msra.mxu0 %v2043
        %2628 = vmatprep.subr.bf16.mxu0 0
        %2629 = vmatpush2.bf16.msra.mxu0 %v2042
        %2630 = vmatprep.subr.bf16.mxu0 0
        %2631 = vmatpush2.bf16.msra.mxu0 %v2041
        %2632 = vmatprep.subr.bf16.mxu0 0
        %2633 = vmatpush2.bf16.msra.mxu0 %v2040
        %2634 = vmatprep.subr.bf16.mxu0 0
        %2635 = vmatpush2.bf16.msra.mxu0 %v2039
        %2636 = vmatprep.subr.bf16.mxu0 0
        %2637 = vmatpush2.bf16.msra.mxu0 %v2038
        %2638 = vmatprep.mubr.bf16.mxu0 %v868
        %2639 = vmatmul.mubr.bf16.gmra.mxu0 %v854
        %v2640 = vpop.f32.mrf.mxu0
        %v2641 = vadd.f32 %v2601, %v2640
        %v2642 = vpop.f32.mrf.mxu0
        %v2643 = vpop.f32.mrf.mxu0
        %v2644 = vpop.f32.mrf.mxu0
        %2645 = vdwg.mxu0
        %2646 = vmatprep.subr.bf16.mxu0 0
        %2647 = vmatpush1.bf16.msra.mxu0 %v2053
        %2648 = vmatprep.subr.bf16.mxu0 0
        %2649 = vmatpush1.bf16.msra.mxu0 %v2052
        %2650 = vmatprep.subr.bf16.mxu0 0
        %2651 = vmatpush1.bf16.msra.mxu0 %v2051
        %2652 = vmatprep.subr.bf16.mxu0 0
        %2653 = vmatpush1.bf16.msra.mxu0 %v2050
        %2654 = vmatprep.subr.bf16.mxu0 0
        %2655 = vmatpush1.bf16.msra.mxu0 %v2049
        %2656 = vmatprep.subr.bf16.mxu0 0
        %2657 = vmatpush1.bf16.msra.mxu0 %v2048
        %2658 = vmatprep.subr.bf16.mxu0 0
        %2659 = vmatpush1.bf16.msra.mxu0 %v2047
        %2660 = vmatprep.subr.bf16.mxu0 0
        %2661 = vmatpush1.bf16.msra.mxu0 %v2046
        %2662 = vmatprep.subr.bf16.mxu0 0
        %2663 = vmatpush2.bf16.msra.mxu0 %v2061
        %2664 = vmatprep.subr.bf16.mxu0 0
        %2665 = vmatpush2.bf16.msra.mxu0 %v2060
        %2666 = vmatprep.subr.bf16.mxu0 0
        %2667 = vmatpush2.bf16.msra.mxu0 %v2059
        %2668 = vmatprep.subr.bf16.mxu0 0
        %2669 = vmatpush2.bf16.msra.mxu0 %v2058
        %2670 = vmatprep.subr.bf16.mxu0 0
        %2671 = vmatpush2.bf16.msra.mxu0 %v2057
        %2672 = vmatprep.subr.bf16.mxu0 0
        %2673 = vmatpush2.bf16.msra.mxu0 %v2056
        %2674 = vmatprep.subr.bf16.mxu0 0
        %2675 = vmatpush2.bf16.msra.mxu0 %v2055
        %2676 = vmatprep.subr.bf16.mxu0 0
        %2677 = vmatpush2.bf16.msra.mxu0 %v2054
        %2678 = vmatprep.mubr.bf16.mxu0 %v878
        %2679 = vmatmul.mubr.bf16.gmra.mxu0 %v876
        %v2680 = vpop.f32.mrf.mxu0
        %v2681 = vadd.f32 %v2641, %v2680
        %v2682 = vpop.f32.mrf.mxu0
        %v2683 = vpop.f32.mrf.mxu0
        %v2684 = vpop.f32.mrf.mxu0
        %2685 = vdwg.mxu0
        %2686 = vmatprep.subr.bf16.mxu0 0
        %2687 = vmatpush1.bf16.msra.mxu0 %v2069
        %2688 = vmatprep.subr.bf16.mxu0 0
        %2689 = vmatpush1.bf16.msra.mxu0 %v2068
        %2690 = vmatprep.subr.bf16.mxu0 0
        %2691 = vmatpush1.bf16.msra.mxu0 %v2067
        %2692 = vmatprep.subr.bf16.mxu0 0
        %2693 = vmatpush1.bf16.msra.mxu0 %v2066
        %2694 = vmatprep.subr.bf16.mxu0 0
        %2695 = vmatpush1.bf16.msra.mxu0 %v2065
        %2696 = vmatprep.subr.bf16.mxu0 0
        %2697 = vmatpush1.bf16.msra.mxu0 %v2064
        %2698 = vmatprep.subr.bf16.mxu0 0
        %2699 = vmatpush1.bf16.msra.mxu0 %v2063
        %2700 = vmatprep.subr.bf16.mxu0 0
        %2701 = vmatpush1.bf16.msra.mxu0 %v2062
        %2702 = vmatprep.subr.bf16.mxu0 0
        %2703 = vmatpush2.bf16.msra.mxu0 %v2077
        %2704 = vmatprep.subr.bf16.mxu0 0
        %2705 = vmatpush2.bf16.msra.mxu0 %v2076
        %2706 = vmatprep.subr.bf16.mxu0 0
        %2707 = vmatpush2.bf16.msra.mxu0 %v2075
        %2708 = vmatprep.subr.bf16.mxu0 0
        %2709 = vmatpush2.bf16.msra.mxu0 %v2074
        %2710 = vmatprep.subr.bf16.mxu0 0
        %2711 = vmatpush2.bf16.msra.mxu0 %v2073
        %2712 = vmatprep.subr.bf16.mxu0 0
        %2713 = vmatpush2.bf16.msra.mxu0 %v2072
        %2714 = vmatprep.subr.bf16.mxu0 0
        %2715 = vmatpush2.bf16.msra.mxu0 %v2071
        %2716 = vmatprep.subr.bf16.mxu0 0
        %2717 = vmatpush2.bf16.msra.mxu0 %v2070
        %2718 = vmatprep.mubr.bf16.mxu0 %v875
        %2719 = vmatmul.mubr.bf16.gmra.mxu0 %v861
        %v2720 = vpop.f32.mrf.mxu0
        %v2721 = vadd.f32 %v2681, %v2720
        %v2722 = vpop.f32.mrf.mxu0
        %v2723 = vpop.f32.mrf.mxu0
        %v2724 = vpop.f32.mrf.mxu0
        %2725 = vdwg.mxu0
        %2726 = vmatprep.subr.bf16.mxu0 0
        %2727 = vmatpush1.bf16.msra.mxu0 %v2085
        %2728 = vmatprep.subr.bf16.mxu0 0
        %2729 = vmatpush1.bf16.msra.mxu0 %v2084
        %2730 = vmatprep.subr.bf16.mxu0 0
        %2731 = vmatpush1.bf16.msra.mxu0 %v2083
        %2732 = vmatprep.subr.bf16.mxu0 0
        %2733 = vmatpush1.bf16.msra.mxu0 %v2082
        %2734 = vmatprep.subr.bf16.mxu0 0
        %2735 = vmatpush1.bf16.msra.mxu0 %v2081
        %2736 = vmatprep.subr.bf16.mxu0 0
        %2737 = vmatpush1.bf16.msra.mxu0 %v2080
        %2738 = vmatprep.subr.bf16.mxu0 0
        %2739 = vmatpush1.bf16.msra.mxu0 %v2079
        %2740 = vmatprep.subr.bf16.mxu0 0
        %2741 = vmatpush1.bf16.msra.mxu0 %v2078
        %2742 = vmatprep.subr.bf16.mxu0 0
        %2743 = vmatpush2.bf16.msra.mxu0 %v2093
        %2744 = vmatprep.subr.bf16.mxu0 0
        %2745 = vmatpush2.bf16.msra.mxu0 %v2092
        %2746 = vmatprep.subr.bf16.mxu0 0
        %2747 = vmatpush2.bf16.msra.mxu0 %v2091
        %2748 = vmatprep.subr.bf16.mxu0 0
        %2749 = vmatpush2.bf16.msra.mxu0 %v2090
        %2750 = vmatprep.subr.bf16.mxu0 0
        %2751 = vmatpush2.bf16.msra.mxu0 %v2089
        %2752 = vmatprep.subr.bf16.mxu0 0
        %2753 = vmatpush2.bf16.msra.mxu0 %v2088
        %2754 = vmatprep.subr.bf16.mxu0 0
        %2755 = vmatpush2.bf16.msra.mxu0 %v2087
        %2756 = vmatprep.subr.bf16.mxu0 0
        %2757 = vmatpush2.bf16.msra.mxu0 %v2086
        %2758 = vmatprep.mubr.bf16.mxu0 %v879
        %2759 = vmatmul.mubr.bf16.gmra.mxu0 %v877
        %v2760 = vpop.f32.mrf.mxu0
        %v2761 = vadd.f32 %v2721, %v2760
        %v2762 = vpop.f32.mrf.mxu0
        %v2763 = vpop.f32.mrf.mxu0
        %v2764 = vpop.f32.mrf.mxu0
        %2765 = vdwg.mxu0
        %2766 = vmatprep.subr.bf16.mxu0 0
        %2767 = vmatpush1.bf16.msra.mxu0 %v2101
        %2768 = vmatprep.subr.bf16.mxu0 0
        %2769 = vmatpush1.bf16.msra.mxu0 %v2100
        %2770 = vmatprep.subr.bf16.mxu0 0
        %2771 = vmatpush1.bf16.msra.mxu0 %v2099
        %2772 = vmatprep.subr.bf16.mxu0 0
        %2773 = vmatpush1.bf16.msra.mxu0 %v2098
        %2774 = vmatprep.subr.bf16.mxu0 0
        %2775 = vmatpush1.bf16.msra.mxu0 %v2097
        %2776 = vmatprep.subr.bf16.mxu0 0
        %2777 = vmatpush1.bf16.msra.mxu0 %v2096
        %2778 = vmatprep.subr.bf16.mxu0 0
        %2779 = vmatpush1.bf16.msra.mxu0 %v2095
        %2780 = vmatprep.subr.bf16.mxu0 0
        %2781 = vmatpush1.bf16.msra.mxu0 %v2094
        %2782 = vmatprep.subr.bf16.mxu0 0
        %2783 = vmatpush2.bf16.msra.mxu0 %v2109
        %2784 = vmatprep.subr.bf16.mxu0 0
        %2785 = vmatpush2.bf16.msra.mxu0 %v2108
        %2786 = vmatprep.subr.bf16.mxu0 0
        %2787 = vmatpush2.bf16.msra.mxu0 %v2107
        %2788 = vmatprep.subr.bf16.mxu0 0
        %2789 = vmatpush2.bf16.msra.mxu0 %v2106
        %2790 = vmatprep.subr.bf16.mxu0 0
        %2791 = vmatpush2.bf16.msra.mxu0 %v2105
        %2792 = vmatprep.subr.bf16.mxu0 0
        %2793 = vmatpush2.bf16.msra.mxu0 %v2104
        %2794 = vmatprep.subr.bf16.mxu0 0
        %2795 = vmatpush2.bf16.msra.mxu0 %v2103
        %2796 = vmatprep.subr.bf16.mxu0 0
        %2797 = vmatpush2.bf16.msra.mxu0 %v2102
        %2798 = vmatprep.mubr.bf16.mxu0 %v917
        %2799 = vmatmul.mubr.bf16.gmra.mxu0 %v903
        %v2800 = vpop.f32.mrf.mxu0
        %v2801 = vadd.f32 %v2761, %v2800
        %v2802 = vpop.f32.mrf.mxu0
        %v2803 = vpop.f32.mrf.mxu0
        %v2804 = vpop.f32.mrf.mxu0
        %2805 = vdwg.mxu0
        %2806 = vmatprep.subr.bf16.mxu0 0
        %2807 = vmatpush1.bf16.msra.mxu0 %v2117
        %2808 = vmatprep.subr.bf16.mxu0 0
        %2809 = vmatpush1.bf16.msra.mxu0 %v2116
        %2810 = vmatprep.subr.bf16.mxu0 0
        %2811 = vmatpush1.bf16.msra.mxu0 %v2115
        %2812 = vmatprep.subr.bf16.mxu0 0
        %2813 = vmatpush1.bf16.msra.mxu0 %v2114
        %2814 = vmatprep.subr.bf16.mxu0 0
        %2815 = vmatpush1.bf16.msra.mxu0 %v2113
        %2816 = vmatprep.subr.bf16.mxu0 0
        %2817 = vmatpush1.bf16.msra.mxu0 %v2112
        %2818 = vmatprep.subr.bf16.mxu0 0
        %2819 = vmatpush1.bf16.msra.mxu0 %v2111
        %2820 = vmatprep.subr.bf16.mxu0 0
        %2821 = vmatpush1.bf16.msra.mxu0 %v2110
        %2822 = vmatprep.subr.bf16.mxu0 0
        %2823 = vmatpush2.bf16.msra.mxu0 %v2125
        %2824 = vmatprep.subr.bf16.mxu0 0
        %2825 = vmatpush2.bf16.msra.mxu0 %v2124
        %2826 = vmatprep.subr.bf16.mxu0 0
        %2827 = vmatpush2.bf16.msra.mxu0 %v2123
        %2828 = vmatprep.subr.bf16.mxu0 0
        %2829 = vmatpush2.bf16.msra.mxu0 %v2122
        %2830 = vmatprep.subr.bf16.mxu0 0
        %2831 = vmatpush2.bf16.msra.mxu0 %v2121
        %2832 = vmatprep.subr.bf16.mxu0 0
        %2833 = vmatpush2.bf16.msra.mxu0 %v2120
        %2834 = vmatprep.subr.bf16.mxu0 0
        %2835 = vmatpush2.bf16.msra.mxu0 %v2119
        %2836 = vmatprep.subr.bf16.mxu0 0
        %2837 = vmatpush2.bf16.msra.mxu0 %v2118
        %2838 = vmatprep.mubr.bf16.mxu0 %v927
        %2839 = vmatmul.mubr.bf16.gmra.mxu0 %v925
        %v2840 = vpop.f32.mrf.mxu0
        %v2841 = vadd.f32 %v2801, %v2840
        %v2842 = vpop.f32.mrf.mxu0
        %v2843 = vpop.f32.mrf.mxu0
        %v2844 = vpop.f32.mrf.mxu0
        %2845 = vdwg.mxu0
        %2846 = vmatprep.subr.bf16.mxu0 0
        %2847 = vmatpush1.bf16.msra.mxu0 %v2133
        %2848 = vmatprep.subr.bf16.mxu0 0
        %2849 = vmatpush1.bf16.msra.mxu0 %v2132
        %2850 = vmatprep.subr.bf16.mxu0 0
        %2851 = vmatpush1.bf16.msra.mxu0 %v2131
        %2852 = vmatprep.subr.bf16.mxu0 0
        %2853 = vmatpush1.bf16.msra.mxu0 %v2130
        %2854 = vmatprep.subr.bf16.mxu0 0
        %2855 = vmatpush1.bf16.msra.mxu0 %v2129
        %2856 = vmatprep.subr.bf16.mxu0 0
        %2857 = vmatpush1.bf16.msra.mxu0 %v2128
        %2858 = vmatprep.subr.bf16.mxu0 0
        %2859 = vmatpush1.bf16.msra.mxu0 %v2127
        %2860 = vmatprep.subr.bf16.mxu0 0
        %2861 = vmatpush1.bf16.msra.mxu0 %v2126
        %2862 = vmatprep.subr.bf16.mxu0 0
        %2863 = vmatpush2.bf16.msra.mxu0 %v2141
        %2864 = vmatprep.subr.bf16.mxu0 0
        %2865 = vmatpush2.bf16.msra.mxu0 %v2140
        %2866 = vmatprep.subr.bf16.mxu0 0
        %2867 = vmatpush2.bf16.msra.mxu0 %v2139
        %2868 = vmatprep.subr.bf16.mxu0 0
        %2869 = vmatpush2.bf16.msra.mxu0 %v2138
        %2870 = vmatprep.subr.bf16.mxu0 0
        %2871 = vmatpush2.bf16.msra.mxu0 %v2137
        %2872 = vmatprep.subr.bf16.mxu0 0
        %2873 = vmatpush2.bf16.msra.mxu0 %v2136
        %2874 = vmatprep.subr.bf16.mxu0 0
        %2875 = vmatpush2.bf16.msra.mxu0 %v2135
        %2876 = vmatprep.subr.bf16.mxu0 0
        %2877 = vmatpush2.bf16.msra.mxu0 %v2134
        %2878 = vmatprep.mubr.bf16.mxu0 %v924
        %2879 = vmatmul.mubr.bf16.gmra.mxu0 %v910
        %v2880 = vpop.f32.mrf.mxu0
        %v2881 = vadd.f32 %v2841, %v2880
        %v2882 = vpop.f32.mrf.mxu0
        %v2883 = vpop.f32.mrf.mxu0
        %v2884 = vpop.f32.mrf.mxu0
        %2885 = vdwg.mxu0
        %2886 = vmatprep.subr.bf16.mxu0 0
        %2887 = vmatpush1.bf16.msra.mxu0 %v2149
        %2888 = vmatprep.subr.bf16.mxu0 0
        %2889 = vmatpush1.bf16.msra.mxu0 %v2148
        %2890 = vmatprep.subr.bf16.mxu0 0
        %2891 = vmatpush1.bf16.msra.mxu0 %v2147
        %2892 = vmatprep.subr.bf16.mxu0 0
        %2893 = vmatpush1.bf16.msra.mxu0 %v2146
        %2894 = vmatprep.subr.bf16.mxu0 0
        %2895 = vmatpush1.bf16.msra.mxu0 %v2145
        %2896 = vmatprep.subr.bf16.mxu0 0
        %2897 = vmatpush1.bf16.msra.mxu0 %v2144
        %2898 = vmatprep.subr.bf16.mxu0 0
        %2899 = vmatpush1.bf16.msra.mxu0 %v2143
        %2900 = vmatprep.subr.bf16.mxu0 0
        %2901 = vmatpush1.bf16.msra.mxu0 %v2142
        %2902 = vmatprep.subr.bf16.mxu0 0
        %2903 = vmatpush2.bf16.msra.mxu0 %v2157
        %2904 = vmatprep.subr.bf16.mxu0 0
        %2905 = vmatpush2.bf16.msra.mxu0 %v2156
        %2906 = vmatprep.subr.bf16.mxu0 0
        %2907 = vmatpush2.bf16.msra.mxu0 %v2155
        %2908 = vmatprep.subr.bf16.mxu0 0
        %2909 = vmatpush2.bf16.msra.mxu0 %v2154
        %2910 = vmatprep.subr.bf16.mxu0 0
        %2911 = vmatpush2.bf16.msra.mxu0 %v2153
        %2912 = vmatprep.subr.bf16.mxu0 0
        %2913 = vmatpush2.bf16.msra.mxu0 %v2152
        %2914 = vmatprep.subr.bf16.mxu0 0
        %2915 = vmatpush2.bf16.msra.mxu0 %v2151
        %2916 = vmatprep.subr.bf16.mxu0 0
        %2917 = vmatpush2.bf16.msra.mxu0 %v2150
        %2918 = vmatprep.mubr.bf16.mxu0 %v928
        %2919 = vmatmul.mubr.bf16.gmra.mxu0 %v926
        %v2920 = vpop.f32.mrf.mxu0
        %v2921 = vadd.f32 %v2881, %v2920
        %v2922 = vpop.f32.mrf.mxu0
        %v2923 = vpop.f32.mrf.mxu0
        %v2924 = vpop.f32.mrf.mxu0
        %2925 = vdwg.mxu0
        %2926 = vmatprep.subr.bf16.mxu0 0
        %2927 = vmatpush1.bf16.msra.mxu0 %v2165
        %2928 = vmatprep.subr.bf16.mxu0 0
        %2929 = vmatpush1.bf16.msra.mxu0 %v2164
        %2930 = vmatprep.subr.bf16.mxu0 0
        %2931 = vmatpush1.bf16.msra.mxu0 %v2163
        %2932 = vmatprep.subr.bf16.mxu0 0
        %2933 = vmatpush1.bf16.msra.mxu0 %v2162
        %2934 = vmatprep.subr.bf16.mxu0 0
        %2935 = vmatpush1.bf16.msra.mxu0 %v2161
        %2936 = vmatprep.subr.bf16.mxu0 0
        %2937 = vmatpush1.bf16.msra.mxu0 %v2160
        %2938 = vmatprep.subr.bf16.mxu0 0
        %2939 = vmatpush1.bf16.msra.mxu0 %v2159
        %2940 = vmatprep.subr.bf16.mxu0 0
        %2941 = vmatpush1.bf16.msra.mxu0 %v2158
        %2942 = vmatprep.subr.bf16.mxu0 0
        %2943 = vmatpush2.bf16.msra.mxu0 %v2173
        %2944 = vmatprep.subr.bf16.mxu0 0
        %2945 = vmatpush2.bf16.msra.mxu0 %v2172
        %2946 = vmatprep.subr.bf16.mxu0 0
        %2947 = vmatpush2.bf16.msra.mxu0 %v2171
        %2948 = vmatprep.subr.bf16.mxu0 0
        %2949 = vmatpush2.bf16.msra.mxu0 %v2170
        %2950 = vmatprep.subr.bf16.mxu0 0
        %2951 = vmatpush2.bf16.msra.mxu0 %v2169
        %2952 = vmatprep.subr.bf16.mxu0 0
        %2953 = vmatpush2.bf16.msra.mxu0 %v2168
        %2954 = vmatprep.subr.bf16.mxu0 0
        %2955 = vmatpush2.bf16.msra.mxu0 %v2167
        %2956 = vmatprep.subr.bf16.mxu0 0
        %2957 = vmatpush2.bf16.msra.mxu0 %v2166
        %2958 = vmatprep.mubr.bf16.mxu0 %v966
        %2959 = vmatmul.mubr.bf16.gmra.mxu0 %v952
        %v2960 = vpop.f32.mrf.mxu0
        %v2961 = vadd.f32 %v2921, %v2960
        %v2962 = vpop.f32.mrf.mxu0
        %v2963 = vpop.f32.mrf.mxu0
        %v2964 = vpop.f32.mrf.mxu0
        %2965 = vdwg.mxu0
        %2966 = vmatprep.subr.bf16.mxu0 0
        %2967 = vmatpush1.bf16.msra.mxu0 %v2181
        %2968 = vmatprep.subr.bf16.mxu0 0
        %2969 = vmatpush1.bf16.msra.mxu0 %v2180
        %2970 = vmatprep.subr.bf16.mxu0 0
        %2971 = vmatpush1.bf16.msra.mxu0 %v2179
        %2972 = vmatprep.subr.bf16.mxu0 0
        %2973 = vmatpush1.bf16.msra.mxu0 %v2178
        %2974 = vmatprep.subr.bf16.mxu0 0
        %2975 = vmatpush1.bf16.msra.mxu0 %v2177
        %2976 = vmatprep.subr.bf16.mxu0 0
        %2977 = vmatpush1.bf16.msra.mxu0 %v2176
        %2978 = vmatprep.subr.bf16.mxu0 0
        %2979 = vmatpush1.bf16.msra.mxu0 %v2175
        %2980 = vmatprep.subr.bf16.mxu0 0
        %2981 = vmatpush1.bf16.msra.mxu0 %v2174
        %2982 = vmatprep.subr.bf16.mxu0 0
        %2983 = vmatpush2.bf16.msra.mxu0 %v2189
        %2984 = vmatprep.subr.bf16.mxu0 0
        %2985 = vmatpush2.bf16.msra.mxu0 %v2188
        %2986 = vmatprep.subr.bf16.mxu0 0
        %2987 = vmatpush2.bf16.msra.mxu0 %v2187
        %2988 = vmatprep.subr.bf16.mxu0 0
        %2989 = vmatpush2.bf16.msra.mxu0 %v2186
        %2990 = vmatprep.subr.bf16.mxu0 0
        %2991 = vmatpush2.bf16.msra.mxu0 %v2185
        %2992 = vmatprep.subr.bf16.mxu0 0
        %2993 = vmatpush2.bf16.msra.mxu0 %v2184
        %2994 = vmatprep.subr.bf16.mxu0 0
        %2995 = vmatpush2.bf16.msra.mxu0 %v2183
        %2996 = vmatprep.subr.bf16.mxu0 0
        %2997 = vmatpush2.bf16.msra.mxu0 %v2182
        %2998 = vmatprep.mubr.bf16.mxu0 %v975
        %2999 = vmatmul.mubr.bf16.gmra.mxu0 %v974
        %v3000 = vpop.f32.mrf.mxu0
        %v3001 = vadd.f32 %v2961, %v3000
        %v3002 = vpop.f32.mrf.mxu0
        %v3003 = vpop.f32.mrf.mxu0
        %v3004 = vpop.f32.mrf.mxu0
        %3005 = vdwg.mxu0
        %3006 = vmatprep.subr.bf16.mxu0 0
        %3007 = vmatpush1.bf16.msra.mxu0 %v2197
        %3008 = vmatprep.subr.bf16.mxu0 0
        %3009 = vmatpush1.bf16.msra.mxu0 %v2196
        %3010 = vmatprep.subr.bf16.mxu0 0
        %3011 = vmatpush1.bf16.msra.mxu0 %v2195
        %3012 = vmatprep.subr.bf16.mxu0 0
        %3013 = vmatpush1.bf16.msra.mxu0 %v2194
        %3014 = vmatprep.subr.bf16.mxu0 0
        %3015 = vmatpush1.bf16.msra.mxu0 %v2193
        %3016 = vmatprep.subr.bf16.mxu0 0
        %3017 = vmatpush1.bf16.msra.mxu0 %v2192
        %3018 = vmatprep.subr.bf16.mxu0 0
        %3019 = vmatpush1.bf16.msra.mxu0 %v2191
        %3020 = vmatprep.subr.bf16.mxu0 0
        %3021 = vmatpush1.bf16.msra.mxu0 %v2190
        %3022 = vmatprep.subr.bf16.mxu0 0
        %3023 = vmatpush2.bf16.msra.mxu0 %v2205
        %3024 = vmatprep.subr.bf16.mxu0 0
        %3025 = vmatpush2.bf16.msra.mxu0 %v2204
        %3026 = vmatprep.subr.bf16.mxu0 0
        %3027 = vmatpush2.bf16.msra.mxu0 %v2203
        %3028 = vmatprep.subr.bf16.mxu0 0
        %3029 = vmatpush2.bf16.msra.mxu0 %v2202
        %3030 = vmatprep.subr.bf16.mxu0 0
        %3031 = vmatpush2.bf16.msra.mxu0 %v2201
        %3032 = vmatprep.subr.bf16.mxu0 0
        %3033 = vmatpush2.bf16.msra.mxu0 %v2200
        %3034 = vmatprep.subr.bf16.mxu0 0
        %3035 = vmatpush2.bf16.msra.mxu0 %v2199
        %3036 = vmatprep.subr.bf16.mxu0 0
        %3037 = vmatpush2.bf16.msra.mxu0 %v2198
        %3038 = vmatprep.mubr.bf16.mxu0 %v973
        %3039 = vmatmul.mubr.bf16.gmra.mxu0 %v959
        %v3040 = vpop.f32.mrf.mxu0
        %v3041 = vadd.f32 %v3001, %v3040
        %v3042 = vpop.f32.mrf.mxu0
        %v3043 = vpop.f32.mrf.mxu0
        %v3044 = vpop.f32.mrf.mxu0
        %3045 = vdwg.mxu0
        %v3046 = vadd.f32 %v293, %v3041
        %vm3047 = vcmask 254976
        %3048 = vst.msk [vmem:[#allocation2] sm:$0x3] %vm3047, %v3046
        %p3049 = scmp.eq.s32.totalorder %s19, 5
        // Predicated region
        $region53: #{policy_vpg_forward.3} parent=47 // pred_check
          %p3050 = pneg %p3049
        $region54: #{policy_vpg_forward.3} parent=47 // pred_check_branch
          %3052 = sbr.rel (%p3050) target = $region56
        $region55: #{policy_vpg_forward.3} parent=47 // pred_region
          %v3053 = vld [vmem:[#allocation2] sm:$0x3]
          %v3054 = vld [vmem:[%s2] sm:$0x1]
          %v3056 = vlaneseq
          %v3057 = vshrl.u32 %v3056, 7
          %v3058 = vsub.s32 0, %v3057
          %v3059 = vrot.slane %v3054, %v3058
          %v3061 = vadd.f32 %v3053, %v3059
          %v3062 = vmax.f32 %v3061, 0.0
          %v3063 = vpack.c.bf16 %v3062, %v3062
          %v3064 = vld [vmem:[%s3] sm:$0xf]
          %v3065 = vld [vmem:[%s3 + $0x4] sm:$0xf]
          %v3066 = vld [vmem:[%s3 + $0x8] sm:$0xf]
          %v3067 = vld [vmem:[%s3 + $0xc] sm:$0xf]
          %v3068 = vld [vmem:[%s4] sm:$0x1]
          %v3070 = vlaneseq
          %v3071 = vshrl.u32 %v3070, 7
          %v3072 = vsub.s32 0, %v3071
          %v3073 = vrot.slane %v3068, %v3072
          %v3079 = vunpack.c.l.b16 %v3064
          %v3080 = vunpack.c.l.b16 %v3065
          %v3081 = vunpack.c.l.b16 %v3066
          %v3082 = vunpack.c.l.b16 %v3067
          %v3083 = vpack.c.b16 %v3080, %v3079
          %v3084 = vpack.c.b16 %v3082, %v3081
          %vm3087 = vcmask 261120
          %v3089 = vsel %vm3087, %v3063, 0
          %3091 = vmatprep.subr.bf16.mxu0 0
          %3092 = vmatpush1.bf16.msra.mxu0 0
          %3093 = vmatprep.subr.bf16.mxu0 0
          %3094 = vmatpush1.bf16.msra.mxu0 0
          %3095 = vmatprep.subr.bf16.mxu0 0
          %3096 = vmatpush1.bf16.msra.mxu0 0
          %3097 = vmatprep.subr.bf16.mxu0 0
          %3098 = vmatpush1.bf16.msra.mxu0 0
          %3099 = vmatprep.subr.bf16.mxu0 0
          %3100 = vmatpush1.bf16.msra.mxu0 0
          %3101 = vmatprep.subr.bf16.mxu0 0
          %3102 = vmatpush1.bf16.msra.mxu0 0
          %3103 = vmatprep.subr.bf16.mxu0 0
          %3104 = vmatpush1.bf16.msra.mxu0 %v3084
          %3105 = vmatprep.subr.bf16.mxu0 0
          %3106 = vmatpush1.bf16.msra.mxu0 %v3083
          %3107 = vmatprep.subr.bf16.mxu0 0
          %3108 = vmatpush2.bf16.msra.mxu0 0
          %3109 = vmatprep.subr.bf16.mxu0 0
          %3110 = vmatpush2.bf16.msra.mxu0 0
          %3111 = vmatprep.subr.bf16.mxu0 0
          %3112 = vmatpush2.bf16.msra.mxu0 0
          %3113 = vmatprep.subr.bf16.mxu0 0
          %3114 = vmatpush2.bf16.msra.mxu0 0
          %3115 = vmatprep.subr.bf16.mxu0 0
          %3116 = vmatpush2.bf16.msra.mxu0 0
          %3117 = vmatprep.subr.bf16.mxu0 0
          %3118 = vmatpush2.bf16.msra.mxu0 0
          %3119 = vmatprep.subr.bf16.mxu0 0
          %3120 = vmatpush2.bf16.msra.mxu0 0
          %3121 = vmatprep.subr.bf16.mxu0 0
          %3122 = vmatpush2.bf16.msra.mxu0 0
          %3123 = vmatprep.mubr.bf16.mxu0 0
          %3124 = vmatmul.mubr.bf16.gmra.mxu0 %v3089
          %v3125 = vpop.f32.mrf.mxu0
          %v3126 = vadd.f32 %v3073, %v3125
          %v3127 = vpop.f32.mrf.mxu0
          %v3128 = vpop.f32.mrf.mxu0
          %v3129 = vpop.f32.mrf.mxu0
          %3130 = vdwg.mxu0
          %v3131 = vmax.f32 %v3126, 0.0
          %v3132 = vpack.c.bf16 %v3131, %v3131
          %v3133 = vld [vmem:[%s5] sm:$0xf]
          %v3134 = vld [vmem:[%s5 + $0x4] sm:$0xf]
          %v3135 = vld [vmem:[%s5 + $0x8] sm:$0xf]
          %v3136 = vld [vmem:[%s5 + $0xc] sm:$0xf]
          %v3137 = vld [vmem:[%s6] sm:$0x1]
          %v3139 = vlaneseq
          %v3140 = vshrl.u32 %v3139, 7
          %v3141 = vsub.s32 0, %v3140
          %v3142 = vrot.slane %v3137, %v3141
          %v3148 = vunpack.c.l.b16 %v3133
          %v3149 = vunpack.c.l.b16 %v3134
          %v3150 = vunpack.c.l.b16 %v3135
          %v3151 = vunpack.c.l.b16 %v3136
          %v3152 = vpack.c.b16 %v3149, %v3148
          %v3153 = vpack.c.b16 %v3151, %v3150
          %v3157 = vsel %vm3087, %v3132, 0
          %3159 = vmatprep.subr.bf16.mxu0 0
          %3160 = vmatpush1.bf16.msra.mxu0 0
          %3161 = vmatprep.subr.bf16.mxu0 0
          %3162 = vmatpush1.bf16.msra.mxu0 0
          %3163 = vmatprep.subr.bf16.mxu0 0
          %3164 = vmatpush1.bf16.msra.mxu0 0
          %3165 = vmatprep.subr.bf16.mxu0 0
          %3166 = vmatpush1.bf16.msra.mxu0 0
          %3167 = vmatprep.subr.bf16.mxu0 0
          %3168 = vmatpush1.bf16.msra.mxu0 0
          %3169 = vmatprep.subr.bf16.mxu0 0
          %3170 = vmatpush1.bf16.msra.mxu0 0
          %3171 = vmatprep.subr.bf16.mxu0 0
          %3172 = vmatpush1.bf16.msra.mxu0 %v3153
          %3173 = vmatprep.subr.bf16.mxu0 0
          %3174 = vmatpush1.bf16.msra.mxu0 %v3152
          %3175 = vmatprep.subr.bf16.mxu0 0
          %3176 = vmatpush2.bf16.msra.mxu0 0
          %3177 = vmatprep.subr.bf16.mxu0 0
          %3178 = vmatpush2.bf16.msra.mxu0 0
          %3179 = vmatprep.subr.bf16.mxu0 0
          %3180 = vmatpush2.bf16.msra.mxu0 0
          %3181 = vmatprep.subr.bf16.mxu0 0
          %3182 = vmatpush2.bf16.msra.mxu0 0
          %3183 = vmatprep.subr.bf16.mxu0 0
          %3184 = vmatpush2.bf16.msra.mxu0 0
          %3185 = vmatprep.subr.bf16.mxu0 0
          %3186 = vmatpush2.bf16.msra.mxu0 0
          %3187 = vmatprep.subr.bf16.mxu0 0
          %3188 = vmatpush2.bf16.msra.mxu0 0
          %3189 = vmatprep.subr.bf16.mxu0 0
          %3190 = vmatpush2.bf16.msra.mxu0 0
          %3191 = vmatprep.mubr.bf16.mxu0 0
          %3192 = vmatmul.mubr.bf16.gmra.mxu0 %v3157
          %v3193 = vpop.f32.mrf.mxu0
          %v3194 = vadd.f32 %v3142, %v3193
          %v3195 = vpop.f32.mrf.mxu0
          %v3196 = vpop.f32.mrf.mxu0
          %v3197 = vpop.f32.mrf.mxu0
          %3198 = vdwg.mxu0
          %vm3199 = vcmask 41984
          %3200 = vst.msk [vmem:[#allocation3] sm:$0x3] %vm3199, %v3194
        $region56: #{policy_vpg_forward.3} parent=47 // pred_fallthru
          _
        // Predicated region
        $region57: #{policy_vpg_forward.3} parent=47 // pred_check
          %p3201 = pneg %p189
        $region58: #{policy_vpg_forward.3} parent=47 // pred_check_branch
          %3203 = sbr.rel (%p3201) target = $region60
        $region59: #{policy_vpg_forward.3} parent=47 // pred_region
          %s3205 = ssub.s32 32, 32
          %3206 = vsyncadd [#allocation4], %s3205
          %s3208 = sshll.u32 [#allocation3], 4
          %s3209 = int_to_ptr.vmem [resolvable:$true] %s3208
          %3211 = dma.vmem_to_hbm [thread:$0]  %s3209, 32, %s7, [#allocation4]
        $region60: #{policy_vpg_forward.3} parent=47 // pred_fallthru
          _
        // Predicated region
        $region61: #{policy_vpg_forward.3} parent=47 // pred_check
          %p3212 = pneg %p189
        $region62: #{policy_vpg_forward.3} parent=47 // pred_check_branch
          %3214 = sbr.rel (%p3212) target = $region64
        $region63: #{policy_vpg_forward.3} parent=47 // pred_region
          %3215 = dma.done [#allocation4], 32
        $region64: #{policy_vpg_forward.3} parent=47 // pred_fallthru
          _
      $region48: #{policy_vpg_forward.3} parent=5 // pred_fallthru
        _
      %p3216 = scmp.le.s32.totalorder 2, %s14
      // Predicated region
      $region65: #{policy_vpg_forward.3} parent=5 // pred_check
        %p3217 = pneg %p3216
      $region66: #{policy_vpg_forward.3} parent=5 // pred_check_branch
        %3219 = sbr.rel (%p3217) target = $region68
      $region67: #{policy_vpg_forward.3} parent=5 // pred_region
        %s3220 = ssub.s32 %s14, 2
      $region68: #{policy_vpg_forward.3} parent=5 // pred_fallthru
        _
    $region6: #{policy_vpg_forward.3} parent=1 // loop_footer
      %s18 = sadd.s32 1, %s14
    $region7: #{policy_vpg_forward.3} parent=1 // loop_footer_branch
      %13 = sbr.rel target = $region3
    $region8: #{policy_vpg_forward.3} parent=1 // loop_exit
      _
    %3221 = vsyncpa [#allocation4], 1
    %s3222 = scalar_lea.sflag [#allocation4], 1
    %3223 = vsyncpa %s3222, 1

// kernel: policy_vpg_forward.2
$region0: #{policy_vpg_forward.2}
  #allocation0 [shape = 'u32[]', space=smem, size = 0x4, offset = 0x4, fixed_abs, tag = 'smem constant byte address 0x4 - core index']
  #allocation1 [shape = 'u32[144,128]{1,0:T(1,128)}', space=vmem, size = 0x12000, scoped, tag = 'internal scratch']
  #allocation2 [shape = 'bf16[408,16]{1,0:T(8,128)(2,1)}', space=vmem, size = 0x19800, scoped, tag = 'scratch operand']
  #allocation3 [shape = 'bf16[408,32]{1,0:T(8,128)(2,1)}', space=vmem, size = 0x19800, scoped, tag = 'scratch operand']
  %s0 = inlined_call_operand.vmem [shape: bf16[2,408,4], index: 0, kind: input, shape index: {}]
  %s1 = inlined_call_operand.vmem [shape: bf16[36,16], index: 1, kind: input, shape index: {}]
  %s2 = inlined_call_operand.hbm [shape: f32[1,16], index: 2, kind: input, shape index: {}]
  %s3 = inlined_call_operand.vmem [shape: bf16[144,32], index: 3, kind: input, shape index: {}]
  %s4 = inlined_call_operand.hbm [shape: f32[1,32], index: 4, kind: input, shape index: {}]
  %s5 = inlined_call_operand.vmem [shape: bf16[288,64], index: 5, kind: input, shape index: {}]
  %s6 = inlined_call_operand.hbm [shape: f32[1,64], index: 6, kind: input, shape index: {}]
  %s7 = inlined_call_operand.vmem [shape: f32[360,1], index: 7, kind: input, shape index: {}]
  %s8 = inlined_call_operand.vmem [shape: bf16[2,360,64], index: 8, kind: output, shape index: {}]
  %s9 = sld [smem:[#allocation0]]
  $region77: #{policy_vpg_forward.2} parent=0
    _
  %s11 = ssub.s32 1, %s9
  %s12 = scalar_select 0, %s11, %s9
  $region1: #{policy_vpg_forward.2} parent=0
    #allocation4 [shape = 'u8[512]{0}', space=vmem, size = 0x400, scoped, tag = 'input window, operand 2, single buffered']
    #allocation5 [shape = 's32[2]{0}', space=sflag, size = 0x8, scoped, tag = 'scoped memory for policy_vpg_forward.2']
    #allocation6 [shape = 'u8[512]{0}', space=vmem, size = 0x400, scoped, tag = 'input window, operand 4, single buffered']
    #allocation7 [shape = 's32[1]{0}', space=sflag, size = 0x4, scoped, tag = 'scoped memory for policy_vpg_forward.2']
    #allocation8 [shape = 'u8[512]{0}', space=vmem, size = 0x400, scoped, tag = 'input window, operand 6, single buffered']
    %13 = vsyncpa [#allocation5], 0
    %14 = vsyncpa [#allocation7], 0
    loop: start=0, step=1, limit=4
    $region2: #{policy_vpg_forward.2} parent=1 // loop_pre_header
      _
    $region3: #{policy_vpg_forward.2} parent=1 // loop_header
      %s16 = sphi 0, %s20
      %p17 = scmp.ge.s32.totalorder %s16, 4
      %s26 = sphi 0, %s28
      %s29 = sphi 0, %s26
      %s30 = sphi 0, %s29
      %s46 = sphi 0, %s30
      %s50 = sphi 0, %s50
      %s52 = sphi 0, %s50
      %s53 = sphi 0, %s52
      %s67 = sphi 0, %s53
      %s71 = sphi 0, %s71
      %s73 = sphi 0, %s71
      %s74 = sphi 0, %s73
      %s88 = sphi 0, %s74
      %s92 = sphi 0, %s92
      %s94 = sphi 0, %s92
      %s95 = sphi 0, %s94
      %s109 = sphi 0, %s95
      %s113 = sphi 0, %s113
      %s115 = sphi 0, %s113
      %s116 = sphi 0, %s115
      %s130 = sphi 0, %s116
      %s134 = sphi 0, %s134
      %s136 = sphi 0, %s134
      %s137 = sphi 0, %s136
      %s151 = sphi 0, %s137
      %s155 = sphi 0, %s155
      %s157 = sphi 0, %s155
      %s158 = sphi 0, %s157
      %s172 = sphi 0, %s158
      %s176 = sphi 0, %s176
      %s178 = sphi 0, %s176
      %s179 = sphi 0, %s178
      %s193 = sphi 0, %s179
      %s199 = sphi 0, %s201
      %s202 = sphi 0, %s199
      %s203 = sphi 0, %s202
      %s219 = sphi 0, %s203
    $region4: #{policy_vpg_forward.2} parent=1 // loop_header_branch
      %19 = sbr.rel (%p17) target = $region8
    $region5: #{policy_vpg_forward.2} parent=1 // loop_body
      %s21 = ssub.s32 %s16, 1
      %s22 = ssub.s32 %s16, 2
      %s23 = sadd.s32 %s16, 1
      %s24 = ssub.s32 %s16, %s23
      %p25 = scmp.eq.s32.totalorder %s24, 0
      %s27 = sadd.s32 %s26, 1
      %s28 = scalar_select %p25, %s26, %s27
      %p31 = pneg %p25
      %p32 = scmp.eq.s32.totalorder %s16, 1
      %p33 = por %p31, %p32
      %p34 = scmp.ne.s32.totalorder %s26, %s29
      %p35 = scmp.eq.s32.totalorder %s16, 0
      %p36 = por %p34, %p35
      %p37 = scmp.ne.s32.totalorder %s26, %s29
      %p38 = scmp.eq.s32.totalorder %s21, 1
      %p39 = por %p37, %p38
      %p40 = scmp.ne.s32.totalorder %s29, %s30
      %p41 = scmp.eq.s32.totalorder %s21, 0
      %p42 = por %p40, %p41
      %p43 = scmp.ne.s32.totalorder %s29, %s30
      %p44 = scmp.eq.s32.totalorder %s22, 1
      %p45 = por %p43, %p44
      %p47 = scmp.ne.s32.totalorder %s30, %s46
      %p48 = scmp.eq.s32.totalorder %s22, 0
      %p49 = por %p47, %p48
      %s51 = sadd.s32 %s50, 1
      %p54 = scmp.eq.s32.totalorder %s16, 1
      %p55 = scmp.ne.s32.totalorder %s50, %s52
      %p56 = scmp.eq.s32.totalorder %s16, 0
      %p57 = por %p55, %p56
      %p58 = scmp.ne.s32.totalorder %s50, %s52
      %p59 = scmp.eq.s32.totalorder %s21, 1
      %p60 = por %p58, %p59
      %p61 = scmp.ne.s32.totalorder %s52, %s53
      %p62 = scmp.eq.s32.totalorder %s21, 0
      %p63 = por %p61, %p62
      %p64 = scmp.ne.s32.totalorder %s52, %s53
      %p65 = scmp.eq.s32.totalorder %s22, 1
      %p66 = por %p64, %p65
      %p68 = scmp.ne.s32.totalorder %s53, %s67
      %p69 = scmp.eq.s32.totalorder %s22, 0
      %p70 = por %p68, %p69
      %s72 = sadd.s32 %s71, 1
      %p75 = scmp.eq.s32.totalorder %s16, 1
      %p76 = scmp.ne.s32.totalorder %s71, %s73
      %p77 = scmp.eq.s32.totalorder %s16, 0
      %p78 = por %p76, %p77
      %p79 = scmp.ne.s32.totalorder %s71, %s73
      %p80 = scmp.eq.s32.totalorder %s21, 1
      %p81 = por %p79, %p80
      %p82 = scmp.ne.s32.totalorder %s73, %s74
      %p83 = scmp.eq.s32.totalorder %s21, 0
      %p84 = por %p82, %p83
      %p85 = scmp.ne.s32.totalorder %s73, %s74
      %p86 = scmp.eq.s32.totalorder %s22, 1
      %p87 = por %p85, %p86
      %p89 = scmp.ne.s32.totalorder %s74, %s88
      %p90 = scmp.eq.s32.totalorder %s22, 0
      %p91 = por %p89, %p90
      %s93 = sadd.s32 %s92, 1
      %p96 = scmp.eq.s32.totalorder %s16, 1
      %p97 = scmp.ne.s32.totalorder %s92, %s94
      %p98 = scmp.eq.s32.totalorder %s16, 0
      %p99 = por %p97, %p98
      %p100 = scmp.ne.s32.totalorder %s92, %s94
      %p101 = scmp.eq.s32.totalorder %s21, 1
      %p102 = por %p100, %p101
      %p103 = scmp.ne.s32.totalorder %s94, %s95
      %p104 = scmp.eq.s32.totalorder %s21, 0
      %p105 = por %p103, %p104
      %p106 = scmp.ne.s32.totalorder %s94, %s95
      %p107 = scmp.eq.s32.totalorder %s22, 1
      %p108 = por %p106, %p107
      %p110 = scmp.ne.s32.totalorder %s95, %s109
      %p111 = scmp.eq.s32.totalorder %s22, 0
      %p112 = por %p110, %p111
      %s114 = sadd.s32 %s113, 1
      %p117 = scmp.eq.s32.totalorder %s16, 1
      %p118 = scmp.ne.s32.totalorder %s113, %s115
      %p119 = scmp.eq.s32.totalorder %s16, 0
      %p120 = por %p118, %p119
      %p121 = scmp.ne.s32.totalorder %s113, %s115
      %p122 = scmp.eq.s32.totalorder %s21, 1
      %p123 = por %p121, %p122
      %p124 = scmp.ne.s32.totalorder %s115, %s116
      %p125 = scmp.eq.s32.totalorder %s21, 0
      %p126 = por %p124, %p125
      %p127 = scmp.ne.s32.totalorder %s115, %s116
      %p128 = scmp.eq.s32.totalorder %s22, 1
      %p129 = por %p127, %p128
      %p131 = scmp.ne.s32.totalorder %s116, %s130
      %p132 = scmp.eq.s32.totalorder %s22, 0
      %p133 = por %p131, %p132
      %s135 = sadd.s32 %s134, 1
      %p138 = scmp.eq.s32.totalorder %s16, 1
      %p139 = scmp.ne.s32.totalorder %s134, %s136
      %p140 = scmp.eq.s32.totalorder %s16, 0
      %p141 = por %p139, %p140
      %p142 = scmp.ne.s32.totalorder %s134, %s136
      %p143 = scmp.eq.s32.totalorder %s21, 1
      %p144 = por %p142, %p143
      %p145 = scmp.ne.s32.totalorder %s136, %s137
      %p146 = scmp.eq.s32.totalorder %s21, 0
      %p147 = por %p145, %p146
      %p148 = scmp.ne.s32.totalorder %s136, %s137
      %p149 = scmp.eq.s32.totalorder %s22, 1
      %p150 = por %p148, %p149
      %p152 = scmp.ne.s32.totalorder %s137, %s151
      %p153 = scmp.eq.s32.totalorder %s22, 0
      %p154 = por %p152, %p153
      %s156 = sadd.s32 %s155, 1
      %p159 = scmp.eq.s32.totalorder %s16, 1
      %p160 = scmp.ne.s32.totalorder %s155, %s157
      %p161 = scmp.eq.s32.totalorder %s16, 0
      %p162 = por %p160, %p161
      %p163 = scmp.ne.s32.totalorder %s155, %s157
      %p164 = scmp.eq.s32.totalorder %s21, 1
      %p165 = por %p163, %p164
      %p166 = scmp.ne.s32.totalorder %s157, %s158
      %p167 = scmp.eq.s32.totalorder %s21, 0
      %p168 = por %p166, %p167
      %p169 = scmp.ne.s32.totalorder %s157, %s158
      %p170 = scmp.eq.s32.totalorder %s22, 1
      %p171 = por %p169, %p170
      %p173 = scmp.ne.s32.totalorder %s158, %s172
      %p174 = scmp.eq.s32.totalorder %s22, 0
      %p175 = por %p173, %p174
      %s177 = sadd.s32 %s176, 1
      %p180 = scmp.eq.s32.totalorder %s16, 1
      %p181 = scmp.ne.s32.totalorder %s176, %s178
      %p182 = scmp.eq.s32.totalorder %s16, 0
      %p183 = por %p181, %p182
      %p184 = scmp.ne.s32.totalorder %s176, %s178
      %p185 = scmp.eq.s32.totalorder %s21, 1
      %p186 = por %p184, %p185
      %p187 = scmp.ne.s32.totalorder %s178, %s179
      %p188 = scmp.eq.s32.totalorder %s21, 0
      %p189 = por %p187, %p188
      %p190 = scmp.ne.s32.totalorder %s178, %s179
      %p191 = scmp.eq.s32.totalorder %s22, 1
      %p192 = por %p190, %p191
      %p194 = scmp.ne.s32.totalorder %s179, %s193
      %p195 = scmp.eq.s32.totalorder %s22, 0
      %p196 = por %p194, %p195
      %s197 = ssub.s32 %s16, %s23
      %p198 = scmp.eq.s32.totalorder %s197, 0
      %s200 = sadd.s32 %s199, 1
      %s201 = scalar_select %p198, %s199, %s200
      %p204 = pneg %p198
      %p205 = scmp.eq.s32.totalorder %s16, 1
      %p206 = por %p204, %p205
      %p207 = scmp.ne.s32.totalorder %s199, %s202
      %p208 = scmp.eq.s32.totalorder %s16, 0
      %p209 = por %p207, %p208
      %p210 = scmp.ne.s32.totalorder %s199, %s202
      %p211 = scmp.eq.s32.totalorder %s21, 1
      %p212 = por %p210, %p211
      %p213 = scmp.ne.s32.totalorder %s202, %s203
      %p214 = scmp.eq.s32.totalorder %s21, 0
      %p215 = por %p213, %p214
      %p216 = scmp.ne.s32.totalorder %s202, %s203
      %p217 = scmp.eq.s32.totalorder %s22, 1
      %p218 = por %p216, %p217
      %p220 = scmp.ne.s32.totalorder %s203, %s219
      %p221 = scmp.eq.s32.totalorder %s22, 0
      %p222 = por %p220, %p221
      %p223 = scmp.le.s32.totalorder 1, %s16
      %p224 = scmp.lt.s32.totalorder %s16, 3
      %p225 = pnand %p223, %p224
      %p226 = pneg %p225
      // Predicated region
      $region9: #{policy_vpg_forward.2} parent=5 // pred_check
        _
      $region10: #{policy_vpg_forward.2} parent=5 // pred_check_branch
        %228 = sbr.rel (%p225) target = $region12
      $region11: #{policy_vpg_forward.2} parent=5 // pred_region
        %s229 = ssub.s32 %s16, 1
        // Predicated region
        $region13: #{policy_vpg_forward.2} parent=11 // pred_check
          %p230 = pneg %p63
        $region14: #{policy_vpg_forward.2} parent=11 // pred_check_branch
          %232 = sbr.rel (%p230) target = $region16
        $region15: #{policy_vpg_forward.2} parent=11 // pred_region
          _
        $region16: #{policy_vpg_forward.2} parent=11 // pred_fallthru
          _
        // Predicated region
        $region17: #{policy_vpg_forward.2} parent=11 // pred_check
          %p233 = pneg %p84
        $region18: #{policy_vpg_forward.2} parent=11 // pred_check_branch
          %235 = sbr.rel (%p233) target = $region20
        $region19: #{policy_vpg_forward.2} parent=11 // pred_region
          %s237 = ssub.s32 16, 16
          %238 = vsyncadd [#allocation5], %s237
          %s240 = sshll.u32 [#allocation4], 4
          %s241 = int_to_ptr.vmem [resolvable:$true] %s240
          %243 = dma.hbm_to_vmem [thread:$0]  %s2, 16, %s241, [#allocation5]
        $region20: #{policy_vpg_forward.2} parent=11 // pred_fallthru
          _
        // Predicated region
        $region21: #{policy_vpg_forward.2} parent=11 // pred_check
          %p244 = pneg %p105
        $region22: #{policy_vpg_forward.2} parent=11 // pred_check_branch
          %246 = sbr.rel (%p244) target = $region24
        $region23: #{policy_vpg_forward.2} parent=11 // pred_region
          _
        $region24: #{policy_vpg_forward.2} parent=11 // pred_fallthru
          _
        // Predicated region
        $region25: #{policy_vpg_forward.2} parent=11 // pred_check
          %p247 = pneg %p126
        $region26: #{policy_vpg_forward.2} parent=11 // pred_check_branch
          %249 = sbr.rel (%p247) target = $region28
        $region27: #{policy_vpg_forward.2} parent=11 // pred_region
          %s251 = ssub.s32 16, 16
          %252 = vsyncadd [#allocation7], %s251
          %s254 = sshll.u32 [#allocation6], 4
          %s255 = int_to_ptr.vmem [resolvable:$true] %s254
          %257 = dma.hbm_to_vmem [thread:$0]  %s4, 16, %s255, [#allocation7]
        $region28: #{policy_vpg_forward.2} parent=11 // pred_fallthru
          _
        // Predicated region
        $region29: #{policy_vpg_forward.2} parent=11 // pred_check
          %p258 = pneg %p147
        $region30: #{policy_vpg_forward.2} parent=11 // pred_check_branch
          %260 = sbr.rel (%p258) target = $region32
        $region31: #{policy_vpg_forward.2} parent=11 // pred_region
          _
        $region32: #{policy_vpg_forward.2} parent=11 // pred_fallthru
          _
        // Predicated region
        $region33: #{policy_vpg_forward.2} parent=11 // pred_check
          %p261 = pneg %p168
        $region34: #{policy_vpg_forward.2} parent=11 // pred_check_branch
          %263 = sbr.rel (%p261) target = $region36
        $region35: #{policy_vpg_forward.2} parent=11 // pred_region
          %s265 = ssub.s32 16, 16
          %266 = vsyncadd [#allocation7], %s265
          %s268 = sshll.u32 [#allocation8], 4
          %s269 = int_to_ptr.vmem [resolvable:$true] %s268
          %271 = dma.hbm_to_vmem [thread:$0]  %s6, 16, %s269, [#allocation7]
        $region36: #{policy_vpg_forward.2} parent=11 // pred_fallthru
          _
        // Predicated region
        $region37: #{policy_vpg_forward.2} parent=11 // pred_check
          %p272 = pneg %p189
        $region38: #{policy_vpg_forward.2} parent=11 // pred_check_branch
          %274 = sbr.rel (%p272) target = $region40
        $region39: #{policy_vpg_forward.2} parent=11 // pred_region
          _
        $region40: #{policy_vpg_forward.2} parent=11 // pred_fallthru
          _
      $region12: #{policy_vpg_forward.2} parent=5 // pred_fallthru
        _
      %p275 = scmp.lt.s32.totalorder %s16, 2
      // Predicated region
      $region41: #{policy_vpg_forward.2} parent=5 // pred_check
        %p276 = pneg %p275
      $region42: #{policy_vpg_forward.2} parent=5 // pred_check_branch
        %278 = sbr.rel (%p276) target = $region44
      $region43: #{policy_vpg_forward.2} parent=5 // pred_region
        // Predicated region
        $region45: #{policy_vpg_forward.2} parent=43 // pred_check
          %p279 = pneg %p36
        $region46: #{policy_vpg_forward.2} parent=43 // pred_check_branch
          %281 = sbr.rel (%p279) target = $region48
        $region47: #{policy_vpg_forward.2} parent=43 // pred_region
          %p282 = scmp.lt.s32.totalorder %s16, 1
          %s283 = scalar_select %p282, %s16, 1
          %s284 = smul.addr %s283, 51
          %s285 = smul.addr %s284, 4
          %s286 = scalar_lea.vmem %s0, %s285
        $region48: #{policy_vpg_forward.2} parent=43 // pred_fallthru
          _
      $region44: #{policy_vpg_forward.2} parent=5 // pred_fallthru
        _
      %p287 = scmp.le.s32.totalorder 1, %s16
      %p288 = scmp.lt.s32.totalorder %s16, 3
      %p289 = pnand %p287, %p288
      %p290 = pneg %p289
      // Predicated region
      $region49: #{policy_vpg_forward.2} parent=5 // pred_check
        _
      $region50: #{policy_vpg_forward.2} parent=5 // pred_check_branch
        %292 = sbr.rel (%p289) target = $region52
      $region51: #{policy_vpg_forward.2} parent=5 // pred_region
        %s293 = ssub.s32 %s16, 1
        // Predicated region
        $region53: #{policy_vpg_forward.2} parent=51 // pred_check
          %p294 = pneg %p84
        $region54: #{policy_vpg_forward.2} parent=51 // pred_check_branch
          %296 = sbr.rel (%p294) target = $region56
        $region55: #{policy_vpg_forward.2} parent=51 // pred_region
          %297 = dma.done [#allocation5], 16
        $region56: #{policy_vpg_forward.2} parent=51 // pred_fallthru
          _
        // Predicated region
        $region57: #{policy_vpg_forward.2} parent=51 // pred_check
          %p298 = pneg %p126
        $region58: #{policy_vpg_forward.2} parent=51 // pred_check_branch
          %300 = sbr.rel (%p298) target = $region60
        $region59: #{policy_vpg_forward.2} parent=51 // pred_region
          %301 = dma.done [#allocation7], 16
        $region60: #{policy_vpg_forward.2} parent=51 // pred_fallthru
          _
        // Predicated region
        $region61: #{policy_vpg_forward.2} parent=51 // pred_check
          %p302 = pneg %p168
        $region62: #{policy_vpg_forward.2} parent=51 // pred_check_branch
          %304 = sbr.rel (%p302) target = $region64
        $region63: #{policy_vpg_forward.2} parent=51 // pred_region
          %305 = dma.done [#allocation7], 16
        $region64: #{policy_vpg_forward.2} parent=51 // pred_fallthru
          _
        %p306 = scmp.lt.s32.totalorder %s21, 1
        %s307 = scalar_select %p306, %s21, 1
        %s308 = smul.addr %s307, 51
        %s309 = smul.addr %s308, 4
        %s310 = scalar_lea.vmem %s0, %s309
        %p311 = pneg %p42
        %p312 = pneg %p39
        %p313 = pneg %p63
        %p314 = pneg %p60
        %p315 = pneg %p84
        %p316 = pneg %p81
        %p317 = pneg %p105
        %p318 = pneg %p102
        %p319 = pneg %p126
        %p320 = pneg %p123
        %p321 = pneg %p147
        %p322 = pneg %p144
        %p323 = pneg %p168
        %p324 = pneg %p165
        %p325 = pneg %p189
        %p326 = pneg %p186
        %p327 = pneg %p215
        %p328 = pneg %p212
        %p329 = scmp.lt.s32.totalorder %s21, 1
        %s330 = scalar_select %p329, %s21, 1
        %s331 = smul.addr %s330, 45
        %s332 = smul.addr %s331, 4
        %s333 = scalar_lea.vmem %s8, %s332
        %p334 = scmp.lt.s32.totalorder %s21, 1
        %s335 = scalar_select %p334, %s21, 1
        %s336 = smul.addr %s335, 51
        %s337 = smul.addr %s336, 4
        %s338 = scalar_lea.vmem %s0, %s337
        %p339 = scmp.lt.s32.totalorder %s21, 1
        %s340 = scalar_select %p339, %s21, 1
        %s341 = smul.addr %s340, 45
        %s342 = smul.addr %s341, 4
        %s343 = scalar_lea.vmem %s8, %s342
        %v345 = vld [vmem:[%s7] sm:$0xff]
        %v346 = vld [vmem:[%s7 + $0x8] sm:$0xff]
        %v347 = vld [vmem:[%s7 + $0x10] sm:$0xff]
        %v348 = vld [vmem:[%s7 + $0x18] sm:$0xff]
        %v349 = vld [vmem:[%s7 + $0x20] sm:$0xff]
        %v350 = vld [vmem:[%s7 + $0x28] sm:$0xff]
        %v351 = vld [vmem:[%s7 + $0x30] sm:$0xff]
        %v352 = vld [vmem:[%s7 + $0x38] sm:$0xff]
        %v353 = vld [vmem:[%s7 + $0x40] sm:$0xff]
        %v354 = vld [vmem:[%s7 + $0x48] sm:$0xff]
        %v355 = vld [vmem:[%s7 + $0x50] sm:$0xff]
        %v356 = vld [vmem:[%s7 + $0x58] sm:$0xff]
        %v357 = vld [vmem:[%s7 + $0x60] sm:$0xff]
        %v358 = vld [vmem:[%s7 + $0x68] sm:$0xff]
        %v359 = vld [vmem:[%s7 + $0x70] sm:$0xff]
        %v360 = vld [vmem:[%s7 + $0x78] sm:$0xff]
        %v361 = vld [vmem:[%s7 + $0x80] sm:$0xff]
        %v362 = vld [vmem:[%s7 + $0x88] sm:$0xff]
        %v363 = vld [vmem:[%s7 + $0x90] sm:$0xff]
        %v364 = vld [vmem:[%s7 + $0x98] sm:$0xff]
        %v365 = vld [vmem:[%s7 + $0xa0] sm:$0xff]
        %v366 = vld [vmem:[%s7 + $0xa8] sm:$0xff]
        %v367 = vld [vmem:[%s7 + $0xb0] sm:$0xff]
        %v368 = vld [vmem:[%s7 + $0xb8] sm:$0xff]
        %v369 = vld [vmem:[%s7 + $0xc0] sm:$0xff]
        %v370 = vld [vmem:[%s7 + $0xc8] sm:$0xff]
        %v371 = vld [vmem:[%s7 + $0xd0] sm:$0xff]
        %v372 = vld [vmem:[%s7 + $0xd8] sm:$0xff]
        %v373 = vld [vmem:[%s7 + $0xe0] sm:$0xff]
        %v374 = vld [vmem:[%s7 + $0xe8] sm:$0xff]
        %v375 = vld [vmem:[%s7 + $0xf0] sm:$0xff]
        %v376 = vld [vmem:[%s7 + $0xf8] sm:$0xff]
        %v377 = vld [vmem:[%s7 + $0x100] sm:$0xff]
        %v378 = vld [vmem:[%s7 + $0x108] sm:$0xff]
        %v379 = vld [vmem:[%s7 + $0x110] sm:$0xff]
        %v380 = vld [vmem:[%s7 + $0x118] sm:$0xff]
        %v381 = vld [vmem:[%s7 + $0x120] sm:$0xff]
        %v382 = vld [vmem:[%s7 + $0x128] sm:$0xff]
        %v383 = vld [vmem:[%s7 + $0x130] sm:$0xff]
        %v384 = vld [vmem:[%s7 + $0x138] sm:$0xff]
        %v385 = vld [vmem:[%s7 + $0x140] sm:$0xff]
        %v386 = vld [vmem:[%s7 + $0x148] sm:$0xff]
        %v387 = vld [vmem:[%s7 + $0x150] sm:$0xff]
        %v388 = vld [vmem:[%s7 + $0x158] sm:$0xff]
        %v389 = vld [vmem:[%s7 + $0x160] sm:$0xff]
        %v390 = vld [vmem:[%s338] sm:$0xe]
        %v391 = vld [vmem:[%s338 + $0x4] sm:$0xf]
        %v392 = vld [vmem:[%s338 + $0x8] sm:$0xf]
        %v393 = vld [vmem:[%s338 + $0xc] sm:$0xf]
        %v394 = vld [vmem:[%s338 + $0x10] sm:$0xf]
        %v395 = vld [vmem:[%s338 + $0x14] sm:$0xf]
        %v396 = vld [vmem:[%s338 + $0x18] sm:$0xf]
        %v397 = vld [vmem:[%s338 + $0x1c] sm:$0xf]
        %v398 = vld [vmem:[%s338 + $0x20] sm:$0xf]
        %v399 = vld [vmem:[%s338 + $0x24] sm:$0xf]
        %v400 = vld [vmem:[%s338 + $0x28] sm:$0xf]
        %v401 = vld [vmem:[%s338 + $0x2c] sm:$0xf]
        %v402 = vld [vmem:[%s338 + $0x30] sm:$0xf]
        %v403 = vld [vmem:[%s338 + $0x34] sm:$0xf]
        %v404 = vld [vmem:[%s338 + $0x38] sm:$0xf]
        %v405 = vld [vmem:[%s338 + $0x3c] sm:$0xf]
        %v406 = vld [vmem:[%s338 + $0x40] sm:$0xf]
        %v407 = vld [vmem:[%s338 + $0x44] sm:$0xf]
        %v408 = vld [vmem:[%s338 + $0x48] sm:$0xf]
        %v409 = vld [vmem:[%s338 + $0x4c] sm:$0xf]
        %v410 = vld [vmem:[%s338 + $0x50] sm:$0xf]
        %v411 = vld [vmem:[%s338 + $0x54] sm:$0xf]
        %v412 = vld [vmem:[%s338 + $0x58] sm:$0xf]
        %v413 = vld [vmem:[%s338 + $0x5c] sm:$0xf]
        %v414 = vld [vmem:[%s338 + $0x60] sm:$0xf]
        %v415 = vld [vmem:[%s338 + $0x64] sm:$0xf]
        %v416 = vld [vmem:[%s338 + $0x68] sm:$0xf]
        %v417 = vld [vmem:[%s338 + $0x6c] sm:$0xf]
        %v418 = vld [vmem:[%s338 + $0x70] sm:$0xf]
        %v419 = vld [vmem:[%s338 + $0x74] sm:$0xf]
        %v420 = vld [vmem:[%s338 + $0x78] sm:$0xf]
        %v421 = vld [vmem:[%s338 + $0x7c] sm:$0xf]
        %v422 = vld [vmem:[%s338 + $0x80] sm:$0xf]
        %v423 = vld [vmem:[%s338 + $0x84] sm:$0xf]
        %v424 = vld [vmem:[%s338 + $0x88] sm:$0xf]
        %v425 = vld [vmem:[%s338 + $0x8c] sm:$0xf]
        %v426 = vld [vmem:[%s338 + $0x90] sm:$0xf]
        %v427 = vld [vmem:[%s338 + $0x94] sm:$0xf]
        %v428 = vld [vmem:[%s338 + $0x98] sm:$0xf]
        %v429 = vld [vmem:[%s338 + $0x9c] sm:$0xf]
        %v430 = vld [vmem:[%s338 + $0xa0] sm:$0xf]
        %v431 = vld [vmem:[%s338 + $0xa4] sm:$0xf]
        %v432 = vld [vmem:[%s338 + $0xa8] sm:$0xf]
        %v433 = vld [vmem:[%s338 + $0xac] sm:$0xf]
        %v434 = vld [vmem:[%s338 + $0xb0] sm:$0xf]
        %v435 = vld [vmem:[%s338 + $0xb4] sm:$0x3]
        %v436 = vld [vmem:[%s338] sm:$0xc]
        %v437 = vld [vmem:[%s338 + $0xb4] sm:$0x7]
        %v438 = vld [vmem:[%s338 + $0x8] sm:$0x8]
        %v439 = vld [vmem:[%s338 + $0xb4] sm:$0xf]
        %v440 = vld [vmem:[%s338 + $0xb8] sm:$0xf]
        %v441 = vld [vmem:[%s338 + $0xbc] sm:$0xf]
        %v442 = vld [vmem:[%s338 + $0xc0] sm:$0x1]
        %v443 = vld [vmem:[%s338 + $0x14] sm:$0xe]
        %v444 = vld [vmem:[%s338 + $0xc0] sm:$0xf]
        %v445 = vld [vmem:[%s338 + $0xc4] sm:$0xf]
        %v446 = vld [vmem:[%s338 + $0xc8] sm:$0x3]
        %v447 = vld [vmem:[%s338 + $0x14] sm:$0xc]
        %v448 = vld [vmem:[%s338 + $0xc8] sm:$0x7]
        %v495 = vunpack.c.l.b16 %v390
        %v496 = vunpack.c.l.b16 %v391
        %v497 = vunpack.c.l.b16 %v392
        %v498 = vunpack.c.l.b16 %v393
        %v499 = vunpack.c.l.b16 %v394
        %v500 = vunpack.c.l.b16 %v395
        %v501 = vunpack.c.l.b16 %v396
        %v502 = vunpack.c.l.b16 %v397
        %v503 = vunpack.c.l.b16 %v398
        %v504 = vunpack.c.l.b16 %v399
        %v505 = vunpack.c.l.b16 %v400
        %v506 = vunpack.c.l.b16 %v401
        %v507 = vunpack.c.l.b16 %v402
        %v508 = vunpack.c.l.b16 %v403
        %v509 = vunpack.c.l.b16 %v404
        %v510 = vunpack.c.l.b16 %v405
        %v511 = vunpack.c.l.b16 %v406
        %v512 = vunpack.c.l.b16 %v407
        %v513 = vunpack.c.l.b16 %v408
        %v514 = vunpack.c.l.b16 %v409
        %v515 = vunpack.c.l.b16 %v410
        %v516 = vunpack.c.l.b16 %v411
        %v517 = vunpack.c.l.b16 %v412
        %v518 = vunpack.c.l.b16 %v413
        %v519 = vunpack.c.l.b16 %v414
        %v520 = vunpack.c.l.b16 %v415
        %v521 = vunpack.c.l.b16 %v416
        %v522 = vunpack.c.l.b16 %v417
        %v523 = vunpack.c.l.b16 %v418
        %v524 = vunpack.c.l.b16 %v419
        %v525 = vunpack.c.l.b16 %v420
        %v526 = vunpack.c.l.b16 %v421
        %v527 = vunpack.c.l.b16 %v422
        %v528 = vunpack.c.l.b16 %v423
        %v529 = vunpack.c.l.b16 %v424
        %v530 = vunpack.c.l.b16 %v425
        %v531 = vunpack.c.l.b16 %v426
        %v532 = vunpack.c.l.b16 %v427
        %v533 = vunpack.c.l.b16 %v428
        %v534 = vunpack.c.l.b16 %v429
        %v535 = vunpack.c.l.b16 %v430
        %v536 = vunpack.c.l.b16 %v431
        %v537 = vunpack.c.l.b16 %v432
        %v538 = vunpack.c.l.b16 %v433
        %v539 = vunpack.c.l.b16 %v434
        %v540 = vunpack.c.l.b16 %v435
        %v541 = vpack.c.b16 %v496, %v495
        %v542 = vpack.c.b16 %v498, %v497
        %v543 = vpack.c.b16 %v500, %v499
        %v544 = vpack.c.b16 %v502, %v501
        %v545 = vpack.c.b16 %v504, %v503
        %v546 = vpack.c.b16 %v506, %v505
        %v547 = vpack.c.b16 %v508, %v507
        %v548 = vpack.c.b16 %v510, %v509
        %v549 = vpack.c.b16 %v512, %v511
        %v550 = vpack.c.b16 %v514, %v513
        %v551 = vpack.c.b16 %v516, %v515
        %v552 = vpack.c.b16 %v518, %v517
        %v553 = vpack.c.b16 %v520, %v519
        %v554 = vpack.c.b16 %v522, %v521
        %v555 = vpack.c.b16 %v524, %v523
        %v556 = vpack.c.b16 %v526, %v525
        %v557 = vpack.c.b16 %v528, %v527
        %v558 = vpack.c.b16 %v530, %v529
        %v559 = vpack.c.b16 %v532, %v531
        %v560 = vpack.c.b16 %v534, %v533
        %v561 = vpack.c.b16 %v536, %v535
        %v562 = vpack.c.b16 %v538, %v537
        %v563 = vpack.c.b16 %v540, %v539
        %v565 = vunpack.c.l.b16 %v436
        %v566 = vpack.c.b16 %v496, %v565
        %vm567 = vsmask.f32 7424
        %v569 = vshrl.u32 %v566, 16
        %v571 = vshll.u32 %v566, 16
        %v573 = vrot.slane %v571, 1
        %v574 = vor.u32 %v569, %v573
        %v576 = vshll.u32 %v542, 16
        %v578 = vrot.slane %v576, 1
        %v579 = vsel %vm567, %v574, %v578
        %v580 = vshrl.u32 %v542, 16
        %v582 = vor.u32 %v580, %v578
        %v584 = vshll.u32 %v543, 16
        %v586 = vrot.slane %v584, 1
        %v587 = vsel %vm567, %v582, %v586
        %v588 = vshrl.u32 %v543, 16
        %v590 = vor.u32 %v588, %v586
        %v592 = vshll.u32 %v544, 16
        %v594 = vrot.slane %v592, 1
        %v595 = vsel %vm567, %v590, %v594
        %v596 = vshrl.u32 %v544, 16
        %v598 = vor.u32 %v596, %v594
        %v600 = vshll.u32 %v545, 16
        %v602 = vrot.slane %v600, 1
        %v603 = vsel %vm567, %v598, %v602
        %v604 = vshrl.u32 %v545, 16
        %v606 = vor.u32 %v604, %v602
        %v608 = vshll.u32 %v546, 16
        %v610 = vrot.slane %v608, 1
        %v611 = vsel %vm567, %v606, %v610
        %v612 = vshrl.u32 %v546, 16
        %v614 = vor.u32 %v612, %v610
        %v616 = vshll.u32 %v547, 16
        %v618 = vrot.slane %v616, 1
        %v619 = vsel %vm567, %v614, %v618
        %v620 = vshrl.u32 %v547, 16
        %v622 = vor.u32 %v620, %v618
        %v624 = vshll.u32 %v548, 16
        %v626 = vrot.slane %v624, 1
        %v627 = vsel %vm567, %v622, %v626
        %v628 = vshrl.u32 %v548, 16
        %v630 = vor.u32 %v628, %v626
        %v632 = vshll.u32 %v549, 16
        %v634 = vrot.slane %v632, 1
        %v635 = vsel %vm567, %v630, %v634
        %v636 = vshrl.u32 %v549, 16
        %v638 = vor.u32 %v636, %v634
        %v640 = vshll.u32 %v550, 16
        %v642 = vrot.slane %v640, 1
        %v643 = vsel %vm567, %v638, %v642
        %v644 = vshrl.u32 %v550, 16
        %v646 = vor.u32 %v644, %v642
        %v648 = vshll.u32 %v551, 16
        %v650 = vrot.slane %v648, 1
        %v651 = vsel %vm567, %v646, %v650
        %v652 = vshrl.u32 %v551, 16
        %v654 = vor.u32 %v652, %v650
        %v656 = vshll.u32 %v552, 16
        %v658 = vrot.slane %v656, 1
        %v659 = vsel %vm567, %v654, %v658
        %v660 = vshrl.u32 %v552, 16
        %v662 = vor.u32 %v660, %v658
        %v664 = vshll.u32 %v553, 16
        %v666 = vrot.slane %v664, 1
        %v667 = vsel %vm567, %v662, %v666
        %v668 = vshrl.u32 %v553, 16
        %v670 = vor.u32 %v668, %v666
        %v672 = vshll.u32 %v554, 16
        %v674 = vrot.slane %v672, 1
        %v675 = vsel %vm567, %v670, %v674
        %v676 = vshrl.u32 %v554, 16
        %v678 = vor.u32 %v676, %v674
        %v680 = vshll.u32 %v555, 16
        %v682 = vrot.slane %v680, 1
        %v683 = vsel %vm567, %v678, %v682
        %v684 = vshrl.u32 %v555, 16
        %v686 = vor.u32 %v684, %v682
        %v688 = vshll.u32 %v556, 16
        %v690 = vrot.slane %v688, 1
        %v691 = vsel %vm567, %v686, %v690
        %v692 = vshrl.u32 %v556, 16
        %v694 = vor.u32 %v692, %v690
        %v696 = vshll.u32 %v557, 16
        %v698 = vrot.slane %v696, 1
        %v699 = vsel %vm567, %v694, %v698
        %v700 = vshrl.u32 %v557, 16
        %v702 = vor.u32 %v700, %v698
        %v704 = vshll.u32 %v558, 16
        %v706 = vrot.slane %v704, 1
        %v707 = vsel %vm567, %v702, %v706
        %v708 = vshrl.u32 %v558, 16
        %v710 = vor.u32 %v708, %v706
        %v712 = vshll.u32 %v559, 16
        %v714 = vrot.slane %v712, 1
        %v715 = vsel %vm567, %v710, %v714
        %v716 = vshrl.u32 %v559, 16
        %v718 = vor.u32 %v716, %v714
        %v720 = vshll.u32 %v560, 16
        %v722 = vrot.slane %v720, 1
        %v723 = vsel %vm567, %v718, %v722
        %v724 = vshrl.u32 %v560, 16
        %v726 = vor.u32 %v724, %v722
        %v728 = vshll.u32 %v561, 16
        %v730 = vrot.slane %v728, 1
        %v731 = vsel %vm567, %v726, %v730
        %v732 = vshrl.u32 %v561, 16
        %v734 = vor.u32 %v732, %v730
        %v736 = vshll.u32 %v562, 16
        %v738 = vrot.slane %v736, 1
        %v739 = vsel %vm567, %v734, %v738
        %v740 = vshrl.u32 %v562, 16
        %v742 = vor.u32 %v740, %v738
        %v744 = vshll.u32 %v563, 16
        %v746 = vrot.slane %v744, 1
        %v747 = vsel %vm567, %v742, %v746
        %v748 = vshrl.u32 %v563, 16
        %v750 = vor.u32 %v748, %v746
        %751 = vrot.lane.b32.xlu0 %v579, 4
        %v752 = vpop.permute.xlu0 %751
        %753 = vrot.lane.b32.xlu0 %v587, 4
        %v754 = vpop.permute.xlu0 %753
        %755 = vrot.lane.b32.xlu0 %v595, 4
        %v756 = vpop.permute.xlu0 %755
        %757 = vrot.lane.b32.xlu0 %v603, 4
        %v758 = vpop.permute.xlu0 %757
        %759 = vrot.lane.b32.xlu0 %v611, 4
        %v760 = vpop.permute.xlu0 %759
        %761 = vrot.lane.b32.xlu0 %v619, 4
        %v762 = vpop.permute.xlu0 %761
        %763 = vrot.lane.b32.xlu0 %v627, 4
        %v764 = vpop.permute.xlu0 %763
        %765 = vrot.lane.b32.xlu0 %v635, 4
        %v766 = vpop.permute.xlu0 %765
        %767 = vrot.lane.b32.xlu0 %v643, 4
        %v768 = vpop.permute.xlu0 %767
        %769 = vrot.lane.b32.xlu0 %v651, 4
        %v770 = vpop.permute.xlu0 %769
        %771 = vrot.lane.b32.xlu0 %v659, 4
        %v772 = vpop.permute.xlu0 %771
        %773 = vrot.lane.b32.xlu0 %v667, 4
        %v774 = vpop.permute.xlu0 %773
        %775 = vrot.lane.b32.xlu0 %v675, 4
        %v776 = vpop.permute.xlu0 %775
        %777 = vrot.lane.b32.xlu0 %v683, 4
        %v778 = vpop.permute.xlu0 %777
        %779 = vrot.lane.b32.xlu0 %v691, 4
        %v780 = vpop.permute.xlu0 %779
        %781 = vrot.lane.b32.xlu0 %v699, 4
        %v782 = vpop.permute.xlu0 %781
        %783 = vrot.lane.b32.xlu0 %v707, 4
        %v784 = vpop.permute.xlu0 %783
        %785 = vrot.lane.b32.xlu0 %v715, 4
        %v786 = vpop.permute.xlu0 %785
        %787 = vrot.lane.b32.xlu0 %v723, 4
        %v788 = vpop.permute.xlu0 %787
        %789 = vrot.lane.b32.xlu0 %v731, 4
        %v790 = vpop.permute.xlu0 %789
        %791 = vrot.lane.b32.xlu0 %v739, 4
        %v792 = vpop.permute.xlu0 %791
        %793 = vrot.lane.b32.xlu0 %v747, 4
        %v794 = vpop.permute.xlu0 %793
        %795 = vrot.lane.b32.xlu0 %v750, 4
        %v796 = vpop.permute.xlu0 %795
        %v798 = vunpack.c.l.b16 %v437
        %v799 = vpack.c.b16 %v798, %v539
        %vm800 = vcmask 1046528
        %v801 = vrot.slane %v566, 1
        %v802 = vrot.slane %v542, 1
        %v803 = vsel %vm800, %v801, %v802
        %v804 = vrot.slane %v543, 1
        %v805 = vsel %vm800, %v802, %v804
        %v806 = vrot.slane %v544, 1
        %v807 = vsel %vm800, %v804, %v806
        %v808 = vrot.slane %v545, 1
        %v809 = vsel %vm800, %v806, %v808
        %v810 = vrot.slane %v546, 1
        %v811 = vsel %vm800, %v808, %v810
        %v812 = vrot.slane %v547, 1
        %v813 = vsel %vm800, %v810, %v812
        %v814 = vrot.slane %v548, 1
        %v815 = vsel %vm800, %v812, %v814
        %v816 = vrot.slane %v549, 1
        %v817 = vsel %vm800, %v814, %v816
        %v818 = vrot.slane %v550, 1
        %v819 = vsel %vm800, %v816, %v818
        %v820 = vrot.slane %v551, 1
        %v821 = vsel %vm800, %v818, %v820
        %v822 = vrot.slane %v552, 1
        %v823 = vsel %vm800, %v820, %v822
        %v824 = vrot.slane %v553, 1
        %v825 = vsel %vm800, %v822, %v824
        %v826 = vrot.slane %v554, 1
        %v827 = vsel %vm800, %v824, %v826
        %v828 = vrot.slane %v555, 1
        %v829 = vsel %vm800, %v826, %v828
        %v830 = vrot.slane %v556, 1
        %v831 = vsel %vm800, %v828, %v830
        %v832 = vrot.slane %v557, 1
        %v833 = vsel %vm800, %v830, %v832
        %v834 = vrot.slane %v558, 1
        %v835 = vsel %vm800, %v832, %v834
        %v836 = vrot.slane %v559, 1
        %v837 = vsel %vm800, %v834, %v836
        %v838 = vrot.slane %v560, 1
        %v839 = vsel %vm800, %v836, %v838
        %v840 = vrot.slane %v561, 1
        %v841 = vsel %vm800, %v838, %v840
        %v842 = vrot.slane %v562, 1
        %v843 = vsel %vm800, %v840, %v842
        %v844 = vrot.slane %v799, 1
        %v845 = vsel %vm800, %v842, %v844
        %846 = vrot.lane.b32.xlu0 %v803, 8
        %v847 = vpop.permute.xlu0 %846
        %848 = vrot.lane.b32.xlu0 %v805, 8
        %v849 = vpop.permute.xlu0 %848
        %850 = vrot.lane.b32.xlu0 %v807, 8
        %v851 = vpop.permute.xlu0 %850
        %852 = vrot.lane.b32.xlu0 %v809, 8
        %v853 = vpop.permute.xlu0 %852
        %854 = vrot.lane.b32.xlu0 %v811, 8
        %v855 = vpop.permute.xlu0 %854
        %856 = vrot.lane.b32.xlu0 %v813, 8
        %v857 = vpop.permute.xlu0 %856
        %858 = vrot.lane.b32.xlu0 %v815, 8
        %v859 = vpop.permute.xlu0 %858
        %860 = vrot.lane.b32.xlu0 %v817, 8
        %v861 = vpop.permute.xlu0 %860
        %862 = vrot.lane.b32.xlu0 %v819, 8
        %v863 = vpop.permute.xlu0 %862
        %864 = vrot.lane.b32.xlu0 %v821, 8
        %v865 = vpop.permute.xlu0 %864
        %866 = vrot.lane.b32.xlu0 %v823, 8
        %v867 = vpop.permute.xlu0 %866
        %868 = vrot.lane.b32.xlu0 %v825, 8
        %v869 = vpop.permute.xlu0 %868
        %870 = vrot.lane.b32.xlu0 %v827, 8
        %v871 = vpop.permute.xlu0 %870
        %872 = vrot.lane.b32.xlu0 %v829, 8
        %v873 = vpop.permute.xlu0 %872
        %874 = vrot.lane.b32.xlu0 %v831, 8
        %v875 = vpop.permute.xlu0 %874
        %876 = vrot.lane.b32.xlu0 %v833, 8
        %v877 = vpop.permute.xlu0 %876
        %878 = vrot.lane.b32.xlu0 %v835, 8
        %v879 = vpop.permute.xlu0 %878
        %880 = vrot.lane.b32.xlu0 %v837, 8
        %v881 = vpop.permute.xlu0 %880
        %882 = vrot.lane.b32.xlu0 %v839, 8
        %v883 = vpop.permute.xlu0 %882
        %884 = vrot.lane.b32.xlu0 %v841, 8
        %v885 = vpop.permute.xlu0 %884
        %886 = vrot.lane.b32.xlu0 %v843, 8
        %v887 = vpop.permute.xlu0 %886
        %888 = vrot.lane.b32.xlu0 %v845, 8
        %v889 = vpop.permute.xlu0 %888
        %890 = vrot.lane.b32.xlu0 %v844, 8
        %v891 = vpop.permute.xlu0 %890
        %v896 = vunpack.c.l.b16 %v438
        %v897 = vunpack.c.l.b16 %v439
        %v898 = vunpack.c.l.b16 %v440
        %v899 = vunpack.c.l.b16 %v441
        %v900 = vpack.c.b16 %v498, %v896
        %v901 = vpack.c.b16 %v897, %v539
        %v902 = vpack.c.b16 %v899, %v898
        %vm903 = vcmask 1045504
        %v904 = vrot.slane %v900, 2
        %v905 = vrot.slane %v543, 2
        %v906 = vsel %vm903, %v904, %v905
        %v907 = vrot.slane %v544, 2
        %v908 = vsel %vm903, %v905, %v907
        %v909 = vrot.slane %v545, 2
        %v910 = vsel %vm903, %v907, %v909
        %v911 = vrot.slane %v546, 2
        %v912 = vsel %vm903, %v909, %v911
        %v913 = vrot.slane %v547, 2
        %v914 = vsel %vm903, %v911, %v913
        %v915 = vrot.slane %v548, 2
        %v916 = vsel %vm903, %v913, %v915
        %v917 = vrot.slane %v549, 2
        %v918 = vsel %vm903, %v915, %v917
        %v919 = vrot.slane %v550, 2
        %v920 = vsel %vm903, %v917, %v919
        %v921 = vrot.slane %v551, 2
        %v922 = vsel %vm903, %v919, %v921
        %v923 = vrot.slane %v552, 2
        %v924 = vsel %vm903, %v921, %v923
        %v925 = vrot.slane %v553, 2
        %v926 = vsel %vm903, %v923, %v925
        %v927 = vrot.slane %v554, 2
        %v928 = vsel %vm903, %v925, %v927
        %v929 = vrot.slane %v555, 2
        %v930 = vsel %vm903, %v927, %v929
        %v931 = vrot.slane %v556, 2
        %v932 = vsel %vm903, %v929, %v931
        %v933 = vrot.slane %v557, 2
        %v934 = vsel %vm903, %v931, %v933
        %v935 = vrot.slane %v558, 2
        %v936 = vsel %vm903, %v933, %v935
        %v937 = vrot.slane %v559, 2
        %v938 = vsel %vm903, %v935, %v937
        %v939 = vrot.slane %v560, 2
        %v940 = vsel %vm903, %v937, %v939
        %v941 = vrot.slane %v561, 2
        %v942 = vsel %vm903, %v939, %v941
        %v943 = vrot.slane %v562, 2
        %v944 = vsel %vm903, %v941, %v943
        %v945 = vrot.slane %v901, 2
        %v946 = vsel %vm903, %v943, %v945
        %v947 = vrot.slane %v902, 2
        %v948 = vsel %vm903, %v945, %v947
        %949 = vrot.lane.b32.xlu0 %v906, 12
        %v950 = vpop.permute.xlu0 %949
        %951 = vrot.lane.b32.xlu0 %v908, 12
        %v952 = vpop.permute.xlu0 %951
        %953 = vrot.lane.b32.xlu0 %v910, 12
        %v954 = vpop.permute.xlu0 %953
        %955 = vrot.lane.b32.xlu0 %v912, 12
        %v956 = vpop.permute.xlu0 %955
        %957 = vrot.lane.b32.xlu0 %v914, 12
        %v958 = vpop.permute.xlu0 %957
        %959 = vrot.lane.b32.xlu0 %v916, 12
        %v960 = vpop.permute.xlu0 %959
        %961 = vrot.lane.b32.xlu0 %v918, 12
        %v962 = vpop.permute.xlu0 %961
        %963 = vrot.lane.b32.xlu0 %v920, 12
        %v964 = vpop.permute.xlu0 %963
        %965 = vrot.lane.b32.xlu0 %v922, 12
        %v966 = vpop.permute.xlu0 %965
        %967 = vrot.lane.b32.xlu0 %v924, 12
        %v968 = vpop.permute.xlu0 %967
        %969 = vrot.lane.b32.xlu0 %v926, 12
        %v970 = vpop.permute.xlu0 %969
        %971 = vrot.lane.b32.xlu0 %v928, 12
        %v972 = vpop.permute.xlu0 %971
        %973 = vrot.lane.b32.xlu0 %v930, 12
        %v974 = vpop.permute.xlu0 %973
        %975 = vrot.lane.b32.xlu0 %v932, 12
        %v976 = vpop.permute.xlu0 %975
        %977 = vrot.lane.b32.xlu0 %v934, 12
        %v978 = vpop.permute.xlu0 %977
        %979 = vrot.lane.b32.xlu0 %v936, 12
        %v980 = vpop.permute.xlu0 %979
        %981 = vrot.lane.b32.xlu0 %v938, 12
        %v982 = vpop.permute.xlu0 %981
        %983 = vrot.lane.b32.xlu0 %v940, 12
        %v984 = vpop.permute.xlu0 %983
        %985 = vrot.lane.b32.xlu0 %v942, 12
        %v986 = vpop.permute.xlu0 %985
        %987 = vrot.lane.b32.xlu0 %v944, 12
        %v988 = vpop.permute.xlu0 %987
        %989 = vrot.lane.b32.xlu0 %v946, 12
        %v990 = vpop.permute.xlu0 %989
        %991 = vrot.lane.b32.xlu0 %v948, 12
        %v992 = vpop.permute.xlu0 %991
        %993 = vrot.lane.b32.xlu0 %v947, 12
        %v994 = vpop.permute.xlu0 %993
        %v995 = vpack.c.b16 %v499, %v498
        %v996 = vpack.c.b16 %v501, %v500
        %v997 = vpack.c.b16 %v503, %v502
        %v998 = vpack.c.b16 %v505, %v504
        %v999 = vpack.c.b16 %v507, %v506
        %v1000 = vpack.c.b16 %v509, %v508
        %v1001 = vpack.c.b16 %v511, %v510
        %v1002 = vpack.c.b16 %v513, %v512
        %v1003 = vpack.c.b16 %v515, %v514
        %v1004 = vpack.c.b16 %v517, %v516
        %v1005 = vpack.c.b16 %v519, %v518
        %v1006 = vpack.c.b16 %v521, %v520
        %v1007 = vpack.c.b16 %v523, %v522
        %v1008 = vpack.c.b16 %v525, %v524
        %v1009 = vpack.c.b16 %v527, %v526
        %v1010 = vpack.c.b16 %v529, %v528
        %v1011 = vpack.c.b16 %v531, %v530
        %v1012 = vpack.c.b16 %v533, %v532
        %v1013 = vpack.c.b16 %v535, %v534
        %v1014 = vpack.c.b16 %v537, %v536
        %v1015 = vpack.c.b16 %v539, %v538
        %v1016 = vpack.c.b16 %v898, %v897
        %v1017 = vpack.c.b16 %v899, %v899
        %vm1018 = vsmask.f32 1280
        %v1020 = vshrl.u32 %v995, 16
        %v1022 = vrot.slane %v1020, 6
        %v1023 = vshll.u32 %v995, 16
        %v1025 = vrot.slane %v1023, 7
        %v1026 = vor.u32 %v1022, %v1025
        %v1028 = vshrl.u32 %v996, 16
        %v1030 = vrot.slane %v1028, 6
        %v1031 = vshll.u32 %v996, 16
        %v1033 = vrot.slane %v1031, 7
        %v1034 = vor.u32 %v1030, %v1033
        %v1035 = vsel %vm1018, %v1026, %v1034
        %v1037 = vshrl.u32 %v997, 16
        %v1039 = vrot.slane %v1037, 6
        %v1040 = vshll.u32 %v997, 16
        %v1042 = vrot.slane %v1040, 7
        %v1043 = vor.u32 %v1039, %v1042
        %v1044 = vsel %vm1018, %v1034, %v1043
        %v1046 = vshrl.u32 %v998, 16
        %v1048 = vrot.slane %v1046, 6
        %v1049 = vshll.u32 %v998, 16
        %v1051 = vrot.slane %v1049, 7
        %v1052 = vor.u32 %v1048, %v1051
        %v1053 = vsel %vm1018, %v1043, %v1052
        %v1055 = vshrl.u32 %v999, 16
        %v1057 = vrot.slane %v1055, 6
        %v1058 = vshll.u32 %v999, 16
        %v1060 = vrot.slane %v1058, 7
        %v1061 = vor.u32 %v1057, %v1060
        %v1062 = vsel %vm1018, %v1052, %v1061
        %v1064 = vshrl.u32 %v1000, 16
        %v1066 = vrot.slane %v1064, 6
        %v1067 = vshll.u32 %v1000, 16
        %v1069 = vrot.slane %v1067, 7
        %v1070 = vor.u32 %v1066, %v1069
        %v1071 = vsel %vm1018, %v1061, %v1070
        %v1073 = vshrl.u32 %v1001, 16
        %v1075 = vrot.slane %v1073, 6
        %v1076 = vshll.u32 %v1001, 16
        %v1078 = vrot.slane %v1076, 7
        %v1079 = vor.u32 %v1075, %v1078
        %v1080 = vsel %vm1018, %v1070, %v1079
        %v1082 = vshrl.u32 %v1002, 16
        %v1084 = vrot.slane %v1082, 6
        %v1085 = vshll.u32 %v1002, 16
        %v1087 = vrot.slane %v1085, 7
        %v1088 = vor.u32 %v1084, %v1087
        %v1089 = vsel %vm1018, %v1079, %v1088
        %v1091 = vshrl.u32 %v1003, 16
        %v1093 = vrot.slane %v1091, 6
        %v1094 = vshll.u32 %v1003, 16
        %v1096 = vrot.slane %v1094, 7
        %v1097 = vor.u32 %v1093, %v1096
        %v1098 = vsel %vm1018, %v1088, %v1097
        %v1100 = vshrl.u32 %v1004, 16
        %v1102 = vrot.slane %v1100, 6
        %v1103 = vshll.u32 %v1004, 16
        %v1105 = vrot.slane %v1103, 7
        %v1106 = vor.u32 %v1102, %v1105
        %v1107 = vsel %vm1018, %v1097, %v1106
        %v1109 = vshrl.u32 %v1005, 16
        %v1111 = vrot.slane %v1109, 6
        %v1112 = vshll.u32 %v1005, 16
        %v1114 = vrot.slane %v1112, 7
        %v1115 = vor.u32 %v1111, %v1114
        %v1116 = vsel %vm1018, %v1106, %v1115
        %v1118 = vshrl.u32 %v1006, 16
        %v1120 = vrot.slane %v1118, 6
        %v1121 = vshll.u32 %v1006, 16
        %v1123 = vrot.slane %v1121, 7
        %v1124 = vor.u32 %v1120, %v1123
        %v1125 = vsel %vm1018, %v1115, %v1124
        %v1127 = vshrl.u32 %v1007, 16
        %v1129 = vrot.slane %v1127, 6
        %v1130 = vshll.u32 %v1007, 16
        %v1132 = vrot.slane %v1130, 7
        %v1133 = vor.u32 %v1129, %v1132
        %v1134 = vsel %vm1018, %v1124, %v1133
        %v1136 = vshrl.u32 %v1008, 16
        %v1138 = vrot.slane %v1136, 6
        %v1139 = vshll.u32 %v1008, 16
        %v1141 = vrot.slane %v1139, 7
        %v1142 = vor.u32 %v1138, %v1141
        %v1143 = vsel %vm1018, %v1133, %v1142
        %v1145 = vshrl.u32 %v1009, 16
        %v1147 = vrot.slane %v1145, 6
        %v1148 = vshll.u32 %v1009, 16
        %v1150 = vrot.slane %v1148, 7
        %v1151 = vor.u32 %v1147, %v1150
        %v1152 = vsel %vm1018, %v1142, %v1151
        %v1154 = vshrl.u32 %v1010, 16
        %v1156 = vrot.slane %v1154, 6
        %v1157 = vshll.u32 %v1010, 16
        %v1159 = vrot.slane %v1157, 7
        %v1160 = vor.u32 %v1156, %v1159
        %v1161 = vsel %vm1018, %v1151, %v1160
        %v1163 = vshrl.u32 %v1011, 16
        %v1165 = vrot.slane %v1163, 6
        %v1166 = vshll.u32 %v1011, 16
        %v1168 = vrot.slane %v1166, 7
        %v1169 = vor.u32 %v1165, %v1168
        %v1170 = vsel %vm1018, %v1160, %v1169
        %v1172 = vshrl.u32 %v1012, 16
        %v1174 = vrot.slane %v1172, 6
        %v1175 = vshll.u32 %v1012, 16
        %v1177 = vrot.slane %v1175, 7
        %v1178 = vor.u32 %v1174, %v1177
        %v1179 = vsel %vm1018, %v1169, %v1178
        %v1181 = vshrl.u32 %v1013, 16
        %v1183 = vrot.slane %v1181, 6
        %v1184 = vshll.u32 %v1013, 16
        %v1186 = vrot.slane %v1184, 7
        %v1187 = vor.u32 %v1183, %v1186
        %v1188 = vsel %vm1018, %v1178, %v1187
        %v1190 = vshrl.u32 %v1014, 16
        %v1192 = vrot.slane %v1190, 6
        %v1193 = vshll.u32 %v1014, 16
        %v1195 = vrot.slane %v1193, 7
        %v1196 = vor.u32 %v1192, %v1195
        %v1197 = vsel %vm1018, %v1187, %v1196
        %v1199 = vshrl.u32 %v1015, 16
        %v1201 = vrot.slane %v1199, 6
        %v1202 = vshll.u32 %v1015, 16
        %v1204 = vrot.slane %v1202, 7
        %v1205 = vor.u32 %v1201, %v1204
        %v1206 = vsel %vm1018, %v1196, %v1205
        %v1208 = vshrl.u32 %v1016, 16
        %v1210 = vrot.slane %v1208, 6
        %v1211 = vshll.u32 %v1016, 16
        %v1213 = vrot.slane %v1211, 7
        %v1214 = vor.u32 %v1210, %v1213
        %v1215 = vsel %vm1018, %v1205, %v1214
        %v1217 = vshrl.u32 %v1017, 16
        %v1219 = vrot.slane %v1217, 6
        %v1220 = vshll.u32 %v1017, 16
        %v1222 = vrot.slane %v1220, 7
        %v1223 = vor.u32 %v1219, %v1222
        %v1224 = vsel %vm1018, %v1214, %v1223
        %1225 = vrot.lane.b32.xlu0 %v1026, 16
        %v1226 = vpop.permute.xlu0 %1225
        %1227 = vrot.lane.b32.xlu0 %v1035, 16
        %v1228 = vpop.permute.xlu0 %1227
        %1229 = vrot.lane.b32.xlu0 %v1044, 16
        %v1230 = vpop.permute.xlu0 %1229
        %1231 = vrot.lane.b32.xlu0 %v1053, 16
        %v1232 = vpop.permute.xlu0 %1231
        %1233 = vrot.lane.b32.xlu0 %v1062, 16
        %v1234 = vpop.permute.xlu0 %1233
        %1235 = vrot.lane.b32.xlu0 %v1071, 16
        %v1236 = vpop.permute.xlu0 %1235
        %1237 = vrot.lane.b32.xlu0 %v1080, 16
        %v1238 = vpop.permute.xlu0 %1237
        %1239 = vrot.lane.b32.xlu0 %v1089, 16
        %v1240 = vpop.permute.xlu0 %1239
        %1241 = vrot.lane.b32.xlu0 %v1098, 16
        %v1242 = vpop.permute.xlu0 %1241
        %1243 = vrot.lane.b32.xlu0 %v1107, 16
        %v1244 = vpop.permute.xlu0 %1243
        %1245 = vrot.lane.b32.xlu0 %v1116, 16
        %v1246 = vpop.permute.xlu0 %1245
        %1247 = vrot.lane.b32.xlu0 %v1125, 16
        %v1248 = vpop.permute.xlu0 %1247
        %1249 = vrot.lane.b32.xlu0 %v1134, 16
        %v1250 = vpop.permute.xlu0 %1249
        %1251 = vrot.lane.b32.xlu0 %v1143, 16
        %v1252 = vpop.permute.xlu0 %1251
        %1253 = vrot.lane.b32.xlu0 %v1152, 16
        %v1254 = vpop.permute.xlu0 %1253
        %1255 = vrot.lane.b32.xlu0 %v1161, 16
        %v1256 = vpop.permute.xlu0 %1255
        %1257 = vrot.lane.b32.xlu0 %v1170, 16
        %v1258 = vpop.permute.xlu0 %1257
        %1259 = vrot.lane.b32.xlu0 %v1179, 16
        %v1260 = vpop.permute.xlu0 %1259
        %1261 = vrot.lane.b32.xlu0 %v1188, 16
        %v1262 = vpop.permute.xlu0 %1261
        %1263 = vrot.lane.b32.xlu0 %v1197, 16
        %v1264 = vpop.permute.xlu0 %1263
        %1265 = vrot.lane.b32.xlu0 %v1206, 16
        %v1266 = vpop.permute.xlu0 %1265
        %1267 = vrot.lane.b32.xlu0 %v1215, 16
        %v1268 = vpop.permute.xlu0 %1267
        %1269 = vrot.lane.b32.xlu0 %v1224, 16
        %v1270 = vpop.permute.xlu0 %1269
        %v1272 = vunpack.c.l.b16 %v442
        %v1273 = vpack.c.b16 %v1272, %v899
        %vm1274 = vcmask 1040384
        %v1275 = vrot.slane %v995, 7
        %v1276 = vrot.slane %v996, 7
        %v1277 = vsel %vm1274, %v1275, %v1276
        %v1278 = vrot.slane %v997, 7
        %v1279 = vsel %vm1274, %v1276, %v1278
        %v1280 = vrot.slane %v998, 7
        %v1281 = vsel %vm1274, %v1278, %v1280
        %v1282 = vrot.slane %v999, 7
        %v1283 = vsel %vm1274, %v1280, %v1282
        %v1284 = vrot.slane %v1000, 7
        %v1285 = vsel %vm1274, %v1282, %v1284
        %v1286 = vrot.slane %v1001, 7
        %v1287 = vsel %vm1274, %v1284, %v1286
        %v1288 = vrot.slane %v1002, 7
        %v1289 = vsel %vm1274, %v1286, %v1288
        %v1290 = vrot.slane %v1003, 7
        %v1291 = vsel %vm1274, %v1288, %v1290
        %v1292 = vrot.slane %v1004, 7
        %v1293 = vsel %vm1274, %v1290, %v1292
        %v1294 = vrot.slane %v1005, 7
        %v1295 = vsel %vm1274, %v1292, %v1294
        %v1296 = vrot.slane %v1006, 7
        %v1297 = vsel %vm1274, %v1294, %v1296
        %v1298 = vrot.slane %v1007, 7
        %v1299 = vsel %vm1274, %v1296, %v1298
        %v1300 = vrot.slane %v1008, 7
        %v1301 = vsel %vm1274, %v1298, %v1300
        %v1302 = vrot.slane %v1009, 7
        %v1303 = vsel %vm1274, %v1300, %v1302
        %v1304 = vrot.slane %v1010, 7
        %v1305 = vsel %vm1274, %v1302, %v1304
        %v1306 = vrot.slane %v1011, 7
        %v1307 = vsel %vm1274, %v1304, %v1306
        %v1308 = vrot.slane %v1012, 7
        %v1309 = vsel %vm1274, %v1306, %v1308
        %v1310 = vrot.slane %v1013, 7
        %v1311 = vsel %vm1274, %v1308, %v1310
        %v1312 = vrot.slane %v1014, 7
        %v1313 = vsel %vm1274, %v1310, %v1312
        %v1314 = vrot.slane %v1015, 7
        %v1315 = vsel %vm1274, %v1312, %v1314
        %v1316 = vrot.slane %v1016, 7
        %v1317 = vsel %vm1274, %v1314, %v1316
        %v1318 = vrot.slane %v1273, 7
        %v1319 = vsel %vm1274, %v1316, %v1318
        %1320 = vrot.lane.b32.xlu0 %v1275, 20
        %v1321 = vpop.permute.xlu0 %1320
        %1322 = vrot.lane.b32.xlu0 %v1277, 20
        %v1323 = vpop.permute.xlu0 %1322
        %1324 = vrot.lane.b32.xlu0 %v1279, 20
        %v1325 = vpop.permute.xlu0 %1324
        %1326 = vrot.lane.b32.xlu0 %v1281, 20
        %v1327 = vpop.permute.xlu0 %1326
        %1328 = vrot.lane.b32.xlu0 %v1283, 20
        %v1329 = vpop.permute.xlu0 %1328
        %1330 = vrot.lane.b32.xlu0 %v1285, 20
        %v1331 = vpop.permute.xlu0 %1330
        %1332 = vrot.lane.b32.xlu0 %v1287, 20
        %v1333 = vpop.permute.xlu0 %1332
        %1334 = vrot.lane.b32.xlu0 %v1289, 20
        %v1335 = vpop.permute.xlu0 %1334
        %1336 = vrot.lane.b32.xlu0 %v1291, 20
        %v1337 = vpop.permute.xlu0 %1336
        %1338 = vrot.lane.b32.xlu0 %v1293, 20
        %v1339 = vpop.permute.xlu0 %1338
        %1340 = vrot.lane.b32.xlu0 %v1295, 20
        %v1341 = vpop.permute.xlu0 %1340
        %1342 = vrot.lane.b32.xlu0 %v1297, 20
        %v1343 = vpop.permute.xlu0 %1342
        %1344 = vrot.lane.b32.xlu0 %v1299, 20
        %v1345 = vpop.permute.xlu0 %1344
        %1346 = vrot.lane.b32.xlu0 %v1301, 20
        %v1347 = vpop.permute.xlu0 %1346
        %1348 = vrot.lane.b32.xlu0 %v1303, 20
        %v1349 = vpop.permute.xlu0 %1348
        %1350 = vrot.lane.b32.xlu0 %v1305, 20
        %v1351 = vpop.permute.xlu0 %1350
        %1352 = vrot.lane.b32.xlu0 %v1307, 20
        %v1353 = vpop.permute.xlu0 %1352
        %1354 = vrot.lane.b32.xlu0 %v1309, 20
        %v1355 = vpop.permute.xlu0 %1354
        %1356 = vrot.lane.b32.xlu0 %v1311, 20
        %v1357 = vpop.permute.xlu0 %1356
        %1358 = vrot.lane.b32.xlu0 %v1313, 20
        %v1359 = vpop.permute.xlu0 %1358
        %1360 = vrot.lane.b32.xlu0 %v1315, 20
        %v1361 = vpop.permute.xlu0 %1360
        %1362 = vrot.lane.b32.xlu0 %v1317, 20
        %v1363 = vpop.permute.xlu0 %1362
        %1364 = vrot.lane.b32.xlu0 %v1319, 20
        %v1365 = vpop.permute.xlu0 %1364
        %v1370 = vunpack.c.l.b16 %v443
        %v1371 = vunpack.c.l.b16 %v444
        %v1372 = vunpack.c.l.b16 %v445
        %v1373 = vunpack.c.l.b16 %v446
        %v1374 = vpack.c.b16 %v501, %v1370
        %v1375 = vpack.c.b16 %v1371, %v899
        %v1376 = vpack.c.b16 %v1373, %v1372
        %1377 = vrot.lane.b32.xlu0 %v1374, 24
        %v1378 = vpop.permute.xlu0 %1377
        %1379 = vrot.lane.b32.xlu0 %v997, 24
        %v1380 = vpop.permute.xlu0 %1379
        %1381 = vrot.lane.b32.xlu0 %v998, 24
        %v1382 = vpop.permute.xlu0 %1381
        %1383 = vrot.lane.b32.xlu0 %v999, 24
        %v1384 = vpop.permute.xlu0 %1383
        %1385 = vrot.lane.b32.xlu0 %v1000, 24
        %v1386 = vpop.permute.xlu0 %1385
        %1387 = vrot.lane.b32.xlu0 %v1001, 24
        %v1388 = vpop.permute.xlu0 %1387
        %1389 = vrot.lane.b32.xlu0 %v1002, 24
        %v1390 = vpop.permute.xlu0 %1389
        %1391 = vrot.lane.b32.xlu0 %v1003, 24
        %v1392 = vpop.permute.xlu0 %1391
        %1393 = vrot.lane.b32.xlu0 %v1004, 24
        %v1394 = vpop.permute.xlu0 %1393
        %1395 = vrot.lane.b32.xlu0 %v1005, 24
        %v1396 = vpop.permute.xlu0 %1395
        %1397 = vrot.lane.b32.xlu0 %v1006, 24
        %v1398 = vpop.permute.xlu0 %1397
        %1399 = vrot.lane.b32.xlu0 %v1007, 24
        %v1400 = vpop.permute.xlu0 %1399
        %1401 = vrot.lane.b32.xlu0 %v1008, 24
        %v1402 = vpop.permute.xlu0 %1401
        %1403 = vrot.lane.b32.xlu0 %v1009, 24
        %v1404 = vpop.permute.xlu0 %1403
        %1405 = vrot.lane.b32.xlu0 %v1010, 24
        %v1406 = vpop.permute.xlu0 %1405
        %1407 = vrot.lane.b32.xlu0 %v1011, 24
        %v1408 = vpop.permute.xlu0 %1407
        %1409 = vrot.lane.b32.xlu0 %v1012, 24
        %v1410 = vpop.permute.xlu0 %1409
        %1411 = vrot.lane.b32.xlu0 %v1013, 24
        %v1412 = vpop.permute.xlu0 %1411
        %1413 = vrot.lane.b32.xlu0 %v1014, 24
        %v1414 = vpop.permute.xlu0 %1413
        %1415 = vrot.lane.b32.xlu0 %v1015, 24
        %v1416 = vpop.permute.xlu0 %1415
        %1417 = vrot.lane.b32.xlu0 %v1016, 24
        %v1418 = vpop.permute.xlu0 %1417
        %1419 = vrot.lane.b32.xlu0 %v1375, 24
        %v1420 = vpop.permute.xlu0 %1419
        %1421 = vrot.lane.b32.xlu0 %v1376, 24
        %v1422 = vpop.permute.xlu0 %1421
        %v1424 = vunpack.c.l.b16 %v447
        %v1425 = vpack.c.b16 %v501, %v1424
        %v1427 = vshrl.u32 %v1425, 16
        %v1429 = vshll.u32 %v1425, 16
        %v1431 = vrot.slane %v1429, 1
        %v1432 = vor.u32 %v1427, %v1431
        %v1433 = vrot.slane %v1040, 1
        %v1434 = vsel %vm567, %v1432, %v1433
        %v1435 = vor.u32 %v1037, %v1433
        %v1436 = vrot.slane %v1049, 1
        %v1437 = vsel %vm567, %v1435, %v1436
        %v1438 = vor.u32 %v1046, %v1436
        %v1439 = vrot.slane %v1058, 1
        %v1440 = vsel %vm567, %v1438, %v1439
        %v1441 = vor.u32 %v1055, %v1439
        %v1442 = vrot.slane %v1067, 1
        %v1443 = vsel %vm567, %v1441, %v1442
        %v1444 = vor.u32 %v1064, %v1442
        %v1445 = vrot.slane %v1076, 1
        %v1446 = vsel %vm567, %v1444, %v1445
        %v1447 = vor.u32 %v1073, %v1445
        %v1448 = vrot.slane %v1085, 1
        %v1449 = vsel %vm567, %v1447, %v1448
        %v1450 = vor.u32 %v1082, %v1448
        %v1451 = vrot.slane %v1094, 1
        %v1452 = vsel %vm567, %v1450, %v1451
        %v1453 = vor.u32 %v1091, %v1451
        %v1454 = vrot.slane %v1103, 1
        %v1455 = vsel %vm567, %v1453, %v1454
        %v1456 = vor.u32 %v1100, %v1454
        %v1457 = vrot.slane %v1112, 1
        %v1458 = vsel %vm567, %v1456, %v1457
        %v1459 = vor.u32 %v1109, %v1457
        %v1460 = vrot.slane %v1121, 1
        %v1461 = vsel %vm567, %v1459, %v1460
        %v1462 = vor.u32 %v1118, %v1460
        %v1463 = vrot.slane %v1130, 1
        %v1464 = vsel %vm567, %v1462, %v1463
        %v1465 = vor.u32 %v1127, %v1463
        %v1466 = vrot.slane %v1139, 1
        %v1467 = vsel %vm567, %v1465, %v1466
        %v1468 = vor.u32 %v1136, %v1466
        %v1469 = vrot.slane %v1148, 1
        %v1470 = vsel %vm567, %v1468, %v1469
        %v1471 = vor.u32 %v1145, %v1469
        %v1472 = vrot.slane %v1157, 1
        %v1473 = vsel %vm567, %v1471, %v1472
        %v1474 = vor.u32 %v1154, %v1472
        %v1475 = vrot.slane %v1166, 1
        %v1476 = vsel %vm567, %v1474, %v1475
        %v1477 = vor.u32 %v1163, %v1475
        %v1478 = vrot.slane %v1175, 1
        %v1479 = vsel %vm567, %v1477, %v1478
        %v1480 = vor.u32 %v1172, %v1478
        %v1481 = vrot.slane %v1184, 1
        %v1482 = vsel %vm567, %v1480, %v1481
        %v1483 = vor.u32 %v1181, %v1481
        %v1484 = vrot.slane %v1193, 1
        %v1485 = vsel %vm567, %v1483, %v1484
        %v1486 = vor.u32 %v1190, %v1484
        %v1487 = vrot.slane %v1202, 1
        %v1488 = vsel %vm567, %v1486, %v1487
        %v1489 = vor.u32 %v1199, %v1487
        %v1490 = vrot.slane %v1211, 1
        %v1491 = vsel %vm567, %v1489, %v1490
        %v1492 = vor.u32 %v1208, %v1490
        %v1494 = vshll.u32 %v1375, 16
        %v1496 = vrot.slane %v1494, 1
        %v1497 = vsel %vm567, %v1492, %v1496
        %v1498 = vshrl.u32 %v1375, 16
        %v1500 = vor.u32 %v1498, %v1496
        %v1502 = vshll.u32 %v1376, 16
        %v1504 = vrot.slane %v1502, 1
        %v1505 = vsel %vm567, %v1500, %v1504
        %v1506 = vshrl.u32 %v1376, 16
        %v1508 = vor.u32 %v1506, %v1504
        %1509 = vrot.lane.b32.xlu0 %v1434, 28
        %v1510 = vpop.permute.xlu0 %1509
        %1511 = vrot.lane.b32.xlu0 %v1437, 28
        %v1512 = vpop.permute.xlu0 %1511
        %1513 = vrot.lane.b32.xlu0 %v1440, 28
        %v1514 = vpop.permute.xlu0 %1513
        %1515 = vrot.lane.b32.xlu0 %v1443, 28
        %v1516 = vpop.permute.xlu0 %1515
        %1517 = vrot.lane.b32.xlu0 %v1446, 28
        %v1518 = vpop.permute.xlu0 %1517
        %1519 = vrot.lane.b32.xlu0 %v1449, 28
        %v1520 = vpop.permute.xlu0 %1519
        %1521 = vrot.lane.b32.xlu0 %v1452, 28
        %v1522 = vpop.permute.xlu0 %1521
        %1523 = vrot.lane.b32.xlu0 %v1455, 28
        %v1524 = vpop.permute.xlu0 %1523
        %1525 = vrot.lane.b32.xlu0 %v1458, 28
        %v1526 = vpop.permute.xlu0 %1525
        %1527 = vrot.lane.b32.xlu0 %v1461, 28
        %v1528 = vpop.permute.xlu0 %1527
        %1529 = vrot.lane.b32.xlu0 %v1464, 28
        %v1530 = vpop.permute.xlu0 %1529
        %1531 = vrot.lane.b32.xlu0 %v1467, 28
        %v1532 = vpop.permute.xlu0 %1531
        %1533 = vrot.lane.b32.xlu0 %v1470, 28
        %v1534 = vpop.permute.xlu0 %1533
        %1535 = vrot.lane.b32.xlu0 %v1473, 28
        %v1536 = vpop.permute.xlu0 %1535
        %1537 = vrot.lane.b32.xlu0 %v1476, 28
        %v1538 = vpop.permute.xlu0 %1537
        %1539 = vrot.lane.b32.xlu0 %v1479, 28
        %v1540 = vpop.permute.xlu0 %1539
        %1541 = vrot.lane.b32.xlu0 %v1482, 28
        %v1542 = vpop.permute.xlu0 %1541
        %1543 = vrot.lane.b32.xlu0 %v1485, 28
        %v1544 = vpop.permute.xlu0 %1543
        %1545 = vrot.lane.b32.xlu0 %v1488, 28
        %v1546 = vpop.permute.xlu0 %1545
        %1547 = vrot.lane.b32.xlu0 %v1491, 28
        %v1548 = vpop.permute.xlu0 %1547
        %1549 = vrot.lane.b32.xlu0 %v1497, 28
        %v1550 = vpop.permute.xlu0 %1549
        %1551 = vrot.lane.b32.xlu0 %v1505, 28
        %v1552 = vpop.permute.xlu0 %1551
        %1553 = vrot.lane.b32.xlu0 %v1508, 28
        %v1554 = vpop.permute.xlu0 %1553
        %v1556 = vunpack.c.l.b16 %v448
        %v1557 = vpack.c.b16 %v1556, %v1372
        %v1558 = vrot.slane %v1425, 1
        %v1559 = vrot.slane %v997, 1
        %v1560 = vsel %vm800, %v1558, %v1559
        %v1561 = vrot.slane %v998, 1
        %v1562 = vsel %vm800, %v1559, %v1561
        %v1563 = vrot.slane %v999, 1
        %v1564 = vsel %vm800, %v1561, %v1563
        %v1565 = vrot.slane %v1000, 1
        %v1566 = vsel %vm800, %v1563, %v1565
        %v1567 = vrot.slane %v1001, 1
        %v1568 = vsel %vm800, %v1565, %v1567
        %v1569 = vrot.slane %v1002, 1
        %v1570 = vsel %vm800, %v1567, %v1569
        %v1571 = vrot.slane %v1003, 1
        %v1572 = vsel %vm800, %v1569, %v1571
        %v1573 = vrot.slane %v1004, 1
        %v1574 = vsel %vm800, %v1571, %v1573
        %v1575 = vrot.slane %v1005, 1
        %v1576 = vsel %vm800, %v1573, %v1575
        %v1577 = vrot.slane %v1006, 1
        %v1578 = vsel %vm800, %v1575, %v1577
        %v1579 = vrot.slane %v1007, 1
        %v1580 = vsel %vm800, %v1577, %v1579
        %v1581 = vrot.slane %v1008, 1
        %v1582 = vsel %vm800, %v1579, %v1581
        %v1583 = vrot.slane %v1009, 1
        %v1584 = vsel %vm800, %v1581, %v1583
        %v1585 = vrot.slane %v1010, 1
        %v1586 = vsel %vm800, %v1583, %v1585
        %v1587 = vrot.slane %v1011, 1
        %v1588 = vsel %vm800, %v1585, %v1587
        %v1589 = vrot.slane %v1012, 1
        %v1590 = vsel %vm800, %v1587, %v1589
        %v1591 = vrot.slane %v1013, 1
        %v1592 = vsel %vm800, %v1589, %v1591
        %v1593 = vrot.slane %v1014, 1
        %v1594 = vsel %vm800, %v1591, %v1593
        %v1595 = vrot.slane %v1015, 1
        %v1596 = vsel %vm800, %v1593, %v1595
        %v1597 = vrot.slane %v1016, 1
        %v1598 = vsel %vm800, %v1595, %v1597
        %v1599 = vrot.slane %v1375, 1
        %v1600 = vsel %vm800, %v1597, %v1599
        %v1601 = vrot.slane %v1557, 1
        %v1602 = vsel %vm800, %v1599, %v1601
        %1603 = vrot.lane.b32.xlu0 %v1560, 32
        %v1604 = vpop.permute.xlu0 %1603
        %1605 = vrot.lane.b32.xlu0 %v1562, 32
        %v1606 = vpop.permute.xlu0 %1605
        %1607 = vrot.lane.b32.xlu0 %v1564, 32
        %v1608 = vpop.permute.xlu0 %1607
        %1609 = vrot.lane.b32.xlu0 %v1566, 32
        %v1610 = vpop.permute.xlu0 %1609
        %1611 = vrot.lane.b32.xlu0 %v1568, 32
        %v1612 = vpop.permute.xlu0 %1611
        %1613 = vrot.lane.b32.xlu0 %v1570, 32
        %v1614 = vpop.permute.xlu0 %1613
        %1615 = vrot.lane.b32.xlu0 %v1572, 32
        %v1616 = vpop.permute.xlu0 %1615
        %1617 = vrot.lane.b32.xlu0 %v1574, 32
        %v1618 = vpop.permute.xlu0 %1617
        %1619 = vrot.lane.b32.xlu0 %v1576, 32
        %v1620 = vpop.permute.xlu0 %1619
        %1621 = vrot.lane.b32.xlu0 %v1578, 32
        %v1622 = vpop.permute.xlu0 %1621
        %1623 = vrot.lane.b32.xlu0 %v1580, 32
        %v1624 = vpop.permute.xlu0 %1623
        %1625 = vrot.lane.b32.xlu0 %v1582, 32
        %v1626 = vpop.permute.xlu0 %1625
        %1627 = vrot.lane.b32.xlu0 %v1584, 32
        %v1628 = vpop.permute.xlu0 %1627
        %1629 = vrot.lane.b32.xlu0 %v1586, 32
        %v1630 = vpop.permute.xlu0 %1629
        %1631 = vrot.lane.b32.xlu0 %v1588, 32
        %v1632 = vpop.permute.xlu0 %1631
        %1633 = vrot.lane.b32.xlu0 %v1590, 32
        %v1634 = vpop.permute.xlu0 %1633
        %1635 = vrot.lane.b32.xlu0 %v1592, 32
        %v1636 = vpop.permute.xlu0 %1635
        %1637 = vrot.lane.b32.xlu0 %v1594, 32
        %v1638 = vpop.permute.xlu0 %1637
        %1639 = vrot.lane.b32.xlu0 %v1596, 32
        %v1640 = vpop.permute.xlu0 %1639
        %1641 = vrot.lane.b32.xlu0 %v1598, 32
        %v1642 = vpop.permute.xlu0 %1641
        %1643 = vrot.lane.b32.xlu0 %v1600, 32
        %v1644 = vpop.permute.xlu0 %1643
        %1645 = vrot.lane.b32.xlu0 %v1602, 32
        %v1646 = vpop.permute.xlu0 %1645
        %1647 = vrot.lane.b32.xlu0 %v1601, 32
        %v1648 = vpop.permute.xlu0 %1647
        %vm1649 = vcmask 31744
        %v1652 = vsel %vm1649, %v541, %v752
        %v1654 = vsel %vm1649, %v542, %v754
        %v1656 = vsel %vm1649, %v543, %v756
        %v1658 = vsel %vm1649, %v544, %v758
        %v1660 = vsel %vm1649, %v545, %v760
        %v1662 = vsel %vm1649, %v546, %v762
        %v1664 = vsel %vm1649, %v547, %v764
        %v1666 = vsel %vm1649, %v548, %v766
        %v1668 = vsel %vm1649, %v549, %v768
        %v1670 = vsel %vm1649, %v550, %v770
        %v1672 = vsel %vm1649, %v551, %v772
        %v1674 = vsel %vm1649, %v552, %v774
        %v1676 = vsel %vm1649, %v553, %v776
        %v1678 = vsel %vm1649, %v554, %v778
        %v1680 = vsel %vm1649, %v555, %v780
        %v1682 = vsel %vm1649, %v556, %v782
        %v1684 = vsel %vm1649, %v557, %v784
        %v1686 = vsel %vm1649, %v558, %v786
        %v1688 = vsel %vm1649, %v559, %v788
        %v1690 = vsel %vm1649, %v560, %v790
        %v1692 = vsel %vm1649, %v561, %v792
        %v1694 = vsel %vm1649, %v562, %v794
        %v1696 = vsel %vm1649, %v563, %v796
        %vm1697 = vcmask 64512
        %v1699 = vsel %vm1697, %v1652, %v847
        %v1701 = vsel %vm1697, %v1654, %v849
        %v1703 = vsel %vm1697, %v1656, %v851
        %v1705 = vsel %vm1697, %v1658, %v853
        %v1707 = vsel %vm1697, %v1660, %v855
        %v1709 = vsel %vm1697, %v1662, %v857
        %v1711 = vsel %vm1697, %v1664, %v859
        %v1713 = vsel %vm1697, %v1666, %v861
        %v1715 = vsel %vm1697, %v1668, %v863
        %v1717 = vsel %vm1697, %v1670, %v865
        %v1719 = vsel %vm1697, %v1672, %v867
        %v1721 = vsel %vm1697, %v1674, %v869
        %v1723 = vsel %vm1697, %v1676, %v871
        %v1725 = vsel %vm1697, %v1678, %v873
        %v1727 = vsel %vm1697, %v1680, %v875
        %v1729 = vsel %vm1697, %v1682, %v877
        %v1731 = vsel %vm1697, %v1684, %v879
        %v1733 = vsel %vm1697, %v1686, %v881
        %v1735 = vsel %vm1697, %v1688, %v883
        %v1737 = vsel %vm1697, %v1690, %v885
        %v1739 = vsel %vm1697, %v1692, %v887
        %v1741 = vsel %vm1697, %v1694, %v889
        %v1743 = vsel %vm1697, %v1696, %v891
        %vm1744 = vcmask 97280
        %v1746 = vsel %vm1744, %v1699, %v950
        %v1748 = vsel %vm1744, %v1701, %v952
        %v1750 = vsel %vm1744, %v1703, %v954
        %v1752 = vsel %vm1744, %v1705, %v956
        %v1754 = vsel %vm1744, %v1707, %v958
        %v1756 = vsel %vm1744, %v1709, %v960
        %v1758 = vsel %vm1744, %v1711, %v962
        %v1760 = vsel %vm1744, %v1713, %v964
        %v1762 = vsel %vm1744, %v1715, %v966
        %v1764 = vsel %vm1744, %v1717, %v968
        %v1766 = vsel %vm1744, %v1719, %v970
        %v1768 = vsel %vm1744, %v1721, %v972
        %v1770 = vsel %vm1744, %v1723, %v974
        %v1772 = vsel %vm1744, %v1725, %v976
        %v1774 = vsel %vm1744, %v1727, %v978
        %v1776 = vsel %vm1744, %v1729, %v980
        %v1778 = vsel %vm1744, %v1731, %v982
        %v1780 = vsel %vm1744, %v1733, %v984
        %v1782 = vsel %vm1744, %v1735, %v986
        %v1784 = vsel %vm1744, %v1737, %v988
        %v1786 = vsel %vm1744, %v1739, %v990
        %v1788 = vsel %vm1744, %v1741, %v992
        %v1790 = vsel %vm1744, %v1743, %v994
        %vm1791 = vcmask 130048
        %v1793 = vsel %vm1791, %v1746, %v1226
        %v1795 = vsel %vm1791, %v1748, %v1228
        %v1797 = vsel %vm1791, %v1750, %v1230
        %v1799 = vsel %vm1791, %v1752, %v1232
        %v1801 = vsel %vm1791, %v1754, %v1234
        %v1803 = vsel %vm1791, %v1756, %v1236
        %v1805 = vsel %vm1791, %v1758, %v1238
        %v1807 = vsel %vm1791, %v1760, %v1240
        %v1809 = vsel %vm1791, %v1762, %v1242
        %v1811 = vsel %vm1791, %v1764, %v1244
        %v1813 = vsel %vm1791, %v1766, %v1246
        %v1815 = vsel %vm1791, %v1768, %v1248
        %v1817 = vsel %vm1791, %v1770, %v1250
        %v1819 = vsel %vm1791, %v1772, %v1252
        %v1821 = vsel %vm1791, %v1774, %v1254
        %v1823 = vsel %vm1791, %v1776, %v1256
        %v1825 = vsel %vm1791, %v1778, %v1258
        %v1827 = vsel %vm1791, %v1780, %v1260
        %v1829 = vsel %vm1791, %v1782, %v1262
        %v1831 = vsel %vm1791, %v1784, %v1264
        %v1833 = vsel %vm1791, %v1786, %v1266
        %v1835 = vsel %vm1791, %v1788, %v1268
        %v1837 = vsel %vm1791, %v1790, %v1270
        %vm1838 = vcmask 162816
        %v1840 = vsel %vm1838, %v1793, %v1321
        %v1842 = vsel %vm1838, %v1795, %v1323
        %v1844 = vsel %vm1838, %v1797, %v1325
        %v1846 = vsel %vm1838, %v1799, %v1327
        %v1848 = vsel %vm1838, %v1801, %v1329
        %v1850 = vsel %vm1838, %v1803, %v1331
        %v1852 = vsel %vm1838, %v1805, %v1333
        %v1854 = vsel %vm1838, %v1807, %v1335
        %v1856 = vsel %vm1838, %v1809, %v1337
        %v1858 = vsel %vm1838, %v1811, %v1339
        %v1860 = vsel %vm1838, %v1813, %v1341
        %v1862 = vsel %vm1838, %v1815, %v1343
        %v1864 = vsel %vm1838, %v1817, %v1345
        %v1866 = vsel %vm1838, %v1819, %v1347
        %v1868 = vsel %vm1838, %v1821, %v1349
        %v1870 = vsel %vm1838, %v1823, %v1351
        %v1872 = vsel %vm1838, %v1825, %v1353
        %v1874 = vsel %vm1838, %v1827, %v1355
        %v1876 = vsel %vm1838, %v1829, %v1357
        %v1878 = vsel %vm1838, %v1831, %v1359
        %v1880 = vsel %vm1838, %v1833, %v1361
        %v1882 = vsel %vm1838, %v1835, %v1363
        %v1884 = vsel %vm1838, %v1837, %v1365
        %vm1885 = vcmask 195584
        %v1887 = vsel %vm1885, %v1840, %v1378
        %v1889 = vsel %vm1885, %v1842, %v1380
        %v1891 = vsel %vm1885, %v1844, %v1382
        %v1893 = vsel %vm1885, %v1846, %v1384
        %v1895 = vsel %vm1885, %v1848, %v1386
        %v1897 = vsel %vm1885, %v1850, %v1388
        %v1899 = vsel %vm1885, %v1852, %v1390
        %v1901 = vsel %vm1885, %v1854, %v1392
        %v1903 = vsel %vm1885, %v1856, %v1394
        %v1905 = vsel %vm1885, %v1858, %v1396
        %v1907 = vsel %vm1885, %v1860, %v1398
        %v1909 = vsel %vm1885, %v1862, %v1400
        %v1911 = vsel %vm1885, %v1864, %v1402
        %v1913 = vsel %vm1885, %v1866, %v1404
        %v1915 = vsel %vm1885, %v1868, %v1406
        %v1917 = vsel %vm1885, %v1870, %v1408
        %v1919 = vsel %vm1885, %v1872, %v1410
        %v1921 = vsel %vm1885, %v1874, %v1412
        %v1923 = vsel %vm1885, %v1876, %v1414
        %v1925 = vsel %vm1885, %v1878, %v1416
        %v1927 = vsel %vm1885, %v1880, %v1418
        %v1929 = vsel %vm1885, %v1882, %v1420
        %v1931 = vsel %vm1885, %v1884, %v1422
        %vm1932 = vcmask 228352
        %v1934 = vsel %vm1932, %v1887, %v1510
        %v1936 = vsel %vm1932, %v1889, %v1512
        %v1938 = vsel %vm1932, %v1891, %v1514
        %v1940 = vsel %vm1932, %v1893, %v1516
        %v1942 = vsel %vm1932, %v1895, %v1518
        %v1944 = vsel %vm1932, %v1897, %v1520
        %v1946 = vsel %vm1932, %v1899, %v1522
        %v1948 = vsel %vm1932, %v1901, %v1524
        %v1950 = vsel %vm1932, %v1903, %v1526
        %v1952 = vsel %vm1932, %v1905, %v1528
        %v1954 = vsel %vm1932, %v1907, %v1530
        %v1956 = vsel %vm1932, %v1909, %v1532
        %v1958 = vsel %vm1932, %v1911, %v1534
        %v1960 = vsel %vm1932, %v1913, %v1536
        %v1962 = vsel %vm1932, %v1915, %v1538
        %v1964 = vsel %vm1932, %v1917, %v1540
        %v1966 = vsel %vm1932, %v1919, %v1542
        %v1968 = vsel %vm1932, %v1921, %v1544
        %v1970 = vsel %vm1932, %v1923, %v1546
        %v1972 = vsel %vm1932, %v1925, %v1548
        %v1974 = vsel %vm1932, %v1927, %v1550
        %v1976 = vsel %vm1932, %v1929, %v1552
        %v1978 = vsel %vm1932, %v1931, %v1554
        %vm1979 = vcmask 261120
        %v1981 = vsel %vm1979, %v1934, %v1604
        %v1983 = vsel %vm1979, %v1936, %v1606
        %v1985 = vsel %vm1979, %v1938, %v1608
        %v1987 = vsel %vm1979, %v1940, %v1610
        %v1989 = vsel %vm1979, %v1942, %v1612
        %v1991 = vsel %vm1979, %v1944, %v1614
        %v1993 = vsel %vm1979, %v1946, %v1616
        %v1995 = vsel %vm1979, %v1948, %v1618
        %v1997 = vsel %vm1979, %v1950, %v1620
        %v1999 = vsel %vm1979, %v1952, %v1622
        %v2001 = vsel %vm1979, %v1954, %v1624
        %v2003 = vsel %vm1979, %v1956, %v1626
        %v2005 = vsel %vm1979, %v1958, %v1628
        %v2007 = vsel %vm1979, %v1960, %v1630
        %v2009 = vsel %vm1979, %v1962, %v1632
        %v2011 = vsel %vm1979, %v1964, %v1634
        %v2013 = vsel %vm1979, %v1966, %v1636
        %v2015 = vsel %vm1979, %v1968, %v1638
        %v2017 = vsel %vm1979, %v1970, %v1640
        %v2019 = vsel %vm1979, %v1972, %v1642
        %v2021 = vsel %vm1979, %v1974, %v1644
        %v2023 = vsel %vm1979, %v1976, %v1646
        %v2025 = vsel %vm1979, %v1978, %v1648
        %v2026 = vld [vmem:[%s1] sm:$0xf]
        %v2027 = vld [vmem:[%s1 + $0x4] sm:$0xf]
        %v2028 = vld [vmem:[%s1 + $0x8] sm:$0xf]
        %v2029 = vld [vmem:[%s1 + $0xc] sm:$0xf]
        %v2030 = vld [vmem:[%s1 + $0x10] sm:$0x3]
        %v2031 = vld [vmem:[#allocation4] sm:$0x1]
        %v2033 = vlaneseq
        %v2034 = vshrl.u32 %v2033, 7
        %v2035 = vsub.s32 0, %v2034
        %v2036 = vrot.slane %v2031, %v2035
        %vm2038 = vsmask.f32 6400
        %v2039 = vshrl.u32 %v1981, 16
        %v2041 = vrot.slane %v2039, 1
        %v2042 = vshll.u32 %v1981, 16
        %v2044 = vrot.slane %v2042, 2
        %v2045 = vor.u32 %v2041, %v2044
        %v2046 = vshrl.u32 %v1983, 16
        %v2048 = vrot.slane %v2046, 1
        %v2049 = vshll.u32 %v1983, 16
        %v2051 = vrot.slane %v2049, 2
        %v2052 = vor.u32 %v2048, %v2051
        %v2053 = vsel %vm2038, %v2045, %v2052
        %v2054 = vshrl.u32 %v1985, 16
        %v2056 = vrot.slane %v2054, 1
        %v2057 = vshll.u32 %v1985, 16
        %v2059 = vrot.slane %v2057, 2
        %v2060 = vor.u32 %v2056, %v2059
        %v2061 = vsel %vm2038, %v2052, %v2060
        %v2062 = vshrl.u32 %v1987, 16
        %v2064 = vrot.slane %v2062, 1
        %v2065 = vshll.u32 %v1987, 16
        %v2067 = vrot.slane %v2065, 2
        %v2068 = vor.u32 %v2064, %v2067
        %v2069 = vsel %vm2038, %v2060, %v2068
        %v2070 = vshrl.u32 %v1989, 16
        %v2072 = vrot.slane %v2070, 1
        %v2073 = vshll.u32 %v1989, 16
        %v2075 = vrot.slane %v2073, 2
        %v2076 = vor.u32 %v2072, %v2075
        %v2077 = vsel %vm2038, %v2068, %v2076
        %v2078 = vshrl.u32 %v1991, 16
        %v2080 = vrot.slane %v2078, 1
        %v2081 = vshll.u32 %v1991, 16
        %v2083 = vrot.slane %v2081, 2
        %v2084 = vor.u32 %v2080, %v2083
        %v2085 = vsel %vm2038, %v2076, %v2084
        %v2086 = vshrl.u32 %v1993, 16
        %v2088 = vrot.slane %v2086, 1
        %v2089 = vshll.u32 %v1993, 16
        %v2091 = vrot.slane %v2089, 2
        %v2092 = vor.u32 %v2088, %v2091
        %v2093 = vsel %vm2038, %v2084, %v2092
        %v2094 = vshrl.u32 %v1995, 16
        %v2096 = vrot.slane %v2094, 1
        %v2097 = vshll.u32 %v1995, 16
        %v2099 = vrot.slane %v2097, 2
        %v2100 = vor.u32 %v2096, %v2099
        %v2101 = vsel %vm2038, %v2092, %v2100
        %v2102 = vshrl.u32 %v1997, 16
        %v2104 = vrot.slane %v2102, 1
        %v2105 = vshll.u32 %v1997, 16
        %v2107 = vrot.slane %v2105, 2
        %v2108 = vor.u32 %v2104, %v2107
        %v2109 = vsel %vm2038, %v2100, %v2108
        %v2110 = vshrl.u32 %v1999, 16
        %v2112 = vrot.slane %v2110, 1
        %v2113 = vshll.u32 %v1999, 16
        %v2115 = vrot.slane %v2113, 2
        %v2116 = vor.u32 %v2112, %v2115
        %v2117 = vsel %vm2038, %v2108, %v2116
        %v2118 = vshrl.u32 %v2001, 16
        %v2120 = vrot.slane %v2118, 1
        %v2121 = vshll.u32 %v2001, 16
        %v2123 = vrot.slane %v2121, 2
        %v2124 = vor.u32 %v2120, %v2123
        %v2125 = vsel %vm2038, %v2116, %v2124
        %v2126 = vshrl.u32 %v2003, 16
        %v2128 = vrot.slane %v2126, 1
        %v2129 = vshll.u32 %v2003, 16
        %v2131 = vrot.slane %v2129, 2
        %v2132 = vor.u32 %v2128, %v2131
        %v2133 = vsel %vm2038, %v2124, %v2132
        %v2134 = vshrl.u32 %v2005, 16
        %v2136 = vrot.slane %v2134, 1
        %v2137 = vshll.u32 %v2005, 16
        %v2139 = vrot.slane %v2137, 2
        %v2140 = vor.u32 %v2136, %v2139
        %v2141 = vsel %vm2038, %v2132, %v2140
        %v2142 = vshrl.u32 %v2007, 16
        %v2144 = vrot.slane %v2142, 1
        %v2145 = vshll.u32 %v2007, 16
        %v2147 = vrot.slane %v2145, 2
        %v2148 = vor.u32 %v2144, %v2147
        %v2149 = vsel %vm2038, %v2140, %v2148
        %v2150 = vshrl.u32 %v2009, 16
        %v2152 = vrot.slane %v2150, 1
        %v2153 = vshll.u32 %v2009, 16
        %v2155 = vrot.slane %v2153, 2
        %v2156 = vor.u32 %v2152, %v2155
        %v2157 = vsel %vm2038, %v2148, %v2156
        %v2158 = vshrl.u32 %v2011, 16
        %v2160 = vrot.slane %v2158, 1
        %v2161 = vshll.u32 %v2011, 16
        %v2163 = vrot.slane %v2161, 2
        %v2164 = vor.u32 %v2160, %v2163
        %v2165 = vsel %vm2038, %v2156, %v2164
        %v2166 = vshrl.u32 %v2013, 16
        %v2168 = vrot.slane %v2166, 1
        %v2169 = vshll.u32 %v2013, 16
        %v2171 = vrot.slane %v2169, 2
        %v2172 = vor.u32 %v2168, %v2171
        %v2173 = vsel %vm2038, %v2164, %v2172
        %v2174 = vshrl.u32 %v2015, 16
        %v2176 = vrot.slane %v2174, 1
        %v2177 = vshll.u32 %v2015, 16
        %v2179 = vrot.slane %v2177, 2
        %v2180 = vor.u32 %v2176, %v2179
        %v2181 = vsel %vm2038, %v2172, %v2180
        %v2182 = vshrl.u32 %v2017, 16
        %v2184 = vrot.slane %v2182, 1
        %v2185 = vshll.u32 %v2017, 16
        %v2187 = vrot.slane %v2185, 2
        %v2188 = vor.u32 %v2184, %v2187
        %v2189 = vsel %vm2038, %v2180, %v2188
        %v2190 = vshrl.u32 %v2019, 16
        %v2192 = vrot.slane %v2190, 1
        %v2193 = vshll.u32 %v2019, 16
        %v2195 = vrot.slane %v2193, 2
        %v2196 = vor.u32 %v2192, %v2195
        %v2197 = vsel %vm2038, %v2188, %v2196
        %v2198 = vshrl.u32 %v2021, 16
        %v2200 = vrot.slane %v2198, 1
        %v2201 = vshll.u32 %v2021, 16
        %v2203 = vrot.slane %v2201, 2
        %v2204 = vor.u32 %v2200, %v2203
        %v2205 = vsel %vm2038, %v2196, %v2204
        %v2206 = vshrl.u32 %v2023, 16
        %v2208 = vrot.slane %v2206, 1
        %v2209 = vshll.u32 %v2023, 16
        %v2211 = vrot.slane %v2209, 2
        %v2212 = vor.u32 %v2208, %v2211
        %v2213 = vsel %vm2038, %v2204, %v2212
        %v2214 = vshrl.u32 %v2025, 16
        %v2216 = vrot.slane %v2214, 1
        %v2217 = vshll.u32 %v2025, 16
        %v2219 = vrot.slane %v2217, 2
        %v2220 = vor.u32 %v2216, %v2219
        %v2221 = vsel %vm2038, %v2212, %v2220
        %v2227 = vunpack.c.l.b16 %v2026
        %v2228 = vunpack.c.l.b16 %v2027
        %v2229 = vunpack.c.l.b16 %v2028
        %v2230 = vunpack.c.l.b16 %v2029
        %v2231 = vunpack.c.l.b16 %v2030
        %v2232 = vpack.c.b16 %v2228, %v2227
        %v2233 = vpack.c.b16 %v2230, %v2229
        %v2234 = vpack.c.b16 %v2231, %v2231
        %vm2237 = vcmask 293888
        %v2239 = vsel %vm2237, %v2053, 0
        %v2242 = vsel %vm2237, %v2061, 0
        %v2245 = vsel %vm2237, %v2069, 0
        %v2248 = vsel %vm2237, %v2077, 0
        %v2251 = vsel %vm2237, %v2085, 0
        %v2254 = vsel %vm2237, %v2093, 0
        %v2257 = vsel %vm2237, %v2101, 0
        %v2260 = vsel %vm2237, %v2109, 0
        %v2263 = vsel %vm2237, %v2117, 0
        %v2266 = vsel %vm2237, %v2125, 0
        %v2269 = vsel %vm2237, %v2133, 0
        %v2272 = vsel %vm2237, %v2141, 0
        %v2275 = vsel %vm2237, %v2149, 0
        %v2278 = vsel %vm2237, %v2157, 0
        %v2281 = vsel %vm2237, %v2165, 0
        %v2284 = vsel %vm2237, %v2173, 0
        %v2287 = vsel %vm2237, %v2181, 0
        %v2290 = vsel %vm2237, %v2189, 0
        %v2293 = vsel %vm2237, %v2197, 0
        %v2296 = vsel %vm2237, %v2205, 0
        %v2299 = vsel %vm2237, %v2213, 0
        %v2302 = vsel %vm2237, %v2221, 0
        %v2305 = vsel %vm2237, %v2220, 0
        %vm2307 = vcmask 1041408
        %v2309 = vsel %vm2307, %v2234, 0
        %2311 = vmatprep.subr.bf16.mxu0 0
        %2312 = vmatpush1.bf16.msra.mxu0 0
        %2313 = vmatprep.subr.bf16.mxu0 0
        %2314 = vmatpush1.bf16.msra.mxu0 0
        %2315 = vmatprep.subr.bf16.mxu0 0
        %2316 = vmatpush1.bf16.msra.mxu0 0
        %2317 = vmatprep.subr.bf16.mxu0 0
        %2318 = vmatpush1.bf16.msra.mxu0 0
        %2319 = vmatprep.subr.bf16.mxu0 0
        %2320 = vmatpush1.bf16.msra.mxu0 0
        %2321 = vmatprep.subr.bf16.mxu0 0
        %2322 = vmatpush1.bf16.msra.mxu0 %v2309
        %2323 = vmatprep.subr.bf16.mxu0 0
        %2324 = vmatpush1.bf16.msra.mxu0 %v2233
        %2325 = vmatprep.subr.bf16.mxu0 0
        %2326 = vmatpush1.bf16.msra.mxu0 %v2232
        %2327 = vmatprep.subr.bf16.mxu0 0
        %2328 = vmatpush2.bf16.msra.mxu0 0
        %2329 = vmatprep.subr.bf16.mxu0 0
        %2330 = vmatpush2.bf16.msra.mxu0 0
        %2331 = vmatprep.subr.bf16.mxu0 0
        %2332 = vmatpush2.bf16.msra.mxu0 0
        %2333 = vmatprep.subr.bf16.mxu0 0
        %2334 = vmatpush2.bf16.msra.mxu0 0
        %2335 = vmatprep.subr.bf16.mxu0 0
        %2336 = vmatpush2.bf16.msra.mxu0 0
        %2337 = vmatprep.subr.bf16.mxu0 0
        %2338 = vmatpush2.bf16.msra.mxu0 0
        %2339 = vmatprep.subr.bf16.mxu0 0
        %2340 = vmatpush2.bf16.msra.mxu0 0
        %2341 = vmatprep.subr.bf16.mxu0 0
        %2342 = vmatpush2.bf16.msra.mxu0 0
        %2343 = vmatprep.mubr.bf16.mxu0 0
        %2344 = vmatmul.mubr.bf16.gmra.mxu0 %v2239
        %v2345 = vpop.f32.mrf.mxu0
        %v2346 = vadd.f32 %v2036, %v2345
        %v2347 = vpop.f32.mrf.mxu0
        %v2348 = vpop.f32.mrf.mxu0
        %v2349 = vadd.f32 %v2036, %v2348
        %v2350 = vpop.f32.mrf.mxu0
        %2351 = vmatprep.mubr.bf16.mxu0 0
        %2352 = vmatmul.mubr.bf16.gmra.mxu0 %v2242
        %v2353 = vpop.f32.mrf.mxu0
        %v2354 = vadd.f32 %v2036, %v2353
        %v2355 = vpop.f32.mrf.mxu0
        %v2356 = vpop.f32.mrf.mxu0
        %v2357 = vadd.f32 %v2036, %v2356
        %v2358 = vpop.f32.mrf.mxu0
        %2359 = vmatprep.mubr.bf16.mxu0 0
        %2360 = vmatmul.mubr.bf16.gmra.mxu0 %v2245
        %v2361 = vpop.f32.mrf.mxu0
        %v2362 = vadd.f32 %v2036, %v2361
        %v2363 = vpop.f32.mrf.mxu0
        %v2364 = vpop.f32.mrf.mxu0
        %v2365 = vadd.f32 %v2036, %v2364
        %v2366 = vpop.f32.mrf.mxu0
        %2367 = vmatprep.mubr.bf16.mxu0 0
        %2368 = vmatmul.mubr.bf16.gmra.mxu0 %v2248
        %v2369 = vpop.f32.mrf.mxu0
        %v2370 = vadd.f32 %v2036, %v2369
        %v2371 = vpop.f32.mrf.mxu0
        %v2372 = vpop.f32.mrf.mxu0
        %v2373 = vadd.f32 %v2036, %v2372
        %v2374 = vpop.f32.mrf.mxu0
        %2375 = vmatprep.mubr.bf16.mxu0 0
        %2376 = vmatmul.mubr.bf16.gmra.mxu0 %v2251
        %v2377 = vpop.f32.mrf.mxu0
        %v2378 = vadd.f32 %v2036, %v2377
        %v2379 = vpop.f32.mrf.mxu0
        %v2380 = vpop.f32.mrf.mxu0
        %v2381 = vadd.f32 %v2036, %v2380
        %v2382 = vpop.f32.mrf.mxu0
        %2383 = vmatprep.mubr.bf16.mxu0 0
        %2384 = vmatmul.mubr.bf16.gmra.mxu0 %v2254
        %v2385 = vpop.f32.mrf.mxu0
        %v2386 = vadd.f32 %v2036, %v2385
        %v2387 = vpop.f32.mrf.mxu0
        %v2388 = vpop.f32.mrf.mxu0
        %v2389 = vadd.f32 %v2036, %v2388
        %v2390 = vpop.f32.mrf.mxu0
        %2391 = vmatprep.mubr.bf16.mxu0 0
        %2392 = vmatmul.mubr.bf16.gmra.mxu0 %v2257
        %v2393 = vpop.f32.mrf.mxu0
        %v2394 = vadd.f32 %v2036, %v2393
        %v2395 = vpop.f32.mrf.mxu0
        %v2396 = vpop.f32.mrf.mxu0
        %v2397 = vadd.f32 %v2036, %v2396
        %v2398 = vpop.f32.mrf.mxu0
        %2399 = vmatprep.mubr.bf16.mxu0 0
        %2400 = vmatmul.mubr.bf16.gmra.mxu0 %v2260
        %v2401 = vpop.f32.mrf.mxu0
        %v2402 = vadd.f32 %v2036, %v2401
        %v2403 = vpop.f32.mrf.mxu0
        %v2404 = vpop.f32.mrf.mxu0
        %v2405 = vadd.f32 %v2036, %v2404
        %v2406 = vpop.f32.mrf.mxu0
        %2407 = vmatprep.mubr.bf16.mxu0 0
        %2408 = vmatmul.mubr.bf16.gmra.mxu0 %v2263
        %v2409 = vpop.f32.mrf.mxu0
        %v2410 = vadd.f32 %v2036, %v2409
        %v2411 = vpop.f32.mrf.mxu0
        %v2412 = vpop.f32.mrf.mxu0
        %v2413 = vadd.f32 %v2036, %v2412
        %v2414 = vpop.f32.mrf.mxu0
        %2415 = vmatprep.mubr.bf16.mxu0 0
        %2416 = vmatmul.mubr.bf16.gmra.mxu0 %v2266
        %v2417 = vpop.f32.mrf.mxu0
        %v2418 = vadd.f32 %v2036, %v2417
        %v2419 = vpop.f32.mrf.mxu0
        %v2420 = vpop.f32.mrf.mxu0
        %v2421 = vadd.f32 %v2036, %v2420
        %v2422 = vpop.f32.mrf.mxu0
        %2423 = vmatprep.mubr.bf16.mxu0 0
        %2424 = vmatmul.mubr.bf16.gmra.mxu0 %v2269
        %v2425 = vpop.f32.mrf.mxu0
        %v2426 = vadd.f32 %v2036, %v2425
        %v2427 = vpop.f32.mrf.mxu0
        %v2428 = vpop.f32.mrf.mxu0
        %v2429 = vadd.f32 %v2036, %v2428
        %v2430 = vpop.f32.mrf.mxu0
        %2431 = vmatprep.mubr.bf16.mxu0 0
        %2432 = vmatmul.mubr.bf16.gmra.mxu0 %v2272
        %v2433 = vpop.f32.mrf.mxu0
        %v2434 = vadd.f32 %v2036, %v2433
        %v2435 = vpop.f32.mrf.mxu0
        %v2436 = vpop.f32.mrf.mxu0
        %v2437 = vadd.f32 %v2036, %v2436
        %v2438 = vpop.f32.mrf.mxu0
        %2439 = vmatprep.mubr.bf16.mxu0 0
        %2440 = vmatmul.mubr.bf16.gmra.mxu0 %v2275
        %v2441 = vpop.f32.mrf.mxu0
        %v2442 = vadd.f32 %v2036, %v2441
        %v2443 = vpop.f32.mrf.mxu0
        %v2444 = vpop.f32.mrf.mxu0
        %v2445 = vadd.f32 %v2036, %v2444
        %v2446 = vpop.f32.mrf.mxu0
        %2447 = vmatprep.mubr.bf16.mxu0 0
        %2448 = vmatmul.mubr.bf16.gmra.mxu0 %v2278
        %v2449 = vpop.f32.mrf.mxu0
        %v2450 = vadd.f32 %v2036, %v2449
        %v2451 = vpop.f32.mrf.mxu0
        %v2452 = vpop.f32.mrf.mxu0
        %v2453 = vadd.f32 %v2036, %v2452
        %v2454 = vpop.f32.mrf.mxu0
        %2455 = vmatprep.mubr.bf16.mxu0 0
        %2456 = vmatmul.mubr.bf16.gmra.mxu0 %v2281
        %v2457 = vpop.f32.mrf.mxu0
        %v2458 = vadd.f32 %v2036, %v2457
        %v2459 = vpop.f32.mrf.mxu0
        %v2460 = vpop.f32.mrf.mxu0
        %v2461 = vadd.f32 %v2036, %v2460
        %v2462 = vpop.f32.mrf.mxu0
        %2463 = vmatprep.mubr.bf16.mxu0 0
        %2464 = vmatmul.mubr.bf16.gmra.mxu0 %v2284
        %v2465 = vpop.f32.mrf.mxu0
        %v2466 = vadd.f32 %v2036, %v2465
        %v2467 = vpop.f32.mrf.mxu0
        %v2468 = vpop.f32.mrf.mxu0
        %v2469 = vadd.f32 %v2036, %v2468
        %v2470 = vpop.f32.mrf.mxu0
        %2471 = vmatprep.mubr.bf16.mxu0 0
        %2472 = vmatmul.mubr.bf16.gmra.mxu0 %v2287
        %v2473 = vpop.f32.mrf.mxu0
        %v2474 = vadd.f32 %v2036, %v2473
        %v2475 = vpop.f32.mrf.mxu0
        %v2476 = vpop.f32.mrf.mxu0
        %v2477 = vadd.f32 %v2036, %v2476
        %v2478 = vpop.f32.mrf.mxu0
        %2479 = vmatprep.mubr.bf16.mxu0 0
        %2480 = vmatmul.mubr.bf16.gmra.mxu0 %v2290
        %v2481 = vpop.f32.mrf.mxu0
        %v2482 = vadd.f32 %v2036, %v2481
        %v2483 = vpop.f32.mrf.mxu0
        %v2484 = vpop.f32.mrf.mxu0
        %v2485 = vadd.f32 %v2036, %v2484
        %v2486 = vpop.f32.mrf.mxu0
        %2487 = vmatprep.mubr.bf16.mxu0 0
        %2488 = vmatmul.mubr.bf16.gmra.mxu0 %v2293
        %v2489 = vpop.f32.mrf.mxu0
        %v2490 = vadd.f32 %v2036, %v2489
        %v2491 = vpop.f32.mrf.mxu0
        %v2492 = vpop.f32.mrf.mxu0
        %v2493 = vadd.f32 %v2036, %v2492
        %v2494 = vpop.f32.mrf.mxu0
        %2495 = vmatprep.mubr.bf16.mxu0 0
        %2496 = vmatmul.mubr.bf16.gmra.mxu0 %v2296
        %v2497 = vpop.f32.mrf.mxu0
        %v2498 = vadd.f32 %v2036, %v2497
        %v2499 = vpop.f32.mrf.mxu0
        %v2500 = vpop.f32.mrf.mxu0
        %v2501 = vadd.f32 %v2036, %v2500
        %v2502 = vpop.f32.mrf.mxu0
        %2503 = vmatprep.mubr.bf16.mxu0 0
        %2504 = vmatmul.mubr.bf16.gmra.mxu0 %v2299
        %v2505 = vpop.f32.mrf.mxu0
        %v2506 = vadd.f32 %v2036, %v2505
        %v2507 = vpop.f32.mrf.mxu0
        %v2508 = vpop.f32.mrf.mxu0
        %v2509 = vadd.f32 %v2036, %v2508
        %v2510 = vpop.f32.mrf.mxu0
        %2511 = vmatprep.mubr.bf16.mxu0 0
        %2512 = vmatmul.mubr.bf16.gmra.mxu0 %v2302
        %v2513 = vpop.f32.mrf.mxu0
        %v2514 = vadd.f32 %v2036, %v2513
        %v2515 = vpop.f32.mrf.mxu0
        %v2516 = vpop.f32.mrf.mxu0
        %v2517 = vadd.f32 %v2036, %v2516
        %v2518 = vpop.f32.mrf.mxu0
        %2519 = vmatprep.mubr.bf16.mxu0 0
        %2520 = vmatmul.mubr.bf16.gmra.mxu0 %v2305
        %v2521 = vpop.f32.mrf.mxu0
        %v2522 = vadd.f32 %v2036, %v2521
        %v2523 = vpop.f32.mrf.mxu0
        %v2524 = vpop.f32.mrf.mxu0
        %v2525 = vpop.f32.mrf.mxu0
        %2526 = vdwg.mxu0
        %v2527 = vmax.f32 %v2346, 0.0
        %v2528 = vmax.f32 %v2349, 0.0
        %v2529 = vmax.f32 %v2354, 0.0
        %v2530 = vmax.f32 %v2357, 0.0
        %v2531 = vmax.f32 %v2362, 0.0
        %v2532 = vmax.f32 %v2365, 0.0
        %v2533 = vmax.f32 %v2370, 0.0
        %v2534 = vmax.f32 %v2373, 0.0
        %v2535 = vmax.f32 %v2378, 0.0
        %v2536 = vmax.f32 %v2381, 0.0
        %v2537 = vmax.f32 %v2386, 0.0
        %v2538 = vmax.f32 %v2389, 0.0
        %v2539 = vmax.f32 %v2394, 0.0
        %v2540 = vmax.f32 %v2397, 0.0
        %v2541 = vmax.f32 %v2402, 0.0
        %v2542 = vmax.f32 %v2405, 0.0
        %v2543 = vmax.f32 %v2410, 0.0
        %v2544 = vmax.f32 %v2413, 0.0
        %v2545 = vmax.f32 %v2418, 0.0
        %v2546 = vmax.f32 %v2421, 0.0
        %v2547 = vmax.f32 %v2426, 0.0
        %v2548 = vmax.f32 %v2429, 0.0
        %v2549 = vmax.f32 %v2434, 0.0
        %v2550 = vmax.f32 %v2437, 0.0
        %v2551 = vmax.f32 %v2442, 0.0
        %v2552 = vmax.f32 %v2445, 0.0
        %v2553 = vmax.f32 %v2450, 0.0
        %v2554 = vmax.f32 %v2453, 0.0
        %v2555 = vmax.f32 %v2458, 0.0
        %v2556 = vmax.f32 %v2461, 0.0
        %v2557 = vmax.f32 %v2466, 0.0
        %v2558 = vmax.f32 %v2469, 0.0
        %v2559 = vmax.f32 %v2474, 0.0
        %v2560 = vmax.f32 %v2477, 0.0
        %v2561 = vmax.f32 %v2482, 0.0
        %v2562 = vmax.f32 %v2485, 0.0
        %v2563 = vmax.f32 %v2490, 0.0
        %v2564 = vmax.f32 %v2493, 0.0
        %v2565 = vmax.f32 %v2498, 0.0
        %v2566 = vmax.f32 %v2501, 0.0
        %v2567 = vmax.f32 %v2506, 0.0
        %v2568 = vmax.f32 %v2509, 0.0
        %v2569 = vmax.f32 %v2514, 0.0
        %v2570 = vmax.f32 %v2517, 0.0
        %v2571 = vmax.f32 %v2522, 0.0
        %vm2572 = vcmask 125952
        %2573 = vst.msk [vmem:[#allocation2] sm:$0xf] %vm2572, 0
        %2574 = vst.msk [vmem:[#allocation2 + $0x4] sm:$0xf] %vm2572, 0
        %2575 = vst.msk [vmem:[#allocation2 + $0x8] sm:$0xf] %vm2572, 0
        %2576 = vst.msk [vmem:[#allocation2 + $0xc0] sm:$0xf] %vm2572, 0
        %2577 = vst.msk [vmem:[#allocation2 + $0xc4] sm:$0xf] %vm2572, 0
        %2578 = vst.msk [vmem:[#allocation2 + $0xc8] sm:$0xf] %vm2572, 0
        %2580 = vset.pattern.permute.xlu0 0
        %2581 = vperm.xlu0 %2580, %v345
        %v2582 = vpop.permute.xlu0 %2581
        %2585 = vset.pattern.permute.xlu0 0
        %2586 = vperm.xlu0 %2585, %v346
        %v2587 = vpop.permute.xlu0 %2586
        %2590 = vset.pattern.permute.xlu0 0
        %2591 = vperm.xlu0 %2590, %v347
        %v2592 = vpop.permute.xlu0 %2591
        %2595 = vset.pattern.permute.xlu0 0
        %2596 = vperm.xlu0 %2595, %v348
        %v2597 = vpop.permute.xlu0 %2596
        %2600 = vset.pattern.permute.xlu0 0
        %2601 = vperm.xlu0 %2600, %v349
        %v2602 = vpop.permute.xlu0 %2601
        %2605 = vset.pattern.permute.xlu0 0
        %2606 = vperm.xlu0 %2605, %v350
        %v2607 = vpop.permute.xlu0 %2606
        %2610 = vset.pattern.permute.xlu0 0
        %2611 = vperm.xlu0 %2610, %v351
        %v2612 = vpop.permute.xlu0 %2611
        %2615 = vset.pattern.permute.xlu0 0
        %2616 = vperm.xlu0 %2615, %v352
        %v2617 = vpop.permute.xlu0 %2616
        %2620 = vset.pattern.permute.xlu0 0
        %2621 = vperm.xlu0 %2620, %v353
        %v2622 = vpop.permute.xlu0 %2621
        %2625 = vset.pattern.permute.xlu0 0
        %2626 = vperm.xlu0 %2625, %v354
        %v2627 = vpop.permute.xlu0 %2626
        %2630 = vset.pattern.permute.xlu0 0
        %2631 = vperm.xlu0 %2630, %v355
        %v2632 = vpop.permute.xlu0 %2631
        %2635 = vset.pattern.permute.xlu0 0
        %2636 = vperm.xlu0 %2635, %v356
        %v2637 = vpop.permute.xlu0 %2636
        %2640 = vset.pattern.permute.xlu0 0
        %2641 = vperm.xlu0 %2640, %v357
        %v2642 = vpop.permute.xlu0 %2641
        %2645 = vset.pattern.permute.xlu0 0
        %2646 = vperm.xlu0 %2645, %v358
        %v2647 = vpop.permute.xlu0 %2646
        %2650 = vset.pattern.permute.xlu0 0
        %2651 = vperm.xlu0 %2650, %v359
        %v2652 = vpop.permute.xlu0 %2651
        %2655 = vset.pattern.permute.xlu0 0
        %2656 = vperm.xlu0 %2655, %v360
        %v2657 = vpop.permute.xlu0 %2656
        %2660 = vset.pattern.permute.xlu0 0
        %2661 = vperm.xlu0 %2660, %v361
        %v2662 = vpop.permute.xlu0 %2661
        %2665 = vset.pattern.permute.xlu0 0
        %2666 = vperm.xlu0 %2665, %v362
        %v2667 = vpop.permute.xlu0 %2666
        %2670 = vset.pattern.permute.xlu0 0
        %2671 = vperm.xlu0 %2670, %v363
        %v2672 = vpop.permute.xlu0 %2671
        %2675 = vset.pattern.permute.xlu0 0
        %2676 = vperm.xlu0 %2675, %v364
        %v2677 = vpop.permute.xlu0 %2676
        %2680 = vset.pattern.permute.xlu0 0
        %2681 = vperm.xlu0 %2680, %v365
        %v2682 = vpop.permute.xlu0 %2681
        %2685 = vset.pattern.permute.xlu0 0
        %2686 = vperm.xlu0 %2685, %v366
        %v2687 = vpop.permute.xlu0 %2686
        %2690 = vset.pattern.permute.xlu0 0
        %2691 = vperm.xlu0 %2690, %v367
        %v2692 = vpop.permute.xlu0 %2691
        %2695 = vset.pattern.permute.xlu0 0
        %2696 = vperm.xlu0 %2695, %v368
        %v2697 = vpop.permute.xlu0 %2696
        %2700 = vset.pattern.permute.xlu0 0
        %2701 = vperm.xlu0 %2700, %v369
        %v2702 = vpop.permute.xlu0 %2701
        %2705 = vset.pattern.permute.xlu0 0
        %2706 = vperm.xlu0 %2705, %v370
        %v2707 = vpop.permute.xlu0 %2706
        %2710 = vset.pattern.permute.xlu0 0
        %2711 = vperm.xlu0 %2710, %v371
        %v2712 = vpop.permute.xlu0 %2711
        %2715 = vset.pattern.permute.xlu0 0
        %2716 = vperm.xlu0 %2715, %v372
        %v2717 = vpop.permute.xlu0 %2716
        %2720 = vset.pattern.permute.xlu0 0
        %2721 = vperm.xlu0 %2720, %v373
        %v2722 = vpop.permute.xlu0 %2721
        %2725 = vset.pattern.permute.xlu0 0
        %2726 = vperm.xlu0 %2725, %v374
        %v2727 = vpop.permute.xlu0 %2726
        %2730 = vset.pattern.permute.xlu0 0
        %2731 = vperm.xlu0 %2730, %v375
        %v2732 = vpop.permute.xlu0 %2731
        %2735 = vset.pattern.permute.xlu0 0
        %2736 = vperm.xlu0 %2735, %v376
        %v2737 = vpop.permute.xlu0 %2736
        %2740 = vset.pattern.permute.xlu0 0
        %2741 = vperm.xlu0 %2740, %v377
        %v2742 = vpop.permute.xlu0 %2741
        %2745 = vset.pattern.permute.xlu0 0
        %2746 = vperm.xlu0 %2745, %v378
        %v2747 = vpop.permute.xlu0 %2746
        %2750 = vset.pattern.permute.xlu0 0
        %2751 = vperm.xlu0 %2750, %v379
        %v2752 = vpop.permute.xlu0 %2751
        %2755 = vset.pattern.permute.xlu0 0
        %2756 = vperm.xlu0 %2755, %v380
        %v2757 = vpop.permute.xlu0 %2756
        %2760 = vset.pattern.permute.xlu0 0
        %2761 = vperm.xlu0 %2760, %v381
        %v2762 = vpop.permute.xlu0 %2761
        %2765 = vset.pattern.permute.xlu0 0
        %2766 = vperm.xlu0 %2765, %v382
        %v2767 = vpop.permute.xlu0 %2766
        %2770 = vset.pattern.permute.xlu0 0
        %2771 = vperm.xlu0 %2770, %v383
        %v2772 = vpop.permute.xlu0 %2771
        %2775 = vset.pattern.permute.xlu0 0
        %2776 = vperm.xlu0 %2775, %v384
        %v2777 = vpop.permute.xlu0 %2776
        %2780 = vset.pattern.permute.xlu0 0
        %2781 = vperm.xlu0 %2780, %v385
        %v2782 = vpop.permute.xlu0 %2781
        %2785 = vset.pattern.permute.xlu0 0
        %2786 = vperm.xlu0 %2785, %v386
        %v2787 = vpop.permute.xlu0 %2786
        %2790 = vset.pattern.permute.xlu0 0
        %2791 = vperm.xlu0 %2790, %v387
        %v2792 = vpop.permute.xlu0 %2791
        %2795 = vset.pattern.permute.xlu0 0
        %2796 = vperm.xlu0 %2795, %v388
        %v2797 = vpop.permute.xlu0 %2796
        %2800 = vset.pattern.permute.xlu0 0
        %2801 = vperm.xlu0 %2800, %v389
        %v2802 = vpop.permute.xlu0 %2801
        %v2804 = vmul.f32 %v2527, %v2582
        %v2805 = vmul.f32 %v2528, %v2587
        %v2806 = vmul.f32 %v2529, %v2592
        %v2807 = vmul.f32 %v2530, %v2597
        %v2808 = vmul.f32 %v2531, %v2602
        %v2809 = vmul.f32 %v2532, %v2607
        %v2810 = vmul.f32 %v2533, %v2612
        %v2811 = vmul.f32 %v2534, %v2617
        %v2812 = vmul.f32 %v2535, %v2622
        %v2813 = vmul.f32 %v2536, %v2627
        %v2814 = vmul.f32 %v2537, %v2632
        %v2815 = vmul.f32 %v2538, %v2637
        %v2816 = vmul.f32 %v2539, %v2642
        %v2817 = vmul.f32 %v2540, %v2647
        %v2818 = vmul.f32 %v2541, %v2652
        %v2819 = vmul.f32 %v2542, %v2657
        %v2820 = vmul.f32 %v2543, %v2662
        %v2821 = vmul.f32 %v2544, %v2667
        %v2822 = vmul.f32 %v2545, %v2672
        %v2823 = vmul.f32 %v2546, %v2677
        %v2824 = vmul.f32 %v2547, %v2682
        %v2825 = vmul.f32 %v2548, %v2687
        %v2826 = vmul.f32 %v2549, %v2692
        %v2827 = vmul.f32 %v2550, %v2697
        %v2828 = vmul.f32 %v2551, %v2702
        %v2829 = vmul.f32 %v2552, %v2707
        %v2830 = vmul.f32 %v2553, %v2712
        %v2831 = vmul.f32 %v2554, %v2717
        %v2832 = vmul.f32 %v2555, %v2722
        %v2833 = vmul.f32 %v2556, %v2727
        %v2834 = vmul.f32 %v2557, %v2732
        %v2835 = vmul.f32 %v2558, %v2737
        %v2836 = vmul.f32 %v2559, %v2742
        %v2837 = vmul.f32 %v2560, %v2747
        %v2838 = vmul.f32 %v2561, %v2752
        %v2839 = vmul.f32 %v2562, %v2757
        %v2840 = vmul.f32 %v2563, %v2762
        %v2841 = vmul.f32 %v2564, %v2767
        %v2842 = vmul.f32 %v2565, %v2772
        %v2843 = vmul.f32 %v2566, %v2777
        %v2844 = vmul.f32 %v2567, %v2782
        %v2845 = vmul.f32 %v2568, %v2787
        %v2846 = vmul.f32 %v2569, %v2792
        %v2847 = vmul.f32 %v2570, %v2797
        %v2848 = vmul.f32 %v2571, %v2802
        %v2849 = vpack.c.bf16 %v2805, %v2804
        %v2850 = vpack.c.bf16 %v2807, %v2806
        %v2851 = vpack.c.bf16 %v2809, %v2808
        %v2852 = vpack.c.bf16 %v2811, %v2810
        %v2853 = vpack.c.bf16 %v2813, %v2812
        %v2854 = vpack.c.bf16 %v2815, %v2814
        %v2855 = vpack.c.bf16 %v2817, %v2816
        %v2856 = vpack.c.bf16 %v2819, %v2818
        %v2857 = vpack.c.bf16 %v2821, %v2820
        %v2858 = vpack.c.bf16 %v2823, %v2822
        %v2859 = vpack.c.bf16 %v2825, %v2824
        %v2860 = vpack.c.bf16 %v2827, %v2826
        %v2861 = vpack.c.bf16 %v2829, %v2828
        %v2862 = vpack.c.bf16 %v2831, %v2830
        %v2863 = vpack.c.bf16 %v2833, %v2832
        %v2864 = vpack.c.bf16 %v2835, %v2834
        %v2865 = vpack.c.bf16 %v2837, %v2836
        %v2866 = vpack.c.bf16 %v2839, %v2838
        %v2867 = vpack.c.bf16 %v2841, %v2840
        %v2868 = vpack.c.bf16 %v2843, %v2842
        %v2869 = vpack.c.bf16 %v2845, %v2844
        %v2870 = vpack.c.bf16 %v2847, %v2846
        %v2871 = vpack.c.bf16 %v2848, %v2848
        %v2895 = vunpack.c.l.b16 %v2849
        %v2896 = vunpack.c.h.b16 %v2849
        %v2897 = vunpack.c.l.b16 %v2850
        %v2898 = vunpack.c.h.b16 %v2850
        %v2899 = vunpack.c.l.b16 %v2851
        %v2900 = vunpack.c.h.b16 %v2851
        %v2901 = vunpack.c.l.b16 %v2852
        %v2902 = vunpack.c.h.b16 %v2852
        %v2903 = vunpack.c.l.b16 %v2853
        %v2904 = vunpack.c.h.b16 %v2853
        %v2905 = vunpack.c.l.b16 %v2854
        %v2906 = vunpack.c.h.b16 %v2854
        %v2907 = vunpack.c.l.b16 %v2855
        %v2908 = vunpack.c.h.b16 %v2855
        %v2909 = vunpack.c.l.b16 %v2856
        %v2910 = vunpack.c.h.b16 %v2856
        %v2911 = vunpack.c.l.b16 %v2857
        %v2912 = vunpack.c.h.b16 %v2857
        %v2913 = vunpack.c.l.b16 %v2858
        %v2914 = vunpack.c.h.b16 %v2858
        %v2915 = vunpack.c.l.b16 %v2859
        %v2916 = vunpack.c.h.b16 %v2859
        %v2917 = vunpack.c.l.b16 %v2860
        %v2918 = vunpack.c.h.b16 %v2860
        %v2919 = vunpack.c.l.b16 %v2861
        %v2920 = vunpack.c.h.b16 %v2861
        %v2921 = vunpack.c.l.b16 %v2862
        %v2922 = vunpack.c.h.b16 %v2862
        %v2923 = vunpack.c.l.b16 %v2863
        %v2924 = vunpack.c.h.b16 %v2863
        %v2925 = vunpack.c.l.b16 %v2864
        %v2926 = vunpack.c.h.b16 %v2864
        %v2927 = vunpack.c.l.b16 %v2865
        %v2928 = vunpack.c.h.b16 %v2865
        %v2929 = vunpack.c.l.b16 %v2866
        %v2930 = vunpack.c.h.b16 %v2866
        %v2931 = vunpack.c.l.b16 %v2867
        %v2932 = vunpack.c.h.b16 %v2867
        %v2933 = vunpack.c.l.b16 %v2868
        %v2934 = vunpack.c.h.b16 %v2868
        %v2935 = vunpack.c.l.b16 %v2869
        %v2936 = vunpack.c.h.b16 %v2869
        %v2937 = vunpack.c.l.b16 %v2870
        %v2938 = vunpack.c.h.b16 %v2870
        %v2939 = vunpack.c.l.b16 %v2871
        %v2940 = vpack.c.b16 %v2895, %v2895
        %v2941 = vpack.c.b16 %v2896, %v2896
        %v2942 = vpack.c.b16 %v2897, %v2897
        %v2943 = vpack.c.b16 %v2898, %v2898
        %v2944 = vpack.c.b16 %v2899, %v2899
        %v2945 = vpack.c.b16 %v2900, %v2900
        %v2946 = vpack.c.b16 %v2901, %v2901
        %v2947 = vpack.c.b16 %v2902, %v2902
        %v2948 = vpack.c.b16 %v2903, %v2903
        %v2949 = vpack.c.b16 %v2904, %v2904
        %v2950 = vpack.c.b16 %v2905, %v2905
        %v2951 = vpack.c.b16 %v2906, %v2906
        %v2952 = vpack.c.b16 %v2907, %v2907
        %v2953 = vpack.c.b16 %v2908, %v2908
        %v2954 = vpack.c.b16 %v2909, %v2909
        %v2955 = vpack.c.b16 %v2910, %v2910
        %v2956 = vpack.c.b16 %v2911, %v2911
        %v2957 = vpack.c.b16 %v2912, %v2912
        %v2958 = vpack.c.b16 %v2913, %v2913
        %v2959 = vpack.c.b16 %v2914, %v2914
        %v2960 = vpack.c.b16 %v2915, %v2915
        %v2961 = vpack.c.b16 %v2916, %v2916
        %v2962 = vpack.c.b16 %v2917, %v2917
        %v2963 = vpack.c.b16 %v2918, %v2918
        %v2964 = vpack.c.b16 %v2919, %v2919
        %v2965 = vpack.c.b16 %v2920, %v2920
        %v2966 = vpack.c.b16 %v2921, %v2921
        %v2967 = vpack.c.b16 %v2922, %v2922
        %v2968 = vpack.c.b16 %v2923, %v2923
        %v2969 = vpack.c.b16 %v2924, %v2924
        %v2970 = vpack.c.b16 %v2925, %v2925
        %v2971 = vpack.c.b16 %v2926, %v2926
        %v2972 = vpack.c.b16 %v2927, %v2927
        %v2973 = vpack.c.b16 %v2928, %v2928
        %v2974 = vpack.c.b16 %v2929, %v2929
        %v2975 = vpack.c.b16 %v2930, %v2930
        %v2976 = vpack.c.b16 %v2931, %v2931
        %v2977 = vpack.c.b16 %v2932, %v2932
        %v2978 = vpack.c.b16 %v2933, %v2933
        %v2979 = vpack.c.b16 %v2934, %v2934
        %v2980 = vpack.c.b16 %v2935, %v2935
        %v2981 = vpack.c.b16 %v2936, %v2936
        %v2982 = vpack.c.b16 %v2937, %v2937
        %v2983 = vpack.c.b16 %v2938, %v2938
        %v2984 = vpack.c.b16 %v2939, %v2939
        %3030 = vst.msk [vmem:[#allocation2 + $0xc] sm:$0xf] %vm2572, %v2940
        %3031 = vst.msk [vmem:[#allocation2 + $0x10] sm:$0xf] %vm2572, %v2941
        %3032 = vst.msk [vmem:[#allocation2 + $0x14] sm:$0xf] %vm2572, %v2942
        %3033 = vst.msk [vmem:[#allocation2 + $0x18] sm:$0xf] %vm2572, %v2943
        %3034 = vst.msk [vmem:[#allocation2 + $0x1c] sm:$0xf] %vm2572, %v2944
        %3035 = vst.msk [vmem:[#allocation2 + $0x20] sm:$0xf] %vm2572, %v2945
        %3036 = vst.msk [vmem:[#allocation2 + $0x24] sm:$0xf] %vm2572, %v2946
        %3037 = vst.msk [vmem:[#allocation2 + $0x28] sm:$0xf] %vm2572, %v2947
        %3038 = vst.msk [vmem:[#allocation2 + $0x2c] sm:$0xf] %vm2572, %v2948
        %3039 = vst.msk [vmem:[#allocation2 + $0x30] sm:$0xf] %vm2572, %v2949
        %3040 = vst.msk [vmem:[#allocation2 + $0x34] sm:$0xf] %vm2572, %v2950
        %3041 = vst.msk [vmem:[#allocation2 + $0x38] sm:$0xf] %vm2572, %v2951
        %3042 = vst.msk [vmem:[#allocation2 + $0x3c] sm:$0xf] %vm2572, %v2952
        %3043 = vst.msk [vmem:[#allocation2 + $0x40] sm:$0xf] %vm2572, %v2953
        %3044 = vst.msk [vmem:[#allocation2 + $0x44] sm:$0xf] %vm2572, %v2954
        %3045 = vst.msk [vmem:[#allocation2 + $0x48] sm:$0xf] %vm2572, %v2955
        %3046 = vst.msk [vmem:[#allocation2 + $0x4c] sm:$0xf] %vm2572, %v2956
        %3047 = vst.msk [vmem:[#allocation2 + $0x50] sm:$0xf] %vm2572, %v2957
        %3048 = vst.msk [vmem:[#allocation2 + $0x54] sm:$0xf] %vm2572, %v2958
        %3049 = vst.msk [vmem:[#allocation2 + $0x58] sm:$0xf] %vm2572, %v2959
        %3050 = vst.msk [vmem:[#allocation2 + $0x5c] sm:$0xf] %vm2572, %v2960
        %3051 = vst.msk [vmem:[#allocation2 + $0x60] sm:$0xf] %vm2572, %v2961
        %3052 = vst.msk [vmem:[#allocation2 + $0x64] sm:$0xf] %vm2572, %v2962
        %3053 = vst.msk [vmem:[#allocation2 + $0x68] sm:$0xf] %vm2572, %v2963
        %3054 = vst.msk [vmem:[#allocation2 + $0x6c] sm:$0xf] %vm2572, %v2964
        %3055 = vst.msk [vmem:[#allocation2 + $0x70] sm:$0xf] %vm2572, %v2965
        %3056 = vst.msk [vmem:[#allocation2 + $0x74] sm:$0xf] %vm2572, %v2966
        %3057 = vst.msk [vmem:[#allocation2 + $0x78] sm:$0xf] %vm2572, %v2967
        %3058 = vst.msk [vmem:[#allocation2 + $0x7c] sm:$0xf] %vm2572, %v2968
        %3059 = vst.msk [vmem:[#allocation2 + $0x80] sm:$0xf] %vm2572, %v2969
        %3060 = vst.msk [vmem:[#allocation2 + $0x84] sm:$0xf] %vm2572, %v2970
        %3061 = vst.msk [vmem:[#allocation2 + $0x88] sm:$0xf] %vm2572, %v2971
        %3062 = vst.msk [vmem:[#allocation2 + $0x8c] sm:$0xf] %vm2572, %v2972
        %3063 = vst.msk [vmem:[#allocation2 + $0x90] sm:$0xf] %vm2572, %v2973
        %3064 = vst.msk [vmem:[#allocation2 + $0x94] sm:$0xf] %vm2572, %v2974
        %3065 = vst.msk [vmem:[#allocation2 + $0x98] sm:$0xf] %vm2572, %v2975
        %3066 = vst.msk [vmem:[#allocation2 + $0x9c] sm:$0xf] %vm2572, %v2976
        %3067 = vst.msk [vmem:[#allocation2 + $0xa0] sm:$0xf] %vm2572, %v2977
        %3068 = vst.msk [vmem:[#allocation2 + $0xa4] sm:$0xf] %vm2572, %v2978
        %3069 = vst.msk [vmem:[#allocation2 + $0xa8] sm:$0xf] %vm2572, %v2979
        %3070 = vst.msk [vmem:[#allocation2 + $0xac] sm:$0xf] %vm2572, %v2980
        %3071 = vst.msk [vmem:[#allocation2 + $0xb0] sm:$0xf] %vm2572, %v2981
        %3072 = vst.msk [vmem:[#allocation2 + $0xb4] sm:$0xf] %vm2572, %v2982
        %3073 = vst.msk [vmem:[#allocation2 + $0xb8] sm:$0xf] %vm2572, %v2983
        %3074 = vst.msk [vmem:[#allocation2 + $0xbc] sm:$0xf] %vm2572, %v2984
        %v3075 = vld [vmem:[#allocation2] sm:$0xe]
        %v3076 = vld [vmem:[#allocation2 + $0x4] sm:$0xf]
        %v3077 = vld [vmem:[#allocation2 + $0x8] sm:$0xf]
        %v3078 = vld [vmem:[#allocation2 + $0xc] sm:$0xf]
        %v3079 = vld [vmem:[#allocation2 + $0x10] sm:$0xf]
        %v3080 = vld [vmem:[#allocation2 + $0x14] sm:$0xf]
        %v3081 = vld [vmem:[#allocation2 + $0x18] sm:$0xf]
        %v3082 = vld [vmem:[#allocation2 + $0x1c] sm:$0xf]
        %v3083 = vld [vmem:[#allocation2 + $0x20] sm:$0xf]
        %v3084 = vld [vmem:[#allocation2 + $0x24] sm:$0xf]
        %v3085 = vld [vmem:[#allocation2 + $0x28] sm:$0xf]
        %v3086 = vld [vmem:[#allocation2 + $0x2c] sm:$0xf]
        %v3087 = vld [vmem:[#allocation2 + $0x30] sm:$0xf]
        %v3088 = vld [vmem:[#allocation2 + $0x34] sm:$0xf]
        %v3089 = vld [vmem:[#allocation2 + $0x38] sm:$0xf]
        %v3090 = vld [vmem:[#allocation2 + $0x3c] sm:$0xf]
        %v3091 = vld [vmem:[#allocation2 + $0x40] sm:$0xf]
        %v3092 = vld [vmem:[#allocation2 + $0x44] sm:$0xf]
        %v3093 = vld [vmem:[#allocation2 + $0x48] sm:$0xf]
        %v3094 = vld [vmem:[#allocation2 + $0x4c] sm:$0xf]
        %v3095 = vld [vmem:[#allocation2 + $0x50] sm:$0xf]
        %v3096 = vld [vmem:[#allocation2 + $0x54] sm:$0xf]
        %v3097 = vld [vmem:[#allocation2 + $0x58] sm:$0xf]
        %v3098 = vld [vmem:[#allocation2 + $0x5c] sm:$0xf]
        %v3099 = vld [vmem:[#allocation2 + $0x60] sm:$0xf]
        %v3100 = vld [vmem:[#allocation2 + $0x64] sm:$0xf]
        %v3101 = vld [vmem:[#allocation2 + $0x68] sm:$0xf]
        %v3102 = vld [vmem:[#allocation2 + $0x6c] sm:$0xf]
        %v3103 = vld [vmem:[#allocation2 + $0x70] sm:$0xf]
        %v3104 = vld [vmem:[#allocation2 + $0x74] sm:$0xf]
        %v3105 = vld [vmem:[#allocation2 + $0x78] sm:$0xf]
        %v3106 = vld [vmem:[#allocation2 + $0x7c] sm:$0xf]
        %v3107 = vld [vmem:[#allocation2 + $0x80] sm:$0xf]
        %v3108 = vld [vmem:[#allocation2 + $0x84] sm:$0xf]
        %v3109 = vld [vmem:[#allocation2 + $0x88] sm:$0xf]
        %v3110 = vld [vmem:[#allocation2 + $0x8c] sm:$0xf]
        %v3111 = vld [vmem:[#allocation2 + $0x90] sm:$0xf]
        %v3112 = vld [vmem:[#allocation2 + $0x94] sm:$0xf]
        %v3113 = vld [vmem:[#allocation2 + $0x98] sm:$0xf]
        %v3114 = vld [vmem:[#allocation2 + $0x9c] sm:$0xf]
        %v3115 = vld [vmem:[#allocation2 + $0xa0] sm:$0xf]
        %v3116 = vld [vmem:[#allocation2 + $0xa4] sm:$0xf]
        %v3117 = vld [vmem:[#allocation2 + $0xa8] sm:$0xf]
        %v3118 = vld [vmem:[#allocation2 + $0xac] sm:$0xf]
        %v3119 = vld [vmem:[#allocation2 + $0xb0] sm:$0xf]
        %v3120 = vld [vmem:[#allocation2 + $0xb4] sm:$0x3]
        %v3121 = vld [vmem:[#allocation2] sm:$0xc]
        %v3122 = vld [vmem:[#allocation2 + $0xb4] sm:$0x7]
        %v3123 = vld [vmem:[#allocation2 + $0x8] sm:$0x8]
        %v3124 = vld [vmem:[#allocation2 + $0xb4] sm:$0xf]
        %v3125 = vld [vmem:[#allocation2 + $0xb8] sm:$0xf]
        %v3126 = vld [vmem:[#allocation2 + $0xbc] sm:$0xf]
        %v3127 = vld [vmem:[#allocation2 + $0xc0] sm:$0x1]
        %v3128 = vld [vmem:[#allocation2 + $0x14] sm:$0xe]
        %v3129 = vld [vmem:[#allocation2 + $0xc0] sm:$0xf]
        %v3130 = vld [vmem:[#allocation2 + $0xc4] sm:$0xf]
        %v3131 = vld [vmem:[#allocation2 + $0xc8] sm:$0x3]
        %v3132 = vld [vmem:[#allocation2 + $0x14] sm:$0xc]
        %v3133 = vld [vmem:[#allocation2 + $0xc8] sm:$0x7]
        %v3180 = vunpack.c.l.b16 %v3075
        %v3181 = vunpack.c.l.b16 %v3076
        %v3182 = vunpack.c.l.b16 %v3077
        %v3183 = vunpack.c.l.b16 %v3078
        %v3184 = vunpack.c.l.b16 %v3079
        %v3185 = vunpack.c.l.b16 %v3080
        %v3186 = vunpack.c.l.b16 %v3081
        %v3187 = vunpack.c.l.b16 %v3082
        %v3188 = vunpack.c.l.b16 %v3083
        %v3189 = vunpack.c.l.b16 %v3084
        %v3190 = vunpack.c.l.b16 %v3085
        %v3191 = vunpack.c.l.b16 %v3086
        %v3192 = vunpack.c.l.b16 %v3087
        %v3193 = vunpack.c.l.b16 %v3088
        %v3194 = vunpack.c.l.b16 %v3089
        %v3195 = vunpack.c.l.b16 %v3090
        %v3196 = vunpack.c.l.b16 %v3091
        %v3197 = vunpack.c.l.b16 %v3092
        %v3198 = vunpack.c.l.b16 %v3093
        %v3199 = vunpack.c.l.b16 %v3094
        %v3200 = vunpack.c.l.b16 %v3095
        %v3201 = vunpack.c.l.b16 %v3096
        %v3202 = vunpack.c.l.b16 %v3097
        %v3203 = vunpack.c.l.b16 %v3098
        %v3204 = vunpack.c.l.b16 %v3099
        %v3205 = vunpack.c.l.b16 %v3100
        %v3206 = vunpack.c.l.b16 %v3101
        %v3207 = vunpack.c.l.b16 %v3102
        %v3208 = vunpack.c.l.b16 %v3103
        %v3209 = vunpack.c.l.b16 %v3104
        %v3210 = vunpack.c.l.b16 %v3105
        %v3211 = vunpack.c.l.b16 %v3106
        %v3212 = vunpack.c.l.b16 %v3107
        %v3213 = vunpack.c.l.b16 %v3108
        %v3214 = vunpack.c.l.b16 %v3109
        %v3215 = vunpack.c.l.b16 %v3110
        %v3216 = vunpack.c.l.b16 %v3111
        %v3217 = vunpack.c.l.b16 %v3112
        %v3218 = vunpack.c.l.b16 %v3113
        %v3219 = vunpack.c.l.b16 %v3114
        %v3220 = vunpack.c.l.b16 %v3115
        %v3221 = vunpack.c.l.b16 %v3116
        %v3222 = vunpack.c.l.b16 %v3117
        %v3223 = vunpack.c.l.b16 %v3118
        %v3224 = vunpack.c.l.b16 %v3119
        %v3225 = vunpack.c.l.b16 %v3120
        %v3226 = vpack.c.b16 %v3181, %v3180
        %v3227 = vpack.c.b16 %v3183, %v3182
        %v3228 = vpack.c.b16 %v3185, %v3184
        %v3229 = vpack.c.b16 %v3187, %v3186
        %v3230 = vpack.c.b16 %v3189, %v3188
        %v3231 = vpack.c.b16 %v3191, %v3190
        %v3232 = vpack.c.b16 %v3193, %v3192
        %v3233 = vpack.c.b16 %v3195, %v3194
        %v3234 = vpack.c.b16 %v3197, %v3196
        %v3235 = vpack.c.b16 %v3199, %v3198
        %v3236 = vpack.c.b16 %v3201, %v3200
        %v3237 = vpack.c.b16 %v3203, %v3202
        %v3238 = vpack.c.b16 %v3205, %v3204
        %v3239 = vpack.c.b16 %v3207, %v3206
        %v3240 = vpack.c.b16 %v3209, %v3208
        %v3241 = vpack.c.b16 %v3211, %v3210
        %v3242 = vpack.c.b16 %v3213, %v3212
        %v3243 = vpack.c.b16 %v3215, %v3214
        %v3244 = vpack.c.b16 %v3217, %v3216
        %v3245 = vpack.c.b16 %v3219, %v3218
        %v3246 = vpack.c.b16 %v3221, %v3220
        %v3247 = vpack.c.b16 %v3223, %v3222
        %v3248 = vpack.c.b16 %v3225, %v3224
        %v3250 = vunpack.c.l.b16 %v3121
        %v3251 = vpack.c.b16 %v3181, %v3250
        %v3253 = vshrl.u32 %v3251, 16
        %v3255 = vshll.u32 %v3251, 16
        %v3257 = vrot.slane %v3255, 1
        %v3258 = vor.u32 %v3253, %v3257
        %v3260 = vshll.u32 %v3227, 16
        %v3262 = vrot.slane %v3260, 1
        %v3263 = vsel %vm567, %v3258, %v3262
        %v3264 = vshrl.u32 %v3227, 16
        %v3266 = vor.u32 %v3264, %v3262
        %v3268 = vshll.u32 %v3228, 16
        %v3270 = vrot.slane %v3268, 1
        %v3271 = vsel %vm567, %v3266, %v3270
        %v3272 = vshrl.u32 %v3228, 16
        %v3274 = vor.u32 %v3272, %v3270
        %v3276 = vshll.u32 %v3229, 16
        %v3278 = vrot.slane %v3276, 1
        %v3279 = vsel %vm567, %v3274, %v3278
        %v3280 = vshrl.u32 %v3229, 16
        %v3282 = vor.u32 %v3280, %v3278
        %v3284 = vshll.u32 %v3230, 16
        %v3286 = vrot.slane %v3284, 1
        %v3287 = vsel %vm567, %v3282, %v3286
        %v3288 = vshrl.u32 %v3230, 16
        %v3290 = vor.u32 %v3288, %v3286
        %v3292 = vshll.u32 %v3231, 16
        %v3294 = vrot.slane %v3292, 1
        %v3295 = vsel %vm567, %v3290, %v3294
        %v3296 = vshrl.u32 %v3231, 16
        %v3298 = vor.u32 %v3296, %v3294
        %v3300 = vshll.u32 %v3232, 16
        %v3302 = vrot.slane %v3300, 1
        %v3303 = vsel %vm567, %v3298, %v3302
        %v3304 = vshrl.u32 %v3232, 16
        %v3306 = vor.u32 %v3304, %v3302
        %v3308 = vshll.u32 %v3233, 16
        %v3310 = vrot.slane %v3308, 1
        %v3311 = vsel %vm567, %v3306, %v3310
        %v3312 = vshrl.u32 %v3233, 16
        %v3314 = vor.u32 %v3312, %v3310
        %v3316 = vshll.u32 %v3234, 16
        %v3318 = vrot.slane %v3316, 1
        %v3319 = vsel %vm567, %v3314, %v3318
        %v3320 = vshrl.u32 %v3234, 16
        %v3322 = vor.u32 %v3320, %v3318
        %v3324 = vshll.u32 %v3235, 16
        %v3326 = vrot.slane %v3324, 1
        %v3327 = vsel %vm567, %v3322, %v3326
        %v3328 = vshrl.u32 %v3235, 16
        %v3330 = vor.u32 %v3328, %v3326
        %v3332 = vshll.u32 %v3236, 16
        %v3334 = vrot.slane %v3332, 1
        %v3335 = vsel %vm567, %v3330, %v3334
        %v3336 = vshrl.u32 %v3236, 16
        %v3338 = vor.u32 %v3336, %v3334
        %v3340 = vshll.u32 %v3237, 16
        %v3342 = vrot.slane %v3340, 1
        %v3343 = vsel %vm567, %v3338, %v3342
        %v3344 = vshrl.u32 %v3237, 16
        %v3346 = vor.u32 %v3344, %v3342
        %v3348 = vshll.u32 %v3238, 16
        %v3350 = vrot.slane %v3348, 1
        %v3351 = vsel %vm567, %v3346, %v3350
        %v3352 = vshrl.u32 %v3238, 16
        %v3354 = vor.u32 %v3352, %v3350
        %v3356 = vshll.u32 %v3239, 16
        %v3358 = vrot.slane %v3356, 1
        %v3359 = vsel %vm567, %v3354, %v3358
        %v3360 = vshrl.u32 %v3239, 16
        %v3362 = vor.u32 %v3360, %v3358
        %v3364 = vshll.u32 %v3240, 16
        %v3366 = vrot.slane %v3364, 1
        %v3367 = vsel %vm567, %v3362, %v3366
        %v3368 = vshrl.u32 %v3240, 16
        %v3370 = vor.u32 %v3368, %v3366
        %v3372 = vshll.u32 %v3241, 16
        %v3374 = vrot.slane %v3372, 1
        %v3375 = vsel %vm567, %v3370, %v3374
        %v3376 = vshrl.u32 %v3241, 16
        %v3378 = vor.u32 %v3376, %v3374
        %v3380 = vshll.u32 %v3242, 16
        %v3382 = vrot.slane %v3380, 1
        %v3383 = vsel %vm567, %v3378, %v3382
        %v3384 = vshrl.u32 %v3242, 16
        %v3386 = vor.u32 %v3384, %v3382
        %v3388 = vshll.u32 %v3243, 16
        %v3390 = vrot.slane %v3388, 1
        %v3391 = vsel %vm567, %v3386, %v3390
        %v3392 = vshrl.u32 %v3243, 16
        %v3394 = vor.u32 %v3392, %v3390
        %v3396 = vshll.u32 %v3244, 16
        %v3398 = vrot.slane %v3396, 1
        %v3399 = vsel %vm567, %v3394, %v3398
        %v3400 = vshrl.u32 %v3244, 16
        %v3402 = vor.u32 %v3400, %v3398
        %v3404 = vshll.u32 %v3245, 16
        %v3406 = vrot.slane %v3404, 1
        %v3407 = vsel %vm567, %v3402, %v3406
        %v3408 = vshrl.u32 %v3245, 16
        %v3410 = vor.u32 %v3408, %v3406
        %v3412 = vshll.u32 %v3246, 16
        %v3414 = vrot.slane %v3412, 1
        %v3415 = vsel %vm567, %v3410, %v3414
        %v3416 = vshrl.u32 %v3246, 16
        %v3418 = vor.u32 %v3416, %v3414
        %v3420 = vshll.u32 %v3247, 16
        %v3422 = vrot.slane %v3420, 1
        %v3423 = vsel %vm567, %v3418, %v3422
        %v3424 = vshrl.u32 %v3247, 16
        %v3426 = vor.u32 %v3424, %v3422
        %v3428 = vshll.u32 %v3248, 16
        %v3430 = vrot.slane %v3428, 1
        %v3431 = vsel %vm567, %v3426, %v3430
        %v3432 = vshrl.u32 %v3248, 16
        %v3434 = vor.u32 %v3432, %v3430
        %3435 = vrot.lane.b32.xlu0 %v3263, 16
        %v3436 = vpop.permute.xlu0 %3435
        %3437 = vrot.lane.b32.xlu0 %v3271, 16
        %v3438 = vpop.permute.xlu0 %3437
        %3439 = vrot.lane.b32.xlu0 %v3279, 16
        %v3440 = vpop.permute.xlu0 %3439
        %3441 = vrot.lane.b32.xlu0 %v3287, 16
        %v3442 = vpop.permute.xlu0 %3441
        %3443 = vrot.lane.b32.xlu0 %v3295, 16
        %v3444 = vpop.permute.xlu0 %3443
        %3445 = vrot.lane.b32.xlu0 %v3303, 16
        %v3446 = vpop.permute.xlu0 %3445
        %3447 = vrot.lane.b32.xlu0 %v3311, 16
        %v3448 = vpop.permute.xlu0 %3447
        %3449 = vrot.lane.b32.xlu0 %v3319, 16
        %v3450 = vpop.permute.xlu0 %3449
        %3451 = vrot.lane.b32.xlu0 %v3327, 16
        %v3452 = vpop.permute.xlu0 %3451
        %3453 = vrot.lane.b32.xlu0 %v3335, 16
        %v3454 = vpop.permute.xlu0 %3453
        %3455 = vrot.lane.b32.xlu0 %v3343, 16
        %v3456 = vpop.permute.xlu0 %3455
        %3457 = vrot.lane.b32.xlu0 %v3351, 16
        %v3458 = vpop.permute.xlu0 %3457
        %3459 = vrot.lane.b32.xlu0 %v3359, 16
        %v3460 = vpop.permute.xlu0 %3459
        %3461 = vrot.lane.b32.xlu0 %v3367, 16
        %v3462 = vpop.permute.xlu0 %3461
        %3463 = vrot.lane.b32.xlu0 %v3375, 16
        %v3464 = vpop.permute.xlu0 %3463
        %3465 = vrot.lane.b32.xlu0 %v3383, 16
        %v3466 = vpop.permute.xlu0 %3465
        %3467 = vrot.lane.b32.xlu0 %v3391, 16
        %v3468 = vpop.permute.xlu0 %3467
        %3469 = vrot.lane.b32.xlu0 %v3399, 16
        %v3470 = vpop.permute.xlu0 %3469
        %3471 = vrot.lane.b32.xlu0 %v3407, 16
        %v3472 = vpop.permute.xlu0 %3471
        %3473 = vrot.lane.b32.xlu0 %v3415, 16
        %v3474 = vpop.permute.xlu0 %3473
        %3475 = vrot.lane.b32.xlu0 %v3423, 16
        %v3476 = vpop.permute.xlu0 %3475
        %3477 = vrot.lane.b32.xlu0 %v3431, 16
        %v3478 = vpop.permute.xlu0 %3477
        %3479 = vrot.lane.b32.xlu0 %v3434, 16
        %v3480 = vpop.permute.xlu0 %3479
        %v3482 = vunpack.c.l.b16 %v3122
        %v3483 = vpack.c.b16 %v3482, %v3224
        %v3484 = vrot.slane %v3251, 1
        %v3485 = vrot.slane %v3227, 1
        %v3486 = vsel %vm800, %v3484, %v3485
        %v3487 = vrot.slane %v3228, 1
        %v3488 = vsel %vm800, %v3485, %v3487
        %v3489 = vrot.slane %v3229, 1
        %v3490 = vsel %vm800, %v3487, %v3489
        %v3491 = vrot.slane %v3230, 1
        %v3492 = vsel %vm800, %v3489, %v3491
        %v3493 = vrot.slane %v3231, 1
        %v3494 = vsel %vm800, %v3491, %v3493
        %v3495 = vrot.slane %v3232, 1
        %v3496 = vsel %vm800, %v3493, %v3495
        %v3497 = vrot.slane %v3233, 1
        %v3498 = vsel %vm800, %v3495, %v3497
        %v3499 = vrot.slane %v3234, 1
        %v3500 = vsel %vm800, %v3497, %v3499
        %v3501 = vrot.slane %v3235, 1
        %v3502 = vsel %vm800, %v3499, %v3501
        %v3503 = vrot.slane %v3236, 1
        %v3504 = vsel %vm800, %v3501, %v3503
        %v3505 = vrot.slane %v3237, 1
        %v3506 = vsel %vm800, %v3503, %v3505
        %v3507 = vrot.slane %v3238, 1
        %v3508 = vsel %vm800, %v3505, %v3507
        %v3509 = vrot.slane %v3239, 1
        %v3510 = vsel %vm800, %v3507, %v3509
        %v3511 = vrot.slane %v3240, 1
        %v3512 = vsel %vm800, %v3509, %v3511
        %v3513 = vrot.slane %v3241, 1
        %v3514 = vsel %vm800, %v3511, %v3513
        %v3515 = vrot.slane %v3242, 1
        %v3516 = vsel %vm800, %v3513, %v3515
        %v3517 = vrot.slane %v3243, 1
        %v3518 = vsel %vm800, %v3515, %v3517
        %v3519 = vrot.slane %v3244, 1
        %v3520 = vsel %vm800, %v3517, %v3519
        %v3521 = vrot.slane %v3245, 1
        %v3522 = vsel %vm800, %v3519, %v3521
        %v3523 = vrot.slane %v3246, 1
        %v3524 = vsel %vm800, %v3521, %v3523
        %v3525 = vrot.slane %v3247, 1
        %v3526 = vsel %vm800, %v3523, %v3525
        %v3527 = vrot.slane %v3483, 1
        %v3528 = vsel %vm800, %v3525, %v3527
        %3529 = vrot.lane.b32.xlu0 %v3486, 32
        %v3530 = vpop.permute.xlu0 %3529
        %3531 = vrot.lane.b32.xlu0 %v3488, 32
        %v3532 = vpop.permute.xlu0 %3531
        %3533 = vrot.lane.b32.xlu0 %v3490, 32
        %v3534 = vpop.permute.xlu0 %3533
        %3535 = vrot.lane.b32.xlu0 %v3492, 32
        %v3536 = vpop.permute.xlu0 %3535
        %3537 = vrot.lane.b32.xlu0 %v3494, 32
        %v3538 = vpop.permute.xlu0 %3537
        %3539 = vrot.lane.b32.xlu0 %v3496, 32
        %v3540 = vpop.permute.xlu0 %3539
        %3541 = vrot.lane.b32.xlu0 %v3498, 32
        %v3542 = vpop.permute.xlu0 %3541
        %3543 = vrot.lane.b32.xlu0 %v3500, 32
        %v3544 = vpop.permute.xlu0 %3543
        %3545 = vrot.lane.b32.xlu0 %v3502, 32
        %v3546 = vpop.permute.xlu0 %3545
        %3547 = vrot.lane.b32.xlu0 %v3504, 32
        %v3548 = vpop.permute.xlu0 %3547
        %3549 = vrot.lane.b32.xlu0 %v3506, 32
        %v3550 = vpop.permute.xlu0 %3549
        %3551 = vrot.lane.b32.xlu0 %v3508, 32
        %v3552 = vpop.permute.xlu0 %3551
        %3553 = vrot.lane.b32.xlu0 %v3510, 32
        %v3554 = vpop.permute.xlu0 %3553
        %3555 = vrot.lane.b32.xlu0 %v3512, 32
        %v3556 = vpop.permute.xlu0 %3555
        %3557 = vrot.lane.b32.xlu0 %v3514, 32
        %v3558 = vpop.permute.xlu0 %3557
        %3559 = vrot.lane.b32.xlu0 %v3516, 32
        %v3560 = vpop.permute.xlu0 %3559
        %3561 = vrot.lane.b32.xlu0 %v3518, 32
        %v3562 = vpop.permute.xlu0 %3561
        %3563 = vrot.lane.b32.xlu0 %v3520, 32
        %v3564 = vpop.permute.xlu0 %3563
        %3565 = vrot.lane.b32.xlu0 %v3522, 32
        %v3566 = vpop.permute.xlu0 %3565
        %3567 = vrot.lane.b32.xlu0 %v3524, 32
        %v3568 = vpop.permute.xlu0 %3567
        %3569 = vrot.lane.b32.xlu0 %v3526, 32
        %v3570 = vpop.permute.xlu0 %3569
        %3571 = vrot.lane.b32.xlu0 %v3528, 32
        %v3572 = vpop.permute.xlu0 %3571
        %3573 = vrot.lane.b32.xlu0 %v3527, 32
        %v3574 = vpop.permute.xlu0 %3573
        %v3579 = vunpack.c.l.b16 %v3123
        %v3580 = vunpack.c.l.b16 %v3124
        %v3581 = vunpack.c.l.b16 %v3125
        %v3582 = vunpack.c.l.b16 %v3126
        %v3583 = vpack.c.b16 %v3183, %v3579
        %v3584 = vpack.c.b16 %v3580, %v3224
        %v3585 = vpack.c.b16 %v3582, %v3581
        %v3586 = vrot.slane %v3583, 2
        %v3587 = vrot.slane %v3228, 2
        %v3588 = vsel %vm903, %v3586, %v3587
        %v3589 = vrot.slane %v3229, 2
        %v3590 = vsel %vm903, %v3587, %v3589
        %v3591 = vrot.slane %v3230, 2
        %v3592 = vsel %vm903, %v3589, %v3591
        %v3593 = vrot.slane %v3231, 2
        %v3594 = vsel %vm903, %v3591, %v3593
        %v3595 = vrot.slane %v3232, 2
        %v3596 = vsel %vm903, %v3593, %v3595
        %v3597 = vrot.slane %v3233, 2
        %v3598 = vsel %vm903, %v3595, %v3597
        %v3599 = vrot.slane %v3234, 2
        %v3600 = vsel %vm903, %v3597, %v3599
        %v3601 = vrot.slane %v3235, 2
        %v3602 = vsel %vm903, %v3599, %v3601
        %v3603 = vrot.slane %v3236, 2
        %v3604 = vsel %vm903, %v3601, %v3603
        %v3605 = vrot.slane %v3237, 2
        %v3606 = vsel %vm903, %v3603, %v3605
        %v3607 = vrot.slane %v3238, 2
        %v3608 = vsel %vm903, %v3605, %v3607
        %v3609 = vrot.slane %v3239, 2
        %v3610 = vsel %vm903, %v3607, %v3609
        %v3611 = vrot.slane %v3240, 2
        %v3612 = vsel %vm903, %v3609, %v3611
        %v3613 = vrot.slane %v3241, 2
        %v3614 = vsel %vm903, %v3611, %v3613
        %v3615 = vrot.slane %v3242, 2
        %v3616 = vsel %vm903, %v3613, %v3615
        %v3617 = vrot.slane %v3243, 2
        %v3618 = vsel %vm903, %v3615, %v3617
        %v3619 = vrot.slane %v3244, 2
        %v3620 = vsel %vm903, %v3617, %v3619
        %v3621 = vrot.slane %v3245, 2
        %v3622 = vsel %vm903, %v3619, %v3621
        %v3623 = vrot.slane %v3246, 2
        %v3624 = vsel %vm903, %v3621, %v3623
        %v3625 = vrot.slane %v3247, 2
        %v3626 = vsel %vm903, %v3623, %v3625
        %v3627 = vrot.slane %v3584, 2
        %v3628 = vsel %vm903, %v3625, %v3627
        %v3629 = vrot.slane %v3585, 2
        %v3630 = vsel %vm903, %v3627, %v3629
        %3631 = vrot.lane.b32.xlu0 %v3588, 48
        %v3632 = vpop.permute.xlu0 %3631
        %3633 = vrot.lane.b32.xlu0 %v3590, 48
        %v3634 = vpop.permute.xlu0 %3633
        %3635 = vrot.lane.b32.xlu0 %v3592, 48
        %v3636 = vpop.permute.xlu0 %3635
        %3637 = vrot.lane.b32.xlu0 %v3594, 48
        %v3638 = vpop.permute.xlu0 %3637
        %3639 = vrot.lane.b32.xlu0 %v3596, 48
        %v3640 = vpop.permute.xlu0 %3639
        %3641 = vrot.lane.b32.xlu0 %v3598, 48
        %v3642 = vpop.permute.xlu0 %3641
        %3643 = vrot.lane.b32.xlu0 %v3600, 48
        %v3644 = vpop.permute.xlu0 %3643
        %3645 = vrot.lane.b32.xlu0 %v3602, 48
        %v3646 = vpop.permute.xlu0 %3645
        %3647 = vrot.lane.b32.xlu0 %v3604, 48
        %v3648 = vpop.permute.xlu0 %3647
        %3649 = vrot.lane.b32.xlu0 %v3606, 48
        %v3650 = vpop.permute.xlu0 %3649
        %3651 = vrot.lane.b32.xlu0 %v3608, 48
        %v3652 = vpop.permute.xlu0 %3651
        %3653 = vrot.lane.b32.xlu0 %v3610, 48
        %v3654 = vpop.permute.xlu0 %3653
        %3655 = vrot.lane.b32.xlu0 %v3612, 48
        %v3656 = vpop.permute.xlu0 %3655
        %3657 = vrot.lane.b32.xlu0 %v3614, 48
        %v3658 = vpop.permute.xlu0 %3657
        %3659 = vrot.lane.b32.xlu0 %v3616, 48
        %v3660 = vpop.permute.xlu0 %3659
        %3661 = vrot.lane.b32.xlu0 %v3618, 48
        %v3662 = vpop.permute.xlu0 %3661
        %3663 = vrot.lane.b32.xlu0 %v3620, 48
        %v3664 = vpop.permute.xlu0 %3663
        %3665 = vrot.lane.b32.xlu0 %v3622, 48
        %v3666 = vpop.permute.xlu0 %3665
        %3667 = vrot.lane.b32.xlu0 %v3624, 48
        %v3668 = vpop.permute.xlu0 %3667
        %3669 = vrot.lane.b32.xlu0 %v3626, 48
        %v3670 = vpop.permute.xlu0 %3669
        %3671 = vrot.lane.b32.xlu0 %v3628, 48
        %v3672 = vpop.permute.xlu0 %3671
        %3673 = vrot.lane.b32.xlu0 %v3630, 48
        %v3674 = vpop.permute.xlu0 %3673
        %3675 = vrot.lane.b32.xlu0 %v3629, 48
        %v3676 = vpop.permute.xlu0 %3675
        %v3677 = vpack.c.b16 %v3184, %v3183
        %v3678 = vpack.c.b16 %v3186, %v3185
        %v3679 = vpack.c.b16 %v3188, %v3187
        %v3680 = vpack.c.b16 %v3190, %v3189
        %v3681 = vpack.c.b16 %v3192, %v3191
        %v3682 = vpack.c.b16 %v3194, %v3193
        %v3683 = vpack.c.b16 %v3196, %v3195
        %v3684 = vpack.c.b16 %v3198, %v3197
        %v3685 = vpack.c.b16 %v3200, %v3199
        %v3686 = vpack.c.b16 %v3202, %v3201
        %v3687 = vpack.c.b16 %v3204, %v3203
        %v3688 = vpack.c.b16 %v3206, %v3205
        %v3689 = vpack.c.b16 %v3208, %v3207
        %v3690 = vpack.c.b16 %v3210, %v3209
        %v3691 = vpack.c.b16 %v3212, %v3211
        %v3692 = vpack.c.b16 %v3214, %v3213
        %v3693 = vpack.c.b16 %v3216, %v3215
        %v3694 = vpack.c.b16 %v3218, %v3217
        %v3695 = vpack.c.b16 %v3220, %v3219
        %v3696 = vpack.c.b16 %v3222, %v3221
        %v3697 = vpack.c.b16 %v3224, %v3223
        %v3698 = vpack.c.b16 %v3581, %v3580
        %v3699 = vpack.c.b16 %v3582, %v3582
        %v3701 = vshrl.u32 %v3677, 16
        %v3703 = vrot.slane %v3701, 6
        %v3704 = vshll.u32 %v3677, 16
        %v3706 = vrot.slane %v3704, 7
        %v3707 = vor.u32 %v3703, %v3706
        %v3709 = vshrl.u32 %v3678, 16
        %v3711 = vrot.slane %v3709, 6
        %v3712 = vshll.u32 %v3678, 16
        %v3714 = vrot.slane %v3712, 7
        %v3715 = vor.u32 %v3711, %v3714
        %v3716 = vsel %vm1018, %v3707, %v3715
        %v3718 = vshrl.u32 %v3679, 16
        %v3720 = vrot.slane %v3718, 6
        %v3721 = vshll.u32 %v3679, 16
        %v3723 = vrot.slane %v3721, 7
        %v3724 = vor.u32 %v3720, %v3723
        %v3725 = vsel %vm1018, %v3715, %v3724
        %v3727 = vshrl.u32 %v3680, 16
        %v3729 = vrot.slane %v3727, 6
        %v3730 = vshll.u32 %v3680, 16
        %v3732 = vrot.slane %v3730, 7
        %v3733 = vor.u32 %v3729, %v3732
        %v3734 = vsel %vm1018, %v3724, %v3733
        %v3736 = vshrl.u32 %v3681, 16
        %v3738 = vrot.slane %v3736, 6
        %v3739 = vshll.u32 %v3681, 16
        %v3741 = vrot.slane %v3739, 7
        %v3742 = vor.u32 %v3738, %v3741
        %v3743 = vsel %vm1018, %v3733, %v3742
        %v3745 = vshrl.u32 %v3682, 16
        %v3747 = vrot.slane %v3745, 6
        %v3748 = vshll.u32 %v3682, 16
        %v3750 = vrot.slane %v3748, 7
        %v3751 = vor.u32 %v3747, %v3750
        %v3752 = vsel %vm1018, %v3742, %v3751
        %v3754 = vshrl.u32 %v3683, 16
        %v3756 = vrot.slane %v3754, 6
        %v3757 = vshll.u32 %v3683, 16
        %v3759 = vrot.slane %v3757, 7
        %v3760 = vor.u32 %v3756, %v3759
        %v3761 = vsel %vm1018, %v3751, %v3760
        %v3763 = vshrl.u32 %v3684, 16
        %v3765 = vrot.slane %v3763, 6
        %v3766 = vshll.u32 %v3684, 16
        %v3768 = vrot.slane %v3766, 7
        %v3769 = vor.u32 %v3765, %v3768
        %v3770 = vsel %vm1018, %v3760, %v3769
        %v3772 = vshrl.u32 %v3685, 16
        %v3774 = vrot.slane %v3772, 6
        %v3775 = vshll.u32 %v3685, 16
        %v3777 = vrot.slane %v3775, 7
        %v3778 = vor.u32 %v3774, %v3777
        %v3779 = vsel %vm1018, %v3769, %v3778
        %v3781 = vshrl.u32 %v3686, 16
        %v3783 = vrot.slane %v3781, 6
        %v3784 = vshll.u32 %v3686, 16
        %v3786 = vrot.slane %v3784, 7
        %v3787 = vor.u32 %v3783, %v3786
        %v3788 = vsel %vm1018, %v3778, %v3787
        %v3790 = vshrl.u32 %v3687, 16
        %v3792 = vrot.slane %v3790, 6
        %v3793 = vshll.u32 %v3687, 16
        %v3795 = vrot.slane %v3793, 7
        %v3796 = vor.u32 %v3792, %v3795
        %v3797 = vsel %vm1018, %v3787, %v3796
        %v3799 = vshrl.u32 %v3688, 16
        %v3801 = vrot.slane %v3799, 6
        %v3802 = vshll.u32 %v3688, 16
        %v3804 = vrot.slane %v3802, 7
        %v3805 = vor.u32 %v3801, %v3804
        %v3806 = vsel %vm1018, %v3796, %v3805
        %v3808 = vshrl.u32 %v3689, 16
        %v3810 = vrot.slane %v3808, 6
        %v3811 = vshll.u32 %v3689, 16
        %v3813 = vrot.slane %v3811, 7
        %v3814 = vor.u32 %v3810, %v3813
        %v3815 = vsel %vm1018, %v3805, %v3814
        %v3817 = vshrl.u32 %v3690, 16
        %v3819 = vrot.slane %v3817, 6
        %v3820 = vshll.u32 %v3690, 16
        %v3822 = vrot.slane %v3820, 7
        %v3823 = vor.u32 %v3819, %v3822
        %v3824 = vsel %vm1018, %v3814, %v3823
        %v3826 = vshrl.u32 %v3691, 16
        %v3828 = vrot.slane %v3826, 6
        %v3829 = vshll.u32 %v3691, 16
        %v3831 = vrot.slane %v3829, 7
        %v3832 = vor.u32 %v3828, %v3831
        %v3833 = vsel %vm1018, %v3823, %v3832
        %v3835 = vshrl.u32 %v3692, 16
        %v3837 = vrot.slane %v3835, 6
        %v3838 = vshll.u32 %v3692, 16
        %v3840 = vrot.slane %v3838, 7
        %v3841 = vor.u32 %v3837, %v3840
        %v3842 = vsel %vm1018, %v3832, %v3841
        %v3844 = vshrl.u32 %v3693, 16
        %v3846 = vrot.slane %v3844, 6
        %v3847 = vshll.u32 %v3693, 16
        %v3849 = vrot.slane %v3847, 7
        %v3850 = vor.u32 %v3846, %v3849
        %v3851 = vsel %vm1018, %v3841, %v3850
        %v3853 = vshrl.u32 %v3694, 16
        %v3855 = vrot.slane %v3853, 6
        %v3856 = vshll.u32 %v3694, 16
        %v3858 = vrot.slane %v3856, 7
        %v3859 = vor.u32 %v3855, %v3858
        %v3860 = vsel %vm1018, %v3850, %v3859
        %v3862 = vshrl.u32 %v3695, 16
        %v3864 = vrot.slane %v3862, 6
        %v3865 = vshll.u32 %v3695, 16
        %v3867 = vrot.slane %v3865, 7
        %v3868 = vor.u32 %v3864, %v3867
        %v3869 = vsel %vm1018, %v3859, %v3868
        %v3871 = vshrl.u32 %v3696, 16
        %v3873 = vrot.slane %v3871, 6
        %v3874 = vshll.u32 %v3696, 16
        %v3876 = vrot.slane %v3874, 7
        %v3877 = vor.u32 %v3873, %v3876
        %v3878 = vsel %vm1018, %v3868, %v3877
        %v3880 = vshrl.u32 %v3697, 16
        %v3882 = vrot.slane %v3880, 6
        %v3883 = vshll.u32 %v3697, 16
        %v3885 = vrot.slane %v3883, 7
        %v3886 = vor.u32 %v3882, %v3885
        %v3887 = vsel %vm1018, %v3877, %v3886
        %v3889 = vshrl.u32 %v3698, 16
        %v3891 = vrot.slane %v3889, 6
        %v3892 = vshll.u32 %v3698, 16
        %v3894 = vrot.slane %v3892, 7
        %v3895 = vor.u32 %v3891, %v3894
        %v3896 = vsel %vm1018, %v3886, %v3895
        %v3898 = vshrl.u32 %v3699, 16
        %v3900 = vrot.slane %v3898, 6
        %v3901 = vshll.u32 %v3699, 16
        %v3903 = vrot.slane %v3901, 7
        %v3904 = vor.u32 %v3900, %v3903
        %v3905 = vsel %vm1018, %v3895, %v3904
        %3906 = vrot.lane.b32.xlu0 %v3707, 64
        %v3907 = vpop.permute.xlu0 %3906
        %3908 = vrot.lane.b32.xlu0 %v3716, 64
        %v3909 = vpop.permute.xlu0 %3908
        %3910 = vrot.lane.b32.xlu0 %v3725, 64
        %v3911 = vpop.permute.xlu0 %3910
        %3912 = vrot.lane.b32.xlu0 %v3734, 64
        %v3913 = vpop.permute.xlu0 %3912
        %3914 = vrot.lane.b32.xlu0 %v3743, 64
        %v3915 = vpop.permute.xlu0 %3914
        %3916 = vrot.lane.b32.xlu0 %v3752, 64
        %v3917 = vpop.permute.xlu0 %3916
        %3918 = vrot.lane.b32.xlu0 %v3761, 64
        %v3919 = vpop.permute.xlu0 %3918
        %3920 = vrot.lane.b32.xlu0 %v3770, 64
        %v3921 = vpop.permute.xlu0 %3920
        %3922 = vrot.lane.b32.xlu0 %v3779, 64
        %v3923 = vpop.permute.xlu0 %3922
        %3924 = vrot.lane.b32.xlu0 %v3788, 64
        %v3925 = vpop.permute.xlu0 %3924
        %3926 = vrot.lane.b32.xlu0 %v3797, 64
        %v3927 = vpop.permute.xlu0 %3926
        %3928 = vrot.lane.b32.xlu0 %v3806, 64
        %v3929 = vpop.permute.xlu0 %3928
        %3930 = vrot.lane.b32.xlu0 %v3815, 64
        %v3931 = vpop.permute.xlu0 %3930
        %3932 = vrot.lane.b32.xlu0 %v3824, 64
        %v3933 = vpop.permute.xlu0 %3932
        %3934 = vrot.lane.b32.xlu0 %v3833, 64
        %v3935 = vpop.permute.xlu0 %3934
        %3936 = vrot.lane.b32.xlu0 %v3842, 64
        %v3937 = vpop.permute.xlu0 %3936
        %3938 = vrot.lane.b32.xlu0 %v3851, 64
        %v3939 = vpop.permute.xlu0 %3938
        %3940 = vrot.lane.b32.xlu0 %v3860, 64
        %v3941 = vpop.permute.xlu0 %3940
        %3942 = vrot.lane.b32.xlu0 %v3869, 64
        %v3943 = vpop.permute.xlu0 %3942
        %3944 = vrot.lane.b32.xlu0 %v3878, 64
        %v3945 = vpop.permute.xlu0 %3944
        %3946 = vrot.lane.b32.xlu0 %v3887, 64
        %v3947 = vpop.permute.xlu0 %3946
        %3948 = vrot.lane.b32.xlu0 %v3896, 64
        %v3949 = vpop.permute.xlu0 %3948
        %3950 = vrot.lane.b32.xlu0 %v3905, 64
        %v3951 = vpop.permute.xlu0 %3950
        %v3953 = vunpack.c.l.b16 %v3127
        %v3954 = vpack.c.b16 %v3953, %v3582
        %v3955 = vrot.slane %v3677, 7
        %v3956 = vrot.slane %v3678, 7
        %v3957 = vsel %vm1274, %v3955, %v3956
        %v3958 = vrot.slane %v3679, 7
        %v3959 = vsel %vm1274, %v3956, %v3958
        %v3960 = vrot.slane %v3680, 7
        %v3961 = vsel %vm1274, %v3958, %v3960
        %v3962 = vrot.slane %v3681, 7
        %v3963 = vsel %vm1274, %v3960, %v3962
        %v3964 = vrot.slane %v3682, 7
        %v3965 = vsel %vm1274, %v3962, %v3964
        %v3966 = vrot.slane %v3683, 7
        %v3967 = vsel %vm1274, %v3964, %v3966
        %v3968 = vrot.slane %v3684, 7
        %v3969 = vsel %vm1274, %v3966, %v3968
        %v3970 = vrot.slane %v3685, 7
        %v3971 = vsel %vm1274, %v3968, %v3970
        %v3972 = vrot.slane %v3686, 7
        %v3973 = vsel %vm1274, %v3970, %v3972
        %v3974 = vrot.slane %v3687, 7
        %v3975 = vsel %vm1274, %v3972, %v3974
        %v3976 = vrot.slane %v3688, 7
        %v3977 = vsel %vm1274, %v3974, %v3976
        %v3978 = vrot.slane %v3689, 7
        %v3979 = vsel %vm1274, %v3976, %v3978
        %v3980 = vrot.slane %v3690, 7
        %v3981 = vsel %vm1274, %v3978, %v3980
        %v3982 = vrot.slane %v3691, 7
        %v3983 = vsel %vm1274, %v3980, %v3982
        %v3984 = vrot.slane %v3692, 7
        %v3985 = vsel %vm1274, %v3982, %v3984
        %v3986 = vrot.slane %v3693, 7
        %v3987 = vsel %vm1274, %v3984, %v3986
        %v3988 = vrot.slane %v3694, 7
        %v3989 = vsel %vm1274, %v3986, %v3988
        %v3990 = vrot.slane %v3695, 7
        %v3991 = vsel %vm1274, %v3988, %v3990
        %v3992 = vrot.slane %v3696, 7
        %v3993 = vsel %vm1274, %v3990, %v3992
        %v3994 = vrot.slane %v3697, 7
        %v3995 = vsel %vm1274, %v3992, %v3994
        %v3996 = vrot.slane %v3698, 7
        %v3997 = vsel %vm1274, %v3994, %v3996
        %v3998 = vrot.slane %v3954, 7
        %v3999 = vsel %vm1274, %v3996, %v3998
        %4000 = vrot.lane.b32.xlu0 %v3955, 80
        %v4001 = vpop.permute.xlu0 %4000
        %4002 = vrot.lane.b32.xlu0 %v3957, 80
        %v4003 = vpop.permute.xlu0 %4002
        %4004 = vrot.lane.b32.xlu0 %v3959, 80
        %v4005 = vpop.permute.xlu0 %4004
        %4006 = vrot.lane.b32.xlu0 %v3961, 80
        %v4007 = vpop.permute.xlu0 %4006
        %4008 = vrot.lane.b32.xlu0 %v3963, 80
        %v4009 = vpop.permute.xlu0 %4008
        %4010 = vrot.lane.b32.xlu0 %v3965, 80
        %v4011 = vpop.permute.xlu0 %4010
        %4012 = vrot.lane.b32.xlu0 %v3967, 80
        %v4013 = vpop.permute.xlu0 %4012
        %4014 = vrot.lane.b32.xlu0 %v3969, 80
        %v4015 = vpop.permute.xlu0 %4014
        %4016 = vrot.lane.b32.xlu0 %v3971, 80
        %v4017 = vpop.permute.xlu0 %4016
        %4018 = vrot.lane.b32.xlu0 %v3973, 80
        %v4019 = vpop.permute.xlu0 %4018
        %4020 = vrot.lane.b32.xlu0 %v3975, 80
        %v4021 = vpop.permute.xlu0 %4020
        %4022 = vrot.lane.b32.xlu0 %v3977, 80
        %v4023 = vpop.permute.xlu0 %4022
        %4024 = vrot.lane.b32.xlu0 %v3979, 80
        %v4025 = vpop.permute.xlu0 %4024
        %4026 = vrot.lane.b32.xlu0 %v3981, 80
        %v4027 = vpop.permute.xlu0 %4026
        %4028 = vrot.lane.b32.xlu0 %v3983, 80
        %v4029 = vpop.permute.xlu0 %4028
        %4030 = vrot.lane.b32.xlu0 %v3985, 80
        %v4031 = vpop.permute.xlu0 %4030
        %4032 = vrot.lane.b32.xlu0 %v3987, 80
        %v4033 = vpop.permute.xlu0 %4032
        %4034 = vrot.lane.b32.xlu0 %v3989, 80
        %v4035 = vpop.permute.xlu0 %4034
        %4036 = vrot.lane.b32.xlu0 %v3991, 80
        %v4037 = vpop.permute.xlu0 %4036
        %4038 = vrot.lane.b32.xlu0 %v3993, 80
        %v4039 = vpop.permute.xlu0 %4038
        %4040 = vrot.lane.b32.xlu0 %v3995, 80
        %v4041 = vpop.permute.xlu0 %4040
        %4042 = vrot.lane.b32.xlu0 %v3997, 80
        %v4043 = vpop.permute.xlu0 %4042
        %4044 = vrot.lane.b32.xlu0 %v3999, 80
        %v4045 = vpop.permute.xlu0 %4044
        %v4050 = vunpack.c.l.b16 %v3128
        %v4051 = vunpack.c.l.b16 %v3129
        %v4052 = vunpack.c.l.b16 %v3130
        %v4053 = vunpack.c.l.b16 %v3131
        %v4054 = vpack.c.b16 %v3186, %v4050
        %v4055 = vpack.c.b16 %v4051, %v3582
        %v4056 = vpack.c.b16 %v4053, %v4052
        %4057 = vrot.lane.b32.xlu0 %v4054, 96
        %v4058 = vpop.permute.xlu0 %4057
        %4059 = vrot.lane.b32.xlu0 %v3679, 96
        %v4060 = vpop.permute.xlu0 %4059
        %4061 = vrot.lane.b32.xlu0 %v3680, 96
        %v4062 = vpop.permute.xlu0 %4061
        %4063 = vrot.lane.b32.xlu0 %v3681, 96
        %v4064 = vpop.permute.xlu0 %4063
        %4065 = vrot.lane.b32.xlu0 %v3682, 96
        %v4066 = vpop.permute.xlu0 %4065
        %4067 = vrot.lane.b32.xlu0 %v3683, 96
        %v4068 = vpop.permute.xlu0 %4067
        %4069 = vrot.lane.b32.xlu0 %v3684, 96
        %v4070 = vpop.permute.xlu0 %4069
        %4071 = vrot.lane.b32.xlu0 %v3685, 96
        %v4072 = vpop.permute.xlu0 %4071
        %4073 = vrot.lane.b32.xlu0 %v3686, 96
        %v4074 = vpop.permute.xlu0 %4073
        %4075 = vrot.lane.b32.xlu0 %v3687, 96
        %v4076 = vpop.permute.xlu0 %4075
        %4077 = vrot.lane.b32.xlu0 %v3688, 96
        %v4078 = vpop.permute.xlu0 %4077
        %4079 = vrot.lane.b32.xlu0 %v3689, 96
        %v4080 = vpop.permute.xlu0 %4079
        %4081 = vrot.lane.b32.xlu0 %v3690, 96
        %v4082 = vpop.permute.xlu0 %4081
        %4083 = vrot.lane.b32.xlu0 %v3691, 96
        %v4084 = vpop.permute.xlu0 %4083
        %4085 = vrot.lane.b32.xlu0 %v3692, 96
        %v4086 = vpop.permute.xlu0 %4085
        %4087 = vrot.lane.b32.xlu0 %v3693, 96
        %v4088 = vpop.permute.xlu0 %4087
        %4089 = vrot.lane.b32.xlu0 %v3694, 96
        %v4090 = vpop.permute.xlu0 %4089
        %4091 = vrot.lane.b32.xlu0 %v3695, 96
        %v4092 = vpop.permute.xlu0 %4091
        %4093 = vrot.lane.b32.xlu0 %v3696, 96
        %v4094 = vpop.permute.xlu0 %4093
        %4095 = vrot.lane.b32.xlu0 %v3697, 96
        %v4096 = vpop.permute.xlu0 %4095
        %4097 = vrot.lane.b32.xlu0 %v3698, 96
        %v4098 = vpop.permute.xlu0 %4097
        %4099 = vrot.lane.b32.xlu0 %v4055, 96
        %v4100 = vpop.permute.xlu0 %4099
        %4101 = vrot.lane.b32.xlu0 %v4056, 96
        %v4102 = vpop.permute.xlu0 %4101
        %v4104 = vunpack.c.l.b16 %v3132
        %v4105 = vpack.c.b16 %v3186, %v4104
        %v4107 = vshrl.u32 %v4105, 16
        %v4109 = vshll.u32 %v4105, 16
        %v4111 = vrot.slane %v4109, 1
        %v4112 = vor.u32 %v4107, %v4111
        %v4113 = vrot.slane %v3721, 1
        %v4114 = vsel %vm567, %v4112, %v4113
        %v4115 = vor.u32 %v3718, %v4113
        %v4116 = vrot.slane %v3730, 1
        %v4117 = vsel %vm567, %v4115, %v4116
        %v4118 = vor.u32 %v3727, %v4116
        %v4119 = vrot.slane %v3739, 1
        %v4120 = vsel %vm567, %v4118, %v4119
        %v4121 = vor.u32 %v3736, %v4119
        %v4122 = vrot.slane %v3748, 1
        %v4123 = vsel %vm567, %v4121, %v4122
        %v4124 = vor.u32 %v3745, %v4122
        %v4125 = vrot.slane %v3757, 1
        %v4126 = vsel %vm567, %v4124, %v4125
        %v4127 = vor.u32 %v3754, %v4125
        %v4128 = vrot.slane %v3766, 1
        %v4129 = vsel %vm567, %v4127, %v4128
        %v4130 = vor.u32 %v3763, %v4128
        %v4131 = vrot.slane %v3775, 1
        %v4132 = vsel %vm567, %v4130, %v4131
        %v4133 = vor.u32 %v3772, %v4131
        %v4134 = vrot.slane %v3784, 1
        %v4135 = vsel %vm567, %v4133, %v4134
        %v4136 = vor.u32 %v3781, %v4134
        %v4137 = vrot.slane %v3793, 1
        %v4138 = vsel %vm567, %v4136, %v4137
        %v4139 = vor.u32 %v3790, %v4137
        %v4140 = vrot.slane %v3802, 1
        %v4141 = vsel %vm567, %v4139, %v4140
        %v4142 = vor.u32 %v3799, %v4140
        %v4143 = vrot.slane %v3811, 1
        %v4144 = vsel %vm567, %v4142, %v4143
        %v4145 = vor.u32 %v3808, %v4143
        %v4146 = vrot.slane %v3820, 1
        %v4147 = vsel %vm567, %v4145, %v4146
        %v4148 = vor.u32 %v3817, %v4146
        %v4149 = vrot.slane %v3829, 1
        %v4150 = vsel %vm567, %v4148, %v4149
        %v4151 = vor.u32 %v3826, %v4149
        %v4152 = vrot.slane %v3838, 1
        %v4153 = vsel %vm567, %v4151, %v4152
        %v4154 = vor.u32 %v3835, %v4152
        %v4155 = vrot.slane %v3847, 1
        %v4156 = vsel %vm567, %v4154, %v4155
        %v4157 = vor.u32 %v3844, %v4155
        %v4158 = vrot.slane %v3856, 1
        %v4159 = vsel %vm567, %v4157, %v4158
        %v4160 = vor.u32 %v3853, %v4158
        %v4161 = vrot.slane %v3865, 1
        %v4162 = vsel %vm567, %v4160, %v4161
        %v4163 = vor.u32 %v3862, %v4161
        %v4164 = vrot.slane %v3874, 1
        %v4165 = vsel %vm567, %v4163, %v4164
        %v4166 = vor.u32 %v3871, %v4164
        %v4167 = vrot.slane %v3883, 1
        %v4168 = vsel %vm567, %v4166, %v4167
        %v4169 = vor.u32 %v3880, %v4167
        %v4170 = vrot.slane %v3892, 1
        %v4171 = vsel %vm567, %v4169, %v4170
        %v4172 = vor.u32 %v3889, %v4170
        %v4174 = vshll.u32 %v4055, 16
        %v4176 = vrot.slane %v4174, 1
        %v4177 = vsel %vm567, %v4172, %v4176
        %v4178 = vshrl.u32 %v4055, 16
        %v4180 = vor.u32 %v4178, %v4176
        %v4182 = vshll.u32 %v4056, 16
        %v4184 = vrot.slane %v4182, 1
        %v4185 = vsel %vm567, %v4180, %v4184
        %v4186 = vshrl.u32 %v4056, 16
        %v4188 = vor.u32 %v4186, %v4184
        %4189 = vrot.lane.b32.xlu0 %v4114, 112
        %v4190 = vpop.permute.xlu0 %4189
        %4191 = vrot.lane.b32.xlu0 %v4117, 112
        %v4192 = vpop.permute.xlu0 %4191
        %4193 = vrot.lane.b32.xlu0 %v4120, 112
        %v4194 = vpop.permute.xlu0 %4193
        %4195 = vrot.lane.b32.xlu0 %v4123, 112
        %v4196 = vpop.permute.xlu0 %4195
        %4197 = vrot.lane.b32.xlu0 %v4126, 112
        %v4198 = vpop.permute.xlu0 %4197
        %4199 = vrot.lane.b32.xlu0 %v4129, 112
        %v4200 = vpop.permute.xlu0 %4199
        %4201 = vrot.lane.b32.xlu0 %v4132, 112
        %v4202 = vpop.permute.xlu0 %4201
        %4203 = vrot.lane.b32.xlu0 %v4135, 112
        %v4204 = vpop.permute.xlu0 %4203
        %4205 = vrot.lane.b32.xlu0 %v4138, 112
        %v4206 = vpop.permute.xlu0 %4205
        %4207 = vrot.lane.b32.xlu0 %v4141, 112
        %v4208 = vpop.permute.xlu0 %4207
        %4209 = vrot.lane.b32.xlu0 %v4144, 112
        %v4210 = vpop.permute.xlu0 %4209
        %4211 = vrot.lane.b32.xlu0 %v4147, 112
        %v4212 = vpop.permute.xlu0 %4211
        %4213 = vrot.lane.b32.xlu0 %v4150, 112
        %v4214 = vpop.permute.xlu0 %4213
        %4215 = vrot.lane.b32.xlu0 %v4153, 112
        %v4216 = vpop.permute.xlu0 %4215
        %4217 = vrot.lane.b32.xlu0 %v4156, 112
        %v4218 = vpop.permute.xlu0 %4217
        %4219 = vrot.lane.b32.xlu0 %v4159, 112
        %v4220 = vpop.permute.xlu0 %4219
        %4221 = vrot.lane.b32.xlu0 %v4162, 112
        %v4222 = vpop.permute.xlu0 %4221
        %4223 = vrot.lane.b32.xlu0 %v4165, 112
        %v4224 = vpop.permute.xlu0 %4223
        %4225 = vrot.lane.b32.xlu0 %v4168, 112
        %v4226 = vpop.permute.xlu0 %4225
        %4227 = vrot.lane.b32.xlu0 %v4171, 112
        %v4228 = vpop.permute.xlu0 %4227
        %4229 = vrot.lane.b32.xlu0 %v4177, 112
        %v4230 = vpop.permute.xlu0 %4229
        %4231 = vrot.lane.b32.xlu0 %v4185, 112
        %v4232 = vpop.permute.xlu0 %4231
        %4233 = vrot.lane.b32.xlu0 %v4188, 112
        %v4234 = vpop.permute.xlu0 %4233
        %v4236 = vunpack.c.l.b16 %v3133
        %v4237 = vpack.c.b16 %v4236, %v4052
        %v4238 = vrot.slane %v4105, 1
        %v4239 = vrot.slane %v3679, 1
        %v4240 = vsel %vm800, %v4238, %v4239
        %v4241 = vrot.slane %v3680, 1
        %v4242 = vsel %vm800, %v4239, %v4241
        %v4243 = vrot.slane %v3681, 1
        %v4244 = vsel %vm800, %v4241, %v4243
        %v4245 = vrot.slane %v3682, 1
        %v4246 = vsel %vm800, %v4243, %v4245
        %v4247 = vrot.slane %v3683, 1
        %v4248 = vsel %vm800, %v4245, %v4247
        %v4249 = vrot.slane %v3684, 1
        %v4250 = vsel %vm800, %v4247, %v4249
        %v4251 = vrot.slane %v3685, 1
        %v4252 = vsel %vm800, %v4249, %v4251
        %v4253 = vrot.slane %v3686, 1
        %v4254 = vsel %vm800, %v4251, %v4253
        %v4255 = vrot.slane %v3687, 1
        %v4256 = vsel %vm800, %v4253, %v4255
        %v4257 = vrot.slane %v3688, 1
        %v4258 = vsel %vm800, %v4255, %v4257
        %v4259 = vrot.slane %v3689, 1
        %v4260 = vsel %vm800, %v4257, %v4259
        %v4261 = vrot.slane %v3690, 1
        %v4262 = vsel %vm800, %v4259, %v4261
        %v4263 = vrot.slane %v3691, 1
        %v4264 = vsel %vm800, %v4261, %v4263
        %v4265 = vrot.slane %v3692, 1
        %v4266 = vsel %vm800, %v4263, %v4265
        %v4267 = vrot.slane %v3693, 1
        %v4268 = vsel %vm800, %v4265, %v4267
        %v4269 = vrot.slane %v3694, 1
        %v4270 = vsel %vm800, %v4267, %v4269
        %v4271 = vrot.slane %v3695, 1
        %v4272 = vsel %vm800, %v4269, %v4271
        %v4273 = vrot.slane %v3696, 1
        %v4274 = vsel %vm800, %v4271, %v4273
        %v4275 = vrot.slane %v3697, 1
        %v4276 = vsel %vm800, %v4273, %v4275
        %v4277 = vrot.slane %v3698, 1
        %v4278 = vsel %vm800, %v4275, %v4277
        %v4279 = vrot.slane %v4055, 1
        %v4280 = vsel %vm800, %v4277, %v4279
        %v4281 = vrot.slane %v4237, 1
        %v4282 = vsel %vm800, %v4279, %v4281
        %v4285 = vsel %vm1791, %v3226, %v3436
        %v4287 = vsel %vm1791, %v3227, %v3438
        %v4289 = vsel %vm1791, %v3228, %v3440
        %v4291 = vsel %vm1791, %v3229, %v3442
        %v4293 = vsel %vm1791, %v3230, %v3444
        %v4295 = vsel %vm1791, %v3231, %v3446
        %v4297 = vsel %vm1791, %v3232, %v3448
        %v4299 = vsel %vm1791, %v3233, %v3450
        %v4301 = vsel %vm1791, %v3234, %v3452
        %v4303 = vsel %vm1791, %v3235, %v3454
        %v4305 = vsel %vm1791, %v3236, %v3456
        %v4307 = vsel %vm1791, %v3237, %v3458
        %v4309 = vsel %vm1791, %v3238, %v3460
        %v4311 = vsel %vm1791, %v3239, %v3462
        %v4313 = vsel %vm1791, %v3240, %v3464
        %v4315 = vsel %vm1791, %v3241, %v3466
        %v4317 = vsel %vm1791, %v3242, %v3468
        %v4319 = vsel %vm1791, %v3243, %v3470
        %v4321 = vsel %vm1791, %v3244, %v3472
        %v4323 = vsel %vm1791, %v3245, %v3474
        %v4325 = vsel %vm1791, %v3246, %v3476
        %v4327 = vsel %vm1791, %v3247, %v3478
        %v4329 = vsel %vm1791, %v3248, %v3480
        %v4331 = vsel %vm1979, %v4285, %v3530
        %v4333 = vsel %vm1979, %v4287, %v3532
        %v4335 = vsel %vm1979, %v4289, %v3534
        %v4337 = vsel %vm1979, %v4291, %v3536
        %v4339 = vsel %vm1979, %v4293, %v3538
        %v4341 = vsel %vm1979, %v4295, %v3540
        %v4343 = vsel %vm1979, %v4297, %v3542
        %v4345 = vsel %vm1979, %v4299, %v3544
        %v4347 = vsel %vm1979, %v4301, %v3546
        %v4349 = vsel %vm1979, %v4303, %v3548
        %v4351 = vsel %vm1979, %v4305, %v3550
        %v4353 = vsel %vm1979, %v4307, %v3552
        %v4355 = vsel %vm1979, %v4309, %v3554
        %v4357 = vsel %vm1979, %v4311, %v3556
        %v4359 = vsel %vm1979, %v4313, %v3558
        %v4361 = vsel %vm1979, %v4315, %v3560
        %v4363 = vsel %vm1979, %v4317, %v3562
        %v4365 = vsel %vm1979, %v4319, %v3564
        %v4367 = vsel %vm1979, %v4321, %v3566
        %v4369 = vsel %vm1979, %v4323, %v3568
        %v4371 = vsel %vm1979, %v4325, %v3570
        %v4373 = vsel %vm1979, %v4327, %v3572
        %v4375 = vsel %vm1979, %v4329, %v3574
        %vm4376 = vcmask 392192
        %v4378 = vsel %vm4376, %v4331, %v3632
        %v4380 = vsel %vm4376, %v4333, %v3634
        %v4382 = vsel %vm4376, %v4335, %v3636
        %v4384 = vsel %vm4376, %v4337, %v3638
        %v4386 = vsel %vm4376, %v4339, %v3640
        %v4388 = vsel %vm4376, %v4341, %v3642
        %v4390 = vsel %vm4376, %v4343, %v3644
        %v4392 = vsel %vm4376, %v4345, %v3646
        %v4394 = vsel %vm4376, %v4347, %v3648
        %v4396 = vsel %vm4376, %v4349, %v3650
        %v4398 = vsel %vm4376, %v4351, %v3652
        %v4400 = vsel %vm4376, %v4353, %v3654
        %v4402 = vsel %vm4376, %v4355, %v3656
        %v4404 = vsel %vm4376, %v4357, %v3658
        %v4406 = vsel %vm4376, %v4359, %v3660
        %v4408 = vsel %vm4376, %v4361, %v3662
        %v4410 = vsel %vm4376, %v4363, %v3664
        %v4412 = vsel %vm4376, %v4365, %v3666
        %v4414 = vsel %vm4376, %v4367, %v3668
        %v4416 = vsel %vm4376, %v4369, %v3670
        %v4418 = vsel %vm4376, %v4371, %v3672
        %v4420 = vsel %vm4376, %v4373, %v3674
        %v4422 = vsel %vm4376, %v4375, %v3676
        %vm4423 = vcmask 523264
        %v4425 = vsel %vm4423, %v4378, %v3907
        %v4427 = vsel %vm4423, %v4380, %v3909
        %v4429 = vsel %vm4423, %v4382, %v3911
        %v4431 = vsel %vm4423, %v4384, %v3913
        %v4433 = vsel %vm4423, %v4386, %v3915
        %v4435 = vsel %vm4423, %v4388, %v3917
        %v4437 = vsel %vm4423, %v4390, %v3919
        %v4439 = vsel %vm4423, %v4392, %v3921
        %v4441 = vsel %vm4423, %v4394, %v3923
        %v4443 = vsel %vm4423, %v4396, %v3925
        %v4445 = vsel %vm4423, %v4398, %v3927
        %v4447 = vsel %vm4423, %v4400, %v3929
        %v4449 = vsel %vm4423, %v4402, %v3931
        %v4451 = vsel %vm4423, %v4404, %v3933
        %v4453 = vsel %vm4423, %v4406, %v3935
        %v4455 = vsel %vm4423, %v4408, %v3937
        %v4457 = vsel %vm4423, %v4410, %v3939
        %v4459 = vsel %vm4423, %v4412, %v3941
        %v4461 = vsel %vm4423, %v4414, %v3943
        %v4463 = vsel %vm4423, %v4416, %v3945
        %v4465 = vsel %vm4423, %v4418, %v3947
        %v4467 = vsel %vm4423, %v4420, %v3949
        %v4469 = vsel %vm4423, %v4422, %v3951
        %vm4470 = vcmask 654336
        %v4472 = vsel %vm4470, %v4425, %v4001
        %v4474 = vsel %vm4470, %v4427, %v4003
        %v4476 = vsel %vm4470, %v4429, %v4005
        %v4478 = vsel %vm4470, %v4431, %v4007
        %v4480 = vsel %vm4470, %v4433, %v4009
        %v4482 = vsel %vm4470, %v4435, %v4011
        %v4484 = vsel %vm4470, %v4437, %v4013
        %v4486 = vsel %vm4470, %v4439, %v4015
        %v4488 = vsel %vm4470, %v4441, %v4017
        %v4490 = vsel %vm4470, %v4443, %v4019
        %v4492 = vsel %vm4470, %v4445, %v4021
        %v4494 = vsel %vm4470, %v4447, %v4023
        %v4496 = vsel %vm4470, %v4449, %v4025
        %v4498 = vsel %vm4470, %v4451, %v4027
        %v4500 = vsel %vm4470, %v4453, %v4029
        %v4502 = vsel %vm4470, %v4455, %v4031
        %v4504 = vsel %vm4470, %v4457, %v4033
        %v4506 = vsel %vm4470, %v4459, %v4035
        %v4508 = vsel %vm4470, %v4461, %v4037
        %v4510 = vsel %vm4470, %v4463, %v4039
        %v4512 = vsel %vm4470, %v4465, %v4041
        %v4514 = vsel %vm4470, %v4467, %v4043
        %v4516 = vsel %vm4470, %v4469, %v4045
        %vm4517 = vcmask 785408
        %v4519 = vsel %vm4517, %v4472, %v4058
        %v4521 = vsel %vm4517, %v4474, %v4060
        %v4523 = vsel %vm4517, %v4476, %v4062
        %v4525 = vsel %vm4517, %v4478, %v4064
        %v4527 = vsel %vm4517, %v4480, %v4066
        %v4529 = vsel %vm4517, %v4482, %v4068
        %v4531 = vsel %vm4517, %v4484, %v4070
        %v4533 = vsel %vm4517, %v4486, %v4072
        %v4535 = vsel %vm4517, %v4488, %v4074
        %v4537 = vsel %vm4517, %v4490, %v4076
        %v4539 = vsel %vm4517, %v4492, %v4078
        %v4541 = vsel %vm4517, %v4494, %v4080
        %v4543 = vsel %vm4517, %v4496, %v4082
        %v4545 = vsel %vm4517, %v4498, %v4084
        %v4547 = vsel %vm4517, %v4500, %v4086
        %v4549 = vsel %vm4517, %v4502, %v4088
        %v4551 = vsel %vm4517, %v4504, %v4090
        %v4553 = vsel %vm4517, %v4506, %v4092
        %v4555 = vsel %vm4517, %v4508, %v4094
        %v4557 = vsel %vm4517, %v4510, %v4096
        %v4559 = vsel %vm4517, %v4512, %v4098
        %v4561 = vsel %vm4517, %v4514, %v4100
        %v4563 = vsel %vm4517, %v4516, %v4102
        %vm4564 = vcmask 916480
        %v4566 = vsel %vm4564, %v4519, %v4190
        %v4568 = vsel %vm4564, %v4521, %v4192
        %v4570 = vsel %vm4564, %v4523, %v4194
        %v4572 = vsel %vm4564, %v4525, %v4196
        %v4574 = vsel %vm4564, %v4527, %v4198
        %v4576 = vsel %vm4564, %v4529, %v4200
        %v4578 = vsel %vm4564, %v4531, %v4202
        %v4580 = vsel %vm4564, %v4533, %v4204
        %v4582 = vsel %vm4564, %v4535, %v4206
        %v4584 = vsel %vm4564, %v4537, %v4208
        %v4586 = vsel %vm4564, %v4539, %v4210
        %v4588 = vsel %vm4564, %v4541, %v4212
        %v4590 = vsel %vm4564, %v4543, %v4214
        %v4592 = vsel %vm4564, %v4545, %v4216
        %v4594 = vsel %vm4564, %v4547, %v4218
        %v4596 = vsel %vm4564, %v4549, %v4220
        %v4598 = vsel %vm4564, %v4551, %v4222
        %v4600 = vsel %vm4564, %v4553, %v4224
        %v4602 = vsel %vm4564, %v4555, %v4226
        %v4604 = vsel %vm4564, %v4557, %v4228
        %v4606 = vsel %vm4564, %v4559, %v4230
        %v4608 = vsel %vm4564, %v4561, %v4232
        %v4610 = vsel %vm4564, %v4563, %v4234
        %v4611 = vld [vmem:[%s3] sm:$0xf]
        %v4612 = vld [vmem:[%s3 + $0x4] sm:$0xf]
        %v4613 = vld [vmem:[%s3 + $0x8] sm:$0xf]
        %v4614 = vld [vmem:[%s3 + $0xc] sm:$0xf]
        %v4615 = vld [vmem:[%s3 + $0x10] sm:$0xf]
        %v4616 = vld [vmem:[%s3 + $0x14] sm:$0xf]
        %v4617 = vld [vmem:[%s3 + $0x18] sm:$0xf]
        %v4618 = vld [vmem:[%s3 + $0x1c] sm:$0xf]
        %v4619 = vld [vmem:[%s3 + $0x20] sm:$0xf]
        %v4620 = vld [vmem:[%s3 + $0x24] sm:$0xf]
        %v4621 = vld [vmem:[%s3 + $0x28] sm:$0xf]
        %v4622 = vld [vmem:[%s3 + $0x2c] sm:$0xf]
        %v4623 = vld [vmem:[%s3 + $0x30] sm:$0xf]
        %v4624 = vld [vmem:[%s3 + $0x34] sm:$0xf]
        %v4625 = vld [vmem:[%s3 + $0x38] sm:$0xf]
        %v4626 = vld [vmem:[%s3 + $0x3c] sm:$0xf]
        %v4627 = vld [vmem:[%s3 + $0x40] sm:$0xf]
        %v4628 = vld [vmem:[%s3 + $0x44] sm:$0xf]
        %v4629 = vld [vmem:[#allocation6] sm:$0x1]
        %v4631 = vlaneseq
        %v4632 = vshrl.u32 %v4631, 7
        %v4633 = vsub.s32 0, %v4632
        %v4634 = vrot.slane %v4629, %v4633
        %v4636 = vshrl.u32 %v4566, 16
        %v4638 = vrot.slane %v4636, 1
        %v4639 = vshll.u32 %v4566, 16
        %v4641 = vrot.slane %v4639, 2
        %v4642 = vor.u32 %v4638, %v4641
        %v4643 = vshrl.u32 %v4568, 16
        %v4645 = vrot.slane %v4643, 1
        %v4646 = vshll.u32 %v4568, 16
        %v4648 = vrot.slane %v4646, 2
        %v4649 = vor.u32 %v4645, %v4648
        %v4650 = vsel %vm2038, %v4642, %v4649
        %v4652 = vshrl.u32 %v4240, 16
        %v4654 = vrot.slane %v4652, 1
        %v4655 = vshll.u32 %v4240, 16
        %v4657 = vrot.slane %v4655, 2
        %v4658 = vor.u32 %v4654, %v4657
        %v4660 = vshrl.u32 %v4242, 16
        %v4662 = vrot.slane %v4660, 1
        %v4663 = vshll.u32 %v4242, 16
        %v4665 = vrot.slane %v4663, 2
        %v4666 = vor.u32 %v4662, %v4665
        %v4667 = vsel %vm2038, %v4658, %v4666
        %v4668 = vshrl.u32 %v4570, 16
        %v4670 = vrot.slane %v4668, 1
        %v4671 = vshll.u32 %v4570, 16
        %v4673 = vrot.slane %v4671, 2
        %v4674 = vor.u32 %v4670, %v4673
        %v4675 = vsel %vm2038, %v4649, %v4674
        %v4677 = vshrl.u32 %v4244, 16
        %v4679 = vrot.slane %v4677, 1
        %v4680 = vshll.u32 %v4244, 16
        %v4682 = vrot.slane %v4680, 2
        %v4683 = vor.u32 %v4679, %v4682
        %v4684 = vsel %vm2038, %v4666, %v4683
        %v4685 = vshrl.u32 %v4572, 16
        %v4687 = vrot.slane %v4685, 1
        %v4688 = vshll.u32 %v4572, 16
        %v4690 = vrot.slane %v4688, 2
        %v4691 = vor.u32 %v4687, %v4690
        %v4692 = vsel %vm2038, %v4674, %v4691
        %v4694 = vshrl.u32 %v4246, 16
        %v4696 = vrot.slane %v4694, 1
        %v4697 = vshll.u32 %v4246, 16
        %v4699 = vrot.slane %v4697, 2
        %v4700 = vor.u32 %v4696, %v4699
        %v4701 = vsel %vm2038, %v4683, %v4700
        %v4702 = vshrl.u32 %v4574, 16
        %v4704 = vrot.slane %v4702, 1
        %v4705 = vshll.u32 %v4574, 16
        %v4707 = vrot.slane %v4705, 2
        %v4708 = vor.u32 %v4704, %v4707
        %v4709 = vsel %vm2038, %v4691, %v4708
        %v4711 = vshrl.u32 %v4248, 16
        %v4713 = vrot.slane %v4711, 1
        %v4714 = vshll.u32 %v4248, 16
        %v4716 = vrot.slane %v4714, 2
        %v4717 = vor.u32 %v4713, %v4716
        %v4718 = vsel %vm2038, %v4700, %v4717
        %v4719 = vshrl.u32 %v4576, 16
        %v4721 = vrot.slane %v4719, 1
        %v4722 = vshll.u32 %v4576, 16
        %v4724 = vrot.slane %v4722, 2
        %v4725 = vor.u32 %v4721, %v4724
        %v4726 = vsel %vm2038, %v4708, %v4725
        %v4728 = vshrl.u32 %v4250, 16
        %v4730 = vrot.slane %v4728, 1
        %v4731 = vshll.u32 %v4250, 16
        %v4733 = vrot.slane %v4731, 2
        %v4734 = vor.u32 %v4730, %v4733
        %v4735 = vsel %vm2038, %v4717, %v4734
        %v4736 = vshrl.u32 %v4578, 16
        %v4738 = vrot.slane %v4736, 1
        %v4739 = vshll.u32 %v4578, 16
        %v4741 = vrot.slane %v4739, 2
        %v4742 = vor.u32 %v4738, %v4741
        %v4743 = vsel %vm2038, %v4725, %v4742
        %v4745 = vshrl.u32 %v4252, 16
        %v4747 = vrot.slane %v4745, 1
        %v4748 = vshll.u32 %v4252, 16
        %v4750 = vrot.slane %v4748, 2
        %v4751 = vor.u32 %v4747, %v4750
        %v4752 = vsel %vm2038, %v4734, %v4751
        %v4753 = vshrl.u32 %v4580, 16
        %v4755 = vrot.slane %v4753, 1
        %v4756 = vshll.u32 %v4580, 16
        %v4758 = vrot.slane %v4756, 2
        %v4759 = vor.u32 %v4755, %v4758
        %v4760 = vsel %vm2038, %v4742, %v4759
        %v4762 = vshrl.u32 %v4254, 16
        %v4764 = vrot.slane %v4762, 1
        %v4765 = vshll.u32 %v4254, 16
        %v4767 = vrot.slane %v4765, 2
        %v4768 = vor.u32 %v4764, %v4767
        %v4769 = vsel %vm2038, %v4751, %v4768
        %v4770 = vshrl.u32 %v4582, 16
        %v4772 = vrot.slane %v4770, 1
        %v4773 = vshll.u32 %v4582, 16
        %v4775 = vrot.slane %v4773, 2
        %v4776 = vor.u32 %v4772, %v4775
        %v4777 = vsel %vm2038, %v4759, %v4776
        %v4779 = vshrl.u32 %v4256, 16
        %v4781 = vrot.slane %v4779, 1
        %v4782 = vshll.u32 %v4256, 16
        %v4784 = vrot.slane %v4782, 2
        %v4785 = vor.u32 %v4781, %v4784
        %v4786 = vsel %vm2038, %v4768, %v4785
        %v4787 = vshrl.u32 %v4584, 16
        %v4789 = vrot.slane %v4787, 1
        %v4790 = vshll.u32 %v4584, 16
        %v4792 = vrot.slane %v4790, 2
        %v4793 = vor.u32 %v4789, %v4792
        %v4794 = vsel %vm2038, %v4776, %v4793
        %v4796 = vshrl.u32 %v4258, 16
        %v4798 = vrot.slane %v4796, 1
        %v4799 = vshll.u32 %v4258, 16
        %v4801 = vrot.slane %v4799, 2
        %v4802 = vor.u32 %v4798, %v4801
        %v4803 = vsel %vm2038, %v4785, %v4802
        %v4804 = vshrl.u32 %v4586, 16
        %v4806 = vrot.slane %v4804, 1
        %v4807 = vshll.u32 %v4586, 16
        %v4809 = vrot.slane %v4807, 2
        %v4810 = vor.u32 %v4806, %v4809
        %v4811 = vsel %vm2038, %v4793, %v4810
        %v4813 = vshrl.u32 %v4260, 16
        %v4815 = vrot.slane %v4813, 1
        %v4816 = vshll.u32 %v4260, 16
        %v4818 = vrot.slane %v4816, 2
        %v4819 = vor.u32 %v4815, %v4818
        %v4820 = vsel %vm2038, %v4802, %v4819
        %v4821 = vshrl.u32 %v4588, 16
        %v4823 = vrot.slane %v4821, 1
        %v4824 = vshll.u32 %v4588, 16
        %v4826 = vrot.slane %v4824, 2
        %v4827 = vor.u32 %v4823, %v4826
        %v4828 = vsel %vm2038, %v4810, %v4827
        %v4830 = vshrl.u32 %v4262, 16
        %v4832 = vrot.slane %v4830, 1
        %v4833 = vshll.u32 %v4262, 16
        %v4835 = vrot.slane %v4833, 2
        %v4836 = vor.u32 %v4832, %v4835
        %v4837 = vsel %vm2038, %v4819, %v4836
        %v4838 = vshrl.u32 %v4590, 16
        %v4840 = vrot.slane %v4838, 1
        %v4841 = vshll.u32 %v4590, 16
        %v4843 = vrot.slane %v4841, 2
        %v4844 = vor.u32 %v4840, %v4843
        %v4845 = vsel %vm2038, %v4827, %v4844
        %v4847 = vshrl.u32 %v4264, 16
        %v4849 = vrot.slane %v4847, 1
        %v4850 = vshll.u32 %v4264, 16
        %v4852 = vrot.slane %v4850, 2
        %v4853 = vor.u32 %v4849, %v4852
        %v4854 = vsel %vm2038, %v4836, %v4853
        %v4855 = vshrl.u32 %v4592, 16
        %v4857 = vrot.slane %v4855, 1
        %v4858 = vshll.u32 %v4592, 16
        %v4860 = vrot.slane %v4858, 2
        %v4861 = vor.u32 %v4857, %v4860
        %v4862 = vsel %vm2038, %v4844, %v4861
        %v4864 = vshrl.u32 %v4266, 16
        %v4866 = vrot.slane %v4864, 1
        %v4867 = vshll.u32 %v4266, 16
        %v4869 = vrot.slane %v4867, 2
        %v4870 = vor.u32 %v4866, %v4869
        %v4871 = vsel %vm2038, %v4853, %v4870
        %v4872 = vshrl.u32 %v4594, 16
        %v4874 = vrot.slane %v4872, 1
        %v4875 = vshll.u32 %v4594, 16
        %v4877 = vrot.slane %v4875, 2
        %v4878 = vor.u32 %v4874, %v4877
        %v4879 = vsel %vm2038, %v4861, %v4878
        %v4881 = vshrl.u32 %v4268, 16
        %v4883 = vrot.slane %v4881, 1
        %v4884 = vshll.u32 %v4268, 16
        %v4886 = vrot.slane %v4884, 2
        %v4887 = vor.u32 %v4883, %v4886
        %v4888 = vsel %vm2038, %v4870, %v4887
        %v4889 = vshrl.u32 %v4596, 16
        %v4891 = vrot.slane %v4889, 1
        %v4892 = vshll.u32 %v4596, 16
        %v4894 = vrot.slane %v4892, 2
        %v4895 = vor.u32 %v4891, %v4894
        %v4896 = vsel %vm2038, %v4878, %v4895
        %v4898 = vshrl.u32 %v4270, 16
        %v4900 = vrot.slane %v4898, 1
        %v4901 = vshll.u32 %v4270, 16
        %v4903 = vrot.slane %v4901, 2
        %v4904 = vor.u32 %v4900, %v4903
        %v4905 = vsel %vm2038, %v4887, %v4904
        %v4906 = vshrl.u32 %v4598, 16
        %v4908 = vrot.slane %v4906, 1
        %v4909 = vshll.u32 %v4598, 16
        %v4911 = vrot.slane %v4909, 2
        %v4912 = vor.u32 %v4908, %v4911
        %v4913 = vsel %vm2038, %v4895, %v4912
        %v4915 = vshrl.u32 %v4272, 16
        %v4917 = vrot.slane %v4915, 1
        %v4918 = vshll.u32 %v4272, 16
        %v4920 = vrot.slane %v4918, 2
        %v4921 = vor.u32 %v4917, %v4920
        %v4922 = vsel %vm2038, %v4904, %v4921
        %v4923 = vshrl.u32 %v4600, 16
        %v4925 = vrot.slane %v4923, 1
        %v4926 = vshll.u32 %v4600, 16
        %v4928 = vrot.slane %v4926, 2
        %v4929 = vor.u32 %v4925, %v4928
        %v4930 = vsel %vm2038, %v4912, %v4929
        %v4932 = vshrl.u32 %v4274, 16
        %v4934 = vrot.slane %v4932, 1
        %v4935 = vshll.u32 %v4274, 16
        %v4937 = vrot.slane %v4935, 2
        %v4938 = vor.u32 %v4934, %v4937
        %v4939 = vsel %vm2038, %v4921, %v4938
        %v4940 = vshrl.u32 %v4602, 16
        %v4942 = vrot.slane %v4940, 1
        %v4943 = vshll.u32 %v4602, 16
        %v4945 = vrot.slane %v4943, 2
        %v4946 = vor.u32 %v4942, %v4945
        %v4947 = vsel %vm2038, %v4929, %v4946
        %v4949 = vshrl.u32 %v4276, 16
        %v4951 = vrot.slane %v4949, 1
        %v4952 = vshll.u32 %v4276, 16
        %v4954 = vrot.slane %v4952, 2
        %v4955 = vor.u32 %v4951, %v4954
        %v4956 = vsel %vm2038, %v4938, %v4955
        %v4957 = vshrl.u32 %v4604, 16
        %v4959 = vrot.slane %v4957, 1
        %v4960 = vshll.u32 %v4604, 16
        %v4962 = vrot.slane %v4960, 2
        %v4963 = vor.u32 %v4959, %v4962
        %v4964 = vsel %vm2038, %v4946, %v4963
        %v4966 = vshrl.u32 %v4278, 16
        %v4968 = vrot.slane %v4966, 1
        %v4969 = vshll.u32 %v4278, 16
        %v4971 = vrot.slane %v4969, 2
        %v4972 = vor.u32 %v4968, %v4971
        %v4973 = vsel %vm2038, %v4955, %v4972
        %v4974 = vshrl.u32 %v4606, 16
        %v4976 = vrot.slane %v4974, 1
        %v4977 = vshll.u32 %v4606, 16
        %v4979 = vrot.slane %v4977, 2
        %v4980 = vor.u32 %v4976, %v4979
        %v4981 = vsel %vm2038, %v4963, %v4980
        %v4983 = vshrl.u32 %v4280, 16
        %v4985 = vrot.slane %v4983, 1
        %v4986 = vshll.u32 %v4280, 16
        %v4988 = vrot.slane %v4986, 2
        %v4989 = vor.u32 %v4985, %v4988
        %v4990 = vsel %vm2038, %v4972, %v4989
        %v4991 = vshrl.u32 %v4608, 16
        %v4993 = vrot.slane %v4991, 1
        %v4994 = vshll.u32 %v4608, 16
        %v4996 = vrot.slane %v4994, 2
        %v4997 = vor.u32 %v4993, %v4996
        %v4998 = vsel %vm2038, %v4980, %v4997
        %v5000 = vshrl.u32 %v4282, 16
        %v5002 = vrot.slane %v5000, 1
        %v5003 = vshll.u32 %v4282, 16
        %v5005 = vrot.slane %v5003, 2
        %v5006 = vor.u32 %v5002, %v5005
        %v5007 = vsel %vm2038, %v4989, %v5006
        %v5008 = vshrl.u32 %v4610, 16
        %v5010 = vrot.slane %v5008, 1
        %v5011 = vshll.u32 %v4610, 16
        %v5013 = vrot.slane %v5011, 2
        %v5014 = vor.u32 %v5010, %v5013
        %v5015 = vsel %vm2038, %v4997, %v5014
        %v5017 = vshrl.u32 %v4281, 16
        %v5019 = vrot.slane %v5017, 1
        %v5020 = vshll.u32 %v4281, 16
        %v5022 = vrot.slane %v5020, 2
        %v5023 = vor.u32 %v5019, %v5022
        %v5024 = vsel %vm2038, %v5006, %v5023
        %v5066 = vunpack.c.l.b16 %v4611
        %v5067 = vunpack.c.l.b16 %v4612
        %v5068 = vunpack.c.l.b16 %v4613
        %v5069 = vunpack.c.l.b16 %v4614
        %v5070 = vunpack.c.l.b16 %v4615
        %v5071 = vunpack.c.l.b16 %v4616
        %v5072 = vunpack.c.l.b16 %v4617
        %v5073 = vunpack.c.l.b16 %v4618
        %v5074 = vunpack.c.l.b16 %v4619
        %v5075 = vunpack.c.l.b16 %v4620
        %v5076 = vunpack.c.l.b16 %v4621
        %v5077 = vunpack.c.l.b16 %v4622
        %v5078 = vunpack.c.l.b16 %v4623
        %v5079 = vunpack.c.l.b16 %v4624
        %v5080 = vunpack.c.l.b16 %v4625
        %v5081 = vunpack.c.l.b16 %v4626
        %v5082 = vunpack.c.l.b16 %v4627
        %v5083 = vunpack.c.l.b16 %v4628
        %v5084 = vpack.c.b16 %v5067, %v5066
        %v5085 = vpack.c.b16 %v5069, %v5068
        %v5086 = vpack.c.b16 %v5071, %v5070
        %v5087 = vpack.c.b16 %v5073, %v5072
        %v5088 = vpack.c.b16 %v5075, %v5074
        %v5089 = vpack.c.b16 %v5077, %v5076
        %v5090 = vpack.c.b16 %v5079, %v5078
        %v5091 = vpack.c.b16 %v5081, %v5080
        %v5092 = vpack.c.b16 %v5083, %v5082
        %v5103 = vsel %vm1791, %v4667, 0
        %v5106 = vsel %vm1791, %v4684, 0
        %v5109 = vsel %vm1791, %v4701, 0
        %v5112 = vsel %vm1791, %v4718, 0
        %v5115 = vsel %vm1791, %v4735, 0
        %v5118 = vsel %vm1791, %v4752, 0
        %v5121 = vsel %vm1791, %v4769, 0
        %v5124 = vsel %vm1791, %v4786, 0
        %v5127 = vsel %vm1791, %v4803, 0
        %v5130 = vsel %vm1791, %v4820, 0
        %v5133 = vsel %vm1791, %v4837, 0
        %v5136 = vsel %vm1791, %v4854, 0
        %v5139 = vsel %vm1791, %v4871, 0
        %v5142 = vsel %vm1791, %v4888, 0
        %v5145 = vsel %vm1791, %v4905, 0
        %v5148 = vsel %vm1791, %v4922, 0
        %v5151 = vsel %vm1791, %v4939, 0
        %v5154 = vsel %vm1791, %v4956, 0
        %v5157 = vsel %vm1791, %v4973, 0
        %v5160 = vsel %vm1791, %v4990, 0
        %v5163 = vsel %vm1791, %v5007, 0
        %v5166 = vsel %vm1791, %v5024, 0
        %v5169 = vsel %vm1791, %v5023, 0
        %5171 = vmatprep.subr.bf16.mxu0 0
        %5172 = vmatpush1.bf16.msra.mxu0 %v5091
        %5173 = vmatprep.subr.bf16.mxu0 0
        %5174 = vmatpush1.bf16.msra.mxu0 %v5090
        %5175 = vmatprep.subr.bf16.mxu0 0
        %5176 = vmatpush1.bf16.msra.mxu0 %v5089
        %5177 = vmatprep.subr.bf16.mxu0 0
        %5178 = vmatpush1.bf16.msra.mxu0 %v5088
        %5179 = vmatprep.subr.bf16.mxu0 0
        %5180 = vmatpush1.bf16.msra.mxu0 %v5087
        %5181 = vmatprep.subr.bf16.mxu0 0
        %5182 = vmatpush1.bf16.msra.mxu0 %v5086
        %5183 = vmatprep.subr.bf16.mxu0 0
        %5184 = vmatpush1.bf16.msra.mxu0 %v5085
        %5185 = vmatprep.subr.bf16.mxu0 0
        %5186 = vmatpush1.bf16.msra.mxu0 %v5084
        %5187 = vmatprep.subr.bf16.mxu0 0
        %5188 = vmatpush2.bf16.msra.mxu0 0
        %5189 = vmatprep.subr.bf16.mxu0 0
        %5190 = vmatpush2.bf16.msra.mxu0 0
        %5191 = vmatprep.subr.bf16.mxu0 0
        %5192 = vmatpush2.bf16.msra.mxu0 0
        %5193 = vmatprep.subr.bf16.mxu0 0
        %5194 = vmatpush2.bf16.msra.mxu0 0
        %5195 = vmatprep.subr.bf16.mxu0 0
        %5196 = vmatpush2.bf16.msra.mxu0 0
        %5197 = vmatprep.subr.bf16.mxu0 0
        %5198 = vmatpush2.bf16.msra.mxu0 0
        %5199 = vmatprep.subr.bf16.mxu0 0
        %5200 = vmatpush2.bf16.msra.mxu0 0
        %5201 = vmatprep.subr.bf16.mxu0 0
        %5202 = vmatpush2.bf16.msra.mxu0 %v5092
        %5203 = vmatprep.mubr.bf16.mxu0 %v5103
        %5204 = vmatmul.mubr.bf16.gmra.mxu0 %v4650
        %v5205 = vpop.f32.mrf.mxu0
        %v5206 = vadd.f32 %v4634, %v5205
        %v5207 = vpop.f32.mrf.mxu0
        %v5208 = vpop.f32.mrf.mxu0
        %v5209 = vadd.f32 %v4634, %v5208
        %v5210 = vpop.f32.mrf.mxu0
        %5211 = vmatprep.mubr.bf16.mxu0 %v5106
        %5212 = vmatmul.mubr.bf16.gmra.mxu0 %v4675
        %v5213 = vpop.f32.mrf.mxu0
        %v5214 = vadd.f32 %v4634, %v5213
        %v5215 = vpop.f32.mrf.mxu0
        %v5216 = vpop.f32.mrf.mxu0
        %v5217 = vadd.f32 %v4634, %v5216
        %v5218 = vpop.f32.mrf.mxu0
        %5219 = vmatprep.mubr.bf16.mxu0 %v5109
        %5220 = vmatmul.mubr.bf16.gmra.mxu0 %v4692
        %v5221 = vpop.f32.mrf.mxu0
        %v5222 = vadd.f32 %v4634, %v5221
        %v5223 = vpop.f32.mrf.mxu0
        %v5224 = vpop.f32.mrf.mxu0
        %v5225 = vadd.f32 %v4634, %v5224
        %v5226 = vpop.f32.mrf.mxu0
        %5227 = vmatprep.mubr.bf16.mxu0 %v5112
        %5228 = vmatmul.mubr.bf16.gmra.mxu0 %v4709
        %v5229 = vpop.f32.mrf.mxu0
        %v5230 = vadd.f32 %v4634, %v5229
        %v5231 = vpop.f32.mrf.mxu0
        %v5232 = vpop.f32.mrf.mxu0
        %v5233 = vadd.f32 %v4634, %v5232
        %v5234 = vpop.f32.mrf.mxu0
        %5235 = vmatprep.mubr.bf16.mxu0 %v5115
        %5236 = vmatmul.mubr.bf16.gmra.mxu0 %v4726
        %v5237 = vpop.f32.mrf.mxu0
        %v5238 = vadd.f32 %v4634, %v5237
        %v5239 = vpop.f32.mrf.mxu0
        %v5240 = vpop.f32.mrf.mxu0
        %v5241 = vadd.f32 %v4634, %v5240
        %v5242 = vpop.f32.mrf.mxu0
        %5243 = vmatprep.mubr.bf16.mxu0 %v5118
        %5244 = vmatmul.mubr.bf16.gmra.mxu0 %v4743
        %v5245 = vpop.f32.mrf.mxu0
        %v5246 = vadd.f32 %v4634, %v5245
        %v5247 = vpop.f32.mrf.mxu0
        %v5248 = vpop.f32.mrf.mxu0
        %v5249 = vadd.f32 %v4634, %v5248
        %v5250 = vpop.f32.mrf.mxu0
        %5251 = vmatprep.mubr.bf16.mxu0 %v5121
        %5252 = vmatmul.mubr.bf16.gmra.mxu0 %v4760
        %v5253 = vpop.f32.mrf.mxu0
        %v5254 = vadd.f32 %v4634, %v5253
        %v5255 = vpop.f32.mrf.mxu0
        %v5256 = vpop.f32.mrf.mxu0
        %v5257 = vadd.f32 %v4634, %v5256
        %v5258 = vpop.f32.mrf.mxu0
        %5259 = vmatprep.mubr.bf16.mxu0 %v5124
        %5260 = vmatmul.mubr.bf16.gmra.mxu0 %v4777
        %v5261 = vpop.f32.mrf.mxu0
        %v5262 = vadd.f32 %v4634, %v5261
        %v5263 = vpop.f32.mrf.mxu0
        %v5264 = vpop.f32.mrf.mxu0
        %v5265 = vadd.f32 %v4634, %v5264
        %v5266 = vpop.f32.mrf.mxu0
        %5267 = vmatprep.mubr.bf16.mxu0 %v5127
        %5268 = vmatmul.mubr.bf16.gmra.mxu0 %v4794
        %v5269 = vpop.f32.mrf.mxu0
        %v5270 = vadd.f32 %v4634, %v5269
        %v5271 = vpop.f32.mrf.mxu0
        %v5272 = vpop.f32.mrf.mxu0
        %v5273 = vadd.f32 %v4634, %v5272
        %v5274 = vpop.f32.mrf.mxu0
        %5275 = vmatprep.mubr.bf16.mxu0 %v5130
        %5276 = vmatmul.mubr.bf16.gmra.mxu0 %v4811
        %v5277 = vpop.f32.mrf.mxu0
        %v5278 = vadd.f32 %v4634, %v5277
        %v5279 = vpop.f32.mrf.mxu0
        %v5280 = vpop.f32.mrf.mxu0
        %v5281 = vadd.f32 %v4634, %v5280
        %v5282 = vpop.f32.mrf.mxu0
        %5283 = vmatprep.mubr.bf16.mxu0 %v5133
        %5284 = vmatmul.mubr.bf16.gmra.mxu0 %v4828
        %v5285 = vpop.f32.mrf.mxu0
        %v5286 = vadd.f32 %v4634, %v5285
        %v5287 = vpop.f32.mrf.mxu0
        %v5288 = vpop.f32.mrf.mxu0
        %v5289 = vadd.f32 %v4634, %v5288
        %v5290 = vpop.f32.mrf.mxu0
        %5291 = vmatprep.mubr.bf16.mxu0 %v5136
        %5292 = vmatmul.mubr.bf16.gmra.mxu0 %v4845
        %v5293 = vpop.f32.mrf.mxu0
        %v5294 = vadd.f32 %v4634, %v5293
        %v5295 = vpop.f32.mrf.mxu0
        %v5296 = vpop.f32.mrf.mxu0
        %v5297 = vadd.f32 %v4634, %v5296
        %v5298 = vpop.f32.mrf.mxu0
        %5299 = vmatprep.mubr.bf16.mxu0 %v5139
        %5300 = vmatmul.mubr.bf16.gmra.mxu0 %v4862
        %v5301 = vpop.f32.mrf.mxu0
        %v5302 = vadd.f32 %v4634, %v5301
        %v5303 = vpop.f32.mrf.mxu0
        %v5304 = vpop.f32.mrf.mxu0
        %v5305 = vadd.f32 %v4634, %v5304
        %v5306 = vpop.f32.mrf.mxu0
        %5307 = vmatprep.mubr.bf16.mxu0 %v5142
        %5308 = vmatmul.mubr.bf16.gmra.mxu0 %v4879
        %v5309 = vpop.f32.mrf.mxu0
        %v5310 = vadd.f32 %v4634, %v5309
        %v5311 = vpop.f32.mrf.mxu0
        %v5312 = vpop.f32.mrf.mxu0
        %v5313 = vadd.f32 %v4634, %v5312
        %v5314 = vpop.f32.mrf.mxu0
        %5315 = vmatprep.mubr.bf16.mxu0 %v5145
        %5316 = vmatmul.mubr.bf16.gmra.mxu0 %v4896
        %v5317 = vpop.f32.mrf.mxu0
        %v5318 = vadd.f32 %v4634, %v5317
        %v5319 = vpop.f32.mrf.mxu0
        %v5320 = vpop.f32.mrf.mxu0
        %v5321 = vadd.f32 %v4634, %v5320
        %v5322 = vpop.f32.mrf.mxu0
        %5323 = vmatprep.mubr.bf16.mxu0 %v5148
        %5324 = vmatmul.mubr.bf16.gmra.mxu0 %v4913
        %v5325 = vpop.f32.mrf.mxu0
        %v5326 = vadd.f32 %v4634, %v5325
        %v5327 = vpop.f32.mrf.mxu0
        %v5328 = vpop.f32.mrf.mxu0
        %v5329 = vadd.f32 %v4634, %v5328
        %v5330 = vpop.f32.mrf.mxu0
        %5331 = vmatprep.mubr.bf16.mxu0 %v5151
        %5332 = vmatmul.mubr.bf16.gmra.mxu0 %v4930
        %v5333 = vpop.f32.mrf.mxu0
        %v5334 = vadd.f32 %v4634, %v5333
        %v5335 = vpop.f32.mrf.mxu0
        %v5336 = vpop.f32.mrf.mxu0
        %v5337 = vadd.f32 %v4634, %v5336
        %v5338 = vpop.f32.mrf.mxu0
        %5339 = vmatprep.mubr.bf16.mxu0 %v5154
        %5340 = vmatmul.mubr.bf16.gmra.mxu0 %v4947
        %v5341 = vpop.f32.mrf.mxu0
        %v5342 = vadd.f32 %v4634, %v5341
        %v5343 = vpop.f32.mrf.mxu0
        %v5344 = vpop.f32.mrf.mxu0
        %v5345 = vadd.f32 %v4634, %v5344
        %v5346 = vpop.f32.mrf.mxu0
        %5347 = vmatprep.mubr.bf16.mxu0 %v5157
        %5348 = vmatmul.mubr.bf16.gmra.mxu0 %v4964
        %v5349 = vpop.f32.mrf.mxu0
        %v5350 = vadd.f32 %v4634, %v5349
        %v5351 = vpop.f32.mrf.mxu0
        %v5352 = vpop.f32.mrf.mxu0
        %v5353 = vadd.f32 %v4634, %v5352
        %v5354 = vpop.f32.mrf.mxu0
        %5355 = vmatprep.mubr.bf16.mxu0 %v5160
        %5356 = vmatmul.mubr.bf16.gmra.mxu0 %v4981
        %v5357 = vpop.f32.mrf.mxu0
        %v5358 = vadd.f32 %v4634, %v5357
        %v5359 = vpop.f32.mrf.mxu0
        %v5360 = vpop.f32.mrf.mxu0
        %v5361 = vadd.f32 %v4634, %v5360
        %v5362 = vpop.f32.mrf.mxu0
        %5363 = vmatprep.mubr.bf16.mxu0 %v5163
        %5364 = vmatmul.mubr.bf16.gmra.mxu0 %v4998
        %v5365 = vpop.f32.mrf.mxu0
        %v5366 = vadd.f32 %v4634, %v5365
        %v5367 = vpop.f32.mrf.mxu0
        %v5368 = vpop.f32.mrf.mxu0
        %v5369 = vadd.f32 %v4634, %v5368
        %v5370 = vpop.f32.mrf.mxu0
        %5371 = vmatprep.mubr.bf16.mxu0 %v5166
        %5372 = vmatmul.mubr.bf16.gmra.mxu0 %v5015
        %v5373 = vpop.f32.mrf.mxu0
        %v5374 = vadd.f32 %v4634, %v5373
        %v5375 = vpop.f32.mrf.mxu0
        %v5376 = vpop.f32.mrf.mxu0
        %v5377 = vadd.f32 %v4634, %v5376
        %v5378 = vpop.f32.mrf.mxu0
        %5379 = vmatprep.mubr.bf16.mxu0 %v5169
        %5380 = vmatmul.mubr.bf16.gmra.mxu0 %v5014
        %v5381 = vpop.f32.mrf.mxu0
        %v5382 = vadd.f32 %v4634, %v5381
        %v5383 = vpop.f32.mrf.mxu0
        %v5384 = vpop.f32.mrf.mxu0
        %v5385 = vpop.f32.mrf.mxu0
        %5386 = vdwg.mxu0
        %v5387 = vmax.f32 %v5206, 0.0
        %v5388 = vmax.f32 %v5209, 0.0
        %v5389 = vmax.f32 %v5214, 0.0
        %v5390 = vmax.f32 %v5217, 0.0
        %v5391 = vmax.f32 %v5222, 0.0
        %v5392 = vmax.f32 %v5225, 0.0
        %v5393 = vmax.f32 %v5230, 0.0
        %v5394 = vmax.f32 %v5233, 0.0
        %v5395 = vmax.f32 %v5238, 0.0
        %v5396 = vmax.f32 %v5241, 0.0
        %v5397 = vmax.f32 %v5246, 0.0
        %v5398 = vmax.f32 %v5249, 0.0
        %v5399 = vmax.f32 %v5254, 0.0
        %v5400 = vmax.f32 %v5257, 0.0
        %v5401 = vmax.f32 %v5262, 0.0
        %v5402 = vmax.f32 %v5265, 0.0
        %v5403 = vmax.f32 %v5270, 0.0
        %v5404 = vmax.f32 %v5273, 0.0
        %v5405 = vmax.f32 %v5278, 0.0
        %v5406 = vmax.f32 %v5281, 0.0
        %v5407 = vmax.f32 %v5286, 0.0
        %v5408 = vmax.f32 %v5289, 0.0
        %v5409 = vmax.f32 %v5294, 0.0
        %v5410 = vmax.f32 %v5297, 0.0
        %v5411 = vmax.f32 %v5302, 0.0
        %v5412 = vmax.f32 %v5305, 0.0
        %v5413 = vmax.f32 %v5310, 0.0
        %v5414 = vmax.f32 %v5313, 0.0
        %v5415 = vmax.f32 %v5318, 0.0
        %v5416 = vmax.f32 %v5321, 0.0
        %v5417 = vmax.f32 %v5326, 0.0
        %v5418 = vmax.f32 %v5329, 0.0
        %v5419 = vmax.f32 %v5334, 0.0
        %v5420 = vmax.f32 %v5337, 0.0
        %v5421 = vmax.f32 %v5342, 0.0
        %v5422 = vmax.f32 %v5345, 0.0
        %v5423 = vmax.f32 %v5350, 0.0
        %v5424 = vmax.f32 %v5353, 0.0
        %v5425 = vmax.f32 %v5358, 0.0
        %v5426 = vmax.f32 %v5361, 0.0
        %v5427 = vmax.f32 %v5366, 0.0
        %v5428 = vmax.f32 %v5369, 0.0
        %v5429 = vmax.f32 %v5374, 0.0
        %v5430 = vmax.f32 %v5377, 0.0
        %v5431 = vmax.f32 %v5382, 0.0
        %vm5432 = vcmask 257024
        %5433 = vst.msk [vmem:[#allocation3] sm:$0xf] %vm5432, 0
        %5434 = vst.msk [vmem:[#allocation3 + $0x4] sm:$0xf] %vm5432, 0
        %5435 = vst.msk [vmem:[#allocation3 + $0x8] sm:$0xf] %vm5432, 0
        %5436 = vst.msk [vmem:[#allocation3 + $0xc0] sm:$0xf] %vm5432, 0
        %5437 = vst.msk [vmem:[#allocation3 + $0xc4] sm:$0xf] %vm5432, 0
        %5438 = vst.msk [vmem:[#allocation3 + $0xc8] sm:$0xf] %vm5432, 0
        %v5439 = vmul.f32 %v5387, %v2582
        %v5440 = vmul.f32 %v5388, %v2587
        %v5441 = vmul.f32 %v5389, %v2592
        %v5442 = vmul.f32 %v5390, %v2597
        %v5443 = vmul.f32 %v5391, %v2602
        %v5444 = vmul.f32 %v5392, %v2607
        %v5445 = vmul.f32 %v5393, %v2612
        %v5446 = vmul.f32 %v5394, %v2617
        %v5447 = vmul.f32 %v5395, %v2622
        %v5448 = vmul.f32 %v5396, %v2627
        %v5449 = vmul.f32 %v5397, %v2632
        %v5450 = vmul.f32 %v5398, %v2637
        %v5451 = vmul.f32 %v5399, %v2642
        %v5452 = vmul.f32 %v5400, %v2647
        %v5453 = vmul.f32 %v5401, %v2652
        %v5454 = vmul.f32 %v5402, %v2657
        %v5455 = vmul.f32 %v5403, %v2662
        %v5456 = vmul.f32 %v5404, %v2667
        %v5457 = vmul.f32 %v5405, %v2672
        %v5458 = vmul.f32 %v5406, %v2677
        %v5459 = vmul.f32 %v5407, %v2682
        %v5460 = vmul.f32 %v5408, %v2687
        %v5461 = vmul.f32 %v5409, %v2692
        %v5462 = vmul.f32 %v5410, %v2697
        %v5463 = vmul.f32 %v5411, %v2702
        %v5464 = vmul.f32 %v5412, %v2707
        %v5465 = vmul.f32 %v5413, %v2712
        %v5466 = vmul.f32 %v5414, %v2717
        %v5467 = vmul.f32 %v5415, %v2722
        %v5468 = vmul.f32 %v5416, %v2727
        %v5469 = vmul.f32 %v5417, %v2732
        %v5470 = vmul.f32 %v5418, %v2737
        %v5471 = vmul.f32 %v5419, %v2742
        %v5472 = vmul.f32 %v5420, %v2747
        %v5473 = vmul.f32 %v5421, %v2752
        %v5474 = vmul.f32 %v5422, %v2757
        %v5475 = vmul.f32 %v5423, %v2762
        %v5476 = vmul.f32 %v5424, %v2767
        %v5477 = vmul.f32 %v5425, %v2772
        %v5478 = vmul.f32 %v5426, %v2777
        %v5479 = vmul.f32 %v5427, %v2782
        %v5480 = vmul.f32 %v5428, %v2787
        %v5481 = vmul.f32 %v5429, %v2792
        %v5482 = vmul.f32 %v5430, %v2797
        %v5483 = vmul.f32 %v5431, %v2802
        %v5484 = vpack.c.bf16 %v5440, %v5439
        %v5485 = vpack.c.bf16 %v5442, %v5441
        %v5486 = vpack.c.bf16 %v5444, %v5443
        %v5487 = vpack.c.bf16 %v5446, %v5445
        %v5488 = vpack.c.bf16 %v5448, %v5447
        %v5489 = vpack.c.bf16 %v5450, %v5449
        %v5490 = vpack.c.bf16 %v5452, %v5451
        %v5491 = vpack.c.bf16 %v5454, %v5453
        %v5492 = vpack.c.bf16 %v5456, %v5455
        %v5493 = vpack.c.bf16 %v5458, %v5457
        %v5494 = vpack.c.bf16 %v5460, %v5459
        %v5495 = vpack.c.bf16 %v5462, %v5461
        %v5496 = vpack.c.bf16 %v5464, %v5463
        %v5497 = vpack.c.bf16 %v5466, %v5465
        %v5498 = vpack.c.bf16 %v5468, %v5467
        %v5499 = vpack.c.bf16 %v5470, %v5469
        %v5500 = vpack.c.bf16 %v5472, %v5471
        %v5501 = vpack.c.bf16 %v5474, %v5473
        %v5502 = vpack.c.bf16 %v5476, %v5475
        %v5503 = vpack.c.bf16 %v5478, %v5477
        %v5504 = vpack.c.bf16 %v5480, %v5479
        %v5505 = vpack.c.bf16 %v5482, %v5481
        %v5506 = vpack.c.bf16 %v5483, %v5483
        %v5530 = vunpack.c.l.b16 %v5484
        %v5531 = vunpack.c.h.b16 %v5484
        %v5532 = vunpack.c.l.b16 %v5485
        %v5533 = vunpack.c.h.b16 %v5485
        %v5534 = vunpack.c.l.b16 %v5486
        %v5535 = vunpack.c.h.b16 %v5486
        %v5536 = vunpack.c.l.b16 %v5487
        %v5537 = vunpack.c.h.b16 %v5487
        %v5538 = vunpack.c.l.b16 %v5488
        %v5539 = vunpack.c.h.b16 %v5488
        %v5540 = vunpack.c.l.b16 %v5489
        %v5541 = vunpack.c.h.b16 %v5489
        %v5542 = vunpack.c.l.b16 %v5490
        %v5543 = vunpack.c.h.b16 %v5490
        %v5544 = vunpack.c.l.b16 %v5491
        %v5545 = vunpack.c.h.b16 %v5491
        %v5546 = vunpack.c.l.b16 %v5492
        %v5547 = vunpack.c.h.b16 %v5492
        %v5548 = vunpack.c.l.b16 %v5493
        %v5549 = vunpack.c.h.b16 %v5493
        %v5550 = vunpack.c.l.b16 %v5494
        %v5551 = vunpack.c.h.b16 %v5494
        %v5552 = vunpack.c.l.b16 %v5495
        %v5553 = vunpack.c.h.b16 %v5495
        %v5554 = vunpack.c.l.b16 %v5496
        %v5555 = vunpack.c.h.b16 %v5496
        %v5556 = vunpack.c.l.b16 %v5497
        %v5557 = vunpack.c.h.b16 %v5497
        %v5558 = vunpack.c.l.b16 %v5498
        %v5559 = vunpack.c.h.b16 %v5498
        %v5560 = vunpack.c.l.b16 %v5499
        %v5561 = vunpack.c.h.b16 %v5499
        %v5562 = vunpack.c.l.b16 %v5500
        %v5563 = vunpack.c.h.b16 %v5500
        %v5564 = vunpack.c.l.b16 %v5501
        %v5565 = vunpack.c.h.b16 %v5501
        %v5566 = vunpack.c.l.b16 %v5502
        %v5567 = vunpack.c.h.b16 %v5502
        %v5568 = vunpack.c.l.b16 %v5503
        %v5569 = vunpack.c.h.b16 %v5503
        %v5570 = vunpack.c.l.b16 %v5504
        %v5571 = vunpack.c.h.b16 %v5504
        %v5572 = vunpack.c.l.b16 %v5505
        %v5573 = vunpack.c.h.b16 %v5505
        %v5574 = vunpack.c.l.b16 %v5506
        %v5575 = vpack.c.b16 %v5530, %v5530
        %v5576 = vpack.c.b16 %v5531, %v5531
        %v5577 = vpack.c.b16 %v5532, %v5532
        %v5578 = vpack.c.b16 %v5533, %v5533
        %v5579 = vpack.c.b16 %v5534, %v5534
        %v5580 = vpack.c.b16 %v5535, %v5535
        %v5581 = vpack.c.b16 %v5536, %v5536
        %v5582 = vpack.c.b16 %v5537, %v5537
        %v5583 = vpack.c.b16 %v5538, %v5538
        %v5584 = vpack.c.b16 %v5539, %v5539
        %v5585 = vpack.c.b16 %v5540, %v5540
        %v5586 = vpack.c.b16 %v5541, %v5541
        %v5587 = vpack.c.b16 %v5542, %v5542
        %v5588 = vpack.c.b16 %v5543, %v5543
        %v5589 = vpack.c.b16 %v5544, %v5544
        %v5590 = vpack.c.b16 %v5545, %v5545
        %v5591 = vpack.c.b16 %v5546, %v5546
        %v5592 = vpack.c.b16 %v5547, %v5547
        %v5593 = vpack.c.b16 %v5548, %v5548
        %v5594 = vpack.c.b16 %v5549, %v5549
        %v5595 = vpack.c.b16 %v5550, %v5550
        %v5596 = vpack.c.b16 %v5551, %v5551
        %v5597 = vpack.c.b16 %v5552, %v5552
        %v5598 = vpack.c.b16 %v5553, %v5553
        %v5599 = vpack.c.b16 %v5554, %v5554
        %v5600 = vpack.c.b16 %v5555, %v5555
        %v5601 = vpack.c.b16 %v5556, %v5556
        %v5602 = vpack.c.b16 %v5557, %v5557
        %v5603 = vpack.c.b16 %v5558, %v5558
        %v5604 = vpack.c.b16 %v5559, %v5559
        %v5605 = vpack.c.b16 %v5560, %v5560
        %v5606 = vpack.c.b16 %v5561, %v5561
        %v5607 = vpack.c.b16 %v5562, %v5562
        %v5608 = vpack.c.b16 %v5563, %v5563
        %v5609 = vpack.c.b16 %v5564, %v5564
        %v5610 = vpack.c.b16 %v5565, %v5565
        %v5611 = vpack.c.b16 %v5566, %v5566
        %v5612 = vpack.c.b16 %v5567, %v5567
        %v5613 = vpack.c.b16 %v5568, %v5568
        %v5614 = vpack.c.b16 %v5569, %v5569
        %v5615 = vpack.c.b16 %v5570, %v5570
        %v5616 = vpack.c.b16 %v5571, %v5571
        %v5617 = vpack.c.b16 %v5572, %v5572
        %v5618 = vpack.c.b16 %v5573, %v5573
        %v5619 = vpack.c.b16 %v5574, %v5574
        %5665 = vst.msk [vmem:[#allocation3 + $0xc] sm:$0xf] %vm5432, %v5575
        %5666 = vst.msk [vmem:[#allocation3 + $0x10] sm:$0xf] %vm5432, %v5576
        %5667 = vst.msk [vmem:[#allocation3 + $0x14] sm:$0xf] %vm5432, %v5577
        %5668 = vst.msk [vmem:[#allocation3 + $0x18] sm:$0xf] %vm5432, %v5578
        %5669 = vst.msk [vmem:[#allocation3 + $0x1c] sm:$0xf] %vm5432, %v5579
        %5670 = vst.msk [vmem:[#allocation3 + $0x20] sm:$0xf] %vm5432, %v5580
        %5671 = vst.msk [vmem:[#allocation3 + $0x24] sm:$0xf] %vm5432, %v5581
        %5672 = vst.msk [vmem:[#allocation3 + $0x28] sm:$0xf] %vm5432, %v5582
        %5673 = vst.msk [vmem:[#allocation3 + $0x2c] sm:$0xf] %vm5432, %v5583
        %5674 = vst.msk [vmem:[#allocation3 + $0x30] sm:$0xf] %vm5432, %v5584
        %5675 = vst.msk [vmem:[#allocation3 + $0x34] sm:$0xf] %vm5432, %v5585
        %5676 = vst.msk [vmem:[#allocation3 + $0x38] sm:$0xf] %vm5432, %v5586
        %5677 = vst.msk [vmem:[#allocation3 + $0x3c] sm:$0xf] %vm5432, %v5587
        %5678 = vst.msk [vmem:[#allocation3 + $0x40] sm:$0xf] %vm5432, %v5588
        %5679 = vst.msk [vmem:[#allocation3 + $0x44] sm:$0xf] %vm5432, %v5589
        %5680 = vst.msk [vmem:[#allocation3 + $0x48] sm:$0xf] %vm5432, %v5590
        %5681 = vst.msk [vmem:[#allocation3 + $0x4c] sm:$0xf] %vm5432, %v5591
        %5682 = vst.msk [vmem:[#allocation3 + $0x50] sm:$0xf] %vm5432, %v5592
        %5683 = vst.msk [vmem:[#allocation3 + $0x54] sm:$0xf] %vm5432, %v5593
        %5684 = vst.msk [vmem:[#allocation3 + $0x58] sm:$0xf] %vm5432, %v5594
        %5685 = vst.msk [vmem:[#allocation3 + $0x5c] sm:$0xf] %vm5432, %v5595
        %5686 = vst.msk [vmem:[#allocation3 + $0x60] sm:$0xf] %vm5432, %v5596
        %5687 = vst.msk [vmem:[#allocation3 + $0x64] sm:$0xf] %vm5432, %v5597
        %5688 = vst.msk [vmem:[#allocation3 + $0x68] sm:$0xf] %vm5432, %v5598
        %5689 = vst.msk [vmem:[#allocation3 + $0x6c] sm:$0xf] %vm5432, %v5599
        %5690 = vst.msk [vmem:[#allocation3 + $0x70] sm:$0xf] %vm5432, %v5600
        %5691 = vst.msk [vmem:[#allocation3 + $0x74] sm:$0xf] %vm5432, %v5601
        %5692 = vst.msk [vmem:[#allocation3 + $0x78] sm:$0xf] %vm5432, %v5602
        %5693 = vst.msk [vmem:[#allocation3 + $0x7c] sm:$0xf] %vm5432, %v5603
        %5694 = vst.msk [vmem:[#allocation3 + $0x80] sm:$0xf] %vm5432, %v5604
        %5695 = vst.msk [vmem:[#allocation3 + $0x84] sm:$0xf] %vm5432, %v5605
        %5696 = vst.msk [vmem:[#allocation3 + $0x88] sm:$0xf] %vm5432, %v5606
        %5697 = vst.msk [vmem:[#allocation3 + $0x8c] sm:$0xf] %vm5432, %v5607
        %5698 = vst.msk [vmem:[#allocation3 + $0x90] sm:$0xf] %vm5432, %v5608
        %5699 = vst.msk [vmem:[#allocation3 + $0x94] sm:$0xf] %vm5432, %v5609
        %5700 = vst.msk [vmem:[#allocation3 + $0x98] sm:$0xf] %vm5432, %v5610
        %5701 = vst.msk [vmem:[#allocation3 + $0x9c] sm:$0xf] %vm5432, %v5611
        %5702 = vst.msk [vmem:[#allocation3 + $0xa0] sm:$0xf] %vm5432, %v5612
        %5703 = vst.msk [vmem:[#allocation3 + $0xa4] sm:$0xf] %vm5432, %v5613
        %5704 = vst.msk [vmem:[#allocation3 + $0xa8] sm:$0xf] %vm5432, %v5614
        %5705 = vst.msk [vmem:[#allocation3 + $0xac] sm:$0xf] %vm5432, %v5615
        %5706 = vst.msk [vmem:[#allocation3 + $0xb0] sm:$0xf] %vm5432, %v5616
        %5707 = vst.msk [vmem:[#allocation3 + $0xb4] sm:$0xf] %vm5432, %v5617
        %5708 = vst.msk [vmem:[#allocation3 + $0xb8] sm:$0xf] %vm5432, %v5618
        %5709 = vst.msk [vmem:[#allocation3 + $0xbc] sm:$0xf] %vm5432, %v5619
        %v5710 = vld [vmem:[#allocation3] sm:$0xe]
        %v5711 = vld [vmem:[#allocation3 + $0x4] sm:$0xf]
        %v5712 = vld [vmem:[#allocation3 + $0x8] sm:$0xf]
        %v5713 = vld [vmem:[#allocation3 + $0xc] sm:$0xf]
        %v5714 = vld [vmem:[#allocation3 + $0x10] sm:$0xf]
        %v5715 = vld [vmem:[#allocation3 + $0x14] sm:$0xf]
        %v5716 = vld [vmem:[#allocation3 + $0x18] sm:$0xf]
        %v5717 = vld [vmem:[#allocation3 + $0x1c] sm:$0xf]
        %v5718 = vld [vmem:[#allocation3 + $0x20] sm:$0xf]
        %v5719 = vld [vmem:[#allocation3 + $0x24] sm:$0xf]
        %v5720 = vld [vmem:[#allocation3 + $0x28] sm:$0xf]
        %v5721 = vld [vmem:[#allocation3 + $0x2c] sm:$0xf]
        %v5722 = vld [vmem:[#allocation3 + $0x30] sm:$0xf]
        %v5723 = vld [vmem:[#allocation3 + $0x34] sm:$0xf]
        %v5724 = vld [vmem:[#allocation3 + $0x38] sm:$0xf]
        %v5725 = vld [vmem:[#allocation3 + $0x3c] sm:$0xf]
        %v5726 = vld [vmem:[#allocation3 + $0x40] sm:$0xf]
        %v5727 = vld [vmem:[#allocation3 + $0x44] sm:$0xf]
        %v5728 = vld [vmem:[#allocation3 + $0x48] sm:$0xf]
        %v5729 = vld [vmem:[#allocation3 + $0x4c] sm:$0xf]
        %v5730 = vld [vmem:[#allocation3 + $0x50] sm:$0xf]
        %v5731 = vld [vmem:[#allocation3 + $0x54] sm:$0xf]
        %v5732 = vld [vmem:[#allocation3 + $0x58] sm:$0xf]
        %v5733 = vld [vmem:[#allocation3 + $0x5c] sm:$0xf]
        %v5734 = vld [vmem:[#allocation3 + $0x60] sm:$0xf]
        %v5735 = vld [vmem:[#allocation3 + $0x64] sm:$0xf]
        %v5736 = vld [vmem:[#allocation3 + $0x68] sm:$0xf]
        %v5737 = vld [vmem:[#allocation3 + $0x6c] sm:$0xf]
        %v5738 = vld [vmem:[#allocation3 + $0x70] sm:$0xf]
        %v5739 = vld [vmem:[#allocation3 + $0x74] sm:$0xf]
        %v5740 = vld [vmem:[#allocation3 + $0x78] sm:$0xf]
        %v5741 = vld [vmem:[#allocation3 + $0x7c] sm:$0xf]
        %v5742 = vld [vmem:[#allocation3 + $0x80] sm:$0xf]
        %v5743 = vld [vmem:[#allocation3 + $0x84] sm:$0xf]
        %v5744 = vld [vmem:[#allocation3 + $0x88] sm:$0xf]
        %v5745 = vld [vmem:[#allocation3 + $0x8c] sm:$0xf]
        %v5746 = vld [vmem:[#allocation3 + $0x90] sm:$0xf]
        %v5747 = vld [vmem:[#allocation3 + $0x94] sm:$0xf]
        %v5748 = vld [vmem:[#allocation3 + $0x98] sm:$0xf]
        %v5749 = vld [vmem:[#allocation3 + $0x9c] sm:$0xf]
        %v5750 = vld [vmem:[#allocation3 + $0xa0] sm:$0xf]
        %v5751 = vld [vmem:[#allocation3 + $0xa4] sm:$0xf]
        %v5752 = vld [vmem:[#allocation3 + $0xa8] sm:$0xf]
        %v5753 = vld [vmem:[#allocation3 + $0xac] sm:$0xf]
        %v5754 = vld [vmem:[#allocation3 + $0xb0] sm:$0xf]
        %v5755 = vld [vmem:[#allocation3 + $0xb4] sm:$0x3]
        %v5756 = vld [vmem:[#allocation3] sm:$0xc]
        %v5757 = vld [vmem:[#allocation3 + $0xb4] sm:$0x7]
        %v5758 = vld [vmem:[#allocation3 + $0x8] sm:$0x8]
        %v5759 = vld [vmem:[#allocation3 + $0xb4] sm:$0xf]
        %v5760 = vld [vmem:[#allocation3 + $0xb8] sm:$0xf]
        %v5761 = vld [vmem:[#allocation3 + $0xbc] sm:$0xf]
        %v5762 = vld [vmem:[#allocation3 + $0xc0] sm:$0x1]
        %v5763 = vld [vmem:[#allocation3 + $0x14] sm:$0xe]
        %v5764 = vld [vmem:[#allocation3 + $0xc0] sm:$0xf]
        %v5765 = vld [vmem:[#allocation3 + $0xc4] sm:$0xf]
        %v5766 = vld [vmem:[#allocation3 + $0xc8] sm:$0x3]
        %v5767 = vld [vmem:[#allocation3 + $0x14] sm:$0xc]
        %v5768 = vld [vmem:[#allocation3 + $0xc8] sm:$0x7]
        %v5815 = vunpack.c.l.b16 %v5710
        %v5816 = vunpack.c.l.b16 %v5711
        %v5817 = vunpack.c.l.b16 %v5712
        %v5818 = vunpack.c.l.b16 %v5713
        %v5819 = vunpack.c.l.b16 %v5714
        %v5820 = vunpack.c.l.b16 %v5715
        %v5821 = vunpack.c.l.b16 %v5716
        %v5822 = vunpack.c.l.b16 %v5717
        %v5823 = vunpack.c.l.b16 %v5718
        %v5824 = vunpack.c.l.b16 %v5719
        %v5825 = vunpack.c.l.b16 %v5720
        %v5826 = vunpack.c.l.b16 %v5721
        %v5827 = vunpack.c.l.b16 %v5722
        %v5828 = vunpack.c.l.b16 %v5723
        %v5829 = vunpack.c.l.b16 %v5724
        %v5830 = vunpack.c.l.b16 %v5725
        %v5831 = vunpack.c.l.b16 %v5726
        %v5832 = vunpack.c.l.b16 %v5727
        %v5833 = vunpack.c.l.b16 %v5728
        %v5834 = vunpack.c.l.b16 %v5729
        %v5835 = vunpack.c.l.b16 %v5730
        %v5836 = vunpack.c.l.b16 %v5731
        %v5837 = vunpack.c.l.b16 %v5732
        %v5838 = vunpack.c.l.b16 %v5733
        %v5839 = vunpack.c.l.b16 %v5734
        %v5840 = vunpack.c.l.b16 %v5735
        %v5841 = vunpack.c.l.b16 %v5736
        %v5842 = vunpack.c.l.b16 %v5737
        %v5843 = vunpack.c.l.b16 %v5738
        %v5844 = vunpack.c.l.b16 %v5739
        %v5845 = vunpack.c.l.b16 %v5740
        %v5846 = vunpack.c.l.b16 %v5741
        %v5847 = vunpack.c.l.b16 %v5742
        %v5848 = vunpack.c.l.b16 %v5743
        %v5849 = vunpack.c.l.b16 %v5744
        %v5850 = vunpack.c.l.b16 %v5745
        %v5851 = vunpack.c.l.b16 %v5746
        %v5852 = vunpack.c.l.b16 %v5747
        %v5853 = vunpack.c.l.b16 %v5748
        %v5854 = vunpack.c.l.b16 %v5749
        %v5855 = vunpack.c.l.b16 %v5750
        %v5856 = vunpack.c.l.b16 %v5751
        %v5857 = vunpack.c.l.b16 %v5752
        %v5858 = vunpack.c.l.b16 %v5753
        %v5859 = vunpack.c.l.b16 %v5754
        %v5860 = vunpack.c.l.b16 %v5755
        %v5861 = vpack.c.b16 %v5816, %v5815
        %v5862 = vpack.c.b16 %v5818, %v5817
        %v5863 = vpack.c.b16 %v5820, %v5819
        %v5864 = vpack.c.b16 %v5822, %v5821
        %v5865 = vpack.c.b16 %v5824, %v5823
        %v5866 = vpack.c.b16 %v5826, %v5825
        %v5867 = vpack.c.b16 %v5828, %v5827
        %v5868 = vpack.c.b16 %v5830, %v5829
        %v5869 = vpack.c.b16 %v5832, %v5831
        %v5870 = vpack.c.b16 %v5834, %v5833
        %v5871 = vpack.c.b16 %v5836, %v5835
        %v5872 = vpack.c.b16 %v5838, %v5837
        %v5873 = vpack.c.b16 %v5840, %v5839
        %v5874 = vpack.c.b16 %v5842, %v5841
        %v5875 = vpack.c.b16 %v5844, %v5843
        %v5876 = vpack.c.b16 %v5846, %v5845
        %v5877 = vpack.c.b16 %v5848, %v5847
        %v5878 = vpack.c.b16 %v5850, %v5849
        %v5879 = vpack.c.b16 %v5852, %v5851
        %v5880 = vpack.c.b16 %v5854, %v5853
        %v5881 = vpack.c.b16 %v5856, %v5855
        %v5882 = vpack.c.b16 %v5858, %v5857
        %v5883 = vpack.c.b16 %v5860, %v5859
        %v5885 = vunpack.c.l.b16 %v5756
        %v5886 = vpack.c.b16 %v5816, %v5885
        %v5888 = vshrl.u32 %v5886, 16
        %v5890 = vshll.u32 %v5886, 16
        %v5892 = vrot.slane %v5890, 1
        %v5893 = vor.u32 %v5888, %v5892
        %v5895 = vshll.u32 %v5862, 16
        %v5897 = vrot.slane %v5895, 1
        %v5898 = vsel %vm567, %v5893, %v5897
        %v5899 = vshrl.u32 %v5862, 16
        %v5901 = vor.u32 %v5899, %v5897
        %v5903 = vshll.u32 %v5863, 16
        %v5905 = vrot.slane %v5903, 1
        %v5906 = vsel %vm567, %v5901, %v5905
        %v5907 = vshrl.u32 %v5863, 16
        %v5909 = vor.u32 %v5907, %v5905
        %v5911 = vshll.u32 %v5864, 16
        %v5913 = vrot.slane %v5911, 1
        %v5914 = vsel %vm567, %v5909, %v5913
        %v5915 = vshrl.u32 %v5864, 16
        %v5917 = vor.u32 %v5915, %v5913
        %v5919 = vshll.u32 %v5865, 16
        %v5921 = vrot.slane %v5919, 1
        %v5922 = vsel %vm567, %v5917, %v5921
        %v5923 = vshrl.u32 %v5865, 16
        %v5925 = vor.u32 %v5923, %v5921
        %v5927 = vshll.u32 %v5866, 16
        %v5929 = vrot.slane %v5927, 1
        %v5930 = vsel %vm567, %v5925, %v5929
        %v5931 = vshrl.u32 %v5866, 16
        %v5933 = vor.u32 %v5931, %v5929
        %v5935 = vshll.u32 %v5867, 16
        %v5937 = vrot.slane %v5935, 1
        %v5938 = vsel %vm567, %v5933, %v5937
        %v5939 = vshrl.u32 %v5867, 16
        %v5941 = vor.u32 %v5939, %v5937
        %v5943 = vshll.u32 %v5868, 16
        %v5945 = vrot.slane %v5943, 1
        %v5946 = vsel %vm567, %v5941, %v5945
        %v5947 = vshrl.u32 %v5868, 16
        %v5949 = vor.u32 %v5947, %v5945
        %v5951 = vshll.u32 %v5869, 16
        %v5953 = vrot.slane %v5951, 1
        %v5954 = vsel %vm567, %v5949, %v5953
        %v5955 = vshrl.u32 %v5869, 16
        %v5957 = vor.u32 %v5955, %v5953
        %v5959 = vshll.u32 %v5870, 16
        %v5961 = vrot.slane %v5959, 1
        %v5962 = vsel %vm567, %v5957, %v5961
        %v5963 = vshrl.u32 %v5870, 16
        %v5965 = vor.u32 %v5963, %v5961
        %v5967 = vshll.u32 %v5871, 16
        %v5969 = vrot.slane %v5967, 1
        %v5970 = vsel %vm567, %v5965, %v5969
        %v5971 = vshrl.u32 %v5871, 16
        %v5973 = vor.u32 %v5971, %v5969
        %v5975 = vshll.u32 %v5872, 16
        %v5977 = vrot.slane %v5975, 1
        %v5978 = vsel %vm567, %v5973, %v5977
        %v5979 = vshrl.u32 %v5872, 16
        %v5981 = vor.u32 %v5979, %v5977
        %v5983 = vshll.u32 %v5873, 16
        %v5985 = vrot.slane %v5983, 1
        %v5986 = vsel %vm567, %v5981, %v5985
        %v5987 = vshrl.u32 %v5873, 16
        %v5989 = vor.u32 %v5987, %v5985
        %v5991 = vshll.u32 %v5874, 16
        %v5993 = vrot.slane %v5991, 1
        %v5994 = vsel %vm567, %v5989, %v5993
        %v5995 = vshrl.u32 %v5874, 16
        %v5997 = vor.u32 %v5995, %v5993
        %v5999 = vshll.u32 %v5875, 16
        %v6001 = vrot.slane %v5999, 1
        %v6002 = vsel %vm567, %v5997, %v6001
        %v6003 = vshrl.u32 %v5875, 16
        %v6005 = vor.u32 %v6003, %v6001
        %v6007 = vshll.u32 %v5876, 16
        %v6009 = vrot.slane %v6007, 1
        %v6010 = vsel %vm567, %v6005, %v6009
        %v6011 = vshrl.u32 %v5876, 16
        %v6013 = vor.u32 %v6011, %v6009
        %v6015 = vshll.u32 %v5877, 16
        %v6017 = vrot.slane %v6015, 1
        %v6018 = vsel %vm567, %v6013, %v6017
        %v6019 = vshrl.u32 %v5877, 16
        %v6021 = vor.u32 %v6019, %v6017
        %v6023 = vshll.u32 %v5878, 16
        %v6025 = vrot.slane %v6023, 1
        %v6026 = vsel %vm567, %v6021, %v6025
        %v6027 = vshrl.u32 %v5878, 16
        %v6029 = vor.u32 %v6027, %v6025
        %v6031 = vshll.u32 %v5879, 16
        %v6033 = vrot.slane %v6031, 1
        %v6034 = vsel %vm567, %v6029, %v6033
        %v6035 = vshrl.u32 %v5879, 16
        %v6037 = vor.u32 %v6035, %v6033
        %v6039 = vshll.u32 %v5880, 16
        %v6041 = vrot.slane %v6039, 1
        %v6042 = vsel %vm567, %v6037, %v6041
        %v6043 = vshrl.u32 %v5880, 16
        %v6045 = vor.u32 %v6043, %v6041
        %v6047 = vshll.u32 %v5881, 16
        %v6049 = vrot.slane %v6047, 1
        %v6050 = vsel %vm567, %v6045, %v6049
        %v6051 = vshrl.u32 %v5881, 16
        %v6053 = vor.u32 %v6051, %v6049
        %v6055 = vshll.u32 %v5882, 16
        %v6057 = vrot.slane %v6055, 1
        %v6058 = vsel %vm567, %v6053, %v6057
        %v6059 = vshrl.u32 %v5882, 16
        %v6061 = vor.u32 %v6059, %v6057
        %v6063 = vshll.u32 %v5883, 16
        %v6065 = vrot.slane %v6063, 1
        %v6066 = vsel %vm567, %v6061, %v6065
        %v6067 = vshrl.u32 %v5883, 16
        %v6069 = vor.u32 %v6067, %v6065
        %6070 = vrot.lane.b32.xlu0 %v5898, 32
        %v6071 = vpop.permute.xlu0 %6070
        %6072 = vrot.lane.b32.xlu0 %v5906, 32
        %v6073 = vpop.permute.xlu0 %6072
        %6074 = vrot.lane.b32.xlu0 %v5914, 32
        %v6075 = vpop.permute.xlu0 %6074
        %6076 = vrot.lane.b32.xlu0 %v5922, 32
        %v6077 = vpop.permute.xlu0 %6076
        %6078 = vrot.lane.b32.xlu0 %v5930, 32
        %v6079 = vpop.permute.xlu0 %6078
        %6080 = vrot.lane.b32.xlu0 %v5938, 32
        %v6081 = vpop.permute.xlu0 %6080
        %6082 = vrot.lane.b32.xlu0 %v5946, 32
        %v6083 = vpop.permute.xlu0 %6082
        %6084 = vrot.lane.b32.xlu0 %v5954, 32
        %v6085 = vpop.permute.xlu0 %6084
        %6086 = vrot.lane.b32.xlu0 %v5962, 32
        %v6087 = vpop.permute.xlu0 %6086
        %6088 = vrot.lane.b32.xlu0 %v5970, 32
        %v6089 = vpop.permute.xlu0 %6088
        %6090 = vrot.lane.b32.xlu0 %v5978, 32
        %v6091 = vpop.permute.xlu0 %6090
        %6092 = vrot.lane.b32.xlu0 %v5986, 32
        %v6093 = vpop.permute.xlu0 %6092
        %6094 = vrot.lane.b32.xlu0 %v5994, 32
        %v6095 = vpop.permute.xlu0 %6094
        %6096 = vrot.lane.b32.xlu0 %v6002, 32
        %v6097 = vpop.permute.xlu0 %6096
        %6098 = vrot.lane.b32.xlu0 %v6010, 32
        %v6099 = vpop.permute.xlu0 %6098
        %6100 = vrot.lane.b32.xlu0 %v6018, 32
        %v6101 = vpop.permute.xlu0 %6100
        %6102 = vrot.lane.b32.xlu0 %v6026, 32
        %v6103 = vpop.permute.xlu0 %6102
        %6104 = vrot.lane.b32.xlu0 %v6034, 32
        %v6105 = vpop.permute.xlu0 %6104
        %6106 = vrot.lane.b32.xlu0 %v6042, 32
        %v6107 = vpop.permute.xlu0 %6106
        %6108 = vrot.lane.b32.xlu0 %v6050, 32
        %v6109 = vpop.permute.xlu0 %6108
        %6110 = vrot.lane.b32.xlu0 %v6058, 32
        %v6111 = vpop.permute.xlu0 %6110
        %6112 = vrot.lane.b32.xlu0 %v6066, 32
        %v6113 = vpop.permute.xlu0 %6112
        %6114 = vrot.lane.b32.xlu0 %v6069, 32
        %v6115 = vpop.permute.xlu0 %6114
        %v6117 = vunpack.c.l.b16 %v5757
        %v6118 = vpack.c.b16 %v6117, %v5859
        %v6119 = vrot.slane %v5886, 1
        %v6120 = vrot.slane %v5862, 1
        %v6121 = vsel %vm800, %v6119, %v6120
        %v6122 = vrot.slane %v5863, 1
        %v6123 = vsel %vm800, %v6120, %v6122
        %v6124 = vrot.slane %v5864, 1
        %v6125 = vsel %vm800, %v6122, %v6124
        %v6126 = vrot.slane %v5865, 1
        %v6127 = vsel %vm800, %v6124, %v6126
        %v6128 = vrot.slane %v5866, 1
        %v6129 = vsel %vm800, %v6126, %v6128
        %v6130 = vrot.slane %v5867, 1
        %v6131 = vsel %vm800, %v6128, %v6130
        %v6132 = vrot.slane %v5868, 1
        %v6133 = vsel %vm800, %v6130, %v6132
        %v6134 = vrot.slane %v5869, 1
        %v6135 = vsel %vm800, %v6132, %v6134
        %v6136 = vrot.slane %v5870, 1
        %v6137 = vsel %vm800, %v6134, %v6136
        %v6138 = vrot.slane %v5871, 1
        %v6139 = vsel %vm800, %v6136, %v6138
        %v6140 = vrot.slane %v5872, 1
        %v6141 = vsel %vm800, %v6138, %v6140
        %v6142 = vrot.slane %v5873, 1
        %v6143 = vsel %vm800, %v6140, %v6142
        %v6144 = vrot.slane %v5874, 1
        %v6145 = vsel %vm800, %v6142, %v6144
        %v6146 = vrot.slane %v5875, 1
        %v6147 = vsel %vm800, %v6144, %v6146
        %v6148 = vrot.slane %v5876, 1
        %v6149 = vsel %vm800, %v6146, %v6148
        %v6150 = vrot.slane %v5877, 1
        %v6151 = vsel %vm800, %v6148, %v6150
        %v6152 = vrot.slane %v5878, 1
        %v6153 = vsel %vm800, %v6150, %v6152
        %v6154 = vrot.slane %v5879, 1
        %v6155 = vsel %vm800, %v6152, %v6154
        %v6156 = vrot.slane %v5880, 1
        %v6157 = vsel %vm800, %v6154, %v6156
        %v6158 = vrot.slane %v5881, 1
        %v6159 = vsel %vm800, %v6156, %v6158
        %v6160 = vrot.slane %v5882, 1
        %v6161 = vsel %vm800, %v6158, %v6160
        %v6162 = vrot.slane %v6118, 1
        %v6163 = vsel %vm800, %v6160, %v6162
        %6164 = vrot.lane.b32.xlu0 %v6121, 64
        %v6165 = vpop.permute.xlu0 %6164
        %6166 = vrot.lane.b32.xlu0 %v6123, 64
        %v6167 = vpop.permute.xlu0 %6166
        %6168 = vrot.lane.b32.xlu0 %v6125, 64
        %v6169 = vpop.permute.xlu0 %6168
        %6170 = vrot.lane.b32.xlu0 %v6127, 64
        %v6171 = vpop.permute.xlu0 %6170
        %6172 = vrot.lane.b32.xlu0 %v6129, 64
        %v6173 = vpop.permute.xlu0 %6172
        %6174 = vrot.lane.b32.xlu0 %v6131, 64
        %v6175 = vpop.permute.xlu0 %6174
        %6176 = vrot.lane.b32.xlu0 %v6133, 64
        %v6177 = vpop.permute.xlu0 %6176
        %6178 = vrot.lane.b32.xlu0 %v6135, 64
        %v6179 = vpop.permute.xlu0 %6178
        %6180 = vrot.lane.b32.xlu0 %v6137, 64
        %v6181 = vpop.permute.xlu0 %6180
        %6182 = vrot.lane.b32.xlu0 %v6139, 64
        %v6183 = vpop.permute.xlu0 %6182
        %6184 = vrot.lane.b32.xlu0 %v6141, 64
        %v6185 = vpop.permute.xlu0 %6184
        %6186 = vrot.lane.b32.xlu0 %v6143, 64
        %v6187 = vpop.permute.xlu0 %6186
        %6188 = vrot.lane.b32.xlu0 %v6145, 64
        %v6189 = vpop.permute.xlu0 %6188
        %6190 = vrot.lane.b32.xlu0 %v6147, 64
        %v6191 = vpop.permute.xlu0 %6190
        %6192 = vrot.lane.b32.xlu0 %v6149, 64
        %v6193 = vpop.permute.xlu0 %6192
        %6194 = vrot.lane.b32.xlu0 %v6151, 64
        %v6195 = vpop.permute.xlu0 %6194
        %6196 = vrot.lane.b32.xlu0 %v6153, 64
        %v6197 = vpop.permute.xlu0 %6196
        %6198 = vrot.lane.b32.xlu0 %v6155, 64
        %v6199 = vpop.permute.xlu0 %6198
        %6200 = vrot.lane.b32.xlu0 %v6157, 64
        %v6201 = vpop.permute.xlu0 %6200
        %6202 = vrot.lane.b32.xlu0 %v6159, 64
        %v6203 = vpop.permute.xlu0 %6202
        %6204 = vrot.lane.b32.xlu0 %v6161, 64
        %v6205 = vpop.permute.xlu0 %6204
        %6206 = vrot.lane.b32.xlu0 %v6163, 64
        %v6207 = vpop.permute.xlu0 %6206
        %6208 = vrot.lane.b32.xlu0 %v6162, 64
        %v6209 = vpop.permute.xlu0 %6208
        %v6214 = vunpack.c.l.b16 %v5758
        %v6215 = vunpack.c.l.b16 %v5759
        %v6216 = vunpack.c.l.b16 %v5760
        %v6217 = vunpack.c.l.b16 %v5761
        %v6218 = vpack.c.b16 %v5818, %v6214
        %v6219 = vpack.c.b16 %v6215, %v5859
        %v6220 = vpack.c.b16 %v6217, %v6216
        %v6221 = vrot.slane %v6218, 2
        %v6222 = vrot.slane %v5863, 2
        %v6223 = vsel %vm903, %v6221, %v6222
        %v6224 = vrot.slane %v5864, 2
        %v6225 = vsel %vm903, %v6222, %v6224
        %v6226 = vrot.slane %v5865, 2
        %v6227 = vsel %vm903, %v6224, %v6226
        %v6228 = vrot.slane %v5866, 2
        %v6229 = vsel %vm903, %v6226, %v6228
        %v6230 = vrot.slane %v5867, 2
        %v6231 = vsel %vm903, %v6228, %v6230
        %v6232 = vrot.slane %v5868, 2
        %v6233 = vsel %vm903, %v6230, %v6232
        %v6234 = vrot.slane %v5869, 2
        %v6235 = vsel %vm903, %v6232, %v6234
        %v6236 = vrot.slane %v5870, 2
        %v6237 = vsel %vm903, %v6234, %v6236
        %v6238 = vrot.slane %v5871, 2
        %v6239 = vsel %vm903, %v6236, %v6238
        %v6240 = vrot.slane %v5872, 2
        %v6241 = vsel %vm903, %v6238, %v6240
        %v6242 = vrot.slane %v5873, 2
        %v6243 = vsel %vm903, %v6240, %v6242
        %v6244 = vrot.slane %v5874, 2
        %v6245 = vsel %vm903, %v6242, %v6244
        %v6246 = vrot.slane %v5875, 2
        %v6247 = vsel %vm903, %v6244, %v6246
        %v6248 = vrot.slane %v5876, 2
        %v6249 = vsel %vm903, %v6246, %v6248
        %v6250 = vrot.slane %v5877, 2
        %v6251 = vsel %vm903, %v6248, %v6250
        %v6252 = vrot.slane %v5878, 2
        %v6253 = vsel %vm903, %v6250, %v6252
        %v6254 = vrot.slane %v5879, 2
        %v6255 = vsel %vm903, %v6252, %v6254
        %v6256 = vrot.slane %v5880, 2
        %v6257 = vsel %vm903, %v6254, %v6256
        %v6258 = vrot.slane %v5881, 2
        %v6259 = vsel %vm903, %v6256, %v6258
        %v6260 = vrot.slane %v5882, 2
        %v6261 = vsel %vm903, %v6258, %v6260
        %v6262 = vrot.slane %v6219, 2
        %v6263 = vsel %vm903, %v6260, %v6262
        %v6264 = vrot.slane %v6220, 2
        %v6265 = vsel %vm903, %v6262, %v6264
        %6266 = vrot.lane.b32.xlu0 %v6223, 96
        %v6267 = vpop.permute.xlu0 %6266
        %6268 = vrot.lane.b32.xlu0 %v6225, 96
        %v6269 = vpop.permute.xlu0 %6268
        %6270 = vrot.lane.b32.xlu0 %v6227, 96
        %v6271 = vpop.permute.xlu0 %6270
        %6272 = vrot.lane.b32.xlu0 %v6229, 96
        %v6273 = vpop.permute.xlu0 %6272
        %6274 = vrot.lane.b32.xlu0 %v6231, 96
        %v6275 = vpop.permute.xlu0 %6274
        %6276 = vrot.lane.b32.xlu0 %v6233, 96
        %v6277 = vpop.permute.xlu0 %6276
        %6278 = vrot.lane.b32.xlu0 %v6235, 96
        %v6279 = vpop.permute.xlu0 %6278
        %6280 = vrot.lane.b32.xlu0 %v6237, 96
        %v6281 = vpop.permute.xlu0 %6280
        %6282 = vrot.lane.b32.xlu0 %v6239, 96
        %v6283 = vpop.permute.xlu0 %6282
        %6284 = vrot.lane.b32.xlu0 %v6241, 96
        %v6285 = vpop.permute.xlu0 %6284
        %6286 = vrot.lane.b32.xlu0 %v6243, 96
        %v6287 = vpop.permute.xlu0 %6286
        %6288 = vrot.lane.b32.xlu0 %v6245, 96
        %v6289 = vpop.permute.xlu0 %6288
        %6290 = vrot.lane.b32.xlu0 %v6247, 96
        %v6291 = vpop.permute.xlu0 %6290
        %6292 = vrot.lane.b32.xlu0 %v6249, 96
        %v6293 = vpop.permute.xlu0 %6292
        %6294 = vrot.lane.b32.xlu0 %v6251, 96
        %v6295 = vpop.permute.xlu0 %6294
        %6296 = vrot.lane.b32.xlu0 %v6253, 96
        %v6297 = vpop.permute.xlu0 %6296
        %6298 = vrot.lane.b32.xlu0 %v6255, 96
        %v6299 = vpop.permute.xlu0 %6298
        %6300 = vrot.lane.b32.xlu0 %v6257, 96
        %v6301 = vpop.permute.xlu0 %6300
        %6302 = vrot.lane.b32.xlu0 %v6259, 96
        %v6303 = vpop.permute.xlu0 %6302
        %6304 = vrot.lane.b32.xlu0 %v6261, 96
        %v6305 = vpop.permute.xlu0 %6304
        %6306 = vrot.lane.b32.xlu0 %v6263, 96
        %v6307 = vpop.permute.xlu0 %6306
        %6308 = vrot.lane.b32.xlu0 %v6265, 96
        %v6309 = vpop.permute.xlu0 %6308
        %6310 = vrot.lane.b32.xlu0 %v6264, 96
        %v6311 = vpop.permute.xlu0 %6310
        %v6312 = vpack.c.b16 %v5819, %v5818
        %v6313 = vpack.c.b16 %v5821, %v5820
        %v6314 = vpack.c.b16 %v5823, %v5822
        %v6315 = vpack.c.b16 %v5825, %v5824
        %v6316 = vpack.c.b16 %v5827, %v5826
        %v6317 = vpack.c.b16 %v5829, %v5828
        %v6318 = vpack.c.b16 %v5831, %v5830
        %v6319 = vpack.c.b16 %v5833, %v5832
        %v6320 = vpack.c.b16 %v5835, %v5834
        %v6321 = vpack.c.b16 %v5837, %v5836
        %v6322 = vpack.c.b16 %v5839, %v5838
        %v6323 = vpack.c.b16 %v5841, %v5840
        %v6324 = vpack.c.b16 %v5843, %v5842
        %v6325 = vpack.c.b16 %v5845, %v5844
        %v6326 = vpack.c.b16 %v5847, %v5846
        %v6327 = vpack.c.b16 %v5849, %v5848
        %v6328 = vpack.c.b16 %v5851, %v5850
        %v6329 = vpack.c.b16 %v5853, %v5852
        %v6330 = vpack.c.b16 %v5855, %v5854
        %v6331 = vpack.c.b16 %v5857, %v5856
        %v6332 = vpack.c.b16 %v5859, %v5858
        %v6333 = vpack.c.b16 %v6216, %v6215
        %v6334 = vpack.c.b16 %v6217, %v6217
        %v6336 = vshrl.u32 %v6312, 16
        %v6338 = vrot.slane %v6336, 6
        %v6339 = vshll.u32 %v6312, 16
        %v6341 = vrot.slane %v6339, 7
        %v6342 = vor.u32 %v6338, %v6341
        %v6344 = vshrl.u32 %v6313, 16
        %v6346 = vrot.slane %v6344, 6
        %v6347 = vshll.u32 %v6313, 16
        %v6349 = vrot.slane %v6347, 7
        %v6350 = vor.u32 %v6346, %v6349
        %v6351 = vsel %vm1018, %v6342, %v6350
        %v6353 = vshrl.u32 %v6314, 16
        %v6355 = vrot.slane %v6353, 6
        %v6356 = vshll.u32 %v6314, 16
        %v6358 = vrot.slane %v6356, 7
        %v6359 = vor.u32 %v6355, %v6358
        %v6360 = vsel %vm1018, %v6350, %v6359
        %v6362 = vshrl.u32 %v6315, 16
        %v6364 = vrot.slane %v6362, 6
        %v6365 = vshll.u32 %v6315, 16
        %v6367 = vrot.slane %v6365, 7
        %v6368 = vor.u32 %v6364, %v6367
        %v6369 = vsel %vm1018, %v6359, %v6368
        %v6371 = vshrl.u32 %v6316, 16
        %v6373 = vrot.slane %v6371, 6
        %v6374 = vshll.u32 %v6316, 16
        %v6376 = vrot.slane %v6374, 7
        %v6377 = vor.u32 %v6373, %v6376
        %v6378 = vsel %vm1018, %v6368, %v6377
        %v6380 = vshrl.u32 %v6317, 16
        %v6382 = vrot.slane %v6380, 6
        %v6383 = vshll.u32 %v6317, 16
        %v6385 = vrot.slane %v6383, 7
        %v6386 = vor.u32 %v6382, %v6385
        %v6387 = vsel %vm1018, %v6377, %v6386
        %v6389 = vshrl.u32 %v6318, 16
        %v6391 = vrot.slane %v6389, 6
        %v6392 = vshll.u32 %v6318, 16
        %v6394 = vrot.slane %v6392, 7
        %v6395 = vor.u32 %v6391, %v6394
        %v6396 = vsel %vm1018, %v6386, %v6395
        %v6398 = vshrl.u32 %v6319, 16
        %v6400 = vrot.slane %v6398, 6
        %v6401 = vshll.u32 %v6319, 16
        %v6403 = vrot.slane %v6401, 7
        %v6404 = vor.u32 %v6400, %v6403
        %v6405 = vsel %vm1018, %v6395, %v6404
        %v6407 = vshrl.u32 %v6320, 16
        %v6409 = vrot.slane %v6407, 6
        %v6410 = vshll.u32 %v6320, 16
        %v6412 = vrot.slane %v6410, 7
        %v6413 = vor.u32 %v6409, %v6412
        %v6414 = vsel %vm1018, %v6404, %v6413
        %v6416 = vshrl.u32 %v6321, 16
        %v6418 = vrot.slane %v6416, 6
        %v6419 = vshll.u32 %v6321, 16
        %v6421 = vrot.slane %v6419, 7
        %v6422 = vor.u32 %v6418, %v6421
        %v6423 = vsel %vm1018, %v6413, %v6422
        %v6425 = vshrl.u32 %v6322, 16
        %v6427 = vrot.slane %v6425, 6
        %v6428 = vshll.u32 %v6322, 16
        %v6430 = vrot.slane %v6428, 7
        %v6431 = vor.u32 %v6427, %v6430
        %v6432 = vsel %vm1018, %v6422, %v6431
        %v6434 = vshrl.u32 %v6323, 16
        %v6436 = vrot.slane %v6434, 6
        %v6437 = vshll.u32 %v6323, 16
        %v6439 = vrot.slane %v6437, 7
        %v6440 = vor.u32 %v6436, %v6439
        %v6441 = vsel %vm1018, %v6431, %v6440
        %v6443 = vshrl.u32 %v6324, 16
        %v6445 = vrot.slane %v6443, 6
        %v6446 = vshll.u32 %v6324, 16
        %v6448 = vrot.slane %v6446, 7
        %v6449 = vor.u32 %v6445, %v6448
        %v6450 = vsel %vm1018, %v6440, %v6449
        %v6452 = vshrl.u32 %v6325, 16
        %v6454 = vrot.slane %v6452, 6
        %v6455 = vshll.u32 %v6325, 16
        %v6457 = vrot.slane %v6455, 7
        %v6458 = vor.u32 %v6454, %v6457
        %v6459 = vsel %vm1018, %v6449, %v6458
        %v6461 = vshrl.u32 %v6326, 16
        %v6463 = vrot.slane %v6461, 6
        %v6464 = vshll.u32 %v6326, 16
        %v6466 = vrot.slane %v6464, 7
        %v6467 = vor.u32 %v6463, %v6466
        %v6468 = vsel %vm1018, %v6458, %v6467
        %v6470 = vshrl.u32 %v6327, 16
        %v6472 = vrot.slane %v6470, 6
        %v6473 = vshll.u32 %v6327, 16
        %v6475 = vrot.slane %v6473, 7
        %v6476 = vor.u32 %v6472, %v6475
        %v6477 = vsel %vm1018, %v6467, %v6476
        %v6479 = vshrl.u32 %v6328, 16
        %v6481 = vrot.slane %v6479, 6
        %v6482 = vshll.u32 %v6328, 16
        %v6484 = vrot.slane %v6482, 7
        %v6485 = vor.u32 %v6481, %v6484
        %v6486 = vsel %vm1018, %v6476, %v6485
        %v6488 = vshrl.u32 %v6329, 16
        %v6490 = vrot.slane %v6488, 6
        %v6491 = vshll.u32 %v6329, 16
        %v6493 = vrot.slane %v6491, 7
        %v6494 = vor.u32 %v6490, %v6493
        %v6495 = vsel %vm1018, %v6485, %v6494
        %v6497 = vshrl.u32 %v6330, 16
        %v6499 = vrot.slane %v6497, 6
        %v6500 = vshll.u32 %v6330, 16
        %v6502 = vrot.slane %v6500, 7
        %v6503 = vor.u32 %v6499, %v6502
        %v6504 = vsel %vm1018, %v6494, %v6503
        %v6506 = vshrl.u32 %v6331, 16
        %v6508 = vrot.slane %v6506, 6
        %v6509 = vshll.u32 %v6331, 16
        %v6511 = vrot.slane %v6509, 7
        %v6512 = vor.u32 %v6508, %v6511
        %v6513 = vsel %vm1018, %v6503, %v6512
        %v6515 = vshrl.u32 %v6332, 16
        %v6517 = vrot.slane %v6515, 6
        %v6518 = vshll.u32 %v6332, 16
        %v6520 = vrot.slane %v6518, 7
        %v6521 = vor.u32 %v6517, %v6520
        %v6522 = vsel %vm1018, %v6512, %v6521
        %v6524 = vshrl.u32 %v6333, 16
        %v6526 = vrot.slane %v6524, 6
        %v6527 = vshll.u32 %v6333, 16
        %v6529 = vrot.slane %v6527, 7
        %v6530 = vor.u32 %v6526, %v6529
        %v6531 = vsel %vm1018, %v6521, %v6530
        %v6533 = vshrl.u32 %v6334, 16
        %v6535 = vrot.slane %v6533, 6
        %v6536 = vshll.u32 %v6334, 16
        %v6538 = vrot.slane %v6536, 7
        %v6539 = vor.u32 %v6535, %v6538
        %v6540 = vsel %vm1018, %v6530, %v6539
        %v6542 = vunpack.c.l.b16 %v5762
        %v6543 = vpack.c.b16 %v6542, %v6217
        %v6544 = vrot.slane %v6312, 7
        %v6545 = vrot.slane %v6313, 7
        %v6546 = vsel %vm1274, %v6544, %v6545
        %v6547 = vrot.slane %v6314, 7
        %v6548 = vsel %vm1274, %v6545, %v6547
        %v6549 = vrot.slane %v6315, 7
        %v6550 = vsel %vm1274, %v6547, %v6549
        %v6551 = vrot.slane %v6316, 7
        %v6552 = vsel %vm1274, %v6549, %v6551
        %v6553 = vrot.slane %v6317, 7
        %v6554 = vsel %vm1274, %v6551, %v6553
        %v6555 = vrot.slane %v6318, 7
        %v6556 = vsel %vm1274, %v6553, %v6555
        %v6557 = vrot.slane %v6319, 7
        %v6558 = vsel %vm1274, %v6555, %v6557
        %v6559 = vrot.slane %v6320, 7
        %v6560 = vsel %vm1274, %v6557, %v6559
        %v6561 = vrot.slane %v6321, 7
        %v6562 = vsel %vm1274, %v6559, %v6561
        %v6563 = vrot.slane %v6322, 7
        %v6564 = vsel %vm1274, %v6561, %v6563
        %v6565 = vrot.slane %v6323, 7
        %v6566 = vsel %vm1274, %v6563, %v6565
        %v6567 = vrot.slane %v6324, 7
        %v6568 = vsel %vm1274, %v6565, %v6567
        %v6569 = vrot.slane %v6325, 7
        %v6570 = vsel %vm1274, %v6567, %v6569
        %v6571 = vrot.slane %v6326, 7
        %v6572 = vsel %vm1274, %v6569, %v6571
        %v6573 = vrot.slane %v6327, 7
        %v6574 = vsel %vm1274, %v6571, %v6573
        %v6575 = vrot.slane %v6328, 7
        %v6576 = vsel %vm1274, %v6573, %v6575
        %v6577 = vrot.slane %v6329, 7
        %v6578 = vsel %vm1274, %v6575, %v6577
        %v6579 = vrot.slane %v6330, 7
        %v6580 = vsel %vm1274, %v6577, %v6579
        %v6581 = vrot.slane %v6331, 7
        %v6582 = vsel %vm1274, %v6579, %v6581
        %v6583 = vrot.slane %v6332, 7
        %v6584 = vsel %vm1274, %v6581, %v6583
        %v6585 = vrot.slane %v6333, 7
        %v6586 = vsel %vm1274, %v6583, %v6585
        %v6587 = vrot.slane %v6543, 7
        %v6588 = vsel %vm1274, %v6585, %v6587
        %6589 = vrot.lane.b32.xlu0 %v6544, 32
        %v6590 = vpop.permute.xlu0 %6589
        %6591 = vrot.lane.b32.xlu0 %v6546, 32
        %v6592 = vpop.permute.xlu0 %6591
        %6593 = vrot.lane.b32.xlu0 %v6548, 32
        %v6594 = vpop.permute.xlu0 %6593
        %6595 = vrot.lane.b32.xlu0 %v6550, 32
        %v6596 = vpop.permute.xlu0 %6595
        %6597 = vrot.lane.b32.xlu0 %v6552, 32
        %v6598 = vpop.permute.xlu0 %6597
        %6599 = vrot.lane.b32.xlu0 %v6554, 32
        %v6600 = vpop.permute.xlu0 %6599
        %6601 = vrot.lane.b32.xlu0 %v6556, 32
        %v6602 = vpop.permute.xlu0 %6601
        %6603 = vrot.lane.b32.xlu0 %v6558, 32
        %v6604 = vpop.permute.xlu0 %6603
        %6605 = vrot.lane.b32.xlu0 %v6560, 32
        %v6606 = vpop.permute.xlu0 %6605
        %6607 = vrot.lane.b32.xlu0 %v6562, 32
        %v6608 = vpop.permute.xlu0 %6607
        %6609 = vrot.lane.b32.xlu0 %v6564, 32
        %v6610 = vpop.permute.xlu0 %6609
        %6611 = vrot.lane.b32.xlu0 %v6566, 32
        %v6612 = vpop.permute.xlu0 %6611
        %6613 = vrot.lane.b32.xlu0 %v6568, 32
        %v6614 = vpop.permute.xlu0 %6613
        %6615 = vrot.lane.b32.xlu0 %v6570, 32
        %v6616 = vpop.permute.xlu0 %6615
        %6617 = vrot.lane.b32.xlu0 %v6572, 32
        %v6618 = vpop.permute.xlu0 %6617
        %6619 = vrot.lane.b32.xlu0 %v6574, 32
        %v6620 = vpop.permute.xlu0 %6619
        %6621 = vrot.lane.b32.xlu0 %v6576, 32
        %v6622 = vpop.permute.xlu0 %6621
        %6623 = vrot.lane.b32.xlu0 %v6578, 32
        %v6624 = vpop.permute.xlu0 %6623
        %6625 = vrot.lane.b32.xlu0 %v6580, 32
        %v6626 = vpop.permute.xlu0 %6625
        %6627 = vrot.lane.b32.xlu0 %v6582, 32
        %v6628 = vpop.permute.xlu0 %6627
        %6629 = vrot.lane.b32.xlu0 %v6584, 32
        %v6630 = vpop.permute.xlu0 %6629
        %6631 = vrot.lane.b32.xlu0 %v6586, 32
        %v6632 = vpop.permute.xlu0 %6631
        %6633 = vrot.lane.b32.xlu0 %v6588, 32
        %v6634 = vpop.permute.xlu0 %6633
        %v6639 = vunpack.c.l.b16 %v5763
        %v6640 = vunpack.c.l.b16 %v5764
        %v6641 = vunpack.c.l.b16 %v5765
        %v6642 = vunpack.c.l.b16 %v5766
        %v6643 = vpack.c.b16 %v5821, %v6639
        %v6644 = vpack.c.b16 %v6640, %v6217
        %v6645 = vpack.c.b16 %v6642, %v6641
        %6646 = vrot.lane.b32.xlu0 %v6643, 64
        %v6647 = vpop.permute.xlu0 %6646
        %6648 = vrot.lane.b32.xlu0 %v6314, 64
        %v6649 = vpop.permute.xlu0 %6648
        %6650 = vrot.lane.b32.xlu0 %v6315, 64
        %v6651 = vpop.permute.xlu0 %6650
        %6652 = vrot.lane.b32.xlu0 %v6316, 64
        %v6653 = vpop.permute.xlu0 %6652
        %6654 = vrot.lane.b32.xlu0 %v6317, 64
        %v6655 = vpop.permute.xlu0 %6654
        %6656 = vrot.lane.b32.xlu0 %v6318, 64
        %v6657 = vpop.permute.xlu0 %6656
        %6658 = vrot.lane.b32.xlu0 %v6319, 64
        %v6659 = vpop.permute.xlu0 %6658
        %6660 = vrot.lane.b32.xlu0 %v6320, 64
        %v6661 = vpop.permute.xlu0 %6660
        %6662 = vrot.lane.b32.xlu0 %v6321, 64
        %v6663 = vpop.permute.xlu0 %6662
        %6664 = vrot.lane.b32.xlu0 %v6322, 64
        %v6665 = vpop.permute.xlu0 %6664
        %6666 = vrot.lane.b32.xlu0 %v6323, 64
        %v6667 = vpop.permute.xlu0 %6666
        %6668 = vrot.lane.b32.xlu0 %v6324, 64
        %v6669 = vpop.permute.xlu0 %6668
        %6670 = vrot.lane.b32.xlu0 %v6325, 64
        %v6671 = vpop.permute.xlu0 %6670
        %6672 = vrot.lane.b32.xlu0 %v6326, 64
        %v6673 = vpop.permute.xlu0 %6672
        %6674 = vrot.lane.b32.xlu0 %v6327, 64
        %v6675 = vpop.permute.xlu0 %6674
        %6676 = vrot.lane.b32.xlu0 %v6328, 64
        %v6677 = vpop.permute.xlu0 %6676
        %6678 = vrot.lane.b32.xlu0 %v6329, 64
        %v6679 = vpop.permute.xlu0 %6678
        %6680 = vrot.lane.b32.xlu0 %v6330, 64
        %v6681 = vpop.permute.xlu0 %6680
        %6682 = vrot.lane.b32.xlu0 %v6331, 64
        %v6683 = vpop.permute.xlu0 %6682
        %6684 = vrot.lane.b32.xlu0 %v6332, 64
        %v6685 = vpop.permute.xlu0 %6684
        %6686 = vrot.lane.b32.xlu0 %v6333, 64
        %v6687 = vpop.permute.xlu0 %6686
        %6688 = vrot.lane.b32.xlu0 %v6644, 64
        %v6689 = vpop.permute.xlu0 %6688
        %6690 = vrot.lane.b32.xlu0 %v6645, 64
        %v6691 = vpop.permute.xlu0 %6690
        %v6693 = vunpack.c.l.b16 %v5767
        %v6694 = vpack.c.b16 %v5821, %v6693
        %v6696 = vshrl.u32 %v6694, 16
        %v6698 = vshll.u32 %v6694, 16
        %v6700 = vrot.slane %v6698, 1
        %v6701 = vor.u32 %v6696, %v6700
        %v6702 = vrot.slane %v6356, 1
        %v6703 = vsel %vm567, %v6701, %v6702
        %v6704 = vor.u32 %v6353, %v6702
        %v6705 = vrot.slane %v6365, 1
        %v6706 = vsel %vm567, %v6704, %v6705
        %v6707 = vor.u32 %v6362, %v6705
        %v6708 = vrot.slane %v6374, 1
        %v6709 = vsel %vm567, %v6707, %v6708
        %v6710 = vor.u32 %v6371, %v6708
        %v6711 = vrot.slane %v6383, 1
        %v6712 = vsel %vm567, %v6710, %v6711
        %v6713 = vor.u32 %v6380, %v6711
        %v6714 = vrot.slane %v6392, 1
        %v6715 = vsel %vm567, %v6713, %v6714
        %v6716 = vor.u32 %v6389, %v6714
        %v6717 = vrot.slane %v6401, 1
        %v6718 = vsel %vm567, %v6716, %v6717
        %v6719 = vor.u32 %v6398, %v6717
        %v6720 = vrot.slane %v6410, 1
        %v6721 = vsel %vm567, %v6719, %v6720
        %v6722 = vor.u32 %v6407, %v6720
        %v6723 = vrot.slane %v6419, 1
        %v6724 = vsel %vm567, %v6722, %v6723
        %v6725 = vor.u32 %v6416, %v6723
        %v6726 = vrot.slane %v6428, 1
        %v6727 = vsel %vm567, %v6725, %v6726
        %v6728 = vor.u32 %v6425, %v6726
        %v6729 = vrot.slane %v6437, 1
        %v6730 = vsel %vm567, %v6728, %v6729
        %v6731 = vor.u32 %v6434, %v6729
        %v6732 = vrot.slane %v6446, 1
        %v6733 = vsel %vm567, %v6731, %v6732
        %v6734 = vor.u32 %v6443, %v6732
        %v6735 = vrot.slane %v6455, 1
        %v6736 = vsel %vm567, %v6734, %v6735
        %v6737 = vor.u32 %v6452, %v6735
        %v6738 = vrot.slane %v6464, 1
        %v6739 = vsel %vm567, %v6737, %v6738
        %v6740 = vor.u32 %v6461, %v6738
        %v6741 = vrot.slane %v6473, 1
        %v6742 = vsel %vm567, %v6740, %v6741
        %v6743 = vor.u32 %v6470, %v6741
        %v6744 = vrot.slane %v6482, 1
        %v6745 = vsel %vm567, %v6743, %v6744
        %v6746 = vor.u32 %v6479, %v6744
        %v6747 = vrot.slane %v6491, 1
        %v6748 = vsel %vm567, %v6746, %v6747
        %v6749 = vor.u32 %v6488, %v6747
        %v6750 = vrot.slane %v6500, 1
        %v6751 = vsel %vm567, %v6749, %v6750
        %v6752 = vor.u32 %v6497, %v6750
        %v6753 = vrot.slane %v6509, 1
        %v6754 = vsel %vm567, %v6752, %v6753
        %v6755 = vor.u32 %v6506, %v6753
        %v6756 = vrot.slane %v6518, 1
        %v6757 = vsel %vm567, %v6755, %v6756
        %v6758 = vor.u32 %v6515, %v6756
        %v6759 = vrot.slane %v6527, 1
        %v6760 = vsel %vm567, %v6758, %v6759
        %v6761 = vor.u32 %v6524, %v6759
        %v6763 = vshll.u32 %v6644, 16
        %v6765 = vrot.slane %v6763, 1
        %v6766 = vsel %vm567, %v6761, %v6765
        %v6767 = vshrl.u32 %v6644, 16
        %v6769 = vor.u32 %v6767, %v6765
        %v6771 = vshll.u32 %v6645, 16
        %v6773 = vrot.slane %v6771, 1
        %v6774 = vsel %vm567, %v6769, %v6773
        %v6775 = vshrl.u32 %v6645, 16
        %v6777 = vor.u32 %v6775, %v6773
        %6778 = vrot.lane.b32.xlu0 %v6703, 96
        %v6779 = vpop.permute.xlu0 %6778
        %6780 = vrot.lane.b32.xlu0 %v6706, 96
        %v6781 = vpop.permute.xlu0 %6780
        %6782 = vrot.lane.b32.xlu0 %v6709, 96
        %v6783 = vpop.permute.xlu0 %6782
        %6784 = vrot.lane.b32.xlu0 %v6712, 96
        %v6785 = vpop.permute.xlu0 %6784
        %6786 = vrot.lane.b32.xlu0 %v6715, 96
        %v6787 = vpop.permute.xlu0 %6786
        %6788 = vrot.lane.b32.xlu0 %v6718, 96
        %v6789 = vpop.permute.xlu0 %6788
        %6790 = vrot.lane.b32.xlu0 %v6721, 96
        %v6791 = vpop.permute.xlu0 %6790
        %6792 = vrot.lane.b32.xlu0 %v6724, 96
        %v6793 = vpop.permute.xlu0 %6792
        %6794 = vrot.lane.b32.xlu0 %v6727, 96
        %v6795 = vpop.permute.xlu0 %6794
        %6796 = vrot.lane.b32.xlu0 %v6730, 96
        %v6797 = vpop.permute.xlu0 %6796
        %6798 = vrot.lane.b32.xlu0 %v6733, 96
        %v6799 = vpop.permute.xlu0 %6798
        %6800 = vrot.lane.b32.xlu0 %v6736, 96
        %v6801 = vpop.permute.xlu0 %6800
        %6802 = vrot.lane.b32.xlu0 %v6739, 96
        %v6803 = vpop.permute.xlu0 %6802
        %6804 = vrot.lane.b32.xlu0 %v6742, 96
        %v6805 = vpop.permute.xlu0 %6804
        %6806 = vrot.lane.b32.xlu0 %v6745, 96
        %v6807 = vpop.permute.xlu0 %6806
        %6808 = vrot.lane.b32.xlu0 %v6748, 96
        %v6809 = vpop.permute.xlu0 %6808
        %6810 = vrot.lane.b32.xlu0 %v6751, 96
        %v6811 = vpop.permute.xlu0 %6810
        %6812 = vrot.lane.b32.xlu0 %v6754, 96
        %v6813 = vpop.permute.xlu0 %6812
        %6814 = vrot.lane.b32.xlu0 %v6757, 96
        %v6815 = vpop.permute.xlu0 %6814
        %6816 = vrot.lane.b32.xlu0 %v6760, 96
        %v6817 = vpop.permute.xlu0 %6816
        %6818 = vrot.lane.b32.xlu0 %v6766, 96
        %v6819 = vpop.permute.xlu0 %6818
        %6820 = vrot.lane.b32.xlu0 %v6774, 96
        %v6821 = vpop.permute.xlu0 %6820
        %6822 = vrot.lane.b32.xlu0 %v6777, 96
        %v6823 = vpop.permute.xlu0 %6822
        %v6825 = vunpack.c.l.b16 %v5768
        %v6826 = vpack.c.b16 %v6825, %v6641
        %v6827 = vrot.slane %v6694, 1
        %v6828 = vrot.slane %v6314, 1
        %v6829 = vsel %vm800, %v6827, %v6828
        %v6830 = vrot.slane %v6315, 1
        %v6831 = vsel %vm800, %v6828, %v6830
        %v6832 = vrot.slane %v6316, 1
        %v6833 = vsel %vm800, %v6830, %v6832
        %v6834 = vrot.slane %v6317, 1
        %v6835 = vsel %vm800, %v6832, %v6834
        %v6836 = vrot.slane %v6318, 1
        %v6837 = vsel %vm800, %v6834, %v6836
        %v6838 = vrot.slane %v6319, 1
        %v6839 = vsel %vm800, %v6836, %v6838
        %v6840 = vrot.slane %v6320, 1
        %v6841 = vsel %vm800, %v6838, %v6840
        %v6842 = vrot.slane %v6321, 1
        %v6843 = vsel %vm800, %v6840, %v6842
        %v6844 = vrot.slane %v6322, 1
        %v6845 = vsel %vm800, %v6842, %v6844
        %v6846 = vrot.slane %v6323, 1
        %v6847 = vsel %vm800, %v6844, %v6846
        %v6848 = vrot.slane %v6324, 1
        %v6849 = vsel %vm800, %v6846, %v6848
        %v6850 = vrot.slane %v6325, 1
        %v6851 = vsel %vm800, %v6848, %v6850
        %v6852 = vrot.slane %v6326, 1
        %v6853 = vsel %vm800, %v6850, %v6852
        %v6854 = vrot.slane %v6327, 1
        %v6855 = vsel %vm800, %v6852, %v6854
        %v6856 = vrot.slane %v6328, 1
        %v6857 = vsel %vm800, %v6854, %v6856
        %v6858 = vrot.slane %v6329, 1
        %v6859 = vsel %vm800, %v6856, %v6858
        %v6860 = vrot.slane %v6330, 1
        %v6861 = vsel %vm800, %v6858, %v6860
        %v6862 = vrot.slane %v6331, 1
        %v6863 = vsel %vm800, %v6860, %v6862
        %v6864 = vrot.slane %v6332, 1
        %v6865 = vsel %vm800, %v6862, %v6864
        %v6866 = vrot.slane %v6333, 1
        %v6867 = vsel %vm800, %v6864, %v6866
        %v6868 = vrot.slane %v6644, 1
        %v6869 = vsel %vm800, %v6866, %v6868
        %v6870 = vrot.slane %v6826, 1
        %v6871 = vsel %vm800, %v6868, %v6870
        %v6874 = vsel %vm1979, %v5861, %v6071
        %v6876 = vsel %vm1979, %v5862, %v6073
        %v6878 = vsel %vm1979, %v5863, %v6075
        %v6880 = vsel %vm1979, %v5864, %v6077
        %v6882 = vsel %vm1979, %v5865, %v6079
        %v6884 = vsel %vm1979, %v5866, %v6081
        %v6886 = vsel %vm1979, %v5867, %v6083
        %v6888 = vsel %vm1979, %v5868, %v6085
        %v6890 = vsel %vm1979, %v5869, %v6087
        %v6892 = vsel %vm1979, %v5870, %v6089
        %v6894 = vsel %vm1979, %v5871, %v6091
        %v6896 = vsel %vm1979, %v5872, %v6093
        %v6898 = vsel %vm1979, %v5873, %v6095
        %v6900 = vsel %vm1979, %v5874, %v6097
        %v6902 = vsel %vm1979, %v5875, %v6099
        %v6904 = vsel %vm1979, %v5876, %v6101
        %v6906 = vsel %vm1979, %v5877, %v6103
        %v6908 = vsel %vm1979, %v5878, %v6105
        %v6910 = vsel %vm1979, %v5879, %v6107
        %v6912 = vsel %vm1979, %v5880, %v6109
        %v6914 = vsel %vm1979, %v5881, %v6111
        %v6916 = vsel %vm1979, %v5882, %v6113
        %v6918 = vsel %vm1979, %v5883, %v6115
        %v6920 = vsel %vm4423, %v6874, %v6165
        %v6922 = vsel %vm4423, %v6876, %v6167
        %v6924 = vsel %vm4423, %v6878, %v6169
        %v6926 = vsel %vm4423, %v6880, %v6171
        %v6928 = vsel %vm4423, %v6882, %v6173
        %v6930 = vsel %vm4423, %v6884, %v6175
        %v6932 = vsel %vm4423, %v6886, %v6177
        %v6934 = vsel %vm4423, %v6888, %v6179
        %v6936 = vsel %vm4423, %v6890, %v6181
        %v6938 = vsel %vm4423, %v6892, %v6183
        %v6940 = vsel %vm4423, %v6894, %v6185
        %v6942 = vsel %vm4423, %v6896, %v6187
        %v6944 = vsel %vm4423, %v6898, %v6189
        %v6946 = vsel %vm4423, %v6900, %v6191
        %v6948 = vsel %vm4423, %v6902, %v6193
        %v6950 = vsel %vm4423, %v6904, %v6195
        %v6952 = vsel %vm4423, %v6906, %v6197
        %v6954 = vsel %vm4423, %v6908, %v6199
        %v6956 = vsel %vm4423, %v6910, %v6201
        %v6958 = vsel %vm4423, %v6912, %v6203
        %v6960 = vsel %vm4423, %v6914, %v6205
        %v6962 = vsel %vm4423, %v6916, %v6207
        %v6964 = vsel %vm4423, %v6918, %v6209
        %v6966 = vsel %vm4517, %v6920, %v6267
        %v6968 = vsel %vm4517, %v6922, %v6269
        %v6970 = vsel %vm4517, %v6924, %v6271
        %v6972 = vsel %vm4517, %v6926, %v6273
        %v6974 = vsel %vm4517, %v6928, %v6275
        %v6976 = vsel %vm4517, %v6930, %v6277
        %v6978 = vsel %vm4517, %v6932, %v6279
        %v6980 = vsel %vm4517, %v6934, %v6281
        %v6982 = vsel %vm4517, %v6936, %v6283
        %v6984 = vsel %vm4517, %v6938, %v6285
        %v6986 = vsel %vm4517, %v6940, %v6287
        %v6988 = vsel %vm4517, %v6942, %v6289
        %v6990 = vsel %vm4517, %v6944, %v6291
        %v6992 = vsel %vm4517, %v6946, %v6293
        %v6994 = vsel %vm4517, %v6948, %v6295
        %v6996 = vsel %vm4517, %v6950, %v6297
        %v6998 = vsel %vm4517, %v6952, %v6299
        %v7000 = vsel %vm4517, %v6954, %v6301
        %v7002 = vsel %vm4517, %v6956, %v6303
        %v7004 = vsel %vm4517, %v6958, %v6305
        %v7006 = vsel %vm4517, %v6960, %v6307
        %v7008 = vsel %vm4517, %v6962, %v6309
        %v7010 = vsel %vm4517, %v6964, %v6311
        %v7013 = vsel %vm1979, %v6342, %v6590
        %v7016 = vsel %vm1979, %v6351, %v6592
        %v7019 = vsel %vm1979, %v6360, %v6594
        %v7022 = vsel %vm1979, %v6369, %v6596
        %v7025 = vsel %vm1979, %v6378, %v6598
        %v7028 = vsel %vm1979, %v6387, %v6600
        %v7031 = vsel %vm1979, %v6396, %v6602
        %v7034 = vsel %vm1979, %v6405, %v6604
        %v7037 = vsel %vm1979, %v6414, %v6606
        %v7040 = vsel %vm1979, %v6423, %v6608
        %v7043 = vsel %vm1979, %v6432, %v6610
        %v7046 = vsel %vm1979, %v6441, %v6612
        %v7049 = vsel %vm1979, %v6450, %v6614
        %v7052 = vsel %vm1979, %v6459, %v6616
        %v7055 = vsel %vm1979, %v6468, %v6618
        %v7058 = vsel %vm1979, %v6477, %v6620
        %v7061 = vsel %vm1979, %v6486, %v6622
        %v7064 = vsel %vm1979, %v6495, %v6624
        %v7067 = vsel %vm1979, %v6504, %v6626
        %v7070 = vsel %vm1979, %v6513, %v6628
        %v7073 = vsel %vm1979, %v6522, %v6630
        %v7076 = vsel %vm1979, %v6531, %v6632
        %v7079 = vsel %vm1979, %v6540, %v6634
        %v7081 = vsel %vm4423, %v7013, %v6647
        %v7083 = vsel %vm4423, %v7016, %v6649
        %v7085 = vsel %vm4423, %v7019, %v6651
        %v7087 = vsel %vm4423, %v7022, %v6653
        %v7089 = vsel %vm4423, %v7025, %v6655
        %v7091 = vsel %vm4423, %v7028, %v6657
        %v7093 = vsel %vm4423, %v7031, %v6659
        %v7095 = vsel %vm4423, %v7034, %v6661
        %v7097 = vsel %vm4423, %v7037, %v6663
        %v7099 = vsel %vm4423, %v7040, %v6665
        %v7101 = vsel %vm4423, %v7043, %v6667
        %v7103 = vsel %vm4423, %v7046, %v6669
        %v7105 = vsel %vm4423, %v7049, %v6671
        %v7107 = vsel %vm4423, %v7052, %v6673
        %v7109 = vsel %vm4423, %v7055, %v6675
        %v7111 = vsel %vm4423, %v7058, %v6677
        %v7113 = vsel %vm4423, %v7061, %v6679
        %v7115 = vsel %vm4423, %v7064, %v6681
        %v7117 = vsel %vm4423, %v7067, %v6683
        %v7119 = vsel %vm4423, %v7070, %v6685
        %v7121 = vsel %vm4423, %v7073, %v6687
        %v7123 = vsel %vm4423, %v7076, %v6689
        %v7125 = vsel %vm4423, %v7079, %v6691
        %v7127 = vsel %vm4517, %v7081, %v6779
        %v7129 = vsel %vm4517, %v7083, %v6781
        %v7131 = vsel %vm4517, %v7085, %v6783
        %v7133 = vsel %vm4517, %v7087, %v6785
        %v7135 = vsel %vm4517, %v7089, %v6787
        %v7137 = vsel %vm4517, %v7091, %v6789
        %v7139 = vsel %vm4517, %v7093, %v6791
        %v7141 = vsel %vm4517, %v7095, %v6793
        %v7143 = vsel %vm4517, %v7097, %v6795
        %v7145 = vsel %vm4517, %v7099, %v6797
        %v7147 = vsel %vm4517, %v7101, %v6799
        %v7149 = vsel %vm4517, %v7103, %v6801
        %v7151 = vsel %vm4517, %v7105, %v6803
        %v7153 = vsel %vm4517, %v7107, %v6805
        %v7155 = vsel %vm4517, %v7109, %v6807
        %v7157 = vsel %vm4517, %v7111, %v6809
        %v7159 = vsel %vm4517, %v7113, %v6811
        %v7161 = vsel %vm4517, %v7115, %v6813
        %v7163 = vsel %vm4517, %v7117, %v6815
        %v7165 = vsel %vm4517, %v7119, %v6817
        %v7167 = vsel %vm4517, %v7121, %v6819
        %v7169 = vsel %vm4517, %v7123, %v6821
        %v7171 = vsel %vm4517, %v7125, %v6823
        %v7172 = vld [vmem:[%s5] sm:$0xf]
        %v7173 = vld [vmem:[%s5 + $0x4] sm:$0xf]
        %v7174 = vld [vmem:[%s5 + $0x8] sm:$0xf]
        %v7175 = vld [vmem:[%s5 + $0xc] sm:$0xf]
        %v7176 = vld [vmem:[%s5 + $0x10] sm:$0xf]
        %v7177 = vld [vmem:[%s5 + $0x14] sm:$0xf]
        %v7178 = vld [vmem:[%s5 + $0x18] sm:$0xf]
        %v7179 = vld [vmem:[%s5 + $0x1c] sm:$0xf]
        %v7180 = vld [vmem:[%s5 + $0x20] sm:$0xf]
        %v7181 = vld [vmem:[%s5 + $0x24] sm:$0xf]
        %v7182 = vld [vmem:[%s5 + $0x28] sm:$0xf]
        %v7183 = vld [vmem:[%s5 + $0x2c] sm:$0xf]
        %v7184 = vld [vmem:[%s5 + $0x30] sm:$0xf]
        %v7185 = vld [vmem:[%s5 + $0x34] sm:$0xf]
        %v7186 = vld [vmem:[%s5 + $0x38] sm:$0xf]
        %v7187 = vld [vmem:[%s5 + $0x3c] sm:$0xf]
        %v7188 = vld [vmem:[%s5 + $0x40] sm:$0xf]
        %v7189 = vld [vmem:[%s5 + $0x44] sm:$0xf]
        %v7190 = vld [vmem:[%s5 + $0x48] sm:$0xf]
        %v7191 = vld [vmem:[%s5 + $0x4c] sm:$0xf]
        %v7192 = vld [vmem:[%s5 + $0x50] sm:$0xf]
        %v7193 = vld [vmem:[%s5 + $0x54] sm:$0xf]
        %v7194 = vld [vmem:[%s5 + $0x58] sm:$0xf]
        %v7195 = vld [vmem:[%s5 + $0x5c] sm:$0xf]
        %v7196 = vld [vmem:[%s5 + $0x60] sm:$0xf]
        %v7197 = vld [vmem:[%s5 + $0x64] sm:$0xf]
        %v7198 = vld [vmem:[%s5 + $0x68] sm:$0xf]
        %v7199 = vld [vmem:[%s5 + $0x6c] sm:$0xf]
        %v7200 = vld [vmem:[%s5 + $0x70] sm:$0xf]
        %v7201 = vld [vmem:[%s5 + $0x74] sm:$0xf]
        %v7202 = vld [vmem:[%s5 + $0x78] sm:$0xf]
        %v7203 = vld [vmem:[%s5 + $0x7c] sm:$0xf]
        %v7204 = vld [vmem:[%s5 + $0x80] sm:$0xf]
        %v7205 = vld [vmem:[%s5 + $0x84] sm:$0xf]
        %v7206 = vld [vmem:[%s5 + $0x88] sm:$0xf]
        %v7207 = vld [vmem:[%s5 + $0x8c] sm:$0xf]
        %v7208 = vld [vmem:[#allocation8] sm:$0x1]
        %v7210 = vlaneseq
        %v7211 = vshrl.u32 %v7210, 7
        %v7212 = vsub.s32 0, %v7211
        %v7213 = vrot.slane %v7208, %v7212
        %v7215 = vshrl.u32 %v6966, 16
        %v7217 = vrot.slane %v7215, 1
        %v7218 = vshll.u32 %v6966, 16
        %v7220 = vrot.slane %v7218, 2
        %v7221 = vor.u32 %v7217, %v7220
        %v7222 = vshrl.u32 %v6968, 16
        %v7224 = vrot.slane %v7222, 1
        %v7225 = vshll.u32 %v6968, 16
        %v7227 = vrot.slane %v7225, 2
        %v7228 = vor.u32 %v7224, %v7227
        %v7229 = vsel %vm2038, %v7221, %v7228
        %v7230 = vshrl.u32 %v7127, 16
        %v7232 = vrot.slane %v7230, 1
        %v7233 = vshll.u32 %v7127, 16
        %v7235 = vrot.slane %v7233, 2
        %v7236 = vor.u32 %v7232, %v7235
        %v7237 = vshrl.u32 %v7129, 16
        %v7239 = vrot.slane %v7237, 1
        %v7240 = vshll.u32 %v7129, 16
        %v7242 = vrot.slane %v7240, 2
        %v7243 = vor.u32 %v7239, %v7242
        %v7244 = vsel %vm2038, %v7236, %v7243
        %v7246 = vshrl.u32 %v6829, 16
        %v7248 = vrot.slane %v7246, 1
        %v7249 = vshll.u32 %v6829, 16
        %v7251 = vrot.slane %v7249, 2
        %v7252 = vor.u32 %v7248, %v7251
        %v7254 = vshrl.u32 %v6831, 16
        %v7256 = vrot.slane %v7254, 1
        %v7257 = vshll.u32 %v6831, 16
        %v7259 = vrot.slane %v7257, 2
        %v7260 = vor.u32 %v7256, %v7259
        %v7261 = vsel %vm2038, %v7252, %v7260
        %v7262 = vshrl.u32 %v6970, 16
        %v7264 = vrot.slane %v7262, 1
        %v7265 = vshll.u32 %v6970, 16
        %v7267 = vrot.slane %v7265, 2
        %v7268 = vor.u32 %v7264, %v7267
        %v7269 = vsel %vm2038, %v7228, %v7268
        %v7270 = vshrl.u32 %v7131, 16
        %v7272 = vrot.slane %v7270, 1
        %v7273 = vshll.u32 %v7131, 16
        %v7275 = vrot.slane %v7273, 2
        %v7276 = vor.u32 %v7272, %v7275
        %v7277 = vsel %vm2038, %v7243, %v7276
        %v7279 = vshrl.u32 %v6833, 16
        %v7281 = vrot.slane %v7279, 1
        %v7282 = vshll.u32 %v6833, 16
        %v7284 = vrot.slane %v7282, 2
        %v7285 = vor.u32 %v7281, %v7284
        %v7286 = vsel %vm2038, %v7260, %v7285
        %v7287 = vshrl.u32 %v6972, 16
        %v7289 = vrot.slane %v7287, 1
        %v7290 = vshll.u32 %v6972, 16
        %v7292 = vrot.slane %v7290, 2
        %v7293 = vor.u32 %v7289, %v7292
        %v7294 = vsel %vm2038, %v7268, %v7293
        %v7295 = vshrl.u32 %v7133, 16
        %v7297 = vrot.slane %v7295, 1
        %v7298 = vshll.u32 %v7133, 16
        %v7300 = vrot.slane %v7298, 2
        %v7301 = vor.u32 %v7297, %v7300
        %v7302 = vsel %vm2038, %v7276, %v7301
        %v7304 = vshrl.u32 %v6835, 16
        %v7306 = vrot.slane %v7304, 1
        %v7307 = vshll.u32 %v6835, 16
        %v7309 = vrot.slane %v7307, 2
        %v7310 = vor.u32 %v7306, %v7309
        %v7311 = vsel %vm2038, %v7285, %v7310
        %v7312 = vshrl.u32 %v6974, 16
        %v7314 = vrot.slane %v7312, 1
        %v7315 = vshll.u32 %v6974, 16
        %v7317 = vrot.slane %v7315, 2
        %v7318 = vor.u32 %v7314, %v7317
        %v7319 = vsel %vm2038, %v7293, %v7318
        %v7320 = vshrl.u32 %v7135, 16
        %v7322 = vrot.slane %v7320, 1
        %v7323 = vshll.u32 %v7135, 16
        %v7325 = vrot.slane %v7323, 2
        %v7326 = vor.u32 %v7322, %v7325
        %v7327 = vsel %vm2038, %v7301, %v7326
        %v7329 = vshrl.u32 %v6837, 16
        %v7331 = vrot.slane %v7329, 1
        %v7332 = vshll.u32 %v6837, 16
        %v7334 = vrot.slane %v7332, 2
        %v7335 = vor.u32 %v7331, %v7334
        %v7336 = vsel %vm2038, %v7310, %v7335
        %v7337 = vshrl.u32 %v6976, 16
        %v7339 = vrot.slane %v7337, 1
        %v7340 = vshll.u32 %v6976, 16
        %v7342 = vrot.slane %v7340, 2
        %v7343 = vor.u32 %v7339, %v7342
        %v7344 = vsel %vm2038, %v7318, %v7343
        %v7345 = vshrl.u32 %v7137, 16
        %v7347 = vrot.slane %v7345, 1
        %v7348 = vshll.u32 %v7137, 16
        %v7350 = vrot.slane %v7348, 2
        %v7351 = vor.u32 %v7347, %v7350
        %v7352 = vsel %vm2038, %v7326, %v7351
        %v7354 = vshrl.u32 %v6839, 16
        %v7356 = vrot.slane %v7354, 1
        %v7357 = vshll.u32 %v6839, 16
        %v7359 = vrot.slane %v7357, 2
        %v7360 = vor.u32 %v7356, %v7359
        %v7361 = vsel %vm2038, %v7335, %v7360
        %v7362 = vshrl.u32 %v6978, 16
        %v7364 = vrot.slane %v7362, 1
        %v7365 = vshll.u32 %v6978, 16
        %v7367 = vrot.slane %v7365, 2
        %v7368 = vor.u32 %v7364, %v7367
        %v7369 = vsel %vm2038, %v7343, %v7368
        %v7370 = vshrl.u32 %v7139, 16
        %v7372 = vrot.slane %v7370, 1
        %v7373 = vshll.u32 %v7139, 16
        %v7375 = vrot.slane %v7373, 2
        %v7376 = vor.u32 %v7372, %v7375
        %v7377 = vsel %vm2038, %v7351, %v7376
        %v7379 = vshrl.u32 %v6841, 16
        %v7381 = vrot.slane %v7379, 1
        %v7382 = vshll.u32 %v6841, 16
        %v7384 = vrot.slane %v7382, 2
        %v7385 = vor.u32 %v7381, %v7384
        %v7386 = vsel %vm2038, %v7360, %v7385
        %v7387 = vshrl.u32 %v6980, 16
        %v7389 = vrot.slane %v7387, 1
        %v7390 = vshll.u32 %v6980, 16
        %v7392 = vrot.slane %v7390, 2
        %v7393 = vor.u32 %v7389, %v7392
        %v7394 = vsel %vm2038, %v7368, %v7393
        %v7395 = vshrl.u32 %v7141, 16
        %v7397 = vrot.slane %v7395, 1
        %v7398 = vshll.u32 %v7141, 16
        %v7400 = vrot.slane %v7398, 2
        %v7401 = vor.u32 %v7397, %v7400
        %v7402 = vsel %vm2038, %v7376, %v7401
        %v7404 = vshrl.u32 %v6843, 16
        %v7406 = vrot.slane %v7404, 1
        %v7407 = vshll.u32 %v6843, 16
        %v7409 = vrot.slane %v7407, 2
        %v7410 = vor.u32 %v7406, %v7409
        %v7411 = vsel %vm2038, %v7385, %v7410
        %v7412 = vshrl.u32 %v6982, 16
        %v7414 = vrot.slane %v7412, 1
        %v7415 = vshll.u32 %v6982, 16
        %v7417 = vrot.slane %v7415, 2
        %v7418 = vor.u32 %v7414, %v7417
        %v7419 = vsel %vm2038, %v7393, %v7418
        %v7420 = vshrl.u32 %v7143, 16
        %v7422 = vrot.slane %v7420, 1
        %v7423 = vshll.u32 %v7143, 16
        %v7425 = vrot.slane %v7423, 2
        %v7426 = vor.u32 %v7422, %v7425
        %v7427 = vsel %vm2038, %v7401, %v7426
        %v7429 = vshrl.u32 %v6845, 16
        %v7431 = vrot.slane %v7429, 1
        %v7432 = vshll.u32 %v6845, 16
        %v7434 = vrot.slane %v7432, 2
        %v7435 = vor.u32 %v7431, %v7434
        %v7436 = vsel %vm2038, %v7410, %v7435
        %v7437 = vshrl.u32 %v6984, 16
        %v7439 = vrot.slane %v7437, 1
        %v7440 = vshll.u32 %v6984, 16
        %v7442 = vrot.slane %v7440, 2
        %v7443 = vor.u32 %v7439, %v7442
        %v7444 = vsel %vm2038, %v7418, %v7443
        %v7445 = vshrl.u32 %v7145, 16
        %v7447 = vrot.slane %v7445, 1
        %v7448 = vshll.u32 %v7145, 16
        %v7450 = vrot.slane %v7448, 2
        %v7451 = vor.u32 %v7447, %v7450
        %v7452 = vsel %vm2038, %v7426, %v7451
        %v7454 = vshrl.u32 %v6847, 16
        %v7456 = vrot.slane %v7454, 1
        %v7457 = vshll.u32 %v6847, 16
        %v7459 = vrot.slane %v7457, 2
        %v7460 = vor.u32 %v7456, %v7459
        %v7461 = vsel %vm2038, %v7435, %v7460
        %v7462 = vshrl.u32 %v6986, 16
        %v7464 = vrot.slane %v7462, 1
        %v7465 = vshll.u32 %v6986, 16
        %v7467 = vrot.slane %v7465, 2
        %v7468 = vor.u32 %v7464, %v7467
        %v7469 = vsel %vm2038, %v7443, %v7468
        %v7470 = vshrl.u32 %v7147, 16
        %v7472 = vrot.slane %v7470, 1
        %v7473 = vshll.u32 %v7147, 16
        %v7475 = vrot.slane %v7473, 2
        %v7476 = vor.u32 %v7472, %v7475
        %v7477 = vsel %vm2038, %v7451, %v7476
        %v7479 = vshrl.u32 %v6849, 16
        %v7481 = vrot.slane %v7479, 1
        %v7482 = vshll.u32 %v6849, 16
        %v7484 = vrot.slane %v7482, 2
        %v7485 = vor.u32 %v7481, %v7484
        %v7486 = vsel %vm2038, %v7460, %v7485
        %v7487 = vshrl.u32 %v6988, 16
        %v7489 = vrot.slane %v7487, 1
        %v7490 = vshll.u32 %v6988, 16
        %v7492 = vrot.slane %v7490, 2
        %v7493 = vor.u32 %v7489, %v7492
        %v7494 = vsel %vm2038, %v7468, %v7493
        %v7495 = vshrl.u32 %v7149, 16
        %v7497 = vrot.slane %v7495, 1
        %v7498 = vshll.u32 %v7149, 16
        %v7500 = vrot.slane %v7498, 2
        %v7501 = vor.u32 %v7497, %v7500
        %v7502 = vsel %vm2038, %v7476, %v7501
        %v7504 = vshrl.u32 %v6851, 16
        %v7506 = vrot.slane %v7504, 1
        %v7507 = vshll.u32 %v6851, 16
        %v7509 = vrot.slane %v7507, 2
        %v7510 = vor.u32 %v7506, %v7509
        %v7511 = vsel %vm2038, %v7485, %v7510
        %v7512 = vshrl.u32 %v6990, 16
        %v7514 = vrot.slane %v7512, 1
        %v7515 = vshll.u32 %v6990, 16
        %v7517 = vrot.slane %v7515, 2
        %v7518 = vor.u32 %v7514, %v7517
        %v7519 = vsel %vm2038, %v7493, %v7518
        %v7520 = vshrl.u32 %v7151, 16
        %v7522 = vrot.slane %v7520, 1
        %v7523 = vshll.u32 %v7151, 16
        %v7525 = vrot.slane %v7523, 2
        %v7526 = vor.u32 %v7522, %v7525
        %v7527 = vsel %vm2038, %v7501, %v7526
        %v7529 = vshrl.u32 %v6853, 16
        %v7531 = vrot.slane %v7529, 1
        %v7532 = vshll.u32 %v6853, 16
        %v7534 = vrot.slane %v7532, 2
        %v7535 = vor.u32 %v7531, %v7534
        %v7536 = vsel %vm2038, %v7510, %v7535
        %v7537 = vshrl.u32 %v6992, 16
        %v7539 = vrot.slane %v7537, 1
        %v7540 = vshll.u32 %v6992, 16
        %v7542 = vrot.slane %v7540, 2
        %v7543 = vor.u32 %v7539, %v7542
        %v7544 = vsel %vm2038, %v7518, %v7543
        %v7545 = vshrl.u32 %v7153, 16
        %v7547 = vrot.slane %v7545, 1
        %v7548 = vshll.u32 %v7153, 16
        %v7550 = vrot.slane %v7548, 2
        %v7551 = vor.u32 %v7547, %v7550
        %v7552 = vsel %vm2038, %v7526, %v7551
        %v7554 = vshrl.u32 %v6855, 16
        %v7556 = vrot.slane %v7554, 1
        %v7557 = vshll.u32 %v6855, 16
        %v7559 = vrot.slane %v7557, 2
        %v7560 = vor.u32 %v7556, %v7559
        %v7561 = vsel %vm2038, %v7535, %v7560
        %v7562 = vshrl.u32 %v6994, 16
        %v7564 = vrot.slane %v7562, 1
        %v7565 = vshll.u32 %v6994, 16
        %v7567 = vrot.slane %v7565, 2
        %v7568 = vor.u32 %v7564, %v7567
        %v7569 = vsel %vm2038, %v7543, %v7568
        %v7570 = vshrl.u32 %v7155, 16
        %v7572 = vrot.slane %v7570, 1
        %v7573 = vshll.u32 %v7155, 16
        %v7575 = vrot.slane %v7573, 2
        %v7576 = vor.u32 %v7572, %v7575
        %v7577 = vsel %vm2038, %v7551, %v7576
        %v7579 = vshrl.u32 %v6857, 16
        %v7581 = vrot.slane %v7579, 1
        %v7582 = vshll.u32 %v6857, 16
        %v7584 = vrot.slane %v7582, 2
        %v7585 = vor.u32 %v7581, %v7584
        %v7586 = vsel %vm2038, %v7560, %v7585
        %v7587 = vshrl.u32 %v6996, 16
        %v7589 = vrot.slane %v7587, 1
        %v7590 = vshll.u32 %v6996, 16
        %v7592 = vrot.slane %v7590, 2
        %v7593 = vor.u32 %v7589, %v7592
        %v7594 = vsel %vm2038, %v7568, %v7593
        %v7595 = vshrl.u32 %v7157, 16
        %v7597 = vrot.slane %v7595, 1
        %v7598 = vshll.u32 %v7157, 16
        %v7600 = vrot.slane %v7598, 2
        %v7601 = vor.u32 %v7597, %v7600
        %v7602 = vsel %vm2038, %v7576, %v7601
        %v7604 = vshrl.u32 %v6859, 16
        %v7606 = vrot.slane %v7604, 1
        %v7607 = vshll.u32 %v6859, 16
        %v7609 = vrot.slane %v7607, 2
        %v7610 = vor.u32 %v7606, %v7609
        %v7611 = vsel %vm2038, %v7585, %v7610
        %v7612 = vshrl.u32 %v6998, 16
        %v7614 = vrot.slane %v7612, 1
        %v7615 = vshll.u32 %v6998, 16
        %v7617 = vrot.slane %v7615, 2
        %v7618 = vor.u32 %v7614, %v7617
        %v7619 = vsel %vm2038, %v7593, %v7618
        %v7620 = vshrl.u32 %v7159, 16
        %v7622 = vrot.slane %v7620, 1
        %v7623 = vshll.u32 %v7159, 16
        %v7625 = vrot.slane %v7623, 2
        %v7626 = vor.u32 %v7622, %v7625
        %v7627 = vsel %vm2038, %v7601, %v7626
        %v7629 = vshrl.u32 %v6861, 16
        %v7631 = vrot.slane %v7629, 1
        %v7632 = vshll.u32 %v6861, 16
        %v7634 = vrot.slane %v7632, 2
        %v7635 = vor.u32 %v7631, %v7634
        %v7636 = vsel %vm2038, %v7610, %v7635
        %v7637 = vshrl.u32 %v7000, 16
        %v7639 = vrot.slane %v7637, 1
        %v7640 = vshll.u32 %v7000, 16
        %v7642 = vrot.slane %v7640, 2
        %v7643 = vor.u32 %v7639, %v7642
        %v7644 = vsel %vm2038, %v7618, %v7643
        %v7645 = vshrl.u32 %v7161, 16
        %v7647 = vrot.slane %v7645, 1
        %v7648 = vshll.u32 %v7161, 16
        %v7650 = vrot.slane %v7648, 2
        %v7651 = vor.u32 %v7647, %v7650
        %v7652 = vsel %vm2038, %v7626, %v7651
        %v7654 = vshrl.u32 %v6863, 16
        %v7656 = vrot.slane %v7654, 1
        %v7657 = vshll.u32 %v6863, 16
        %v7659 = vrot.slane %v7657, 2
        %v7660 = vor.u32 %v7656, %v7659
        %v7661 = vsel %vm2038, %v7635, %v7660
        %v7662 = vshrl.u32 %v7002, 16
        %v7664 = vrot.slane %v7662, 1
        %v7665 = vshll.u32 %v7002, 16
        %v7667 = vrot.slane %v7665, 2
        %v7668 = vor.u32 %v7664, %v7667
        %v7669 = vsel %vm2038, %v7643, %v7668
        %v7670 = vshrl.u32 %v7163, 16
        %v7672 = vrot.slane %v7670, 1
        %v7673 = vshll.u32 %v7163, 16
        %v7675 = vrot.slane %v7673, 2
        %v7676 = vor.u32 %v7672, %v7675
        %v7677 = vsel %vm2038, %v7651, %v7676
        %v7679 = vshrl.u32 %v6865, 16
        %v7681 = vrot.slane %v7679, 1
        %v7682 = vshll.u32 %v6865, 16
        %v7684 = vrot.slane %v7682, 2
        %v7685 = vor.u32 %v7681, %v7684
        %v7686 = vsel %vm2038, %v7660, %v7685
        %v7687 = vshrl.u32 %v7004, 16
        %v7689 = vrot.slane %v7687, 1
        %v7690 = vshll.u32 %v7004, 16
        %v7692 = vrot.slane %v7690, 2
        %v7693 = vor.u32 %v7689, %v7692
        %v7694 = vsel %vm2038, %v7668, %v7693
        %v7695 = vshrl.u32 %v7165, 16
        %v7697 = vrot.slane %v7695, 1
        %v7698 = vshll.u32 %v7165, 16
        %v7700 = vrot.slane %v7698, 2
        %v7701 = vor.u32 %v7697, %v7700
        %v7702 = vsel %vm2038, %v7676, %v7701
        %v7704 = vshrl.u32 %v6867, 16
        %v7706 = vrot.slane %v7704, 1
        %v7707 = vshll.u32 %v6867, 16
        %v7709 = vrot.slane %v7707, 2
        %v7710 = vor.u32 %v7706, %v7709
        %v7711 = vsel %vm2038, %v7685, %v7710
        %v7712 = vshrl.u32 %v7006, 16
        %v7714 = vrot.slane %v7712, 1
        %v7715 = vshll.u32 %v7006, 16
        %v7717 = vrot.slane %v7715, 2
        %v7718 = vor.u32 %v7714, %v7717
        %v7719 = vsel %vm2038, %v7693, %v7718
        %v7720 = vshrl.u32 %v7167, 16
        %v7722 = vrot.slane %v7720, 1
        %v7723 = vshll.u32 %v7167, 16
        %v7725 = vrot.slane %v7723, 2
        %v7726 = vor.u32 %v7722, %v7725
        %v7727 = vsel %vm2038, %v7701, %v7726
        %v7729 = vshrl.u32 %v6869, 16
        %v7731 = vrot.slane %v7729, 1
        %v7732 = vshll.u32 %v6869, 16
        %v7734 = vrot.slane %v7732, 2
        %v7735 = vor.u32 %v7731, %v7734
        %v7736 = vsel %vm2038, %v7710, %v7735
        %v7737 = vshrl.u32 %v7008, 16
        %v7739 = vrot.slane %v7737, 1
        %v7740 = vshll.u32 %v7008, 16
        %v7742 = vrot.slane %v7740, 2
        %v7743 = vor.u32 %v7739, %v7742
        %v7744 = vsel %vm2038, %v7718, %v7743
        %v7745 = vshrl.u32 %v7169, 16
        %v7747 = vrot.slane %v7745, 1
        %v7748 = vshll.u32 %v7169, 16
        %v7750 = vrot.slane %v7748, 2
        %v7751 = vor.u32 %v7747, %v7750
        %v7752 = vsel %vm2038, %v7726, %v7751
        %v7754 = vshrl.u32 %v6871, 16
        %v7756 = vrot.slane %v7754, 1
        %v7757 = vshll.u32 %v6871, 16
        %v7759 = vrot.slane %v7757, 2
        %v7760 = vor.u32 %v7756, %v7759
        %v7761 = vsel %vm2038, %v7735, %v7760
        %v7762 = vshrl.u32 %v7010, 16
        %v7764 = vrot.slane %v7762, 1
        %v7765 = vshll.u32 %v7010, 16
        %v7767 = vrot.slane %v7765, 2
        %v7768 = vor.u32 %v7764, %v7767
        %v7769 = vsel %vm2038, %v7743, %v7768
        %v7770 = vshrl.u32 %v7171, 16
        %v7772 = vrot.slane %v7770, 1
        %v7773 = vshll.u32 %v7171, 16
        %v7775 = vrot.slane %v7773, 2
        %v7776 = vor.u32 %v7772, %v7775
        %v7777 = vsel %vm2038, %v7751, %v7776
        %v7779 = vshrl.u32 %v6870, 16
        %v7781 = vrot.slane %v7779, 1
        %v7782 = vshll.u32 %v6870, 16
        %v7784 = vrot.slane %v7782, 2
        %v7785 = vor.u32 %v7781, %v7784
        %v7786 = vsel %vm2038, %v7760, %v7785
        %v7869 = vunpack.c.l.b16 %v7172
        %v7870 = vunpack.c.l.b16 %v7173
        %v7871 = vunpack.c.l.b16 %v7174
        %v7872 = vunpack.c.l.b16 %v7175
        %v7873 = vunpack.c.l.b16 %v7176
        %v7874 = vunpack.c.l.b16 %v7177
        %v7875 = vunpack.c.l.b16 %v7178
        %v7876 = vunpack.c.l.b16 %v7179
        %v7877 = vunpack.c.l.b16 %v7180
        %v7878 = vunpack.c.l.b16 %v7181
        %v7879 = vunpack.c.l.b16 %v7182
        %v7880 = vunpack.c.l.b16 %v7183
        %v7881 = vunpack.c.l.b16 %v7184
        %v7882 = vunpack.c.l.b16 %v7185
        %v7883 = vunpack.c.l.b16 %v7186
        %v7884 = vunpack.c.l.b16 %v7187
        %v7885 = vunpack.c.l.b16 %v7188
        %v7886 = vunpack.c.l.b16 %v7189
        %v7887 = vunpack.c.l.b16 %v7190
        %v7888 = vunpack.c.l.b16 %v7191
        %v7889 = vunpack.c.l.b16 %v7192
        %v7890 = vunpack.c.l.b16 %v7193
        %v7891 = vunpack.c.l.b16 %v7194
        %v7892 = vunpack.c.l.b16 %v7195
        %v7893 = vunpack.c.l.b16 %v7196
        %v7894 = vunpack.c.l.b16 %v7197
        %v7895 = vunpack.c.l.b16 %v7198
        %v7896 = vunpack.c.l.b16 %v7199
        %v7897 = vunpack.c.l.b16 %v7200
        %v7898 = vunpack.c.l.b16 %v7201
        %v7899 = vunpack.c.l.b16 %v7202
        %v7900 = vunpack.c.l.b16 %v7203
        %v7901 = vunpack.c.l.b16 %v7204
        %v7902 = vunpack.c.l.b16 %v7205
        %v7903 = vunpack.c.l.b16 %v7206
        %v7904 = vunpack.c.l.b16 %v7207
        %v7905 = vpack.c.b16 %v7870, %v7869
        %v7906 = vpack.c.b16 %v7872, %v7871
        %v7907 = vpack.c.b16 %v7874, %v7873
        %v7908 = vpack.c.b16 %v7876, %v7875
        %v7909 = vpack.c.b16 %v7878, %v7877
        %v7910 = vpack.c.b16 %v7880, %v7879
        %v7911 = vpack.c.b16 %v7882, %v7881
        %v7912 = vpack.c.b16 %v7884, %v7883
        %v7913 = vpack.c.b16 %v7886, %v7885
        %v7914 = vpack.c.b16 %v7888, %v7887
        %v7915 = vpack.c.b16 %v7890, %v7889
        %v7916 = vpack.c.b16 %v7892, %v7891
        %v7917 = vpack.c.b16 %v7894, %v7893
        %v7918 = vpack.c.b16 %v7896, %v7895
        %v7919 = vpack.c.b16 %v7898, %v7897
        %v7920 = vpack.c.b16 %v7900, %v7899
        %v7921 = vpack.c.b16 %v7902, %v7901
        %v7922 = vpack.c.b16 %v7904, %v7903
        %v7942 = vsel %vm1979, %v7261, 0
        %v7945 = vsel %vm1979, %v7286, 0
        %v7948 = vsel %vm1979, %v7311, 0
        %v7951 = vsel %vm1979, %v7336, 0
        %v7954 = vsel %vm1979, %v7361, 0
        %v7957 = vsel %vm1979, %v7386, 0
        %v7960 = vsel %vm1979, %v7411, 0
        %v7963 = vsel %vm1979, %v7436, 0
        %v7966 = vsel %vm1979, %v7461, 0
        %v7969 = vsel %vm1979, %v7486, 0
        %v7972 = vsel %vm1979, %v7511, 0
        %v7975 = vsel %vm1979, %v7536, 0
        %v7978 = vsel %vm1979, %v7561, 0
        %v7981 = vsel %vm1979, %v7586, 0
        %v7984 = vsel %vm1979, %v7611, 0
        %v7987 = vsel %vm1979, %v7636, 0
        %v7990 = vsel %vm1979, %v7661, 0
        %v7993 = vsel %vm1979, %v7686, 0
        %v7996 = vsel %vm1979, %v7711, 0
        %v7999 = vsel %vm1979, %v7736, 0
        %v8002 = vsel %vm1979, %v7761, 0
        %v8005 = vsel %vm1979, %v7786, 0
        %v8008 = vsel %vm1979, %v7785, 0
        %8010 = vmatprep.subr.bf16.mxu0 0
        %8011 = vmatpush1.bf16.msra.mxu0 %v7912
        %8012 = vmatprep.subr.bf16.mxu0 0
        %8013 = vmatpush1.bf16.msra.mxu0 %v7911
        %8014 = vmatprep.subr.bf16.mxu0 0
        %8015 = vmatpush1.bf16.msra.mxu0 %v7910
        %8016 = vmatprep.subr.bf16.mxu0 0
        %8017 = vmatpush1.bf16.msra.mxu0 %v7909
        %8018 = vmatprep.subr.bf16.mxu0 0
        %8019 = vmatpush1.bf16.msra.mxu0 %v7908
        %8020 = vmatprep.subr.bf16.mxu0 0
        %8021 = vmatpush1.bf16.msra.mxu0 %v7907
        %8022 = vmatprep.subr.bf16.mxu0 0
        %8023 = vmatpush1.bf16.msra.mxu0 %v7906
        %8024 = vmatprep.subr.bf16.mxu0 0
        %8025 = vmatpush1.bf16.msra.mxu0 %v7905
        %8026 = vmatprep.subr.bf16.mxu0 0
        %8027 = vmatpush2.bf16.msra.mxu0 %v7920
        %8028 = vmatprep.subr.bf16.mxu0 0
        %8029 = vmatpush2.bf16.msra.mxu0 %v7919
        %8030 = vmatprep.subr.bf16.mxu0 0
        %8031 = vmatpush2.bf16.msra.mxu0 %v7918
        %8032 = vmatprep.subr.bf16.mxu0 0
        %8033 = vmatpush2.bf16.msra.mxu0 %v7917
        %8034 = vmatprep.subr.bf16.mxu0 0
        %8035 = vmatpush2.bf16.msra.mxu0 %v7916
        %8036 = vmatprep.subr.bf16.mxu0 0
        %8037 = vmatpush2.bf16.msra.mxu0 %v7915
        %8038 = vmatprep.subr.bf16.mxu0 0
        %8039 = vmatpush2.bf16.msra.mxu0 %v7914
        %8040 = vmatprep.subr.bf16.mxu0 0
        %8041 = vmatpush2.bf16.msra.mxu0 %v7913
        %8042 = vmatprep.mubr.bf16.mxu0 %v7244
        %8043 = vmatmul.mubr.bf16.gmra.mxu0 %v7229
        %v8044 = vpop.f32.mrf.mxu0
        %v8045 = vadd.f32 %v7213, %v8044
        %v8046 = vpop.f32.mrf.mxu0
        %v8047 = vpop.f32.mrf.mxu0
        %v8048 = vadd.f32 %v7213, %v8047
        %v8049 = vpop.f32.mrf.mxu0
        %8050 = vmatprep.mubr.bf16.mxu0 %v7277
        %8051 = vmatmul.mubr.bf16.gmra.mxu0 %v7269
        %v8052 = vpop.f32.mrf.mxu0
        %v8053 = vadd.f32 %v7213, %v8052
        %v8054 = vpop.f32.mrf.mxu0
        %v8055 = vpop.f32.mrf.mxu0
        %v8056 = vadd.f32 %v7213, %v8055
        %v8057 = vpop.f32.mrf.mxu0
        %8058 = vmatprep.mubr.bf16.mxu0 %v7302
        %8059 = vmatmul.mubr.bf16.gmra.mxu0 %v7294
        %v8060 = vpop.f32.mrf.mxu0
        %v8061 = vadd.f32 %v7213, %v8060
        %v8062 = vpop.f32.mrf.mxu0
        %v8063 = vpop.f32.mrf.mxu0
        %v8064 = vadd.f32 %v7213, %v8063
        %v8065 = vpop.f32.mrf.mxu0
        %8066 = vmatprep.mubr.bf16.mxu0 %v7327
        %8067 = vmatmul.mubr.bf16.gmra.mxu0 %v7319
        %v8068 = vpop.f32.mrf.mxu0
        %v8069 = vadd.f32 %v7213, %v8068
        %v8070 = vpop.f32.mrf.mxu0
        %v8071 = vpop.f32.mrf.mxu0
        %v8072 = vadd.f32 %v7213, %v8071
        %v8073 = vpop.f32.mrf.mxu0
        %8074 = vmatprep.mubr.bf16.mxu0 %v7352
        %8075 = vmatmul.mubr.bf16.gmra.mxu0 %v7344
        %v8076 = vpop.f32.mrf.mxu0
        %v8077 = vadd.f32 %v7213, %v8076
        %v8078 = vpop.f32.mrf.mxu0
        %v8079 = vpop.f32.mrf.mxu0
        %v8080 = vadd.f32 %v7213, %v8079
        %v8081 = vpop.f32.mrf.mxu0
        %8082 = vmatprep.mubr.bf16.mxu0 %v7377
        %8083 = vmatmul.mubr.bf16.gmra.mxu0 %v7369
        %v8084 = vpop.f32.mrf.mxu0
        %v8085 = vadd.f32 %v7213, %v8084
        %v8086 = vpop.f32.mrf.mxu0
        %v8087 = vpop.f32.mrf.mxu0
        %v8088 = vadd.f32 %v7213, %v8087
        %v8089 = vpop.f32.mrf.mxu0
        %8090 = vmatprep.mubr.bf16.mxu0 %v7402
        %8091 = vmatmul.mubr.bf16.gmra.mxu0 %v7394
        %v8092 = vpop.f32.mrf.mxu0
        %v8093 = vadd.f32 %v7213, %v8092
        %v8094 = vpop.f32.mrf.mxu0
        %v8095 = vpop.f32.mrf.mxu0
        %v8096 = vadd.f32 %v7213, %v8095
        %v8097 = vpop.f32.mrf.mxu0
        %8098 = vmatprep.mubr.bf16.mxu0 %v7427
        %8099 = vmatmul.mubr.bf16.gmra.mxu0 %v7419
        %v8100 = vpop.f32.mrf.mxu0
        %v8101 = vadd.f32 %v7213, %v8100
        %v8102 = vpop.f32.mrf.mxu0
        %v8103 = vpop.f32.mrf.mxu0
        %v8104 = vadd.f32 %v7213, %v8103
        %v8105 = vpop.f32.mrf.mxu0
        %8106 = vmatprep.mubr.bf16.mxu0 %v7452
        %8107 = vmatmul.mubr.bf16.gmra.mxu0 %v7444
        %v8108 = vpop.f32.mrf.mxu0
        %v8109 = vadd.f32 %v7213, %v8108
        %v8110 = vpop.f32.mrf.mxu0
        %v8111 = vpop.f32.mrf.mxu0
        %v8112 = vadd.f32 %v7213, %v8111
        %v8113 = vpop.f32.mrf.mxu0
        %8114 = vmatprep.mubr.bf16.mxu0 %v7477
        %8115 = vmatmul.mubr.bf16.gmra.mxu0 %v7469
        %v8116 = vpop.f32.mrf.mxu0
        %v8117 = vadd.f32 %v7213, %v8116
        %v8118 = vpop.f32.mrf.mxu0
        %v8119 = vpop.f32.mrf.mxu0
        %v8120 = vadd.f32 %v7213, %v8119
        %v8121 = vpop.f32.mrf.mxu0
        %8122 = vmatprep.mubr.bf16.mxu0 %v7502
        %8123 = vmatmul.mubr.bf16.gmra.mxu0 %v7494
        %v8124 = vpop.f32.mrf.mxu0
        %v8125 = vadd.f32 %v7213, %v8124
        %v8126 = vpop.f32.mrf.mxu0
        %v8127 = vpop.f32.mrf.mxu0
        %v8128 = vadd.f32 %v7213, %v8127
        %v8129 = vpop.f32.mrf.mxu0
        %8130 = vmatprep.mubr.bf16.mxu0 %v7527
        %8131 = vmatmul.mubr.bf16.gmra.mxu0 %v7519
        %v8132 = vpop.f32.mrf.mxu0
        %v8133 = vadd.f32 %v7213, %v8132
        %v8134 = vpop.f32.mrf.mxu0
        %v8135 = vpop.f32.mrf.mxu0
        %v8136 = vadd.f32 %v7213, %v8135
        %v8137 = vpop.f32.mrf.mxu0
        %8138 = vmatprep.mubr.bf16.mxu0 %v7552
        %8139 = vmatmul.mubr.bf16.gmra.mxu0 %v7544
        %v8140 = vpop.f32.mrf.mxu0
        %v8141 = vadd.f32 %v7213, %v8140
        %v8142 = vpop.f32.mrf.mxu0
        %v8143 = vpop.f32.mrf.mxu0
        %v8144 = vadd.f32 %v7213, %v8143
        %v8145 = vpop.f32.mrf.mxu0
        %8146 = vmatprep.mubr.bf16.mxu0 %v7577
        %8147 = vmatmul.mubr.bf16.gmra.mxu0 %v7569
        %v8148 = vpop.f32.mrf.mxu0
        %v8149 = vadd.f32 %v7213, %v8148
        %v8150 = vpop.f32.mrf.mxu0
        %v8151 = vpop.f32.mrf.mxu0
        %v8152 = vadd.f32 %v7213, %v8151
        %v8153 = vpop.f32.mrf.mxu0
        %8154 = vmatprep.mubr.bf16.mxu0 %v7602
        %8155 = vmatmul.mubr.bf16.gmra.mxu0 %v7594
        %v8156 = vpop.f32.mrf.mxu0
        %v8157 = vadd.f32 %v7213, %v8156
        %v8158 = vpop.f32.mrf.mxu0
        %v8159 = vpop.f32.mrf.mxu0
        %v8160 = vadd.f32 %v7213, %v8159
        %v8161 = vpop.f32.mrf.mxu0
        %8162 = vmatprep.mubr.bf16.mxu0 %v7627
        %8163 = vmatmul.mubr.bf16.gmra.mxu0 %v7619
        %v8164 = vpop.f32.mrf.mxu0
        %v8165 = vadd.f32 %v7213, %v8164
        %v8166 = vpop.f32.mrf.mxu0
        %v8167 = vpop.f32.mrf.mxu0
        %v8168 = vadd.f32 %v7213, %v8167
        %v8169 = vpop.f32.mrf.mxu0
        %8170 = vmatprep.mubr.bf16.mxu0 %v7652
        %8171 = vmatmul.mubr.bf16.gmra.mxu0 %v7644
        %v8172 = vpop.f32.mrf.mxu0
        %v8173 = vadd.f32 %v7213, %v8172
        %v8174 = vpop.f32.mrf.mxu0
        %v8175 = vpop.f32.mrf.mxu0
        %v8176 = vadd.f32 %v7213, %v8175
        %v8177 = vpop.f32.mrf.mxu0
        %8178 = vmatprep.mubr.bf16.mxu0 %v7677
        %8179 = vmatmul.mubr.bf16.gmra.mxu0 %v7669
        %v8180 = vpop.f32.mrf.mxu0
        %v8181 = vadd.f32 %v7213, %v8180
        %v8182 = vpop.f32.mrf.mxu0
        %v8183 = vpop.f32.mrf.mxu0
        %v8184 = vadd.f32 %v7213, %v8183
        %v8185 = vpop.f32.mrf.mxu0
        %8186 = vmatprep.mubr.bf16.mxu0 %v7702
        %8187 = vmatmul.mubr.bf16.gmra.mxu0 %v7694
        %v8188 = vpop.f32.mrf.mxu0
        %v8189 = vadd.f32 %v7213, %v8188
        %v8190 = vpop.f32.mrf.mxu0
        %v8191 = vpop.f32.mrf.mxu0
        %v8192 = vadd.f32 %v7213, %v8191
        %v8193 = vpop.f32.mrf.mxu0
        %8194 = vmatprep.mubr.bf16.mxu0 %v7727
        %8195 = vmatmul.mubr.bf16.gmra.mxu0 %v7719
        %v8196 = vpop.f32.mrf.mxu0
        %v8197 = vadd.f32 %v7213, %v8196
        %v8198 = vpop.f32.mrf.mxu0
        %v8199 = vpop.f32.mrf.mxu0
        %v8200 = vadd.f32 %v7213, %v8199
        %v8201 = vpop.f32.mrf.mxu0
        %8202 = vmatprep.mubr.bf16.mxu0 %v7752
        %8203 = vmatmul.mubr.bf16.gmra.mxu0 %v7744
        %v8204 = vpop.f32.mrf.mxu0
        %v8205 = vadd.f32 %v7213, %v8204
        %v8206 = vpop.f32.mrf.mxu0
        %v8207 = vpop.f32.mrf.mxu0
        %v8208 = vadd.f32 %v7213, %v8207
        %v8209 = vpop.f32.mrf.mxu0
        %8210 = vmatprep.mubr.bf16.mxu0 %v7777
        %8211 = vmatmul.mubr.bf16.gmra.mxu0 %v7769
        %v8212 = vpop.f32.mrf.mxu0
        %v8213 = vadd.f32 %v7213, %v8212
        %v8214 = vpop.f32.mrf.mxu0
        %v8215 = vpop.f32.mrf.mxu0
        %v8216 = vadd.f32 %v7213, %v8215
        %v8217 = vpop.f32.mrf.mxu0
        %8218 = vmatprep.mubr.bf16.mxu0 %v7776
        %8219 = vmatmul.mubr.bf16.gmra.mxu0 %v7768
        %v8220 = vpop.f32.mrf.mxu0
        %v8221 = vadd.f32 %v7213, %v8220
        %v8222 = vpop.f32.mrf.mxu0
        %v8223 = vpop.f32.mrf.mxu0
        %v8224 = vpop.f32.mrf.mxu0
        %8225 = vdwg.mxu0
        %8226 = vmatprep.subr.bf16.mxu0 0
        %8227 = vmatpush1.bf16.msra.mxu0 0
        %8228 = vmatprep.subr.bf16.mxu0 0
        %8229 = vmatpush1.bf16.msra.mxu0 0
        %8230 = vmatprep.subr.bf16.mxu0 0
        %8231 = vmatpush1.bf16.msra.mxu0 0
        %8232 = vmatprep.subr.bf16.mxu0 0
        %8233 = vmatpush1.bf16.msra.mxu0 0
        %8234 = vmatprep.subr.bf16.mxu0 0
        %8235 = vmatpush1.bf16.msra.mxu0 0
        %8236 = vmatprep.subr.bf16.mxu0 0
        %8237 = vmatpush1.bf16.msra.mxu0 0
        %8238 = vmatprep.subr.bf16.mxu0 0
        %8239 = vmatpush1.bf16.msra.mxu0 %v7922
        %8240 = vmatprep.subr.bf16.mxu0 0
        %8241 = vmatpush1.bf16.msra.mxu0 %v7921
        %8242 = vmatprep.subr.bf16.mxu0 0
        %8243 = vmatpush2.bf16.msra.mxu0 0
        %8244 = vmatprep.subr.bf16.mxu0 0
        %8245 = vmatpush2.bf16.msra.mxu0 0
        %8246 = vmatprep.subr.bf16.mxu0 0
        %8247 = vmatpush2.bf16.msra.mxu0 0
        %8248 = vmatprep.subr.bf16.mxu0 0
        %8249 = vmatpush2.bf16.msra.mxu0 0
        %8250 = vmatprep.subr.bf16.mxu0 0
        %8251 = vmatpush2.bf16.msra.mxu0 0
        %8252 = vmatprep.subr.bf16.mxu0 0
        %8253 = vmatpush2.bf16.msra.mxu0 0
        %8254 = vmatprep.subr.bf16.mxu0 0
        %8255 = vmatpush2.bf16.msra.mxu0 0
        %8256 = vmatprep.subr.bf16.mxu0 0
        %8257 = vmatpush2.bf16.msra.mxu0 0
        %8258 = vmatprep.mubr.bf16.mxu0 0
        %8259 = vmatmul.mubr.bf16.gmra.mxu0 %v7942
        %v8260 = vpop.f32.mrf.mxu0
        %v8261 = vadd.f32 %v8045, %v8260
        %v8262 = vpop.f32.mrf.mxu0
        %v8263 = vpop.f32.mrf.mxu0
        %v8264 = vadd.f32 %v8048, %v8263
        %v8265 = vpop.f32.mrf.mxu0
        %8266 = vmatprep.mubr.bf16.mxu0 0
        %8267 = vmatmul.mubr.bf16.gmra.mxu0 %v7945
        %v8268 = vpop.f32.mrf.mxu0
        %v8269 = vadd.f32 %v8053, %v8268
        %v8270 = vpop.f32.mrf.mxu0
        %v8271 = vpop.f32.mrf.mxu0
        %v8272 = vadd.f32 %v8056, %v8271
        %v8273 = vpop.f32.mrf.mxu0
        %8274 = vmatprep.mubr.bf16.mxu0 0
        %8275 = vmatmul.mubr.bf16.gmra.mxu0 %v7948
        %v8276 = vpop.f32.mrf.mxu0
        %v8277 = vadd.f32 %v8061, %v8276
        %v8278 = vpop.f32.mrf.mxu0
        %v8279 = vpop.f32.mrf.mxu0
        %v8280 = vadd.f32 %v8064, %v8279
        %v8281 = vpop.f32.mrf.mxu0
        %8282 = vmatprep.mubr.bf16.mxu0 0
        %8283 = vmatmul.mubr.bf16.gmra.mxu0 %v7951
        %v8284 = vpop.f32.mrf.mxu0
        %v8285 = vadd.f32 %v8069, %v8284
        %v8286 = vpop.f32.mrf.mxu0
        %v8287 = vpop.f32.mrf.mxu0
        %v8288 = vadd.f32 %v8072, %v8287
        %v8289 = vpop.f32.mrf.mxu0
        %8290 = vmatprep.mubr.bf16.mxu0 0
        %8291 = vmatmul.mubr.bf16.gmra.mxu0 %v7954
        %v8292 = vpop.f32.mrf.mxu0
        %v8293 = vadd.f32 %v8077, %v8292
        %v8294 = vpop.f32.mrf.mxu0
        %v8295 = vpop.f32.mrf.mxu0
        %v8296 = vadd.f32 %v8080, %v8295
        %v8297 = vpop.f32.mrf.mxu0
        %8298 = vmatprep.mubr.bf16.mxu0 0
        %8299 = vmatmul.mubr.bf16.gmra.mxu0 %v7957
        %v8300 = vpop.f32.mrf.mxu0
        %v8301 = vadd.f32 %v8085, %v8300
        %v8302 = vpop.f32.mrf.mxu0
        %v8303 = vpop.f32.mrf.mxu0
        %v8304 = vadd.f32 %v8088, %v8303
        %v8305 = vpop.f32.mrf.mxu0
        %8306 = vmatprep.mubr.bf16.mxu0 0
        %8307 = vmatmul.mubr.bf16.gmra.mxu0 %v7960
        %v8308 = vpop.f32.mrf.mxu0
        %v8309 = vadd.f32 %v8093, %v8308
        %v8310 = vpop.f32.mrf.mxu0
        %v8311 = vpop.f32.mrf.mxu0
        %v8312 = vadd.f32 %v8096, %v8311
        %v8313 = vpop.f32.mrf.mxu0
        %8314 = vmatprep.mubr.bf16.mxu0 0
        %8315 = vmatmul.mubr.bf16.gmra.mxu0 %v7963
        %v8316 = vpop.f32.mrf.mxu0
        %v8317 = vadd.f32 %v8101, %v8316
        %v8318 = vpop.f32.mrf.mxu0
        %v8319 = vpop.f32.mrf.mxu0
        %v8320 = vadd.f32 %v8104, %v8319
        %v8321 = vpop.f32.mrf.mxu0
        %8322 = vmatprep.mubr.bf16.mxu0 0
        %8323 = vmatmul.mubr.bf16.gmra.mxu0 %v7966
        %v8324 = vpop.f32.mrf.mxu0
        %v8325 = vadd.f32 %v8109, %v8324
        %v8326 = vpop.f32.mrf.mxu0
        %v8327 = vpop.f32.mrf.mxu0
        %v8328 = vadd.f32 %v8112, %v8327
        %v8329 = vpop.f32.mrf.mxu0
        %8330 = vmatprep.mubr.bf16.mxu0 0
        %8331 = vmatmul.mubr.bf16.gmra.mxu0 %v7969
        %v8332 = vpop.f32.mrf.mxu0
        %v8333 = vadd.f32 %v8117, %v8332
        %v8334 = vpop.f32.mrf.mxu0
        %v8335 = vpop.f32.mrf.mxu0
        %v8336 = vadd.f32 %v8120, %v8335
        %v8337 = vpop.f32.mrf.mxu0
        %8338 = vmatprep.mubr.bf16.mxu0 0
        %8339 = vmatmul.mubr.bf16.gmra.mxu0 %v7972
        %v8340 = vpop.f32.mrf.mxu0
        %v8341 = vadd.f32 %v8125, %v8340
        %v8342 = vpop.f32.mrf.mxu0
        %v8343 = vpop.f32.mrf.mxu0
        %v8344 = vadd.f32 %v8128, %v8343
        %v8345 = vpop.f32.mrf.mxu0
        %8346 = vmatprep.mubr.bf16.mxu0 0
        %8347 = vmatmul.mubr.bf16.gmra.mxu0 %v7975
        %v8348 = vpop.f32.mrf.mxu0
        %v8349 = vadd.f32 %v8133, %v8348
        %v8350 = vpop.f32.mrf.mxu0
        %v8351 = vpop.f32.mrf.mxu0
        %v8352 = vadd.f32 %v8136, %v8351
        %v8353 = vpop.f32.mrf.mxu0
        %8354 = vmatprep.mubr.bf16.mxu0 0
        %8355 = vmatmul.mubr.bf16.gmra.mxu0 %v7978
        %v8356 = vpop.f32.mrf.mxu0
        %v8357 = vadd.f32 %v8141, %v8356
        %v8358 = vpop.f32.mrf.mxu0
        %v8359 = vpop.f32.mrf.mxu0
        %v8360 = vadd.f32 %v8144, %v8359
        %v8361 = vpop.f32.mrf.mxu0
        %8362 = vmatprep.mubr.bf16.mxu0 0
        %8363 = vmatmul.mubr.bf16.gmra.mxu0 %v7981
        %v8364 = vpop.f32.mrf.mxu0
        %v8365 = vadd.f32 %v8149, %v8364
        %v8366 = vpop.f32.mrf.mxu0
        %v8367 = vpop.f32.mrf.mxu0
        %v8368 = vadd.f32 %v8152, %v8367
        %v8369 = vpop.f32.mrf.mxu0
        %8370 = vmatprep.mubr.bf16.mxu0 0
        %8371 = vmatmul.mubr.bf16.gmra.mxu0 %v7984
        %v8372 = vpop.f32.mrf.mxu0
        %v8373 = vadd.f32 %v8157, %v8372
        %v8374 = vpop.f32.mrf.mxu0
        %v8375 = vpop.f32.mrf.mxu0
        %v8376 = vadd.f32 %v8160, %v8375
        %v8377 = vpop.f32.mrf.mxu0
        %8378 = vmatprep.mubr.bf16.mxu0 0
        %8379 = vmatmul.mubr.bf16.gmra.mxu0 %v7987
        %v8380 = vpop.f32.mrf.mxu0
        %v8381 = vadd.f32 %v8165, %v8380
        %v8382 = vpop.f32.mrf.mxu0
        %v8383 = vpop.f32.mrf.mxu0
        %v8384 = vadd.f32 %v8168, %v8383
        %v8385 = vpop.f32.mrf.mxu0
        %8386 = vmatprep.mubr.bf16.mxu0 0
        %8387 = vmatmul.mubr.bf16.gmra.mxu0 %v7990
        %v8388 = vpop.f32.mrf.mxu0
        %v8389 = vadd.f32 %v8173, %v8388
        %v8390 = vpop.f32.mrf.mxu0
        %v8391 = vpop.f32.mrf.mxu0
        %v8392 = vadd.f32 %v8176, %v8391
        %v8393 = vpop.f32.mrf.mxu0
        %8394 = vmatprep.mubr.bf16.mxu0 0
        %8395 = vmatmul.mubr.bf16.gmra.mxu0 %v7993
        %v8396 = vpop.f32.mrf.mxu0
        %v8397 = vadd.f32 %v8181, %v8396
        %v8398 = vpop.f32.mrf.mxu0
        %v8399 = vpop.f32.mrf.mxu0
        %v8400 = vadd.f32 %v8184, %v8399
        %v8401 = vpop.f32.mrf.mxu0
        %8402 = vmatprep.mubr.bf16.mxu0 0
        %8403 = vmatmul.mubr.bf16.gmra.mxu0 %v7996
        %v8404 = vpop.f32.mrf.mxu0
        %v8405 = vadd.f32 %v8189, %v8404
        %v8406 = vpop.f32.mrf.mxu0
        %v8407 = vpop.f32.mrf.mxu0
        %v8408 = vadd.f32 %v8192, %v8407
        %v8409 = vpop.f32.mrf.mxu0
        %8410 = vmatprep.mubr.bf16.mxu0 0
        %8411 = vmatmul.mubr.bf16.gmra.mxu0 %v7999
        %v8412 = vpop.f32.mrf.mxu0
        %v8413 = vadd.f32 %v8197, %v8412
        %v8414 = vpop.f32.mrf.mxu0
        %v8415 = vpop.f32.mrf.mxu0
        %v8416 = vadd.f32 %v8200, %v8415
        %v8417 = vpop.f32.mrf.mxu0
        %8418 = vmatprep.mubr.bf16.mxu0 0
        %8419 = vmatmul.mubr.bf16.gmra.mxu0 %v8002
        %v8420 = vpop.f32.mrf.mxu0
        %v8421 = vadd.f32 %v8205, %v8420
        %v8422 = vpop.f32.mrf.mxu0
        %v8423 = vpop.f32.mrf.mxu0
        %v8424 = vadd.f32 %v8208, %v8423
        %v8425 = vpop.f32.mrf.mxu0
        %8426 = vmatprep.mubr.bf16.mxu0 0
        %8427 = vmatmul.mubr.bf16.gmra.mxu0 %v8005
        %v8428 = vpop.f32.mrf.mxu0
        %v8429 = vadd.f32 %v8213, %v8428
        %v8430 = vpop.f32.mrf.mxu0
        %v8431 = vpop.f32.mrf.mxu0
        %v8432 = vadd.f32 %v8216, %v8431
        %v8433 = vpop.f32.mrf.mxu0
        %8434 = vmatprep.mubr.bf16.mxu0 0
        %8435 = vmatmul.mubr.bf16.gmra.mxu0 %v8008
        %v8436 = vpop.f32.mrf.mxu0
        %v8437 = vadd.f32 %v8221, %v8436
        %v8438 = vpop.f32.mrf.mxu0
        %v8439 = vpop.f32.mrf.mxu0
        %v8440 = vpop.f32.mrf.mxu0
        %8441 = vdwg.mxu0
        %v8442 = vmax.f32 %v8261, 0.0
        %v8443 = vmax.f32 %v8264, 0.0
        %v8444 = vmax.f32 %v8269, 0.0
        %v8445 = vmax.f32 %v8272, 0.0
        %v8446 = vmax.f32 %v8277, 0.0
        %v8447 = vmax.f32 %v8280, 0.0
        %v8448 = vmax.f32 %v8285, 0.0
        %v8449 = vmax.f32 %v8288, 0.0
        %v8450 = vmax.f32 %v8293, 0.0
        %v8451 = vmax.f32 %v8296, 0.0
        %v8452 = vmax.f32 %v8301, 0.0
        %v8453 = vmax.f32 %v8304, 0.0
        %v8454 = vmax.f32 %v8309, 0.0
        %v8455 = vmax.f32 %v8312, 0.0
        %v8456 = vmax.f32 %v8317, 0.0
        %v8457 = vmax.f32 %v8320, 0.0
        %v8458 = vmax.f32 %v8325, 0.0
        %v8459 = vmax.f32 %v8328, 0.0
        %v8460 = vmax.f32 %v8333, 0.0
        %v8461 = vmax.f32 %v8336, 0.0
        %v8462 = vmax.f32 %v8341, 0.0
        %v8463 = vmax.f32 %v8344, 0.0
        %v8464 = vmax.f32 %v8349, 0.0
        %v8465 = vmax.f32 %v8352, 0.0
        %v8466 = vmax.f32 %v8357, 0.0
        %v8467 = vmax.f32 %v8360, 0.0
        %v8468 = vmax.f32 %v8365, 0.0
        %v8469 = vmax.f32 %v8368, 0.0
        %v8470 = vmax.f32 %v8373, 0.0
        %v8471 = vmax.f32 %v8376, 0.0
        %v8472 = vmax.f32 %v8381, 0.0
        %v8473 = vmax.f32 %v8384, 0.0
        %v8474 = vmax.f32 %v8389, 0.0
        %v8475 = vmax.f32 %v8392, 0.0
        %v8476 = vmax.f32 %v8397, 0.0
        %v8477 = vmax.f32 %v8400, 0.0
        %v8478 = vmax.f32 %v8405, 0.0
        %v8479 = vmax.f32 %v8408, 0.0
        %v8480 = vmax.f32 %v8413, 0.0
        %v8481 = vmax.f32 %v8416, 0.0
        %v8482 = vmax.f32 %v8421, 0.0
        %v8483 = vmax.f32 %v8424, 0.0
        %v8484 = vmax.f32 %v8429, 0.0
        %v8485 = vmax.f32 %v8432, 0.0
        %v8486 = vmax.f32 %v8437, 0.0
        %v8487 = vpack.c.bf16 %v8443, %v8442
        %v8488 = vpack.c.bf16 %v8445, %v8444
        %v8489 = vpack.c.bf16 %v8447, %v8446
        %v8490 = vpack.c.bf16 %v8449, %v8448
        %v8491 = vpack.c.bf16 %v8451, %v8450
        %v8492 = vpack.c.bf16 %v8453, %v8452
        %v8493 = vpack.c.bf16 %v8455, %v8454
        %v8494 = vpack.c.bf16 %v8457, %v8456
        %v8495 = vpack.c.bf16 %v8459, %v8458
        %v8496 = vpack.c.bf16 %v8461, %v8460
        %v8497 = vpack.c.bf16 %v8463, %v8462
        %v8498 = vpack.c.bf16 %v8465, %v8464
        %v8499 = vpack.c.bf16 %v8467, %v8466
        %v8500 = vpack.c.bf16 %v8469, %v8468
        %v8501 = vpack.c.bf16 %v8471, %v8470
        %v8502 = vpack.c.bf16 %v8473, %v8472
        %v8503 = vpack.c.bf16 %v8475, %v8474
        %v8504 = vpack.c.bf16 %v8477, %v8476
        %v8505 = vpack.c.bf16 %v8479, %v8478
        %v8506 = vpack.c.bf16 %v8481, %v8480
        %v8507 = vpack.c.bf16 %v8483, %v8482
        %v8508 = vpack.c.bf16 %v8485, %v8484
        %v8509 = vpack.c.bf16 %v8486, %v8486
        %v8533 = vunpack.c.l.b16 %v8487
        %v8534 = vunpack.c.h.b16 %v8487
        %v8535 = vunpack.c.l.b16 %v8488
        %v8536 = vunpack.c.h.b16 %v8488
        %v8537 = vunpack.c.l.b16 %v8489
        %v8538 = vunpack.c.h.b16 %v8489
        %v8539 = vunpack.c.l.b16 %v8490
        %v8540 = vunpack.c.h.b16 %v8490
        %v8541 = vunpack.c.l.b16 %v8491
        %v8542 = vunpack.c.h.b16 %v8491
        %v8543 = vunpack.c.l.b16 %v8492
        %v8544 = vunpack.c.h.b16 %v8492
        %v8545 = vunpack.c.l.b16 %v8493
        %v8546 = vunpack.c.h.b16 %v8493
        %v8547 = vunpack.c.l.b16 %v8494
        %v8548 = vunpack.c.h.b16 %v8494
        %v8549 = vunpack.c.l.b16 %v8495
        %v8550 = vunpack.c.h.b16 %v8495
        %v8551 = vunpack.c.l.b16 %v8496
        %v8552 = vunpack.c.h.b16 %v8496
        %v8553 = vunpack.c.l.b16 %v8497
        %v8554 = vunpack.c.h.b16 %v8497
        %v8555 = vunpack.c.l.b16 %v8498
        %v8556 = vunpack.c.h.b16 %v8498
        %v8557 = vunpack.c.l.b16 %v8499
        %v8558 = vunpack.c.h.b16 %v8499
        %v8559 = vunpack.c.l.b16 %v8500
        %v8560 = vunpack.c.h.b16 %v8500
        %v8561 = vunpack.c.l.b16 %v8501
        %v8562 = vunpack.c.h.b16 %v8501
        %v8563 = vunpack.c.l.b16 %v8502
        %v8564 = vunpack.c.h.b16 %v8502
        %v8565 = vunpack.c.l.b16 %v8503
        %v8566 = vunpack.c.h.b16 %v8503
        %v8567 = vunpack.c.l.b16 %v8504
        %v8568 = vunpack.c.h.b16 %v8504
        %v8569 = vunpack.c.l.b16 %v8505
        %v8570 = vunpack.c.h.b16 %v8505
        %v8571 = vunpack.c.l.b16 %v8506
        %v8572 = vunpack.c.h.b16 %v8506
        %v8573 = vunpack.c.l.b16 %v8507
        %v8574 = vunpack.c.h.b16 %v8507
        %v8575 = vunpack.c.l.b16 %v8508
        %v8576 = vunpack.c.h.b16 %v8508
        %v8577 = vunpack.c.l.b16 %v8509
        %v8578 = vpack.c.b16 %v8533, %v8533
        %v8579 = vpack.c.b16 %v8534, %v8534
        %v8580 = vpack.c.b16 %v8535, %v8535
        %v8581 = vpack.c.b16 %v8536, %v8536
        %v8582 = vpack.c.b16 %v8537, %v8537
        %v8583 = vpack.c.b16 %v8538, %v8538
        %v8584 = vpack.c.b16 %v8539, %v8539
        %v8585 = vpack.c.b16 %v8540, %v8540
        %v8586 = vpack.c.b16 %v8541, %v8541
        %v8587 = vpack.c.b16 %v8542, %v8542
        %v8588 = vpack.c.b16 %v8543, %v8543
        %v8589 = vpack.c.b16 %v8544, %v8544
        %v8590 = vpack.c.b16 %v8545, %v8545
        %v8591 = vpack.c.b16 %v8546, %v8546
        %v8592 = vpack.c.b16 %v8547, %v8547
        %v8593 = vpack.c.b16 %v8548, %v8548
        %v8594 = vpack.c.b16 %v8549, %v8549
        %v8595 = vpack.c.b16 %v8550, %v8550
        %v8596 = vpack.c.b16 %v8551, %v8551
        %v8597 = vpack.c.b16 %v8552, %v8552
        %v8598 = vpack.c.b16 %v8553, %v8553
        %v8599 = vpack.c.b16 %v8554, %v8554
        %v8600 = vpack.c.b16 %v8555, %v8555
        %v8601 = vpack.c.b16 %v8556, %v8556
        %v8602 = vpack.c.b16 %v8557, %v8557
        %v8603 = vpack.c.b16 %v8558, %v8558
        %v8604 = vpack.c.b16 %v8559, %v8559
        %v8605 = vpack.c.b16 %v8560, %v8560
        %v8606 = vpack.c.b16 %v8561, %v8561
        %v8607 = vpack.c.b16 %v8562, %v8562
        %v8608 = vpack.c.b16 %v8563, %v8563
        %v8609 = vpack.c.b16 %v8564, %v8564
        %v8610 = vpack.c.b16 %v8565, %v8565
        %v8611 = vpack.c.b16 %v8566, %v8566
        %v8612 = vpack.c.b16 %v8567, %v8567
        %v8613 = vpack.c.b16 %v8568, %v8568
        %v8614 = vpack.c.b16 %v8569, %v8569
        %v8615 = vpack.c.b16 %v8570, %v8570
        %v8616 = vpack.c.b16 %v8571, %v8571
        %v8617 = vpack.c.b16 %v8572, %v8572
        %v8618 = vpack.c.b16 %v8573, %v8573
        %v8619 = vpack.c.b16 %v8574, %v8574
        %v8620 = vpack.c.b16 %v8575, %v8575
        %v8621 = vpack.c.b16 %v8576, %v8576
        %v8622 = vpack.c.b16 %v8577, %v8577
        %vm8668 = vcmask 519168
        %8669 = vst.msk [vmem:[%s343] sm:$0xf] %vm8668, %v8578
        %8670 = vst.msk [vmem:[%s343 + $0x4] sm:$0xf] %vm8668, %v8579
        %8671 = vst.msk [vmem:[%s343 + $0x8] sm:$0xf] %vm8668, %v8580
        %8672 = vst.msk [vmem:[%s343 + $0xc] sm:$0xf] %vm8668, %v8581
        %8673 = vst.msk [vmem:[%s343 + $0x10] sm:$0xf] %vm8668, %v8582
        %8674 = vst.msk [vmem:[%s343 + $0x14] sm:$0xf] %vm8668, %v8583
        %8675 = vst.msk [vmem:[%s343 + $0x18] sm:$0xf] %vm8668, %v8584
        %8676 = vst.msk [vmem:[%s343 + $0x1c] sm:$0xf] %vm8668, %v8585
        %8677 = vst.msk [vmem:[%s343 + $0x20] sm:$0xf] %vm8668, %v8586
        %8678 = vst.msk [vmem:[%s343 + $0x24] sm:$0xf] %vm8668, %v8587
        %8679 = vst.msk [vmem:[%s343 + $0x28] sm:$0xf] %vm8668, %v8588
        %8680 = vst.msk [vmem:[%s343 + $0x2c] sm:$0xf] %vm8668, %v8589
        %8681 = vst.msk [vmem:[%s343 + $0x30] sm:$0xf] %vm8668, %v8590
        %8682 = vst.msk [vmem:[%s343 + $0x34] sm:$0xf] %vm8668, %v8591
        %8683 = vst.msk [vmem:[%s343 + $0x38] sm:$0xf] %vm8668, %v8592
        %8684 = vst.msk [vmem:[%s343 + $0x3c] sm:$0xf] %vm8668, %v8593
        %8685 = vst.msk [vmem:[%s343 + $0x40] sm:$0xf] %vm8668, %v8594
        %8686 = vst.msk [vmem:[%s343 + $0x44] sm:$0xf] %vm8668, %v8595
        %8687 = vst.msk [vmem:[%s343 + $0x48] sm:$0xf] %vm8668, %v8596
        %8688 = vst.msk [vmem:[%s343 + $0x4c] sm:$0xf] %vm8668, %v8597
        %8689 = vst.msk [vmem:[%s343 + $0x50] sm:$0xf] %vm8668, %v8598
        %8690 = vst.msk [vmem:[%s343 + $0x54] sm:$0xf] %vm8668, %v8599
        %8691 = vst.msk [vmem:[%s343 + $0x58] sm:$0xf] %vm8668, %v8600
        %8692 = vst.msk [vmem:[%s343 + $0x5c] sm:$0xf] %vm8668, %v8601
        %8693 = vst.msk [vmem:[%s343 + $0x60] sm:$0xf] %vm8668, %v8602
        %8694 = vst.msk [vmem:[%s343 + $0x64] sm:$0xf] %vm8668, %v8603
        %8695 = vst.msk [vmem:[%s343 + $0x68] sm:$0xf] %vm8668, %v8604
        %8696 = vst.msk [vmem:[%s343 + $0x6c] sm:$0xf] %vm8668, %v8605
        %8697 = vst.msk [vmem:[%s343 + $0x70] sm:$0xf] %vm8668, %v8606
        %8698 = vst.msk [vmem:[%s343 + $0x74] sm:$0xf] %vm8668, %v8607
        %8699 = vst.msk [vmem:[%s343 + $0x78] sm:$0xf] %vm8668, %v8608
        %8700 = vst.msk [vmem:[%s343 + $0x7c] sm:$0xf] %vm8668, %v8609
        %8701 = vst.msk [vmem:[%s343 + $0x80] sm:$0xf] %vm8668, %v8610
        %8702 = vst.msk [vmem:[%s343 + $0x84] sm:$0xf] %vm8668, %v8611
        %8703 = vst.msk [vmem:[%s343 + $0x88] sm:$0xf] %vm8668, %v8612
        %8704 = vst.msk [vmem:[%s343 + $0x8c] sm:$0xf] %vm8668, %v8613
        %8705 = vst.msk [vmem:[%s343 + $0x90] sm:$0xf] %vm8668, %v8614
        %8706 = vst.msk [vmem:[%s343 + $0x94] sm:$0xf] %vm8668, %v8615
        %8707 = vst.msk [vmem:[%s343 + $0x98] sm:$0xf] %vm8668, %v8616
        %8708 = vst.msk [vmem:[%s343 + $0x9c] sm:$0xf] %vm8668, %v8617
        %8709 = vst.msk [vmem:[%s343 + $0xa0] sm:$0xf] %vm8668, %v8618
        %8710 = vst.msk [vmem:[%s343 + $0xa4] sm:$0xf] %vm8668, %v8619
        %8711 = vst.msk [vmem:[%s343 + $0xa8] sm:$0xf] %vm8668, %v8620
        %8712 = vst.msk [vmem:[%s343 + $0xac] sm:$0xf] %vm8668, %v8621
        %8713 = vst.msk [vmem:[%s343 + $0xb0] sm:$0xf] %vm8668, %v8622
        %p8714 = scmp.lt.s32.totalorder %s21, 1
        %s8715 = scalar_select %p8714, %s21, 1
        %s8716 = smul.addr %s8715, 45
        %s8717 = smul.addr %s8716, 4
        %s8718 = scalar_lea.vmem %s8, %s8717
        // Predicated region
        $region65: #{policy_vpg_forward.2} parent=51 // pred_check
          %p8719 = pneg %p212
        $region66: #{policy_vpg_forward.2} parent=51 // pred_check_branch
          %8721 = sbr.rel (%p8719) target = $region68
        $region67: #{policy_vpg_forward.2} parent=51 // pred_region
          _
        $region68: #{policy_vpg_forward.2} parent=51 // pred_fallthru
          _
      $region52: #{policy_vpg_forward.2} parent=5 // pred_fallthru
        _
      %p8722 = scmp.le.s32.totalorder 2, %s16
      // Predicated region
      $region69: #{policy_vpg_forward.2} parent=5 // pred_check
        %p8723 = pneg %p8722
      $region70: #{policy_vpg_forward.2} parent=5 // pred_check_branch
        %8725 = sbr.rel (%p8723) target = $region72
      $region71: #{policy_vpg_forward.2} parent=5 // pred_region
        %s8726 = ssub.s32 %s16, 2
        // Predicated region
        $region73: #{policy_vpg_forward.2} parent=71 // pred_check
          %p8727 = pneg %p218
        $region74: #{policy_vpg_forward.2} parent=71 // pred_check_branch
          %8729 = sbr.rel (%p8727) target = $region76
        $region75: #{policy_vpg_forward.2} parent=71 // pred_region
          %p8730 = scmp.lt.s32.totalorder %s22, 1
          %s8731 = scalar_select %p8730, %s22, 1
          %s8732 = smul.addr %s8731, 45
          %s8733 = smul.addr %s8732, 4
          %s8734 = scalar_lea.vmem %s8, %s8733
        $region76: #{policy_vpg_forward.2} parent=71 // pred_fallthru
          _
      $region72: #{policy_vpg_forward.2} parent=5 // pred_fallthru
        _
    $region6: #{policy_vpg_forward.2} parent=1 // loop_footer
      %s20 = sadd.s32 1, %s16
    $region7: #{policy_vpg_forward.2} parent=1 // loop_footer_branch
      %15 = sbr.rel target = $region3
    $region8: #{policy_vpg_forward.2} parent=1 // loop_exit
      _
    %8735 = vsyncpa [#allocation5], 1
    %s8736 = scalar_lea.sflag [#allocation5], 1
    %8737 = vsyncpa %s8736, 1
    %8738 = vsyncpa [#allocation7], 1

</llo_original>
